<compile_context>
chip_gen: v5e
topology: v5e:2x2
jax: 0.10.0
libtpu: 0.0.40
codegen_flags: <defaults>
</compile_context>

<pallas_src>
import functools

import jax
import jax.numpy as jnp
from jax.experimental import pallas as pl
from jax.experimental.pallas import tpu as pltpu


def _round_up(x, m):
  return (x + m - 1) // m * m


# --------------------------------- kernel -----------------------------------

def _fused_forward_kernel(user_emb_ref, w0_ref, b0_ref, whead_ref, bhead_ref,
                          pleft_ref, pright_ref, small_ref, item_ref,
                          *, cf_seg, head12_w, item_num, item_mem_num,
                          item_emb_size):
  f32 = jnp.float32

  # Stage 1: one matmul -> [cf | 0-pad | hid1_pre | hid2_pre | hid3_pre | 0-pad]
  fused0 = jnp.dot(user_emb_ref[...], w0_ref[...],
                   preferred_element_type=f32) + b0_ref[...]
  hid = jnp.maximum(fused0[:, cf_seg:], 0.0)        # (tm, hid_w); pad cols stay 0

  # Stage 2: single block-diagonal head matmul
  #   head = [w1f | b1f | w2f | b2f | 0-pad || emb_left(m-major) | emb_right]
  head = jnp.dot(hid, whead_ref[...], preferred_element_type=f32) + bhead_ref[...]

  # Small-output slab: lane-dense, 128-aligned slice stores, no concat temp.
  small_ref[:, :head12_w] = head[:, :head12_w]
  small_ref[:, head12_w:] = fused0[:, :cf_seg]      # cf + already-zero pad lanes

  # item_embedding[b, n, e] = sum_m left[b, n, m] * right[b, m, e]
  # emitted as a lane-dense flat (tm, item_num*item_emb_size) slab. The per-m
  # repeat/tile broadcasts are done on the MXU with constant 0/1 expansion
  # matrices -> no reshapes, no tiny-K batched matmuls, no relayouted output.
  ne = item_num * item_emb_size
  nel = item_num * item_mem_num
  p_left = pleft_ref[...]
  p_right = pright_ref[...]
  acc = jnp.zeros((user_emb_ref.shape[0], ne), f32)
  for m in range(item_mem_num):                     # static unroll (8 iters)
    l_m = head[:, head12_w + m * item_num:
               head12_w + (m + 1) * item_num]                     # (tm, N)
    r_m = head[:, head12_w + nel + m * item_emb_size:
               head12_w + nel + (m + 1) * item_emb_size]          # (tm, E)
    acc = acc + (jnp.dot(l_m, p_left, preferred_element_type=f32) *
                 jnp.dot(r_m, p_right, preferred_element_type=f32))
  item_ref[...] = acc


# ----------------------------- weight packing --------------------------------

def pack_params(p, *, item_num, item_mem_num, item_emb_size):
  """One-time packing of per-layer [in,out] weights into fused layouts."""
  f32 = jnp.float32
  ue, dm = p['memory'].shape
  h = p['wh1'].shape[1]
  out1 = item_emb_size // 4
  n_w1, n_b1, n_w2, n_b2 = item_emb_size * out1, out1, out1, 1
  head12_w = _round_up(n_w1 + n_b1 + n_w2 + n_b2, 128)
  cf_seg = _round_up(dm, 128)
  hid_w = _round_up(3 * h, 128)
  nel = item_num * item_mem_num
  ner = item_mem_num * item_emb_size
  head_w = head12_w + _round_up(nel + ner, 128)

  # Stage-1 weight: [memory | 0 | memory @ [wh1|wh2|wh3] | 0]   (ue, cf_seg+hid_w)
  wh_cat = jnp.concatenate([p['wh1'], p['wh2'], p['wh3']], axis=1)
  bh_cat = jnp.concatenate([p['bh1'], p['bh2'], p['bh3']], axis=1)
  w0 = jnp.zeros((ue, cf_seg + hid_w), f32)
  w0 = w0.at[:, :dm].set(p['memory'])
  w0 = w0.at[:, cf_seg:cf_seg + 3 * h].set(p['memory'] @ wh_cat)
  b0 = jnp.zeros((1, cf_seg + hid_w), f32)
  b0 = b0.at[:, cf_seg:cf_seg + 3 * h].set(bh_cat)

  # Block-diagonal head weight covering all five output heads.
  whead = jnp.zeros((hid_w, head_w), f32)
  bhead = jnp.zeros((1, head_w), f32)
  c = 0
  whead = whead.at[0:h, c:c + n_w1].set(p['ww1'])
  bhead = bhead.at[:, c:c + n_w1].set(p['bw1']); c += n_w1
  whead = whead.at[0:h, c:c + n_b1].set(p['wb1'])
  bhead = bhead.at[:, c:c + n_b1].set(p['bb1']); c += n_b1
  whead = whead.at[h:2 * h, c:c + n_w2].set(p['ww2'])
  bhead = bhead.at[:, c:c + n_w2].set(p['bw2']); c += n_w2
  whead = whead.at[h:2 * h, c:c + n_b2].set(p['wb2'])
  bhead = bhead.at[:, c:c + n_b2].set(p['bb2'])

  # emb_left head repacked m-major (transposed flatten) so per-m slices of the
  # head output are contiguous lane slices, no in-kernel reshape needed.
  we1_t = p['we1'].reshape(h, item_num, item_mem_num).transpose(0, 2, 1)
  we1_t = we1_t.reshape(h, nel)
  be1_t = p['be1'].reshape(1, item_num, item_mem_num).transpose(0, 2, 1)
  be1_t = be1_t.reshape(1, nel)
  whead = whead.at[2 * h:3 * h, head12_w:head12_w + nel].set(we1_t)
  bhead = bhead.at[:, head12_w:head12_w + nel].set(be1_t)
  whead = whead.at[2 * h:3 * h,
                   head12_w + nel:head12_w + nel + ner].set(p['we2'])
  bhead = bhead.at[:, head12_w + nel:head12_w + nel + ner].set(p['be2'])

  # Constant 0/1 expansion matrices for the per-m outer-product accumulation:
  #   p_left[n, n*E + e] = 1  (repeat each left value E times along lanes)
  #   p_right[e, n*E + e] = 1 (tile right values N times along lanes)
  p_left = jnp.kron(jnp.eye(item_num, dtype=f32),
                    jnp.ones((1, item_emb_size), f32))
  p_right = jnp.tile(jnp.eye(item_emb_size, dtype=f32), (1, item_num))

  return {'user_embedding': p['user_embedding'], 'w0': w0, 'b0': b0,
          'whead': whead, 'bhead': bhead, 'p_left': p_left, 'p_right': p_right}


# ------------------------------ Python wrapper -------------------------------

def meta_recommender_forward(user_id, packed, *, item_num, item_mem_num,
                             item_emb_size, domain_mem):
  f32 = jnp.float32
  # nn.Embedding row gather stays in XLA: folding it in via scalar prefetch
  # would force a row-per-step grid and defeat batch tiling.
  user_emb = packed['user_embedding'][user_id]                   # (B, ue)
  B, ue = user_emb.shape

  out1 = item_emb_size // 4
  n_w1, n_b1, n_w2, n_b2 = item_emb_size * out1, out1, out1, 1
  head12_w = _round_up(n_w1 + n_b1 + n_w2 + n_b2, 128)
  cf_seg = _round_up(domain_mem, 128)
  w0_cols = packed['w0'].shape[1]
  hid_w = w0_cols - cf_seg
  head_w = packed['whead'].shape[1]
  ne = item_num * item_emb_size
  small_w = head12_w + cf_seg

  # Batch tiling: 128-row MXU-sized tiles; B >= 256 gives >= 2 grid steps so
  # the parallel axis shards across v7x's two TensorCores. Odd/large batches
  # are padded to a 128 multiple instead of becoming one huge VMEM block.
  if B >= 128:
    tm = 128
    Bp = _round_up(B, 128)
  else:
    tm = B
    Bp = B
  if Bp != B:
    user_emb = jnp.pad(user_emb, ((0, Bp - B), (0, 0)))
  grid = (Bp // tm,)

  kernel = functools.partial(
      _fused_forward_kernel, cf_seg=cf_seg, head12_w=head12_w,
      item_num=item_num, item_mem_num=item_mem_num,
      item_emb_size=item_emb_size)

  const = lambda i: (0, 0)   # weights: same block every grid step (resident)
  flops = 2 * Bp * (ue * w0_cols + hid_w * head_w
                    + item_mem_num * (item_num + item_emb_size) * ne)
  bytes_accessed = 4 * (Bp * (ue + small_w + ne)
                        + (ue + 1) * w0_cols + (hid_w + 1) * head_w
                        + (item_num + item_emb_size) * ne)

  small, item_flat = pl.pallas_call(
      kernel,
      grid=grid,
      in_specs=[
          pl.BlockSpec((tm, ue), lambda i: (i, 0)),      # user_emb (batch tiled)
          pl.BlockSpec((ue, w0_cols), const),            # w0 (memory folded in)
          pl.BlockSpec((1, w0_cols), const),             # b0
          pl.BlockSpec((hid_w, head_w), const),          # whead (block-diag)
          pl.BlockSpec((1, head_w), const),              # bhead
          pl.BlockSpec((item_num, ne), const),           # p_left expansion
          pl.BlockSpec((item_emb_size, ne), const),      # p_right expansion
      ],
      out_specs=(
          pl.BlockSpec((tm, small_w), lambda i: (i, 0)),
          pl.BlockSpec((tm, ne), lambda i: (i, 0)),      # lane-dense item slab
      ),
      out_shape=(
          jax.ShapeDtypeStruct((Bp, small_w), f32),
          jax.ShapeDtypeStruct((Bp, ne), f32),
      ),
      compiler_params=pltpu.CompilerParams(
          dimension_semantics=("parallel",),
          vmem_limit_bytes=32 * 1024 * 1024),
      cost_estimate=pl.CostEstimate(flops=flops, transcendentals=0,
                                    bytes_accessed=bytes_accessed),
  )(user_emb, packed['w0'], packed['b0'], packed['whead'], packed['bhead'],
    packed['p_left'], packed['p_right'])

  # Slice the lane-dense slabs back to PyTorch-shaped outputs (plain XLA glue).
  small = small[:B]
  item_embedding = item_flat[:B].reshape(B, item_num, item_emb_size)
  o = 0
  weight1 = small[:, o:o + n_w1].reshape(B, item_emb_size, out1); o += n_w1
  bias1 = small[:, o:o + n_b1].reshape(B, 1, out1); o += n_b1
  weight2 = small[:, o:o + n_w2].reshape(B, out1, 1); o += n_w2
  bias2 = small[:, o:o + n_b2].reshape(B, 1, 1)
  cf = small[:, head12_w:head12_w + domain_mem]
  return [weight1, weight2], [bias1, bias2], item_embedding, cf


# --------------------------- parameter construction --------------------------

def init_params(key, *, user_num, item_num, item_emb_size, item_mem_num,
                user_emb_size, domain_mem, hidden_size):
  """Deterministic synthetic parameters (weights stored as [in, out])."""
  ks = iter(jax.random.split(key, 32))

  def mat(shape, scale=0.05):
    return (scale * jax.random.normal(next(ks), shape)).astype(jnp.float32)

  p = {}
  p['user_embedding'] = mat((user_num, user_emb_size), 0.1)
  p['memory'] = mat((user_emb_size, domain_mem), 0.1)

  def linear(in_f, out_f):
    return mat((in_f, out_f)), mat((1, out_f))

  out1 = item_emb_size // 4
  p['wh1'], p['bh1'] = linear(domain_mem, hidden_size)
  p['ww1'], p['bw1'] = linear(hidden_size, item_emb_size * out1)
  p['wb1'], p['bb1'] = linear(hidden_size, out1)
  p['wh2'], p['bh2'] = linear(domain_mem, hidden_size)
  p['ww2'], p['bw2'] = linear(hidden_size, out1 * 1)
  p['wb2'], p['bb2'] = linear(hidden_size, 1)
  p['wh3'], p['bh3'] = linear(domain_mem, hidden_size)
  p['we1'], p['be1'] = linear(hidden_size, item_num * item_mem_num)
  p['we2'], p['be2'] = linear(hidden_size, item_mem_num * item_emb_size)
  return p


# ------------------------------ pure-JAX reference ---------------------------

def reference_forward(user_id, p, *, item_num, item_mem_num, item_emb_size):
  user_emb = p['user_embedding'][user_id]
  cf = user_emb @ p['memory']
  B = cf.shape[0]

  def one_layer(wh, bh, ww, bw, wb, bb, int_size, out_size):
    hid = jax.nn.relu(cf @ wh + bh)
    w = (hid @ ww + bw).reshape(B, int_size, out_size)
    b = (hid @ wb + bb).reshape(B, 1, out_size)
    return w, b

  w1, b1 = one_layer(p['wh1'], p['bh1'], p['ww1'], p['bw1'], p['wb1'], p['bb1'],
                     item_emb_size, item_emb_size // 4)
  w2, b2 = one_layer(p['wh2'], p['bh2'], p['ww2'], p['bw2'], p['wb2'], p['bb2'],
                     item_emb_size // 4, 1)
  hid3 = jax.nn.relu(cf @ p['wh3'] + p['bh3'])
  el = (hid3 @ p['we1'] + p['be1']).reshape(B, item_num, item_mem_num)
  er = (hid3 @ p['we2'] + p['be2']).reshape(B, item_mem_num, item_emb_size)
  item_embedding = jnp.einsum('bnm,bme->bne', el, er)
  return [w1, w2], [b1, b2], item_embedding, cf


# ----------------------------------- main ------------------------------------

if __name__ == "__main__":
  user_num = 16
  item_num = 64
  item_emb_size = 32
  item_mem_num = 8
  user_emb_size = 32
  domain_mem = 64
  hidden_size = 64
  batch = 8

  key = jax.random.PRNGKey(0)
  pkey, ukey = jax.random.split(key)
  params = init_params(pkey, user_num=user_num, item_num=item_num,
                       item_emb_size=item_emb_size, item_mem_num=item_mem_num,
                       user_emb_size=user_emb_size, domain_mem=domain_mem,
                       hidden_size=hidden_size)
  user_id = jax.random.randint(ukey, (batch,), 0, user_num, dtype=jnp.int32)

  packed = pack_params(params, item_num=item_num, item_mem_num=item_mem_num,
                       item_emb_size=item_emb_size)   # one-time packing

  fwd = jax.jit(functools.partial(
      meta_recommender_forward, item_num=item_num, item_mem_num=item_mem_num,
      item_emb_size=item_emb_size, domain_mem=domain_mem))
  weights, biases, item_embedding, cf_vec = fwd(user_id, packed)
  jax.block_until_ready((weights, biases, item_embedding, cf_vec))

  rw, rb, ritem, rcf = reference_forward(
      user_id, params, item_num=item_num, item_mem_num=item_mem_num,
      item_emb_size=item_emb_size)

  assert weights[0].shape == (batch, item_emb_size, item_emb_size // 4)
  assert weights[1].shape == (batch, item_emb_size // 4, 1)
  assert biases[0].shape == (batch, 1, item_emb_size // 4)
  assert biases[1].shape == (batch, 1, 1)
  assert item_embedding.shape == (batch, item_num, item_emb_size)
  assert cf_vec.shape == (batch, domain_mem)

  for a, b in zip(weights + biases + [item_embedding, cf_vec],
                  rw + rb + [ritem, rcf]):
    assert jnp.allclose(a, b, atol=1e-4, rtol=1e-4), "mismatch vs reference"

  print("KERNEL_OK")
</pallas_src>

<mosaic_0001>
module attributes {stable_mosaic.version = 11 : i64} {
  func.func @_fused_forward_kernel(%arg0: i32, %arg1: memref<8x32xf32, #tpu.memory_space<vmem>>, %arg2: memref<32x384xf32, #tpu.memory_space<vmem>>, %arg3: memref<1x384xf32, #tpu.memory_space<vmem>>, %arg4: memref<256x1152xf32, #tpu.memory_space<vmem>>, %arg5: memref<1x1152xf32, #tpu.memory_space<vmem>>, %arg6: memref<64x2048xf32, #tpu.memory_space<vmem>>, %arg7: memref<32x2048xf32, #tpu.memory_space<vmem>>, %arg8: memref<8x512xf32, #tpu.memory_space<vmem>>, %arg9: memref<8x2048xf32, #tpu.memory_space<vmem>>) attributes {dimension_semantics = [#tpu.dimension_semantics<parallel>], iteration_bounds = array<i64: 1>, scalar_prefetch = 0 : i64, scratch_operands = 0 : i64, tpu.core_type = #tpu.core_type<tc>, window_params = [{transform_indices = @transform_0, window_bounds = array<i64: 8, 32>}, {pipeline_mode = #tpu.pipeline_mode<synchronous>, transform_indices = @transform_1, window_bounds = array<i64: 32, 384>}, {pipeline_mode = #tpu.pipeline_mode<synchronous>, transform_indices = @transform_2, window_bounds = array<i64: 1, 384>}, {pipeline_mode = #tpu.pipeline_mode<synchronous>, transform_indices = @transform_3, window_bounds = array<i64: 256, 1152>}, {pipeline_mode = #tpu.pipeline_mode<synchronous>, transform_indices = @transform_4, window_bounds = array<i64: 1, 1152>}, {pipeline_mode = #tpu.pipeline_mode<synchronous>, transform_indices = @transform_5, window_bounds = array<i64: 64, 2048>}, {pipeline_mode = #tpu.pipeline_mode<synchronous>, transform_indices = @transform_6, window_bounds = array<i64: 32, 2048>}, {transform_indices = @transform_7, window_bounds = array<i64: 8, 512>}, {transform_indices = @transform_8, window_bounds = array<i64: 8, 2048>}]} {
    %c0 = arith.constant 0 : index
    %c0_0 = arith.constant 0 : index
    %0 = vector.load %arg1[%c0, %c0_0] : memref<8x32xf32, #tpu.memory_space<vmem>>, vector<8x32xf32>
    %c0_1 = arith.constant 0 : index
    %c0_2 = arith.constant 0 : index
    %1 = vector.load %arg2[%c0_1, %c0_2] : memref<32x384xf32, #tpu.memory_space<vmem>>, vector<32x384xf32>
    %cst = arith.constant dense<0.000000e+00> : vector<8x384xf32>
    %2 = tpu.matmul %0, %1, %cst {dimension_numbers = #tpu.dot_dimension_numbers<[1], [0], [0], [1], [0, 0, 1, 1], [], []>} : vector<8x32xf32>, vector<32x384xf32>, vector<8x384xf32> -> vector<8x384xf32>
    %c0_3 = arith.constant 0 : index
    %c0_4 = arith.constant 0 : index
    %3 = vector.load %arg3[%c0_3, %c0_4] : memref<1x384xf32, #tpu.memory_space<vmem>>, vector<1x384xf32>
    %4 = vector.broadcast %3 : vector<1x384xf32> to vector<8x384xf32>
    %5 = arith.addf %2, %4 : vector<8x384xf32>
    %6 = vector.extract_strided_slice %5 {offsets = [0, 128], sizes = [8, 256], strides = [1, 1]} : vector<8x384xf32> to vector<8x256xf32>
    %cst_5 = arith.constant 0.000000e+00 : f32
    %7 = vector.broadcast %cst_5 : f32 to vector<8x256xf32>
    %8 = arith.maximumf %6, %7 : vector<8x256xf32>
    %c0_6 = arith.constant 0 : index
    %c0_7 = arith.constant 0 : index
    %9 = vector.load %arg4[%c0_6, %c0_7] : memref<256x1152xf32, #tpu.memory_space<vmem>>, vector<256x1152xf32>
    %cst_8 = arith.constant dense<0.000000e+00> : vector<8x1152xf32>
    %10 = tpu.matmul %8, %9, %cst_8 {dimension_numbers = #tpu.dot_dimension_numbers<[1], [0], [0], [1], [0, 0, 1, 1], [], []>} : vector<8x256xf32>, vector<256x1152xf32>, vector<8x1152xf32> -> vector<8x1152xf32>
    %c0_9 = arith.constant 0 : index
    %c0_10 = arith.constant 0 : index
    %11 = vector.load %arg5[%c0_9, %c0_10] : memref<1x1152xf32, #tpu.memory_space<vmem>>, vector<1x1152xf32>
    %12 = vector.broadcast %11 : vector<1x1152xf32> to vector<8x1152xf32>
    %13 = arith.addf %10, %12 : vector<8x1152xf32>
    %14 = vector.extract_strided_slice %13 {offsets = [0, 0], sizes = [8, 384], strides = [1, 1]} : vector<8x1152xf32> to vector<8x384xf32>
    %c0_11 = arith.constant 0 : index
    %c0_12 = arith.constant 0 : index
    %15 = vector.load %arg8[%c0_11, %c0_12] : memref<8x512xf32, #tpu.memory_space<vmem>>, vector<8x384xf32>
    tpu.vector_store %arg8[%c0_11, %c0_12], %14 {strides = array<i32>} : memref<8x512xf32, #tpu.memory_space<vmem>>, vector<8x384xf32>,
    %16 = vector.extract_strided_slice %5 {offsets = [0, 0], sizes = [8, 128], strides = [1, 1]} : vector<8x384xf32> to vector<8x128xf32>
    %c0_13 = arith.constant 0 : index
    %c384 = arith.constant 384 : index
    %17 = vector.load %arg8[%c0_13, %c384] : memref<8x512xf32, #tpu.memory_space<vmem>>, vector<8x128xf32>
    tpu.vector_store %arg8[%c0_13, %c384], %16 {strides = array<i32>} : memref<8x512xf32, #tpu.memory_space<vmem>>, vector<8x128xf32>,
    %c0_14 = arith.constant 0 : index
    %c0_15 = arith.constant 0 : index
    %18 = vector.load %arg6[%c0_14, %c0_15] : memref<64x2048xf32, #tpu.memory_space<vmem>>, vector<64x2048xf32>
    %c0_16 = arith.constant 0 : index
    %c0_17 = arith.constant 0 : index
    %19 = vector.load %arg7[%c0_16, %c0_17] : memref<32x2048xf32, #tpu.memory_space<vmem>>, vector<32x2048xf32>
    %cst_18 = arith.constant 0.000000e+00 : f32
    %20 = vector.broadcast %cst_18 : f32 to vector<8x2048xf32>
    %21 = vector.extract_strided_slice %13 {offsets = [0, 384], sizes = [8, 64], strides = [1, 1]} : vector<8x1152xf32> to vector<8x64xf32>
    %22 = vector.extract_strided_slice %13 {offsets = [0, 896], sizes = [8, 32], strides = [1, 1]} : vector<8x1152xf32> to vector<8x32xf32>
    %cst_19 = arith.constant dense<0.000000e+00> : vector<8x2048xf32>
    %23 = tpu.matmul %21, %18, %cst_19 {dimension_numbers = #tpu.dot_dimension_numbers<[1], [0], [0], [1], [0, 0, 1, 1], [], []>} : vector<8x64xf32>, vector<64x2048xf32>, vector<8x2048xf32> -> vector<8x2048xf32>
    %cst_20 = arith.constant dense<0.000000e+00> : vector<8x2048xf32>
    %24 = tpu.matmul %22, %19, %cst_20 {dimension_numbers = #tpu.dot_dimension_numbers<[1], [0], [0], [1], [0, 0, 1, 1], [], []>} : vector<8x32xf32>, vector<32x2048xf32>, vector<8x2048xf32> -> vector<8x2048xf32>
    %25 = arith.mulf %23, %24 : vector<8x2048xf32>
    %26 = arith.addf %20, %25 : vector<8x2048xf32>
    %27 = vector.extract_strided_slice %13 {offsets = [0, 448], sizes = [8, 64], strides = [1, 1]} : vector<8x1152xf32> to vector<8x64xf32>
    %28 = vector.extract_strided_slice %13 {offsets = [0, 928], sizes = [8, 32], strides = [1, 1]} : vector<8x1152xf32> to vector<8x32xf32>
    %cst_21 = arith.constant dense<0.000000e+00> : vector<8x2048xf32>
    %29 = tpu.matmul %27, %18, %cst_21 {dimension_numbers = #tpu.dot_dimension_numbers<[1], [0], [0], [1], [0, 0, 1, 1], [], []>} : vector<8x64xf32>, vector<64x2048xf32>, vector<8x2048xf32> -> vector<8x2048xf32>
    %cst_22 = arith.constant dense<0.000000e+00> : vector<8x2048xf32>
    %30 = tpu.matmul %28, %19, %cst_22 {dimension_numbers = #tpu.dot_dimension_numbers<[1], [0], [0], [1], [0, 0, 1, 1], [], []>} : vector<8x32xf32>, vector<32x2048xf32>, vector<8x2048xf32> -> vector<8x2048xf32>
    %31 = arith.mulf %29, %30 : vector<8x2048xf32>
    %32 = arith.addf %26, %31 : vector<8x2048xf32>
    %33 = vector.extract_strided_slice %13 {offsets = [0, 512], sizes = [8, 64], strides = [1, 1]} : vector<8x1152xf32> to vector<8x64xf32>
    %34 = vector.extract_strided_slice %13 {offsets = [0, 960], sizes = [8, 32], strides = [1, 1]} : vector<8x1152xf32> to vector<8x32xf32>
    %cst_23 = arith.constant dense<0.000000e+00> : vector<8x2048xf32>
    %35 = tpu.matmul %33, %18, %cst_23 {dimension_numbers = #tpu.dot_dimension_numbers<[1], [0], [0], [1], [0, 0, 1, 1], [], []>} : vector<8x64xf32>, vector<64x2048xf32>, vector<8x2048xf32> -> vector<8x2048xf32>
    %cst_24 = arith.constant dense<0.000000e+00> : vector<8x2048xf32>
    %36 = tpu.matmul %34, %19, %cst_24 {dimension_numbers = #tpu.dot_dimension_numbers<[1], [0], [0], [1], [0, 0, 1, 1], [], []>} : vector<8x32xf32>, vector<32x2048xf32>, vector<8x2048xf32> -> vector<8x2048xf32>
    %37 = arith.mulf %35, %36 : vector<8x2048xf32>
    %38 = arith.addf %32, %37 : vector<8x2048xf32>
    %39 = vector.extract_strided_slice %13 {offsets = [0, 576], sizes = [8, 64], strides = [1, 1]} : vector<8x1152xf32> to vector<8x64xf32>
    %40 = vector.extract_strided_slice %13 {offsets = [0, 992], sizes = [8, 32], strides = [1, 1]} : vector<8x1152xf32> to vector<8x32xf32>
    %cst_25 = arith.constant dense<0.000000e+00> : vector<8x2048xf32>
    %41 = tpu.matmul %39, %18, %cst_25 {dimension_numbers = #tpu.dot_dimension_numbers<[1], [0], [0], [1], [0, 0, 1, 1], [], []>} : vector<8x64xf32>, vector<64x2048xf32>, vector<8x2048xf32> -> vector<8x2048xf32>
    %cst_26 = arith.constant dense<0.000000e+00> : vector<8x2048xf32>
    %42 = tpu.matmul %40, %19, %cst_26 {dimension_numbers = #tpu.dot_dimension_numbers<[1], [0], [0], [1], [0, 0, 1, 1], [], []>} : vector<8x32xf32>, vector<32x2048xf32>, vector<8x2048xf32> -> vector<8x2048xf32>
    %43 = arith.mulf %41, %42 : vector<8x2048xf32>
    %44 = arith.addf %38, %43 : vector<8x2048xf32>
    %45 = vector.extract_strided_slice %13 {offsets = [0, 640], sizes = [8, 64], strides = [1, 1]} : vector<8x1152xf32> to vector<8x64xf32>
    %46 = vector.extract_strided_slice %13 {offsets = [0, 1024], sizes = [8, 32], strides = [1, 1]} : vector<8x1152xf32> to vector<8x32xf32>
    %cst_27 = arith.constant dense<0.000000e+00> : vector<8x2048xf32>
    %47 = tpu.matmul %45, %18, %cst_27 {dimension_numbers = #tpu.dot_dimension_numbers<[1], [0], [0], [1], [0, 0, 1, 1], [], []>} : vector<8x64xf32>, vector<64x2048xf32>, vector<8x2048xf32> -> vector<8x2048xf32>
    %cst_28 = arith.constant dense<0.000000e+00> : vector<8x2048xf32>
    %48 = tpu.matmul %46, %19, %cst_28 {dimension_numbers = #tpu.dot_dimension_numbers<[1], [0], [0], [1], [0, 0, 1, 1], [], []>} : vector<8x32xf32>, vector<32x2048xf32>, vector<8x2048xf32> -> vector<8x2048xf32>
    %49 = arith.mulf %47, %48 : vector<8x2048xf32>
    %50 = arith.addf %44, %49 : vector<8x2048xf32>
    %51 = vector.extract_strided_slice %13 {offsets = [0, 704], sizes = [8, 64], strides = [1, 1]} : vector<8x1152xf32> to vector<8x64xf32>
    %52 = vector.extract_strided_slice %13 {offsets = [0, 1056], sizes = [8, 32], strides = [1, 1]} : vector<8x1152xf32> to vector<8x32xf32>
    %cst_29 = arith.constant dense<0.000000e+00> : vector<8x2048xf32>
    %53 = tpu.matmul %51, %18, %cst_29 {dimension_numbers = #tpu.dot_dimension_numbers<[1], [0], [0], [1], [0, 0, 1, 1], [], []>} : vector<8x64xf32>, vector<64x2048xf32>, vector<8x2048xf32> -> vector<8x2048xf32>
    %cst_30 = arith.constant dense<0.000000e+00> : vector<8x2048xf32>
    %54 = tpu.matmul %52, %19, %cst_30 {dimension_numbers = #tpu.dot_dimension_numbers<[1], [0], [0], [1], [0, 0, 1, 1], [], []>} : vector<8x32xf32>, vector<32x2048xf32>, vector<8x2048xf32> -> vector<8x2048xf32>
    %55 = arith.mulf %53, %54 : vector<8x2048xf32>
    %56 = arith.addf %50, %55 : vector<8x2048xf32>
    %57 = vector.extract_strided_slice %13 {offsets = [0, 768], sizes = [8, 64], strides = [1, 1]} : vector<8x1152xf32> to vector<8x64xf32>
    %58 = vector.extract_strided_slice %13 {offsets = [0, 1088], sizes = [8, 32], strides = [1, 1]} : vector<8x1152xf32> to vector<8x32xf32>
    %cst_31 = arith.constant dense<0.000000e+00> : vector<8x2048xf32>
    %59 = tpu.matmul %57, %18, %cst_31 {dimension_numbers = #tpu.dot_dimension_numbers<[1], [0], [0], [1], [0, 0, 1, 1], [], []>} : vector<8x64xf32>, vector<64x2048xf32>, vector<8x2048xf32> -> vector<8x2048xf32>
    %cst_32 = arith.constant dense<0.000000e+00> : vector<8x2048xf32>
    %60 = tpu.matmul %58, %19, %cst_32 {dimension_numbers = #tpu.dot_dimension_numbers<[1], [0], [0], [1], [0, 0, 1, 1], [], []>} : vector<8x32xf32>, vector<32x2048xf32>, vector<8x2048xf32> -> vector<8x2048xf32>
    %61 = arith.mulf %59, %60 : vector<8x2048xf32>
    %62 = arith.addf %56, %61 : vector<8x2048xf32>
    %63 = vector.extract_strided_slice %13 {offsets = [0, 832], sizes = [8, 64], strides = [1, 1]} : vector<8x1152xf32> to vector<8x64xf32>
    %64 = vector.extract_strided_slice %13 {offsets = [0, 1120], sizes = [8, 32], strides = [1, 1]} : vector<8x1152xf32> to vector<8x32xf32>
    %cst_33 = arith.constant dense<0.000000e+00> : vector<8x2048xf32>
    %65 = tpu.matmul %63, %18, %cst_33 {dimension_numbers = #tpu.dot_dimension_numbers<[1], [0], [0], [1], [0, 0, 1, 1], [], []>} : vector<8x64xf32>, vector<64x2048xf32>, vector<8x2048xf32> -> vector<8x2048xf32>
    %cst_34 = arith.constant dense<0.000000e+00> : vector<8x2048xf32>
    %66 = tpu.matmul %64, %19, %cst_34 {dimension_numbers = #tpu.dot_dimension_numbers<[1], [0], [0], [1], [0, 0, 1, 1], [], []>} : vector<8x32xf32>, vector<32x2048xf32>, vector<8x2048xf32> -> vector<8x2048xf32>
    %67 = arith.mulf %65, %66 : vector<8x2048xf32>
    %68 = arith.addf %62, %67 : vector<8x2048xf32>
    %c0_35 = arith.constant 0 : index
    %c0_36 = arith.constant 0 : index
    %69 = vector.load %arg9[%c0_35, %c0_36] : memref<8x2048xf32, #tpu.memory_space<vmem>>, vector<8x2048xf32>
    tpu.vector_store %arg9[%c0_35, %c0_36], %68 {strides = array<i32>} : memref<8x2048xf32, #tpu.memory_space<vmem>>, vector<8x2048xf32>,
    return
  }
  func.func @transform_0(%arg0: i32) -> (i32, i32) {
    %c0_i32 = arith.constant 0 : i32
    %c0_i32_0 = arith.constant 0 : i32
    return %arg0, %c0_i32 : i32, i32
  }
  func.func @transform_1(%arg0: i32) -> (i32, i32) {
    %c0_i32 = arith.constant 0 : i32
    %c0_i32_0 = arith.constant 0 : i32
    %c0_i32_1 = arith.constant 0 : i32
    return %c0_i32, %c0_i32_0 : i32, i32
  }
  func.func @transform_2(%arg0: i32) -> (i32, i32) {
    %c0_i32 = arith.constant 0 : i32
    %c0_i32_0 = arith.constant 0 : i32
    %c0_i32_1 = arith.constant 0 : i32
    return %c0_i32, %c0_i32_0 : i32, i32
  }
  func.func @transform_3(%arg0: i32) -> (i32, i32) {
    %c0_i32 = arith.constant 0 : i32
    %c0_i32_0 = arith.constant 0 : i32
    %c0_i32_1 = arith.constant 0 : i32
    return %c0_i32, %c0_i32_0 : i32, i32
  }
  func.func @transform_4(%arg0: i32) -> (i32, i32) {
    %c0_i32 = arith.constant 0 : i32
    %c0_i32_0 = arith.constant 0 : i32
    %c0_i32_1 = arith.constant 0 : i32
    return %c0_i32, %c0_i32_0 : i32, i32
  }
  func.func @transform_5(%arg0: i32) -> (i32, i32) {
    %c0_i32 = arith.constant 0 : i32
    %c0_i32_0 = arith.constant 0 : i32
    %c0_i32_1 = arith.constant 0 : i32
    return %c0_i32, %c0_i32_0 : i32, i32
  }
  func.func @transform_6(%arg0: i32) -> (i32, i32) {
    %c0_i32 = arith.constant 0 : i32
    %c0_i32_0 = arith.constant 0 : i32
    %c0_i32_1 = arith.constant 0 : i32
    return %c0_i32, %c0_i32_0 : i32, i32
  }
  func.func @transform_7(%arg0: i32) -> (i32, i32) {
    %c0_i32 = arith.constant 0 : i32
    %c0_i32_0 = arith.constant 0 : i32
    return %arg0, %c0_i32 : i32, i32
  }
  func.func @transform_8(%arg0: i32) -> (i32, i32) {
    %c0_i32 = arith.constant 0 : i32
    %c0_i32_0 = arith.constant 0 : i32
    return %arg0, %c0_i32 : i32, i32
  }
}

</mosaic_0001>

<llo_original>
// kernel: meta_recommender_forward.1
$region0: #{meta_recommender_forward.1}
  #allocation0 [shape = 'u32[]', space=smem, size = 0x4, offset = 0x4, fixed_abs, tag = 'smem constant byte address 0x4 - core index']
  #allocation1 [shape = 'u32[72,128]{1,0:T(1,128)}', space=vmem, size = 0x9000, scoped, tag = 'internal scratch']
  %s0 = inlined_call_operand.vmem [shape: f32[8,32], index: 0, kind: input, shape index: {}]
  %s1 = inlined_call_operand.hbm [shape: f32[32,384], index: 1, kind: input, shape index: {}]
  %s2 = inlined_call_operand.hbm [shape: f32[1,384], index: 2, kind: input, shape index: {}]
  %s3 = inlined_call_operand.hbm [shape: f32[256,1152], index: 3, kind: input, shape index: {}]
  %s4 = inlined_call_operand.hbm [shape: f32[1,1152], index: 4, kind: input, shape index: {}]
  %s5 = inlined_call_operand.hbm [shape: f32[64,2048], index: 5, kind: input, shape index: {}]
  %s6 = inlined_call_operand.hbm [shape: f32[32,2048], index: 6, kind: input, shape index: {}]
  %s7 = inlined_call_operand.vmem [shape: f32[8,512], index: 7, kind: output, shape index: {0}]
  %s8 = inlined_call_operand.vmem [shape: f32[8,2048], index: 8, kind: output, shape index: {1}]
  %9 = xla_tuple %s7, %s8
  %s10 = sld [smem:[#allocation0]]
  $region70: #{meta_recommender_forward.1} parent=0
    _
  %s12 = ssub.s32 1, %s10
  %s13 = scalar_select 0, %s12, %s10
  $region1: #{meta_recommender_forward.1} parent=0
    #allocation2 [shape = 'u8[49152]{0}', space=vmem, size = 0xc000, scoped, tag = 'input window, operand 1, single buffered']
    #allocation3 [shape = 's32[1]{0}', space=sflag, size = 0x4, scoped, tag = 'scoped memory for meta_recommender_forward.1']
    #allocation4 [shape = 'u8[1536]{0}', space=vmem, size = 0x800, scoped, tag = 'input window, operand 2, single buffered']
    #allocation5 [shape = 's32[1]{0}', space=sflag, size = 0x4, scoped, tag = 'scoped memory for meta_recommender_forward.1']
    #allocation6 [shape = 'u8[1179648]{0}', space=vmem, size = 0x120000, scoped, tag = 'input window, operand 3, single buffered']
    #allocation7 [shape = 'u8[4608]{0}', space=vmem, size = 0x1400, scoped, tag = 'input window, operand 4, single buffered']
    #allocation8 [shape = 's32[1]{0}', space=sflag, size = 0x4, scoped, tag = 'scoped memory for meta_recommender_forward.1']
    #allocation9 [shape = 'u8[524288]{0}', space=vmem, size = 0x80000, scoped, tag = 'input window, operand 5, single buffered']
    #allocation10 [shape = 'u8[262144]{0}', space=vmem, size = 0x40000, scoped, tag = 'input window, operand 6, single buffered']
    #allocation11 [shape = 's32[1]{0}', space=sflag, size = 0x4, scoped, tag = 'scoped memory for meta_recommender_forward.1']
    %14 = vsyncpa [#allocation3], 0
    %15 = vsyncpa [#allocation5], 0
    %16 = vsyncpa [#allocation8], 0
    %17 = vsyncpa [#allocation11], 0
    // Predicated region
    $region2: #{meta_recommender_forward.1} parent=1 // pred_check
      _
    $region3: #{meta_recommender_forward.1} parent=1 // pred_check_branch
      %19 = sbr.rel (0) target = $region5
    $region4: #{meta_recommender_forward.1} parent=1 // pred_region
      _
    $region5: #{meta_recommender_forward.1} parent=1 // pred_fallthru
      _
    // Predicated region
    $region6: #{meta_recommender_forward.1} parent=1 // pred_check
      _
    $region7: #{meta_recommender_forward.1} parent=1 // pred_check_branch
      %21 = sbr.rel (0) target = $region9
    $region8: #{meta_recommender_forward.1} parent=1 // pred_region
      %23 = vsyncadd [#allocation3], 0
      %s24 = sshll.u32 %s1, 4
      %s25 = int_to_ptr.hbm [resolvable:$true] %s24
      %s26 = sshll.u32 [#allocation2], 4
      %s27 = int_to_ptr.vmem [resolvable:$true] %s26
      %32 = dma.hbm_to_vmem [thread:$0]  %s25, 1536, %s27, [#allocation3], 384, 384, 24
    $region9: #{meta_recommender_forward.1} parent=1 // pred_fallthru
      _
    // Predicated region
    $region10: #{meta_recommender_forward.1} parent=1 // pred_check
      _
    $region11: #{meta_recommender_forward.1} parent=1 // pred_check_branch
      %34 = sbr.rel (0) target = $region13
    $region12: #{meta_recommender_forward.1} parent=1 // pred_region
      %36 = vsyncadd [#allocation5], 0
      %s38 = sshll.u32 %s2, 4
      %s39 = int_to_ptr.hbm [resolvable:$true] %s38
      %s40 = sshll.u32 [#allocation4], 4
      %s41 = int_to_ptr.vmem [resolvable:$true] %s40
      %43 = dma.hbm_to_vmem [thread:$0]  %s39, 48, %s41, [#allocation5]
    $region13: #{meta_recommender_forward.1} parent=1 // pred_fallthru
      _
    // Predicated region
    $region14: #{meta_recommender_forward.1} parent=1 // pred_check
      _
    $region15: #{meta_recommender_forward.1} parent=1 // pred_check_branch
      %45 = sbr.rel (0) target = $region17
    $region16: #{meta_recommender_forward.1} parent=1 // pred_region
      %47 = vsyncadd [#allocation5], 0
      %s48 = sshll.u32 %s3, 4
      %s49 = int_to_ptr.hbm [resolvable:$true] %s48
      %s50 = sshll.u32 [#allocation6], 4
      %s51 = int_to_ptr.vmem [resolvable:$true] %s50
      %56 = dma.hbm_to_vmem [thread:$0]  %s49, 36864, %s51, [#allocation5], 1152, 1152, 72
    $region17: #{meta_recommender_forward.1} parent=1 // pred_fallthru
      _
    // Predicated region
    $region18: #{meta_recommender_forward.1} parent=1 // pred_check
      _
    $region19: #{meta_recommender_forward.1} parent=1 // pred_check_branch
      %58 = sbr.rel (0) target = $region21
    $region20: #{meta_recommender_forward.1} parent=1 // pred_region
      %60 = vsyncadd [#allocation8], 0
      %s62 = sshll.u32 %s4, 4
      %s63 = int_to_ptr.hbm [resolvable:$true] %s62
      %s64 = sshll.u32 [#allocation7], 4
      %s65 = int_to_ptr.vmem [resolvable:$true] %s64
      %67 = dma.hbm_to_vmem [thread:$0]  %s63, 144, %s65, [#allocation8]
    $region21: #{meta_recommender_forward.1} parent=1 // pred_fallthru
      _
    // Predicated region
    $region22: #{meta_recommender_forward.1} parent=1 // pred_check
      _
    $region23: #{meta_recommender_forward.1} parent=1 // pred_check_branch
      %69 = sbr.rel (0) target = $region25
    $region24: #{meta_recommender_forward.1} parent=1 // pred_region
      %71 = vsyncadd [#allocation8], 0
      %s72 = sshll.u32 %s5, 4
      %s73 = int_to_ptr.hbm [resolvable:$true] %s72
      %s74 = sshll.u32 [#allocation9], 4
      %s75 = int_to_ptr.vmem [resolvable:$true] %s74
      %80 = dma.hbm_to_vmem [thread:$0]  %s73, 16384, %s75, [#allocation8], 2048, 2048, 128
    $region25: #{meta_recommender_forward.1} parent=1 // pred_fallthru
      _
    // Predicated region
    $region26: #{meta_recommender_forward.1} parent=1 // pred_check
      _
    $region27: #{meta_recommender_forward.1} parent=1 // pred_check_branch
      %82 = sbr.rel (0) target = $region29
    $region28: #{meta_recommender_forward.1} parent=1 // pred_region
      %84 = vsyncadd [#allocation11], 0
      %s85 = sshll.u32 %s6, 4
      %s86 = int_to_ptr.hbm [resolvable:$true] %s85
      %s87 = sshll.u32 [#allocation10], 4
      %s88 = int_to_ptr.vmem [resolvable:$true] %s87
      %93 = dma.hbm_to_vmem [thread:$0]  %s86, 8192, %s88, [#allocation11], 2048, 2048, 128
    $region29: #{meta_recommender_forward.1} parent=1 // pred_fallthru
      _
    // Predicated region
    $region30: #{meta_recommender_forward.1} parent=1 // pred_check
      _
    $region31: #{meta_recommender_forward.1} parent=1 // pred_check_branch
      %95 = sbr.rel (0) target = $region33
    $region32: #{meta_recommender_forward.1} parent=1 // pred_region
      %97 = dma.done [#allocation3], 1536
    $region33: #{meta_recommender_forward.1} parent=1 // pred_fallthru
      _
    // Predicated region
    $region34: #{meta_recommender_forward.1} parent=1 // pred_check
      _
    $region35: #{meta_recommender_forward.1} parent=1 // pred_check_branch
      %99 = sbr.rel (0) target = $region37
    $region36: #{meta_recommender_forward.1} parent=1 // pred_region
      %101 = dma.done [#allocation5], 48
    $region37: #{meta_recommender_forward.1} parent=1 // pred_fallthru
      _
    // Predicated region
    $region38: #{meta_recommender_forward.1} parent=1 // pred_check
      _
    $region39: #{meta_recommender_forward.1} parent=1 // pred_check_branch
      %103 = sbr.rel (0) target = $region41
    $region40: #{meta_recommender_forward.1} parent=1 // pred_region
      %105 = dma.done [#allocation5], 36864
    $region41: #{meta_recommender_forward.1} parent=1 // pred_fallthru
      _
    // Predicated region
    $region42: #{meta_recommender_forward.1} parent=1 // pred_check
      _
    $region43: #{meta_recommender_forward.1} parent=1 // pred_check_branch
      %107 = sbr.rel (0) target = $region45
    $region44: #{meta_recommender_forward.1} parent=1 // pred_region
      %109 = dma.done [#allocation8], 144
    $region45: #{meta_recommender_forward.1} parent=1 // pred_fallthru
      _
    // Predicated region
    $region46: #{meta_recommender_forward.1} parent=1 // pred_check
      _
    $region47: #{meta_recommender_forward.1} parent=1 // pred_check_branch
      %111 = sbr.rel (0) target = $region49
    $region48: #{meta_recommender_forward.1} parent=1 // pred_region
      %113 = dma.done [#allocation8], 16384
    $region49: #{meta_recommender_forward.1} parent=1 // pred_fallthru
      _
    // Predicated region
    $region50: #{meta_recommender_forward.1} parent=1 // pred_check
      _
    $region51: #{meta_recommender_forward.1} parent=1 // pred_check_branch
      %115 = sbr.rel (0) target = $region53
    $region52: #{meta_recommender_forward.1} parent=1 // pred_region
      %117 = dma.done [#allocation11], 8192
    $region53: #{meta_recommender_forward.1} parent=1 // pred_fallthru
      _
    %v118 = vld [vmem:[%s0] sm:$0xff]
    %v119 = vld [vmem:[#allocation2] sm:$0xff]
    %v120 = vld [vmem:[#allocation2 + $0x8] sm:$0xff]
    %v121 = vld [vmem:[#allocation2 + $0x10] sm:$0xff]
    %v122 = vld [vmem:[#allocation2 + $0x18] sm:$0xff]
    %v123 = vld [vmem:[#allocation2 + $0x20] sm:$0xff]
    %v124 = vld [vmem:[#allocation2 + $0x28] sm:$0xff]
    %v125 = vld [vmem:[#allocation2 + $0x30] sm:$0xff]
    %v126 = vld [vmem:[#allocation2 + $0x38] sm:$0xff]
    %v127 = vld [vmem:[#allocation2 + $0x40] sm:$0xff]
    %v128 = vld [vmem:[#allocation2 + $0x48] sm:$0xff]
    %v129 = vld [vmem:[#allocation2 + $0x50] sm:$0xff]
    %v130 = vld [vmem:[#allocation2 + $0x58] sm:$0xff]
    %v131 = vld [vmem:[#allocation4] sm:$0x7]
    %v133 = vperm.slane %v131, 0
    %v134 = vperm.slane %v131, 1
    %v135 = vperm.slane %v131, 2
    %vm139 = vcmask 261120
    %v141 = vsel %vm139, %v118, 0
    %143 = vmatpush.msra.mxu0 0.0
    %144 = vmatpush.msra.mxu0 0.0
    %145 = vmatpush.msra.mxu0 0.0
    %146 = vmatpush.msra.mxu0 0.0
    %147 = vmatpush.msra.mxu0 0.0
    %148 = vmatpush.msra.mxu0 0.0
    %149 = vmatpush.msra.mxu0 0.0
    %150 = vmatpush.msra.mxu0 0.0
    %151 = vmatpush.msra.mxu0 0.0
    %152 = vmatpush.msra.mxu0 0.0
    %153 = vmatpush.msra.mxu0 0.0
    %154 = vmatpush.msra.mxu0 0.0
    %155 = vmatpush.msra.mxu0 %v128
    %156 = vmatpush.msra.mxu0 %v125
    %157 = vmatpush.msra.mxu0 %v122
    %158 = vmatpush.msra.mxu0 %v119
    %159 = vmatmul.f32.gmra.mxu0 %v141
    %v160 = vpop.f32.mrf.mxu0
    %v161 = vadd.f32 %v133, %v160
    %162 = vdwg.mxu0
    %163 = vmatpush.msra.mxu0 0.0
    %164 = vmatpush.msra.mxu0 0.0
    %165 = vmatpush.msra.mxu0 0.0
    %166 = vmatpush.msra.mxu0 0.0
    %167 = vmatpush.msra.mxu0 0.0
    %168 = vmatpush.msra.mxu0 0.0
    %169 = vmatpush.msra.mxu0 0.0
    %170 = vmatpush.msra.mxu0 0.0
    %171 = vmatpush.msra.mxu0 0.0
    %172 = vmatpush.msra.mxu0 0.0
    %173 = vmatpush.msra.mxu0 0.0
    %174 = vmatpush.msra.mxu0 0.0
    %175 = vmatpush.msra.mxu0 %v129
    %176 = vmatpush.msra.mxu0 %v126
    %177 = vmatpush.msra.mxu0 %v123
    %178 = vmatpush.msra.mxu0 %v120
    %179 = vmatmul.f32.gmra.mxu0 %v141
    %v180 = vpop.f32.mrf.mxu0
    %v181 = vadd.f32 %v134, %v180
    %182 = vdwg.mxu0
    %183 = vmatpush.msra.mxu0 0.0
    %184 = vmatpush.msra.mxu0 0.0
    %185 = vmatpush.msra.mxu0 0.0
    %186 = vmatpush.msra.mxu0 0.0
    %187 = vmatpush.msra.mxu0 0.0
    %188 = vmatpush.msra.mxu0 0.0
    %189 = vmatpush.msra.mxu0 0.0
    %190 = vmatpush.msra.mxu0 0.0
    %191 = vmatpush.msra.mxu0 0.0
    %192 = vmatpush.msra.mxu0 0.0
    %193 = vmatpush.msra.mxu0 0.0
    %194 = vmatpush.msra.mxu0 0.0
    %195 = vmatpush.msra.mxu0 %v130
    %196 = vmatpush.msra.mxu0 %v127
    %197 = vmatpush.msra.mxu0 %v124
    %198 = vmatpush.msra.mxu0 %v121
    %199 = vmatmul.f32.gmra.mxu0 %v141
    %v200 = vpop.f32.mrf.mxu0
    %v201 = vadd.f32 %v135, %v200
    %202 = vdwg.mxu0
    %v203 = vmax.f32 %v181, 0.0
    %v204 = vmax.f32 %v201, 0.0
    %v205 = vld [vmem:[#allocation6] sm:$0xff]
    %v206 = vld [vmem:[#allocation6 + $0x8] sm:$0xff]
    %v207 = vld [vmem:[#allocation6 + $0x10] sm:$0xff]
    %v208 = vld [vmem:[#allocation6 + $0x18] sm:$0xff]
    %v209 = vld [vmem:[#allocation6 + $0x20] sm:$0xff]
    %v210 = vld [vmem:[#allocation6 + $0x28] sm:$0xff]
    %v211 = vld [vmem:[#allocation6 + $0x30] sm:$0xff]
    %v212 = vld [vmem:[#allocation6 + $0x38] sm:$0xff]
    %v213 = vld [vmem:[#allocation6 + $0x40] sm:$0xff]
    %v214 = vld [vmem:[#allocation6 + $0x48] sm:$0xff]
    %v215 = vld [vmem:[#allocation6 + $0x50] sm:$0xff]
    %v216 = vld [vmem:[#allocation6 + $0x58] sm:$0xff]
    %v217 = vld [vmem:[#allocation6 + $0x60] sm:$0xff]
    %v218 = vld [vmem:[#allocation6 + $0x68] sm:$0xff]
    %v219 = vld [vmem:[#allocation6 + $0x70] sm:$0xff]
    %v220 = vld [vmem:[#allocation6 + $0x78] sm:$0xff]
    %v221 = vld [vmem:[#allocation6 + $0x80] sm:$0xff]
    %v222 = vld [vmem:[#allocation6 + $0x88] sm:$0xff]
    %v223 = vld [vmem:[#allocation6 + $0x90] sm:$0xff]
    %v224 = vld [vmem:[#allocation6 + $0x98] sm:$0xff]
    %v225 = vld [vmem:[#allocation6 + $0xa0] sm:$0xff]
    %v226 = vld [vmem:[#allocation6 + $0xa8] sm:$0xff]
    %v227 = vld [vmem:[#allocation6 + $0xb0] sm:$0xff]
    %v228 = vld [vmem:[#allocation6 + $0xb8] sm:$0xff]
    %v229 = vld [vmem:[#allocation6 + $0xc0] sm:$0xff]
    %v230 = vld [vmem:[#allocation6 + $0xc8] sm:$0xff]
    %v231 = vld [vmem:[#allocation6 + $0xd0] sm:$0xff]
    %v232 = vld [vmem:[#allocation6 + $0xd8] sm:$0xff]
    %v233 = vld [vmem:[#allocation6 + $0xe0] sm:$0xff]
    %v234 = vld [vmem:[#allocation6 + $0xe8] sm:$0xff]
    %v235 = vld [vmem:[#allocation6 + $0xf0] sm:$0xff]
    %v236 = vld [vmem:[#allocation6 + $0xf8] sm:$0xff]
    %v237 = vld [vmem:[#allocation6 + $0x100] sm:$0xff]
    %v238 = vld [vmem:[#allocation6 + $0x108] sm:$0xff]
    %v239 = vld [vmem:[#allocation6 + $0x110] sm:$0xff]
    %v240 = vld [vmem:[#allocation6 + $0x118] sm:$0xff]
    %v241 = vld [vmem:[#allocation6 + $0x120] sm:$0xff]
    %v242 = vld [vmem:[#allocation6 + $0x128] sm:$0xff]
    %v243 = vld [vmem:[#allocation6 + $0x130] sm:$0xff]
    %v244 = vld [vmem:[#allocation6 + $0x138] sm:$0xff]
    %v245 = vld [vmem:[#allocation6 + $0x140] sm:$0xff]
    %v246 = vld [vmem:[#allocation6 + $0x148] sm:$0xff]
    %v247 = vld [vmem:[#allocation6 + $0x150] sm:$0xff]
    %v248 = vld [vmem:[#allocation6 + $0x158] sm:$0xff]
    %v249 = vld [vmem:[#allocation6 + $0x160] sm:$0xff]
    %v250 = vld [vmem:[#allocation6 + $0x168] sm:$0xff]
    %v251 = vld [vmem:[#allocation6 + $0x170] sm:$0xff]
    %v252 = vld [vmem:[#allocation6 + $0x178] sm:$0xff]
    %v253 = vld [vmem:[#allocation6 + $0x180] sm:$0xff]
    %v254 = vld [vmem:[#allocation6 + $0x188] sm:$0xff]
    %v255 = vld [vmem:[#allocation6 + $0x190] sm:$0xff]
    %v256 = vld [vmem:[#allocation6 + $0x198] sm:$0xff]
    %v257 = vld [vmem:[#allocation6 + $0x1a0] sm:$0xff]
    %v258 = vld [vmem:[#allocation6 + $0x1a8] sm:$0xff]
    %v259 = vld [vmem:[#allocation6 + $0x1b0] sm:$0xff]
    %v260 = vld [vmem:[#allocation6 + $0x1b8] sm:$0xff]
    %v261 = vld [vmem:[#allocation6 + $0x1c0] sm:$0xff]
    %v262 = vld [vmem:[#allocation6 + $0x1c8] sm:$0xff]
    %v263 = vld [vmem:[#allocation6 + $0x1d0] sm:$0xff]
    %v264 = vld [vmem:[#allocation6 + $0x1d8] sm:$0xff]
    %v265 = vld [vmem:[#allocation6 + $0x1e0] sm:$0xff]
    %v266 = vld [vmem:[#allocation6 + $0x1e8] sm:$0xff]
    %v267 = vld [vmem:[#allocation6 + $0x1f0] sm:$0xff]
    %v268 = vld [vmem:[#allocation6 + $0x1f8] sm:$0xff]
    %v269 = vld [vmem:[#allocation6 + $0x200] sm:$0xff]
    %v270 = vld [vmem:[#allocation6 + $0x208] sm:$0xff]
    %v271 = vld [vmem:[#allocation6 + $0x210] sm:$0xff]
    %v272 = vld [vmem:[#allocation6 + $0x218] sm:$0xff]
    %v273 = vld [vmem:[#allocation6 + $0x220] sm:$0xff]
    %v274 = vld [vmem:[#allocation6 + $0x228] sm:$0xff]
    %v275 = vld [vmem:[#allocation6 + $0x230] sm:$0xff]
    %v276 = vld [vmem:[#allocation6 + $0x238] sm:$0xff]
    %v277 = vld [vmem:[#allocation6 + $0x240] sm:$0xff]
    %v278 = vld [vmem:[#allocation6 + $0x248] sm:$0xff]
    %v279 = vld [vmem:[#allocation6 + $0x250] sm:$0xff]
    %v280 = vld [vmem:[#allocation6 + $0x258] sm:$0xff]
    %v281 = vld [vmem:[#allocation6 + $0x260] sm:$0xff]
    %v282 = vld [vmem:[#allocation6 + $0x268] sm:$0xff]
    %v283 = vld [vmem:[#allocation6 + $0x270] sm:$0xff]
    %v284 = vld [vmem:[#allocation6 + $0x278] sm:$0xff]
    %v285 = vld [vmem:[#allocation6 + $0x280] sm:$0xff]
    %v286 = vld [vmem:[#allocation6 + $0x288] sm:$0xff]
    %v287 = vld [vmem:[#allocation6 + $0x290] sm:$0xff]
    %v288 = vld [vmem:[#allocation6 + $0x298] sm:$0xff]
    %v289 = vld [vmem:[#allocation6 + $0x2a0] sm:$0xff]
    %v290 = vld [vmem:[#allocation6 + $0x2a8] sm:$0xff]
    %v291 = vld [vmem:[#allocation6 + $0x2b0] sm:$0xff]
    %v292 = vld [vmem:[#allocation6 + $0x2b8] sm:$0xff]
    %v293 = vld [vmem:[#allocation6 + $0x2c0] sm:$0xff]
    %v294 = vld [vmem:[#allocation6 + $0x2c8] sm:$0xff]
    %v295 = vld [vmem:[#allocation6 + $0x2d0] sm:$0xff]
    %v296 = vld [vmem:[#allocation6 + $0x2d8] sm:$0xff]
    %v297 = vld [vmem:[#allocation6 + $0x2e0] sm:$0xff]
    %v298 = vld [vmem:[#allocation6 + $0x2e8] sm:$0xff]
    %v299 = vld [vmem:[#allocation6 + $0x2f0] sm:$0xff]
    %v300 = vld [vmem:[#allocation6 + $0x2f8] sm:$0xff]
    %v301 = vld [vmem:[#allocation6 + $0x300] sm:$0xff]
    %v302 = vld [vmem:[#allocation6 + $0x308] sm:$0xff]
    %v303 = vld [vmem:[#allocation6 + $0x310] sm:$0xff]
    %v304 = vld [vmem:[#allocation6 + $0x318] sm:$0xff]
    %v305 = vld [vmem:[#allocation6 + $0x320] sm:$0xff]
    %v306 = vld [vmem:[#allocation6 + $0x328] sm:$0xff]
    %v307 = vld [vmem:[#allocation6 + $0x330] sm:$0xff]
    %v308 = vld [vmem:[#allocation6 + $0x338] sm:$0xff]
    %v309 = vld [vmem:[#allocation6 + $0x340] sm:$0xff]
    %v310 = vld [vmem:[#allocation6 + $0x348] sm:$0xff]
    %v311 = vld [vmem:[#allocation6 + $0x350] sm:$0xff]
    %v312 = vld [vmem:[#allocation6 + $0x358] sm:$0xff]
    %v313 = vld [vmem:[#allocation6 + $0x360] sm:$0xff]
    %v314 = vld [vmem:[#allocation6 + $0x368] sm:$0xff]
    %v315 = vld [vmem:[#allocation6 + $0x370] sm:$0xff]
    %v316 = vld [vmem:[#allocation6 + $0x378] sm:$0xff]
    %v317 = vld [vmem:[#allocation6 + $0x380] sm:$0xff]
    %v318 = vld [vmem:[#allocation6 + $0x388] sm:$0xff]
    %v319 = vld [vmem:[#allocation6 + $0x390] sm:$0xff]
    %v320 = vld [vmem:[#allocation6 + $0x398] sm:$0xff]
    %v321 = vld [vmem:[#allocation6 + $0x3a0] sm:$0xff]
    %v322 = vld [vmem:[#allocation6 + $0x3a8] sm:$0xff]
    %v323 = vld [vmem:[#allocation6 + $0x3b0] sm:$0xff]
    %v324 = vld [vmem:[#allocation6 + $0x3b8] sm:$0xff]
    %v325 = vld [vmem:[#allocation6 + $0x3c0] sm:$0xff]
    %v326 = vld [vmem:[#allocation6 + $0x3c8] sm:$0xff]
    %v327 = vld [vmem:[#allocation6 + $0x3d0] sm:$0xff]
    %v328 = vld [vmem:[#allocation6 + $0x3d8] sm:$0xff]
    %v329 = vld [vmem:[#allocation6 + $0x3e0] sm:$0xff]
    %v330 = vld [vmem:[#allocation6 + $0x3e8] sm:$0xff]
    %v331 = vld [vmem:[#allocation6 + $0x3f0] sm:$0xff]
    %v332 = vld [vmem:[#allocation6 + $0x3f8] sm:$0xff]
    %v333 = vld [vmem:[#allocation6 + $0x400] sm:$0xff]
    %v334 = vld [vmem:[#allocation6 + $0x408] sm:$0xff]
    %v335 = vld [vmem:[#allocation6 + $0x410] sm:$0xff]
    %v336 = vld [vmem:[#allocation6 + $0x418] sm:$0xff]
    %v337 = vld [vmem:[#allocation6 + $0x420] sm:$0xff]
    %v338 = vld [vmem:[#allocation6 + $0x428] sm:$0xff]
    %v339 = vld [vmem:[#allocation6 + $0x430] sm:$0xff]
    %v340 = vld [vmem:[#allocation6 + $0x438] sm:$0xff]
    %v341 = vld [vmem:[#allocation6 + $0x440] sm:$0xff]
    %v342 = vld [vmem:[#allocation6 + $0x448] sm:$0xff]
    %v343 = vld [vmem:[#allocation6 + $0x450] sm:$0xff]
    %v344 = vld [vmem:[#allocation6 + $0x458] sm:$0xff]
    %v345 = vld [vmem:[#allocation6 + $0x460] sm:$0xff]
    %v346 = vld [vmem:[#allocation6 + $0x468] sm:$0xff]
    %v347 = vld [vmem:[#allocation6 + $0x470] sm:$0xff]
    %v348 = vld [vmem:[#allocation6 + $0x478] sm:$0xff]
    %v349 = vld [vmem:[#allocation6 + $0x480] sm:$0xff]
    %v350 = vld [vmem:[#allocation6 + $0x488] sm:$0xff]
    %v351 = vld [vmem:[#allocation6 + $0x490] sm:$0xff]
    %v352 = vld [vmem:[#allocation6 + $0x498] sm:$0xff]
    %v353 = vld [vmem:[#allocation6 + $0x4a0] sm:$0xff]
    %v354 = vld [vmem:[#allocation6 + $0x4a8] sm:$0xff]
    %v355 = vld [vmem:[#allocation6 + $0x4b0] sm:$0xff]
    %v356 = vld [vmem:[#allocation6 + $0x4b8] sm:$0xff]
    %v357 = vld [vmem:[#allocation6 + $0x4c0] sm:$0xff]
    %v358 = vld [vmem:[#allocation6 + $0x4c8] sm:$0xff]
    %v359 = vld [vmem:[#allocation6 + $0x4d0] sm:$0xff]
    %v360 = vld [vmem:[#allocation6 + $0x4d8] sm:$0xff]
    %v361 = vld [vmem:[#allocation6 + $0x4e0] sm:$0xff]
    %v362 = vld [vmem:[#allocation6 + $0x4e8] sm:$0xff]
    %v363 = vld [vmem:[#allocation6 + $0x4f0] sm:$0xff]
    %v364 = vld [vmem:[#allocation6 + $0x4f8] sm:$0xff]
    %v365 = vld [vmem:[#allocation6 + $0x500] sm:$0xff]
    %v366 = vld [vmem:[#allocation6 + $0x508] sm:$0xff]
    %v367 = vld [vmem:[#allocation6 + $0x510] sm:$0xff]
    %v368 = vld [vmem:[#allocation6 + $0x518] sm:$0xff]
    %v369 = vld [vmem:[#allocation6 + $0x520] sm:$0xff]
    %v370 = vld [vmem:[#allocation6 + $0x528] sm:$0xff]
    %v371 = vld [vmem:[#allocation6 + $0x530] sm:$0xff]
    %v372 = vld [vmem:[#allocation6 + $0x538] sm:$0xff]
    %v373 = vld [vmem:[#allocation6 + $0x540] sm:$0xff]
    %v374 = vld [vmem:[#allocation6 + $0x548] sm:$0xff]
    %v375 = vld [vmem:[#allocation6 + $0x550] sm:$0xff]
    %v376 = vld [vmem:[#allocation6 + $0x558] sm:$0xff]
    %v377 = vld [vmem:[#allocation6 + $0x560] sm:$0xff]
    %v378 = vld [vmem:[#allocation6 + $0x568] sm:$0xff]
    %v379 = vld [vmem:[#allocation6 + $0x570] sm:$0xff]
    %v380 = vld [vmem:[#allocation6 + $0x578] sm:$0xff]
    %v381 = vld [vmem:[#allocation6 + $0x580] sm:$0xff]
    %v382 = vld [vmem:[#allocation6 + $0x588] sm:$0xff]
    %v383 = vld [vmem:[#allocation6 + $0x590] sm:$0xff]
    %v384 = vld [vmem:[#allocation6 + $0x598] sm:$0xff]
    %v385 = vld [vmem:[#allocation6 + $0x5a0] sm:$0xff]
    %v386 = vld [vmem:[#allocation6 + $0x5a8] sm:$0xff]
    %v387 = vld [vmem:[#allocation6 + $0x5b0] sm:$0xff]
    %v388 = vld [vmem:[#allocation6 + $0x5b8] sm:$0xff]
    %v389 = vld [vmem:[#allocation6 + $0x5c0] sm:$0xff]
    %v390 = vld [vmem:[#allocation6 + $0x5c8] sm:$0xff]
    %v391 = vld [vmem:[#allocation6 + $0x5d0] sm:$0xff]
    %v392 = vld [vmem:[#allocation6 + $0x5d8] sm:$0xff]
    %v393 = vld [vmem:[#allocation6 + $0x5e0] sm:$0xff]
    %v394 = vld [vmem:[#allocation6 + $0x5e8] sm:$0xff]
    %v395 = vld [vmem:[#allocation6 + $0x5f0] sm:$0xff]
    %v396 = vld [vmem:[#allocation6 + $0x5f8] sm:$0xff]
    %v397 = vld [vmem:[#allocation6 + $0x600] sm:$0xff]
    %v398 = vld [vmem:[#allocation6 + $0x608] sm:$0xff]
    %v399 = vld [vmem:[#allocation6 + $0x610] sm:$0xff]
    %v400 = vld [vmem:[#allocation6 + $0x618] sm:$0xff]
    %v401 = vld [vmem:[#allocation6 + $0x620] sm:$0xff]
    %v402 = vld [vmem:[#allocation6 + $0x628] sm:$0xff]
    %v403 = vld [vmem:[#allocation6 + $0x630] sm:$0xff]
    %v404 = vld [vmem:[#allocation6 + $0x638] sm:$0xff]
    %v405 = vld [vmem:[#allocation6 + $0x640] sm:$0xff]
    %v406 = vld [vmem:[#allocation6 + $0x648] sm:$0xff]
    %v407 = vld [vmem:[#allocation6 + $0x650] sm:$0xff]
    %v408 = vld [vmem:[#allocation6 + $0x658] sm:$0xff]
    %v409 = vld [vmem:[#allocation6 + $0x660] sm:$0xff]
    %v410 = vld [vmem:[#allocation6 + $0x668] sm:$0xff]
    %v411 = vld [vmem:[#allocation6 + $0x670] sm:$0xff]
    %v412 = vld [vmem:[#allocation6 + $0x678] sm:$0xff]
    %v413 = vld [vmem:[#allocation6 + $0x680] sm:$0xff]
    %v414 = vld [vmem:[#allocation6 + $0x688] sm:$0xff]
    %v415 = vld [vmem:[#allocation6 + $0x690] sm:$0xff]
    %v416 = vld [vmem:[#allocation6 + $0x698] sm:$0xff]
    %v417 = vld [vmem:[#allocation6 + $0x6a0] sm:$0xff]
    %v418 = vld [vmem:[#allocation6 + $0x6a8] sm:$0xff]
    %v419 = vld [vmem:[#allocation6 + $0x6b0] sm:$0xff]
    %v420 = vld [vmem:[#allocation6 + $0x6b8] sm:$0xff]
    %v421 = vld [vmem:[#allocation6 + $0x6c0] sm:$0xff]
    %v422 = vld [vmem:[#allocation6 + $0x6c8] sm:$0xff]
    %v423 = vld [vmem:[#allocation6 + $0x6d0] sm:$0xff]
    %v424 = vld [vmem:[#allocation6 + $0x6d8] sm:$0xff]
    %v425 = vld [vmem:[#allocation6 + $0x6e0] sm:$0xff]
    %v426 = vld [vmem:[#allocation6 + $0x6e8] sm:$0xff]
    %v427 = vld [vmem:[#allocation6 + $0x6f0] sm:$0xff]
    %v428 = vld [vmem:[#allocation6 + $0x6f8] sm:$0xff]
    %v429 = vld [vmem:[#allocation6 + $0x700] sm:$0xff]
    %v430 = vld [vmem:[#allocation6 + $0x708] sm:$0xff]
    %v431 = vld [vmem:[#allocation6 + $0x710] sm:$0xff]
    %v432 = vld [vmem:[#allocation6 + $0x718] sm:$0xff]
    %v433 = vld [vmem:[#allocation6 + $0x720] sm:$0xff]
    %v434 = vld [vmem:[#allocation6 + $0x728] sm:$0xff]
    %v435 = vld [vmem:[#allocation6 + $0x730] sm:$0xff]
    %v436 = vld [vmem:[#allocation6 + $0x738] sm:$0xff]
    %v437 = vld [vmem:[#allocation6 + $0x740] sm:$0xff]
    %v438 = vld [vmem:[#allocation6 + $0x748] sm:$0xff]
    %v439 = vld [vmem:[#allocation6 + $0x750] sm:$0xff]
    %v440 = vld [vmem:[#allocation6 + $0x758] sm:$0xff]
    %v441 = vld [vmem:[#allocation6 + $0x760] sm:$0xff]
    %v442 = vld [vmem:[#allocation6 + $0x768] sm:$0xff]
    %v443 = vld [vmem:[#allocation6 + $0x770] sm:$0xff]
    %v444 = vld [vmem:[#allocation6 + $0x778] sm:$0xff]
    %v445 = vld [vmem:[#allocation6 + $0x780] sm:$0xff]
    %v446 = vld [vmem:[#allocation6 + $0x788] sm:$0xff]
    %v447 = vld [vmem:[#allocation6 + $0x790] sm:$0xff]
    %v448 = vld [vmem:[#allocation6 + $0x798] sm:$0xff]
    %v449 = vld [vmem:[#allocation6 + $0x7a0] sm:$0xff]
    %v450 = vld [vmem:[#allocation6 + $0x7a8] sm:$0xff]
    %v451 = vld [vmem:[#allocation6 + $0x7b0] sm:$0xff]
    %v452 = vld [vmem:[#allocation6 + $0x7b8] sm:$0xff]
    %v453 = vld [vmem:[#allocation6 + $0x7c0] sm:$0xff]
    %v454 = vld [vmem:[#allocation6 + $0x7c8] sm:$0xff]
    %v455 = vld [vmem:[#allocation6 + $0x7d0] sm:$0xff]
    %v456 = vld [vmem:[#allocation6 + $0x7d8] sm:$0xff]
    %v457 = vld [vmem:[#allocation6 + $0x7e0] sm:$0xff]
    %v458 = vld [vmem:[#allocation6 + $0x7e8] sm:$0xff]
    %v459 = vld [vmem:[#allocation6 + $0x7f0] sm:$0xff]
    %v460 = vld [vmem:[#allocation6 + $0x7f8] sm:$0xff]
    %v461 = vld [vmem:[#allocation6 + $0x800] sm:$0xff]
    %v462 = vld [vmem:[#allocation6 + $0x808] sm:$0xff]
    %v463 = vld [vmem:[#allocation6 + $0x810] sm:$0xff]
    %v464 = vld [vmem:[#allocation6 + $0x818] sm:$0xff]
    %v465 = vld [vmem:[#allocation6 + $0x820] sm:$0xff]
    %v466 = vld [vmem:[#allocation6 + $0x828] sm:$0xff]
    %v467 = vld [vmem:[#allocation6 + $0x830] sm:$0xff]
    %v468 = vld [vmem:[#allocation6 + $0x838] sm:$0xff]
    %v469 = vld [vmem:[#allocation6 + $0x840] sm:$0xff]
    %v470 = vld [vmem:[#allocation6 + $0x848] sm:$0xff]
    %v471 = vld [vmem:[#allocation6 + $0x850] sm:$0xff]
    %v472 = vld [vmem:[#allocation6 + $0x858] sm:$0xff]
    %v473 = vld [vmem:[#allocation6 + $0x860] sm:$0xff]
    %v474 = vld [vmem:[#allocation6 + $0x868] sm:$0xff]
    %v475 = vld [vmem:[#allocation6 + $0x870] sm:$0xff]
    %v476 = vld [vmem:[#allocation6 + $0x878] sm:$0xff]
    %v477 = vld [vmem:[#allocation6 + $0x880] sm:$0xff]
    %v478 = vld [vmem:[#allocation6 + $0x888] sm:$0xff]
    %v479 = vld [vmem:[#allocation6 + $0x890] sm:$0xff]
    %v480 = vld [vmem:[#allocation6 + $0x898] sm:$0xff]
    %v481 = vld [vmem:[#allocation6 + $0x8a0] sm:$0xff]
    %v482 = vld [vmem:[#allocation6 + $0x8a8] sm:$0xff]
    %v483 = vld [vmem:[#allocation6 + $0x8b0] sm:$0xff]
    %v484 = vld [vmem:[#allocation6 + $0x8b8] sm:$0xff]
    %v485 = vld [vmem:[#allocation6 + $0x8c0] sm:$0xff]
    %v486 = vld [vmem:[#allocation6 + $0x8c8] sm:$0xff]
    %v487 = vld [vmem:[#allocation6 + $0x8d0] sm:$0xff]
    %v488 = vld [vmem:[#allocation6 + $0x8d8] sm:$0xff]
    %v489 = vld [vmem:[#allocation6 + $0x8e0] sm:$0xff]
    %v490 = vld [vmem:[#allocation6 + $0x8e8] sm:$0xff]
    %v491 = vld [vmem:[#allocation6 + $0x8f0] sm:$0xff]
    %v492 = vld [vmem:[#allocation6 + $0x8f8] sm:$0xff]
    %v493 = vld [vmem:[#allocation7] sm:$0xff]
    %v494 = vld [vmem:[#allocation7 + $0x8] sm:$0x1]
    %v497 = vperm.slane %v493, 0
    %v498 = vperm.slane %v493, 1
    %v499 = vperm.slane %v493, 2
    %v500 = vperm.slane %v493, 3
    %v501 = vperm.slane %v493, 4
    %v502 = vperm.slane %v493, 5
    %v503 = vperm.slane %v493, 6
    %v504 = vperm.slane %v493, 7
    %v505 = vperm.slane %v494, 0
    %515 = vmatpush.msra.mxu0 %v340
    %516 = vmatpush.msra.mxu0 %v331
    %517 = vmatpush.msra.mxu0 %v322
    %518 = vmatpush.msra.mxu0 %v313
    %519 = vmatpush.msra.mxu0 %v304
    %520 = vmatpush.msra.mxu0 %v295
    %521 = vmatpush.msra.mxu0 %v286
    %522 = vmatpush.msra.mxu0 %v277
    %523 = vmatpush.msra.mxu0 %v268
    %524 = vmatpush.msra.mxu0 %v259
    %525 = vmatpush.msra.mxu0 %v250
    %526 = vmatpush.msra.mxu0 %v241
    %527 = vmatpush.msra.mxu0 %v232
    %528 = vmatpush.msra.mxu0 %v223
    %529 = vmatpush.msra.mxu0 %v214
    %530 = vmatpush.msra.mxu0 %v205
    %531 = vmatmul.f32.gmra.mxu0 %v203
    %v532 = vpop.f32.mrf.mxu0
    %v533 = vadd.f32 %v497, %v532
    %534 = vdwg.mxu0
    %535 = vmatpush.msra.mxu0 %v484
    %536 = vmatpush.msra.mxu0 %v475
    %537 = vmatpush.msra.mxu0 %v466
    %538 = vmatpush.msra.mxu0 %v457
    %539 = vmatpush.msra.mxu0 %v448
    %540 = vmatpush.msra.mxu0 %v439
    %541 = vmatpush.msra.mxu0 %v430
    %542 = vmatpush.msra.mxu0 %v421
    %543 = vmatpush.msra.mxu0 %v412
    %544 = vmatpush.msra.mxu0 %v403
    %545 = vmatpush.msra.mxu0 %v394
    %546 = vmatpush.msra.mxu0 %v385
    %547 = vmatpush.msra.mxu0 %v376
    %548 = vmatpush.msra.mxu0 %v367
    %549 = vmatpush.msra.mxu0 %v358
    %550 = vmatpush.msra.mxu0 %v349
    %551 = vmatmul.f32.gmra.mxu0 %v204
    %v552 = vpop.f32.mrf.mxu0
    %v553 = vadd.f32 %v533, %v552
    %554 = vdwg.mxu0
    %555 = vmatpush.msra.mxu0 %v341
    %556 = vmatpush.msra.mxu0 %v332
    %557 = vmatpush.msra.mxu0 %v323
    %558 = vmatpush.msra.mxu0 %v314
    %559 = vmatpush.msra.mxu0 %v305
    %560 = vmatpush.msra.mxu0 %v296
    %561 = vmatpush.msra.mxu0 %v287
    %562 = vmatpush.msra.mxu0 %v278
    %563 = vmatpush.msra.mxu0 %v269
    %564 = vmatpush.msra.mxu0 %v260
    %565 = vmatpush.msra.mxu0 %v251
    %566 = vmatpush.msra.mxu0 %v242
    %567 = vmatpush.msra.mxu0 %v233
    %568 = vmatpush.msra.mxu0 %v224
    %569 = vmatpush.msra.mxu0 %v215
    %570 = vmatpush.msra.mxu0 %v206
    %571 = vmatmul.f32.gmra.mxu0 %v203
    %v572 = vpop.f32.mrf.mxu0
    %v573 = vadd.f32 %v498, %v572
    %574 = vdwg.mxu0
    %575 = vmatpush.msra.mxu0 %v485
    %576 = vmatpush.msra.mxu0 %v476
    %577 = vmatpush.msra.mxu0 %v467
    %578 = vmatpush.msra.mxu0 %v458
    %579 = vmatpush.msra.mxu0 %v449
    %580 = vmatpush.msra.mxu0 %v440
    %581 = vmatpush.msra.mxu0 %v431
    %582 = vmatpush.msra.mxu0 %v422
    %583 = vmatpush.msra.mxu0 %v413
    %584 = vmatpush.msra.mxu0 %v404
    %585 = vmatpush.msra.mxu0 %v395
    %586 = vmatpush.msra.mxu0 %v386
    %587 = vmatpush.msra.mxu0 %v377
    %588 = vmatpush.msra.mxu0 %v368
    %589 = vmatpush.msra.mxu0 %v359
    %590 = vmatpush.msra.mxu0 %v350
    %591 = vmatmul.f32.gmra.mxu0 %v204
    %v592 = vpop.f32.mrf.mxu0
    %v593 = vadd.f32 %v573, %v592
    %594 = vdwg.mxu0
    %595 = vmatpush.msra.mxu0 %v342
    %596 = vmatpush.msra.mxu0 %v333
    %597 = vmatpush.msra.mxu0 %v324
    %598 = vmatpush.msra.mxu0 %v315
    %599 = vmatpush.msra.mxu0 %v306
    %600 = vmatpush.msra.mxu0 %v297
    %601 = vmatpush.msra.mxu0 %v288
    %602 = vmatpush.msra.mxu0 %v279
    %603 = vmatpush.msra.mxu0 %v270
    %604 = vmatpush.msra.mxu0 %v261
    %605 = vmatpush.msra.mxu0 %v252
    %606 = vmatpush.msra.mxu0 %v243
    %607 = vmatpush.msra.mxu0 %v234
    %608 = vmatpush.msra.mxu0 %v225
    %609 = vmatpush.msra.mxu0 %v216
    %610 = vmatpush.msra.mxu0 %v207
    %611 = vmatmul.f32.gmra.mxu0 %v203
    %v612 = vpop.f32.mrf.mxu0
    %v613 = vadd.f32 %v499, %v612
    %614 = vdwg.mxu0
    %615 = vmatpush.msra.mxu0 %v486
    %616 = vmatpush.msra.mxu0 %v477
    %617 = vmatpush.msra.mxu0 %v468
    %618 = vmatpush.msra.mxu0 %v459
    %619 = vmatpush.msra.mxu0 %v450
    %620 = vmatpush.msra.mxu0 %v441
    %621 = vmatpush.msra.mxu0 %v432
    %622 = vmatpush.msra.mxu0 %v423
    %623 = vmatpush.msra.mxu0 %v414
    %624 = vmatpush.msra.mxu0 %v405
    %625 = vmatpush.msra.mxu0 %v396
    %626 = vmatpush.msra.mxu0 %v387
    %627 = vmatpush.msra.mxu0 %v378
    %628 = vmatpush.msra.mxu0 %v369
    %629 = vmatpush.msra.mxu0 %v360
    %630 = vmatpush.msra.mxu0 %v351
    %631 = vmatmul.f32.gmra.mxu0 %v204
    %v632 = vpop.f32.mrf.mxu0
    %v633 = vadd.f32 %v613, %v632
    %634 = vdwg.mxu0
    %635 = vmatpush.msra.mxu0 %v343
    %636 = vmatpush.msra.mxu0 %v334
    %637 = vmatpush.msra.mxu0 %v325
    %638 = vmatpush.msra.mxu0 %v316
    %639 = vmatpush.msra.mxu0 %v307
    %640 = vmatpush.msra.mxu0 %v298
    %641 = vmatpush.msra.mxu0 %v289
    %642 = vmatpush.msra.mxu0 %v280
    %643 = vmatpush.msra.mxu0 %v271
    %644 = vmatpush.msra.mxu0 %v262
    %645 = vmatpush.msra.mxu0 %v253
    %646 = vmatpush.msra.mxu0 %v244
    %647 = vmatpush.msra.mxu0 %v235
    %648 = vmatpush.msra.mxu0 %v226
    %649 = vmatpush.msra.mxu0 %v217
    %650 = vmatpush.msra.mxu0 %v208
    %651 = vmatmul.f32.gmra.mxu0 %v203
    %v652 = vpop.f32.mrf.mxu0
    %v653 = vadd.f32 %v500, %v652
    %654 = vdwg.mxu0
    %655 = vmatpush.msra.mxu0 %v487
    %656 = vmatpush.msra.mxu0 %v478
    %657 = vmatpush.msra.mxu0 %v469
    %658 = vmatpush.msra.mxu0 %v460
    %659 = vmatpush.msra.mxu0 %v451
    %660 = vmatpush.msra.mxu0 %v442
    %661 = vmatpush.msra.mxu0 %v433
    %662 = vmatpush.msra.mxu0 %v424
    %663 = vmatpush.msra.mxu0 %v415
    %664 = vmatpush.msra.mxu0 %v406
    %665 = vmatpush.msra.mxu0 %v397
    %666 = vmatpush.msra.mxu0 %v388
    %667 = vmatpush.msra.mxu0 %v379
    %668 = vmatpush.msra.mxu0 %v370
    %669 = vmatpush.msra.mxu0 %v361
    %670 = vmatpush.msra.mxu0 %v352
    %671 = vmatmul.f32.gmra.mxu0 %v204
    %v672 = vpop.f32.mrf.mxu0
    %v673 = vadd.f32 %v653, %v672
    %674 = vdwg.mxu0
    %675 = vmatpush.msra.mxu0 %v344
    %676 = vmatpush.msra.mxu0 %v335
    %677 = vmatpush.msra.mxu0 %v326
    %678 = vmatpush.msra.mxu0 %v317
    %679 = vmatpush.msra.mxu0 %v308
    %680 = vmatpush.msra.mxu0 %v299
    %681 = vmatpush.msra.mxu0 %v290
    %682 = vmatpush.msra.mxu0 %v281
    %683 = vmatpush.msra.mxu0 %v272
    %684 = vmatpush.msra.mxu0 %v263
    %685 = vmatpush.msra.mxu0 %v254
    %686 = vmatpush.msra.mxu0 %v245
    %687 = vmatpush.msra.mxu0 %v236
    %688 = vmatpush.msra.mxu0 %v227
    %689 = vmatpush.msra.mxu0 %v218
    %690 = vmatpush.msra.mxu0 %v209
    %691 = vmatmul.f32.gmra.mxu0 %v203
    %v692 = vpop.f32.mrf.mxu0
    %v693 = vadd.f32 %v501, %v692
    %694 = vdwg.mxu0
    %695 = vmatpush.msra.mxu0 %v488
    %696 = vmatpush.msra.mxu0 %v479
    %697 = vmatpush.msra.mxu0 %v470
    %698 = vmatpush.msra.mxu0 %v461
    %699 = vmatpush.msra.mxu0 %v452
    %700 = vmatpush.msra.mxu0 %v443
    %701 = vmatpush.msra.mxu0 %v434
    %702 = vmatpush.msra.mxu0 %v425
    %703 = vmatpush.msra.mxu0 %v416
    %704 = vmatpush.msra.mxu0 %v407
    %705 = vmatpush.msra.mxu0 %v398
    %706 = vmatpush.msra.mxu0 %v389
    %707 = vmatpush.msra.mxu0 %v380
    %708 = vmatpush.msra.mxu0 %v371
    %709 = vmatpush.msra.mxu0 %v362
    %710 = vmatpush.msra.mxu0 %v353
    %711 = vmatmul.f32.gmra.mxu0 %v204
    %v712 = vpop.f32.mrf.mxu0
    %v713 = vadd.f32 %v693, %v712
    %714 = vdwg.mxu0
    %715 = vmatpush.msra.mxu0 %v345
    %716 = vmatpush.msra.mxu0 %v336
    %717 = vmatpush.msra.mxu0 %v327
    %718 = vmatpush.msra.mxu0 %v318
    %719 = vmatpush.msra.mxu0 %v309
    %720 = vmatpush.msra.mxu0 %v300
    %721 = vmatpush.msra.mxu0 %v291
    %722 = vmatpush.msra.mxu0 %v282
    %723 = vmatpush.msra.mxu0 %v273
    %724 = vmatpush.msra.mxu0 %v264
    %725 = vmatpush.msra.mxu0 %v255
    %726 = vmatpush.msra.mxu0 %v246
    %727 = vmatpush.msra.mxu0 %v237
    %728 = vmatpush.msra.mxu0 %v228
    %729 = vmatpush.msra.mxu0 %v219
    %730 = vmatpush.msra.mxu0 %v210
    %731 = vmatmul.f32.gmra.mxu0 %v203
    %v732 = vpop.f32.mrf.mxu0
    %v733 = vadd.f32 %v502, %v732
    %734 = vdwg.mxu0
    %735 = vmatpush.msra.mxu0 %v489
    %736 = vmatpush.msra.mxu0 %v480
    %737 = vmatpush.msra.mxu0 %v471
    %738 = vmatpush.msra.mxu0 %v462
    %739 = vmatpush.msra.mxu0 %v453
    %740 = vmatpush.msra.mxu0 %v444
    %741 = vmatpush.msra.mxu0 %v435
    %742 = vmatpush.msra.mxu0 %v426
    %743 = vmatpush.msra.mxu0 %v417
    %744 = vmatpush.msra.mxu0 %v408
    %745 = vmatpush.msra.mxu0 %v399
    %746 = vmatpush.msra.mxu0 %v390
    %747 = vmatpush.msra.mxu0 %v381
    %748 = vmatpush.msra.mxu0 %v372
    %749 = vmatpush.msra.mxu0 %v363
    %750 = vmatpush.msra.mxu0 %v354
    %751 = vmatmul.f32.gmra.mxu0 %v204
    %v752 = vpop.f32.mrf.mxu0
    %v753 = vadd.f32 %v733, %v752
    %754 = vdwg.mxu0
    %755 = vmatpush.msra.mxu0 %v346
    %756 = vmatpush.msra.mxu0 %v337
    %757 = vmatpush.msra.mxu0 %v328
    %758 = vmatpush.msra.mxu0 %v319
    %759 = vmatpush.msra.mxu0 %v310
    %760 = vmatpush.msra.mxu0 %v301
    %761 = vmatpush.msra.mxu0 %v292
    %762 = vmatpush.msra.mxu0 %v283
    %763 = vmatpush.msra.mxu0 %v274
    %764 = vmatpush.msra.mxu0 %v265
    %765 = vmatpush.msra.mxu0 %v256
    %766 = vmatpush.msra.mxu0 %v247
    %767 = vmatpush.msra.mxu0 %v238
    %768 = vmatpush.msra.mxu0 %v229
    %769 = vmatpush.msra.mxu0 %v220
    %770 = vmatpush.msra.mxu0 %v211
    %771 = vmatmul.f32.gmra.mxu0 %v203
    %v772 = vpop.f32.mrf.mxu0
    %v773 = vadd.f32 %v503, %v772
    %774 = vdwg.mxu0
    %775 = vmatpush.msra.mxu0 %v490
    %776 = vmatpush.msra.mxu0 %v481
    %777 = vmatpush.msra.mxu0 %v472
    %778 = vmatpush.msra.mxu0 %v463
    %779 = vmatpush.msra.mxu0 %v454
    %780 = vmatpush.msra.mxu0 %v445
    %781 = vmatpush.msra.mxu0 %v436
    %782 = vmatpush.msra.mxu0 %v427
    %783 = vmatpush.msra.mxu0 %v418
    %784 = vmatpush.msra.mxu0 %v409
    %785 = vmatpush.msra.mxu0 %v400
    %786 = vmatpush.msra.mxu0 %v391
    %787 = vmatpush.msra.mxu0 %v382
    %788 = vmatpush.msra.mxu0 %v373
    %789 = vmatpush.msra.mxu0 %v364
    %790 = vmatpush.msra.mxu0 %v355
    %791 = vmatmul.f32.gmra.mxu0 %v204
    %v792 = vpop.f32.mrf.mxu0
    %v793 = vadd.f32 %v773, %v792
    %794 = vdwg.mxu0
    %795 = vmatpush.msra.mxu0 %v347
    %796 = vmatpush.msra.mxu0 %v338
    %797 = vmatpush.msra.mxu0 %v329
    %798 = vmatpush.msra.mxu0 %v320
    %799 = vmatpush.msra.mxu0 %v311
    %800 = vmatpush.msra.mxu0 %v302
    %801 = vmatpush.msra.mxu0 %v293
    %802 = vmatpush.msra.mxu0 %v284
    %803 = vmatpush.msra.mxu0 %v275
    %804 = vmatpush.msra.mxu0 %v266
    %805 = vmatpush.msra.mxu0 %v257
    %806 = vmatpush.msra.mxu0 %v248
    %807 = vmatpush.msra.mxu0 %v239
    %808 = vmatpush.msra.mxu0 %v230
    %809 = vmatpush.msra.mxu0 %v221
    %810 = vmatpush.msra.mxu0 %v212
    %811 = vmatmul.f32.gmra.mxu0 %v203
    %v812 = vpop.f32.mrf.mxu0
    %v813 = vadd.f32 %v504, %v812
    %814 = vdwg.mxu0
    %815 = vmatpush.msra.mxu0 %v491
    %816 = vmatpush.msra.mxu0 %v482
    %817 = vmatpush.msra.mxu0 %v473
    %818 = vmatpush.msra.mxu0 %v464
    %819 = vmatpush.msra.mxu0 %v455
    %820 = vmatpush.msra.mxu0 %v446
    %821 = vmatpush.msra.mxu0 %v437
    %822 = vmatpush.msra.mxu0 %v428
    %823 = vmatpush.msra.mxu0 %v419
    %824 = vmatpush.msra.mxu0 %v410
    %825 = vmatpush.msra.mxu0 %v401
    %826 = vmatpush.msra.mxu0 %v392
    %827 = vmatpush.msra.mxu0 %v383
    %828 = vmatpush.msra.mxu0 %v374
    %829 = vmatpush.msra.mxu0 %v365
    %830 = vmatpush.msra.mxu0 %v356
    %831 = vmatmul.f32.gmra.mxu0 %v204
    %v832 = vpop.f32.mrf.mxu0
    %v833 = vadd.f32 %v813, %v832
    %834 = vdwg.mxu0
    %835 = vmatpush.msra.mxu0 %v348
    %836 = vmatpush.msra.mxu0 %v339
    %837 = vmatpush.msra.mxu0 %v330
    %838 = vmatpush.msra.mxu0 %v321
    %839 = vmatpush.msra.mxu0 %v312
    %840 = vmatpush.msra.mxu0 %v303
    %841 = vmatpush.msra.mxu0 %v294
    %842 = vmatpush.msra.mxu0 %v285
    %843 = vmatpush.msra.mxu0 %v276
    %844 = vmatpush.msra.mxu0 %v267
    %845 = vmatpush.msra.mxu0 %v258
    %846 = vmatpush.msra.mxu0 %v249
    %847 = vmatpush.msra.mxu0 %v240
    %848 = vmatpush.msra.mxu0 %v231
    %849 = vmatpush.msra.mxu0 %v222
    %850 = vmatpush.msra.mxu0 %v213
    %851 = vmatmul.f32.gmra.mxu0 %v203
    %v852 = vpop.f32.mrf.mxu0
    %v853 = vadd.f32 %v505, %v852
    %854 = vdwg.mxu0
    %855 = vmatpush.msra.mxu0 %v492
    %856 = vmatpush.msra.mxu0 %v483
    %857 = vmatpush.msra.mxu0 %v474
    %858 = vmatpush.msra.mxu0 %v465
    %859 = vmatpush.msra.mxu0 %v456
    %860 = vmatpush.msra.mxu0 %v447
    %861 = vmatpush.msra.mxu0 %v438
    %862 = vmatpush.msra.mxu0 %v429
    %863 = vmatpush.msra.mxu0 %v420
    %864 = vmatpush.msra.mxu0 %v411
    %865 = vmatpush.msra.mxu0 %v402
    %866 = vmatpush.msra.mxu0 %v393
    %867 = vmatpush.msra.mxu0 %v384
    %868 = vmatpush.msra.mxu0 %v375
    %869 = vmatpush.msra.mxu0 %v366
    %870 = vmatpush.msra.mxu0 %v357
    %871 = vmatmul.f32.gmra.mxu0 %v204
    %v872 = vpop.f32.mrf.mxu0
    %v873 = vadd.f32 %v853, %v872
    %874 = vdwg.mxu0
    %875 = vst [vmem:[%s7] sm:$0xff] %v553
    %876 = vst [vmem:[%s7 + $0x8] sm:$0xff] %v593
    %877 = vst [vmem:[%s7 + $0x10] sm:$0xff] %v633
    %878 = vst [vmem:[%s7 + $0x18] sm:$0xff] %v161
    %v879 = vld [vmem:[#allocation9] sm:$0xff]
    %v880 = vld [vmem:[#allocation9 + $0x8] sm:$0xff]
    %v881 = vld [vmem:[#allocation9 + $0x10] sm:$0xff]
    %v882 = vld [vmem:[#allocation9 + $0x18] sm:$0xff]
    %v883 = vld [vmem:[#allocation9 + $0x20] sm:$0xff]
    %v884 = vld [vmem:[#allocation9 + $0x28] sm:$0xff]
    %v885 = vld [vmem:[#allocation9 + $0x30] sm:$0xff]
    %v886 = vld [vmem:[#allocation9 + $0x38] sm:$0xff]
    %v887 = vld [vmem:[#allocation9 + $0x40] sm:$0xff]
    %v888 = vld [vmem:[#allocation9 + $0x48] sm:$0xff]
    %v889 = vld [vmem:[#allocation9 + $0x50] sm:$0xff]
    %v890 = vld [vmem:[#allocation9 + $0x58] sm:$0xff]
    %v891 = vld [vmem:[#allocation9 + $0x60] sm:$0xff]
    %v892 = vld [vmem:[#allocation9 + $0x68] sm:$0xff]
    %v893 = vld [vmem:[#allocation9 + $0x70] sm:$0xff]
    %v894 = vld [vmem:[#allocation9 + $0x78] sm:$0xff]
    %v895 = vld [vmem:[#allocation9 + $0x80] sm:$0xff]
    %v896 = vld [vmem:[#allocation9 + $0x88] sm:$0xff]
    %v897 = vld [vmem:[#allocation9 + $0x90] sm:$0xff]
    %v898 = vld [vmem:[#allocation9 + $0x98] sm:$0xff]
    %v899 = vld [vmem:[#allocation9 + $0xa0] sm:$0xff]
    %v900 = vld [vmem:[#allocation9 + $0xa8] sm:$0xff]
    %v901 = vld [vmem:[#allocation9 + $0xb0] sm:$0xff]
    %v902 = vld [vmem:[#allocation9 + $0xb8] sm:$0xff]
    %v903 = vld [vmem:[#allocation9 + $0xc0] sm:$0xff]
    %v904 = vld [vmem:[#allocation9 + $0xc8] sm:$0xff]
    %v905 = vld [vmem:[#allocation9 + $0xd0] sm:$0xff]
    %v906 = vld [vmem:[#allocation9 + $0xd8] sm:$0xff]
    %v907 = vld [vmem:[#allocation9 + $0xe0] sm:$0xff]
    %v908 = vld [vmem:[#allocation9 + $0xe8] sm:$0xff]
    %v909 = vld [vmem:[#allocation9 + $0xf0] sm:$0xff]
    %v910 = vld [vmem:[#allocation9 + $0xf8] sm:$0xff]
    %v911 = vld [vmem:[#allocation9 + $0x100] sm:$0xff]
    %v912 = vld [vmem:[#allocation9 + $0x108] sm:$0xff]
    %v913 = vld [vmem:[#allocation9 + $0x110] sm:$0xff]
    %v914 = vld [vmem:[#allocation9 + $0x118] sm:$0xff]
    %v915 = vld [vmem:[#allocation9 + $0x120] sm:$0xff]
    %v916 = vld [vmem:[#allocation9 + $0x128] sm:$0xff]
    %v917 = vld [vmem:[#allocation9 + $0x130] sm:$0xff]
    %v918 = vld [vmem:[#allocation9 + $0x138] sm:$0xff]
    %v919 = vld [vmem:[#allocation9 + $0x140] sm:$0xff]
    %v920 = vld [vmem:[#allocation9 + $0x148] sm:$0xff]
    %v921 = vld [vmem:[#allocation9 + $0x150] sm:$0xff]
    %v922 = vld [vmem:[#allocation9 + $0x158] sm:$0xff]
    %v923 = vld [vmem:[#allocation9 + $0x160] sm:$0xff]
    %v924 = vld [vmem:[#allocation9 + $0x168] sm:$0xff]
    %v925 = vld [vmem:[#allocation9 + $0x170] sm:$0xff]
    %v926 = vld [vmem:[#allocation9 + $0x178] sm:$0xff]
    %v927 = vld [vmem:[#allocation9 + $0x180] sm:$0xff]
    %v928 = vld [vmem:[#allocation9 + $0x188] sm:$0xff]
    %v929 = vld [vmem:[#allocation9 + $0x190] sm:$0xff]
    %v930 = vld [vmem:[#allocation9 + $0x198] sm:$0xff]
    %v931 = vld [vmem:[#allocation9 + $0x1a0] sm:$0xff]
    %v932 = vld [vmem:[#allocation9 + $0x1a8] sm:$0xff]
    %v933 = vld [vmem:[#allocation9 + $0x1b0] sm:$0xff]
    %v934 = vld [vmem:[#allocation9 + $0x1b8] sm:$0xff]
    %v935 = vld [vmem:[#allocation9 + $0x1c0] sm:$0xff]
    %v936 = vld [vmem:[#allocation9 + $0x1c8] sm:$0xff]
    %v937 = vld [vmem:[#allocation9 + $0x1d0] sm:$0xff]
    %v938 = vld [vmem:[#allocation9 + $0x1d8] sm:$0xff]
    %v939 = vld [vmem:[#allocation9 + $0x1e0] sm:$0xff]
    %v940 = vld [vmem:[#allocation9 + $0x1e8] sm:$0xff]
    %v941 = vld [vmem:[#allocation9 + $0x1f0] sm:$0xff]
    %v942 = vld [vmem:[#allocation9 + $0x1f8] sm:$0xff]
    %v943 = vld [vmem:[#allocation9 + $0x200] sm:$0xff]
    %v944 = vld [vmem:[#allocation9 + $0x208] sm:$0xff]
    %v945 = vld [vmem:[#allocation9 + $0x210] sm:$0xff]
    %v946 = vld [vmem:[#allocation9 + $0x218] sm:$0xff]
    %v947 = vld [vmem:[#allocation9 + $0x220] sm:$0xff]
    %v948 = vld [vmem:[#allocation9 + $0x228] sm:$0xff]
    %v949 = vld [vmem:[#allocation9 + $0x230] sm:$0xff]
    %v950 = vld [vmem:[#allocation9 + $0x238] sm:$0xff]
    %v951 = vld [vmem:[#allocation9 + $0x240] sm:$0xff]
    %v952 = vld [vmem:[#allocation9 + $0x248] sm:$0xff]
    %v953 = vld [vmem:[#allocation9 + $0x250] sm:$0xff]
    %v954 = vld [vmem:[#allocation9 + $0x258] sm:$0xff]
    %v955 = vld [vmem:[#allocation9 + $0x260] sm:$0xff]
    %v956 = vld [vmem:[#allocation9 + $0x268] sm:$0xff]
    %v957 = vld [vmem:[#allocation9 + $0x270] sm:$0xff]
    %v958 = vld [vmem:[#allocation9 + $0x278] sm:$0xff]
    %v959 = vld [vmem:[#allocation9 + $0x280] sm:$0xff]
    %v960 = vld [vmem:[#allocation9 + $0x288] sm:$0xff]
    %v961 = vld [vmem:[#allocation9 + $0x290] sm:$0xff]
    %v962 = vld [vmem:[#allocation9 + $0x298] sm:$0xff]
    %v963 = vld [vmem:[#allocation9 + $0x2a0] sm:$0xff]
    %v964 = vld [vmem:[#allocation9 + $0x2a8] sm:$0xff]
    %v965 = vld [vmem:[#allocation9 + $0x2b0] sm:$0xff]
    %v966 = vld [vmem:[#allocation9 + $0x2b8] sm:$0xff]
    %v967 = vld [vmem:[#allocation9 + $0x2c0] sm:$0xff]
    %v968 = vld [vmem:[#allocation9 + $0x2c8] sm:$0xff]
    %v969 = vld [vmem:[#allocation9 + $0x2d0] sm:$0xff]
    %v970 = vld [vmem:[#allocation9 + $0x2d8] sm:$0xff]
    %v971 = vld [vmem:[#allocation9 + $0x2e0] sm:$0xff]
    %v972 = vld [vmem:[#allocation9 + $0x2e8] sm:$0xff]
    %v973 = vld [vmem:[#allocation9 + $0x2f0] sm:$0xff]
    %v974 = vld [vmem:[#allocation9 + $0x2f8] sm:$0xff]
    %v975 = vld [vmem:[#allocation9 + $0x300] sm:$0xff]
    %v976 = vld [vmem:[#allocation9 + $0x308] sm:$0xff]
    %v977 = vld [vmem:[#allocation9 + $0x310] sm:$0xff]
    %v978 = vld [vmem:[#allocation9 + $0x318] sm:$0xff]
    %v979 = vld [vmem:[#allocation9 + $0x320] sm:$0xff]
    %v980 = vld [vmem:[#allocation9 + $0x328] sm:$0xff]
    %v981 = vld [vmem:[#allocation9 + $0x330] sm:$0xff]
    %v982 = vld [vmem:[#allocation9 + $0x338] sm:$0xff]
    %v983 = vld [vmem:[#allocation9 + $0x340] sm:$0xff]
    %v984 = vld [vmem:[#allocation9 + $0x348] sm:$0xff]
    %v985 = vld [vmem:[#allocation9 + $0x350] sm:$0xff]
    %v986 = vld [vmem:[#allocation9 + $0x358] sm:$0xff]
    %v987 = vld [vmem:[#allocation9 + $0x360] sm:$0xff]
    %v988 = vld [vmem:[#allocation9 + $0x368] sm:$0xff]
    %v989 = vld [vmem:[#allocation9 + $0x370] sm:$0xff]
    %v990 = vld [vmem:[#allocation9 + $0x378] sm:$0xff]
    %v991 = vld [vmem:[#allocation9 + $0x380] sm:$0xff]
    %v992 = vld [vmem:[#allocation9 + $0x388] sm:$0xff]
    %v993 = vld [vmem:[#allocation9 + $0x390] sm:$0xff]
    %v994 = vld [vmem:[#allocation9 + $0x398] sm:$0xff]
    %v995 = vld [vmem:[#allocation9 + $0x3a0] sm:$0xff]
    %v996 = vld [vmem:[#allocation9 + $0x3a8] sm:$0xff]
    %v997 = vld [vmem:[#allocation9 + $0x3b0] sm:$0xff]
    %v998 = vld [vmem:[#allocation9 + $0x3b8] sm:$0xff]
    %v999 = vld [vmem:[#allocation9 + $0x3c0] sm:$0xff]
    %v1000 = vld [vmem:[#allocation9 + $0x3c8] sm:$0xff]
    %v1001 = vld [vmem:[#allocation9 + $0x3d0] sm:$0xff]
    %v1002 = vld [vmem:[#allocation9 + $0x3d8] sm:$0xff]
    %v1003 = vld [vmem:[#allocation9 + $0x3e0] sm:$0xff]
    %v1004 = vld [vmem:[#allocation9 + $0x3e8] sm:$0xff]
    %v1005 = vld [vmem:[#allocation9 + $0x3f0] sm:$0xff]
    %v1006 = vld [vmem:[#allocation9 + $0x3f8] sm:$0xff]
    %v1007 = vld [vmem:[#allocation10] sm:$0xff]
    %v1008 = vld [vmem:[#allocation10 + $0x8] sm:$0xff]
    %v1009 = vld [vmem:[#allocation10 + $0x10] sm:$0xff]
    %v1010 = vld [vmem:[#allocation10 + $0x18] sm:$0xff]
    %v1011 = vld [vmem:[#allocation10 + $0x20] sm:$0xff]
    %v1012 = vld [vmem:[#allocation10 + $0x28] sm:$0xff]
    %v1013 = vld [vmem:[#allocation10 + $0x30] sm:$0xff]
    %v1014 = vld [vmem:[#allocation10 + $0x38] sm:$0xff]
    %v1015 = vld [vmem:[#allocation10 + $0x40] sm:$0xff]
    %v1016 = vld [vmem:[#allocation10 + $0x48] sm:$0xff]
    %v1017 = vld [vmem:[#allocation10 + $0x50] sm:$0xff]
    %v1018 = vld [vmem:[#allocation10 + $0x58] sm:$0xff]
    %v1019 = vld [vmem:[#allocation10 + $0x60] sm:$0xff]
    %v1020 = vld [vmem:[#allocation10 + $0x68] sm:$0xff]
    %v1021 = vld [vmem:[#allocation10 + $0x70] sm:$0xff]
    %v1022 = vld [vmem:[#allocation10 + $0x78] sm:$0xff]
    %v1023 = vld [vmem:[#allocation10 + $0x80] sm:$0xff]
    %v1024 = vld [vmem:[#allocation10 + $0x88] sm:$0xff]
    %v1025 = vld [vmem:[#allocation10 + $0x90] sm:$0xff]
    %v1026 = vld [vmem:[#allocation10 + $0x98] sm:$0xff]
    %v1027 = vld [vmem:[#allocation10 + $0xa0] sm:$0xff]
    %v1028 = vld [vmem:[#allocation10 + $0xa8] sm:$0xff]
    %v1029 = vld [vmem:[#allocation10 + $0xb0] sm:$0xff]
    %v1030 = vld [vmem:[#allocation10 + $0xb8] sm:$0xff]
    %v1031 = vld [vmem:[#allocation10 + $0xc0] sm:$0xff]
    %v1032 = vld [vmem:[#allocation10 + $0xc8] sm:$0xff]
    %v1033 = vld [vmem:[#allocation10 + $0xd0] sm:$0xff]
    %v1034 = vld [vmem:[#allocation10 + $0xd8] sm:$0xff]
    %v1035 = vld [vmem:[#allocation10 + $0xe0] sm:$0xff]
    %v1036 = vld [vmem:[#allocation10 + $0xe8] sm:$0xff]
    %v1037 = vld [vmem:[#allocation10 + $0xf0] sm:$0xff]
    %v1038 = vld [vmem:[#allocation10 + $0xf8] sm:$0xff]
    %v1039 = vld [vmem:[#allocation10 + $0x100] sm:$0xff]
    %v1040 = vld [vmem:[#allocation10 + $0x108] sm:$0xff]
    %v1041 = vld [vmem:[#allocation10 + $0x110] sm:$0xff]
    %v1042 = vld [vmem:[#allocation10 + $0x118] sm:$0xff]
    %v1043 = vld [vmem:[#allocation10 + $0x120] sm:$0xff]
    %v1044 = vld [vmem:[#allocation10 + $0x128] sm:$0xff]
    %v1045 = vld [vmem:[#allocation10 + $0x130] sm:$0xff]
    %v1046 = vld [vmem:[#allocation10 + $0x138] sm:$0xff]
    %v1047 = vld [vmem:[#allocation10 + $0x140] sm:$0xff]
    %v1048 = vld [vmem:[#allocation10 + $0x148] sm:$0xff]
    %v1049 = vld [vmem:[#allocation10 + $0x150] sm:$0xff]
    %v1050 = vld [vmem:[#allocation10 + $0x158] sm:$0xff]
    %v1051 = vld [vmem:[#allocation10 + $0x160] sm:$0xff]
    %v1052 = vld [vmem:[#allocation10 + $0x168] sm:$0xff]
    %v1053 = vld [vmem:[#allocation10 + $0x170] sm:$0xff]
    %v1054 = vld [vmem:[#allocation10 + $0x178] sm:$0xff]
    %v1055 = vld [vmem:[#allocation10 + $0x180] sm:$0xff]
    %v1056 = vld [vmem:[#allocation10 + $0x188] sm:$0xff]
    %v1057 = vld [vmem:[#allocation10 + $0x190] sm:$0xff]
    %v1058 = vld [vmem:[#allocation10 + $0x198] sm:$0xff]
    %v1059 = vld [vmem:[#allocation10 + $0x1a0] sm:$0xff]
    %v1060 = vld [vmem:[#allocation10 + $0x1a8] sm:$0xff]
    %v1061 = vld [vmem:[#allocation10 + $0x1b0] sm:$0xff]
    %v1062 = vld [vmem:[#allocation10 + $0x1b8] sm:$0xff]
    %v1063 = vld [vmem:[#allocation10 + $0x1c0] sm:$0xff]
    %v1064 = vld [vmem:[#allocation10 + $0x1c8] sm:$0xff]
    %v1065 = vld [vmem:[#allocation10 + $0x1d0] sm:$0xff]
    %v1066 = vld [vmem:[#allocation10 + $0x1d8] sm:$0xff]
    %v1067 = vld [vmem:[#allocation10 + $0x1e0] sm:$0xff]
    %v1068 = vld [vmem:[#allocation10 + $0x1e8] sm:$0xff]
    %v1069 = vld [vmem:[#allocation10 + $0x1f0] sm:$0xff]
    %v1070 = vld [vmem:[#allocation10 + $0x1f8] sm:$0xff]
    %vm1071 = vcmask 523264
    %v1073 = vsel %vm1071, %v673, 0
    %1075 = vmatpush.msra.mxu0 0.0
    %1076 = vmatpush.msra.mxu0 0.0
    %1077 = vmatpush.msra.mxu0 0.0
    %1078 = vmatpush.msra.mxu0 0.0
    %1079 = vmatpush.msra.mxu0 0.0
    %1080 = vmatpush.msra.mxu0 0.0
    %1081 = vmatpush.msra.mxu0 0.0
    %1082 = vmatpush.msra.mxu0 0.0
    %1083 = vmatpush.msra.mxu0 %v991
    %1084 = vmatpush.msra.mxu0 %v975
    %1085 = vmatpush.msra.mxu0 %v959
    %1086 = vmatpush.msra.mxu0 %v943
    %1087 = vmatpush.msra.mxu0 %v927
    %1088 = vmatpush.msra.mxu0 %v911
    %1089 = vmatpush.msra.mxu0 %v895
    %1090 = vmatpush.msra.mxu0 %v879
    %1091 = vmatmul.f32.gmra.mxu0 %v1073
    %v1092 = vpop.f32.mrf.mxu0
    %v1093 = vadd.f32 0.0, %v1092
    %1094 = vdwg.mxu0
    %1095 = vmatpush.msra.mxu0 0.0
    %1096 = vmatpush.msra.mxu0 0.0
    %1097 = vmatpush.msra.mxu0 0.0
    %1098 = vmatpush.msra.mxu0 0.0
    %1099 = vmatpush.msra.mxu0 0.0
    %1100 = vmatpush.msra.mxu0 0.0
    %1101 = vmatpush.msra.mxu0 0.0
    %1102 = vmatpush.msra.mxu0 0.0
    %1103 = vmatpush.msra.mxu0 %v992
    %1104 = vmatpush.msra.mxu0 %v976
    %1105 = vmatpush.msra.mxu0 %v960
    %1106 = vmatpush.msra.mxu0 %v944
    %1107 = vmatpush.msra.mxu0 %v928
    %1108 = vmatpush.msra.mxu0 %v912
    %1109 = vmatpush.msra.mxu0 %v896
    %1110 = vmatpush.msra.mxu0 %v880
    %1111 = vmatmul.f32.gmra.mxu0 %v1073
    %v1112 = vpop.f32.mrf.mxu0
    %v1113 = vadd.f32 0.0, %v1112
    %1114 = vdwg.mxu0
    %1115 = vmatpush.msra.mxu0 0.0
    %1116 = vmatpush.msra.mxu0 0.0
    %1117 = vmatpush.msra.mxu0 0.0
    %1118 = vmatpush.msra.mxu0 0.0
    %1119 = vmatpush.msra.mxu0 0.0
    %1120 = vmatpush.msra.mxu0 0.0
    %1121 = vmatpush.msra.mxu0 0.0
    %1122 = vmatpush.msra.mxu0 0.0
    %1123 = vmatpush.msra.mxu0 %v993
    %1124 = vmatpush.msra.mxu0 %v977
    %1125 = vmatpush.msra.mxu0 %v961
    %1126 = vmatpush.msra.mxu0 %v945
    %1127 = vmatpush.msra.mxu0 %v929
    %1128 = vmatpush.msra.mxu0 %v913
    %1129 = vmatpush.msra.mxu0 %v897
    %1130 = vmatpush.msra.mxu0 %v881
    %1131 = vmatmul.f32.gmra.mxu0 %v1073
    %v1132 = vpop.f32.mrf.mxu0
    %v1133 = vadd.f32 0.0, %v1132
    %1134 = vdwg.mxu0
    %1135 = vmatpush.msra.mxu0 0.0
    %1136 = vmatpush.msra.mxu0 0.0
    %1137 = vmatpush.msra.mxu0 0.0
    %1138 = vmatpush.msra.mxu0 0.0
    %1139 = vmatpush.msra.mxu0 0.0
    %1140 = vmatpush.msra.mxu0 0.0
    %1141 = vmatpush.msra.mxu0 0.0
    %1142 = vmatpush.msra.mxu0 0.0
    %1143 = vmatpush.msra.mxu0 %v994
    %1144 = vmatpush.msra.mxu0 %v978
    %1145 = vmatpush.msra.mxu0 %v962
    %1146 = vmatpush.msra.mxu0 %v946
    %1147 = vmatpush.msra.mxu0 %v930
    %1148 = vmatpush.msra.mxu0 %v914
    %1149 = vmatpush.msra.mxu0 %v898
    %1150 = vmatpush.msra.mxu0 %v882
    %1151 = vmatmul.f32.gmra.mxu0 %v1073
    %v1152 = vpop.f32.mrf.mxu0
    %v1153 = vadd.f32 0.0, %v1152
    %1154 = vdwg.mxu0
    %1155 = vmatpush.msra.mxu0 0.0
    %1156 = vmatpush.msra.mxu0 0.0
    %1157 = vmatpush.msra.mxu0 0.0
    %1158 = vmatpush.msra.mxu0 0.0
    %1159 = vmatpush.msra.mxu0 0.0
    %1160 = vmatpush.msra.mxu0 0.0
    %1161 = vmatpush.msra.mxu0 0.0
    %1162 = vmatpush.msra.mxu0 0.0
    %1163 = vmatpush.msra.mxu0 %v995
    %1164 = vmatpush.msra.mxu0 %v979
    %1165 = vmatpush.msra.mxu0 %v963
    %1166 = vmatpush.msra.mxu0 %v947
    %1167 = vmatpush.msra.mxu0 %v931
    %1168 = vmatpush.msra.mxu0 %v915
    %1169 = vmatpush.msra.mxu0 %v899
    %1170 = vmatpush.msra.mxu0 %v883
    %1171 = vmatmul.f32.gmra.mxu0 %v1073
    %v1172 = vpop.f32.mrf.mxu0
    %v1173 = vadd.f32 0.0, %v1172
    %1174 = vdwg.mxu0
    %1175 = vmatpush.msra.mxu0 0.0
    %1176 = vmatpush.msra.mxu0 0.0
    %1177 = vmatpush.msra.mxu0 0.0
    %1178 = vmatpush.msra.mxu0 0.0
    %1179 = vmatpush.msra.mxu0 0.0
    %1180 = vmatpush.msra.mxu0 0.0
    %1181 = vmatpush.msra.mxu0 0.0
    %1182 = vmatpush.msra.mxu0 0.0
    %1183 = vmatpush.msra.mxu0 %v996
    %1184 = vmatpush.msra.mxu0 %v980
    %1185 = vmatpush.msra.mxu0 %v964
    %1186 = vmatpush.msra.mxu0 %v948
    %1187 = vmatpush.msra.mxu0 %v932
    %1188 = vmatpush.msra.mxu0 %v916
    %1189 = vmatpush.msra.mxu0 %v900
    %1190 = vmatpush.msra.mxu0 %v884
    %1191 = vmatmul.f32.gmra.mxu0 %v1073
    %v1192 = vpop.f32.mrf.mxu0
    %v1193 = vadd.f32 0.0, %v1192
    %1194 = vdwg.mxu0
    %1195 = vmatpush.msra.mxu0 0.0
    %1196 = vmatpush.msra.mxu0 0.0
    %1197 = vmatpush.msra.mxu0 0.0
    %1198 = vmatpush.msra.mxu0 0.0
    %1199 = vmatpush.msra.mxu0 0.0
    %1200 = vmatpush.msra.mxu0 0.0
    %1201 = vmatpush.msra.mxu0 0.0
    %1202 = vmatpush.msra.mxu0 0.0
    %1203 = vmatpush.msra.mxu0 %v997
    %1204 = vmatpush.msra.mxu0 %v981
    %1205 = vmatpush.msra.mxu0 %v965
    %1206 = vmatpush.msra.mxu0 %v949
    %1207 = vmatpush.msra.mxu0 %v933
    %1208 = vmatpush.msra.mxu0 %v917
    %1209 = vmatpush.msra.mxu0 %v901
    %1210 = vmatpush.msra.mxu0 %v885
    %1211 = vmatmul.f32.gmra.mxu0 %v1073
    %v1212 = vpop.f32.mrf.mxu0
    %v1213 = vadd.f32 0.0, %v1212
    %1214 = vdwg.mxu0
    %1215 = vmatpush.msra.mxu0 0.0
    %1216 = vmatpush.msra.mxu0 0.0
    %1217 = vmatpush.msra.mxu0 0.0
    %1218 = vmatpush.msra.mxu0 0.0
    %1219 = vmatpush.msra.mxu0 0.0
    %1220 = vmatpush.msra.mxu0 0.0
    %1221 = vmatpush.msra.mxu0 0.0
    %1222 = vmatpush.msra.mxu0 0.0
    %1223 = vmatpush.msra.mxu0 %v998
    %1224 = vmatpush.msra.mxu0 %v982
    %1225 = vmatpush.msra.mxu0 %v966
    %1226 = vmatpush.msra.mxu0 %v950
    %1227 = vmatpush.msra.mxu0 %v934
    %1228 = vmatpush.msra.mxu0 %v918
    %1229 = vmatpush.msra.mxu0 %v902
    %1230 = vmatpush.msra.mxu0 %v886
    %1231 = vmatmul.f32.gmra.mxu0 %v1073
    %v1232 = vpop.f32.mrf.mxu0
    %v1233 = vadd.f32 0.0, %v1232
    %1234 = vdwg.mxu0
    %1235 = vmatpush.msra.mxu0 0.0
    %1236 = vmatpush.msra.mxu0 0.0
    %1237 = vmatpush.msra.mxu0 0.0
    %1238 = vmatpush.msra.mxu0 0.0
    %1239 = vmatpush.msra.mxu0 0.0
    %1240 = vmatpush.msra.mxu0 0.0
    %1241 = vmatpush.msra.mxu0 0.0
    %1242 = vmatpush.msra.mxu0 0.0
    %1243 = vmatpush.msra.mxu0 %v999
    %1244 = vmatpush.msra.mxu0 %v983
    %1245 = vmatpush.msra.mxu0 %v967
    %1246 = vmatpush.msra.mxu0 %v951
    %1247 = vmatpush.msra.mxu0 %v935
    %1248 = vmatpush.msra.mxu0 %v919
    %1249 = vmatpush.msra.mxu0 %v903
    %1250 = vmatpush.msra.mxu0 %v887
    %1251 = vmatmul.f32.gmra.mxu0 %v1073
    %v1252 = vpop.f32.mrf.mxu0
    %v1253 = vadd.f32 0.0, %v1252
    %1254 = vdwg.mxu0
    %1255 = vmatpush.msra.mxu0 0.0
    %1256 = vmatpush.msra.mxu0 0.0
    %1257 = vmatpush.msra.mxu0 0.0
    %1258 = vmatpush.msra.mxu0 0.0
    %1259 = vmatpush.msra.mxu0 0.0
    %1260 = vmatpush.msra.mxu0 0.0
    %1261 = vmatpush.msra.mxu0 0.0
    %1262 = vmatpush.msra.mxu0 0.0
    %1263 = vmatpush.msra.mxu0 %v1000
    %1264 = vmatpush.msra.mxu0 %v984
    %1265 = vmatpush.msra.mxu0 %v968
    %1266 = vmatpush.msra.mxu0 %v952
    %1267 = vmatpush.msra.mxu0 %v936
    %1268 = vmatpush.msra.mxu0 %v920
    %1269 = vmatpush.msra.mxu0 %v904
    %1270 = vmatpush.msra.mxu0 %v888
    %1271 = vmatmul.f32.gmra.mxu0 %v1073
    %v1272 = vpop.f32.mrf.mxu0
    %v1273 = vadd.f32 0.0, %v1272
    %1274 = vdwg.mxu0
    %1275 = vmatpush.msra.mxu0 0.0
    %1276 = vmatpush.msra.mxu0 0.0
    %1277 = vmatpush.msra.mxu0 0.0
    %1278 = vmatpush.msra.mxu0 0.0
    %1279 = vmatpush.msra.mxu0 0.0
    %1280 = vmatpush.msra.mxu0 0.0
    %1281 = vmatpush.msra.mxu0 0.0
    %1282 = vmatpush.msra.mxu0 0.0
    %1283 = vmatpush.msra.mxu0 %v1001
    %1284 = vmatpush.msra.mxu0 %v985
    %1285 = vmatpush.msra.mxu0 %v969
    %1286 = vmatpush.msra.mxu0 %v953
    %1287 = vmatpush.msra.mxu0 %v937
    %1288 = vmatpush.msra.mxu0 %v921
    %1289 = vmatpush.msra.mxu0 %v905
    %1290 = vmatpush.msra.mxu0 %v889
    %1291 = vmatmul.f32.gmra.mxu0 %v1073
    %v1292 = vpop.f32.mrf.mxu0
    %v1293 = vadd.f32 0.0, %v1292
    %1294 = vdwg.mxu0
    %1295 = vmatpush.msra.mxu0 0.0
    %1296 = vmatpush.msra.mxu0 0.0
    %1297 = vmatpush.msra.mxu0 0.0
    %1298 = vmatpush.msra.mxu0 0.0
    %1299 = vmatpush.msra.mxu0 0.0
    %1300 = vmatpush.msra.mxu0 0.0
    %1301 = vmatpush.msra.mxu0 0.0
    %1302 = vmatpush.msra.mxu0 0.0
    %1303 = vmatpush.msra.mxu0 %v1002
    %1304 = vmatpush.msra.mxu0 %v986
    %1305 = vmatpush.msra.mxu0 %v970
    %1306 = vmatpush.msra.mxu0 %v954
    %1307 = vmatpush.msra.mxu0 %v938
    %1308 = vmatpush.msra.mxu0 %v922
    %1309 = vmatpush.msra.mxu0 %v906
    %1310 = vmatpush.msra.mxu0 %v890
    %1311 = vmatmul.f32.gmra.mxu0 %v1073
    %v1312 = vpop.f32.mrf.mxu0
    %v1313 = vadd.f32 0.0, %v1312
    %1314 = vdwg.mxu0
    %1315 = vmatpush.msra.mxu0 0.0
    %1316 = vmatpush.msra.mxu0 0.0
    %1317 = vmatpush.msra.mxu0 0.0
    %1318 = vmatpush.msra.mxu0 0.0
    %1319 = vmatpush.msra.mxu0 0.0
    %1320 = vmatpush.msra.mxu0 0.0
    %1321 = vmatpush.msra.mxu0 0.0
    %1322 = vmatpush.msra.mxu0 0.0
    %1323 = vmatpush.msra.mxu0 %v1003
    %1324 = vmatpush.msra.mxu0 %v987
    %1325 = vmatpush.msra.mxu0 %v971
    %1326 = vmatpush.msra.mxu0 %v955
    %1327 = vmatpush.msra.mxu0 %v939
    %1328 = vmatpush.msra.mxu0 %v923
    %1329 = vmatpush.msra.mxu0 %v907
    %1330 = vmatpush.msra.mxu0 %v891
    %1331 = vmatmul.f32.gmra.mxu0 %v1073
    %v1332 = vpop.f32.mrf.mxu0
    %v1333 = vadd.f32 0.0, %v1332
    %1334 = vdwg.mxu0
    %1335 = vmatpush.msra.mxu0 0.0
    %1336 = vmatpush.msra.mxu0 0.0
    %1337 = vmatpush.msra.mxu0 0.0
    %1338 = vmatpush.msra.mxu0 0.0
    %1339 = vmatpush.msra.mxu0 0.0
    %1340 = vmatpush.msra.mxu0 0.0
    %1341 = vmatpush.msra.mxu0 0.0
    %1342 = vmatpush.msra.mxu0 0.0
    %1343 = vmatpush.msra.mxu0 %v1004
    %1344 = vmatpush.msra.mxu0 %v988
    %1345 = vmatpush.msra.mxu0 %v972
    %1346 = vmatpush.msra.mxu0 %v956
    %1347 = vmatpush.msra.mxu0 %v940
    %1348 = vmatpush.msra.mxu0 %v924
    %1349 = vmatpush.msra.mxu0 %v908
    %1350 = vmatpush.msra.mxu0 %v892
    %1351 = vmatmul.f32.gmra.mxu0 %v1073
    %v1352 = vpop.f32.mrf.mxu0
    %v1353 = vadd.f32 0.0, %v1352
    %1354 = vdwg.mxu0
    %1355 = vmatpush.msra.mxu0 0.0
    %1356 = vmatpush.msra.mxu0 0.0
    %1357 = vmatpush.msra.mxu0 0.0
    %1358 = vmatpush.msra.mxu0 0.0
    %1359 = vmatpush.msra.mxu0 0.0
    %1360 = vmatpush.msra.mxu0 0.0
    %1361 = vmatpush.msra.mxu0 0.0
    %1362 = vmatpush.msra.mxu0 0.0
    %1363 = vmatpush.msra.mxu0 %v1005
    %1364 = vmatpush.msra.mxu0 %v989
    %1365 = vmatpush.msra.mxu0 %v973
    %1366 = vmatpush.msra.mxu0 %v957
    %1367 = vmatpush.msra.mxu0 %v941
    %1368 = vmatpush.msra.mxu0 %v925
    %1369 = vmatpush.msra.mxu0 %v909
    %1370 = vmatpush.msra.mxu0 %v893
    %1371 = vmatmul.f32.gmra.mxu0 %v1073
    %v1372 = vpop.f32.mrf.mxu0
    %v1373 = vadd.f32 0.0, %v1372
    %1374 = vdwg.mxu0
    %1375 = vmatpush.msra.mxu0 0.0
    %1376 = vmatpush.msra.mxu0 0.0
    %1377 = vmatpush.msra.mxu0 0.0
    %1378 = vmatpush.msra.mxu0 0.0
    %1379 = vmatpush.msra.mxu0 0.0
    %1380 = vmatpush.msra.mxu0 0.0
    %1381 = vmatpush.msra.mxu0 0.0
    %1382 = vmatpush.msra.mxu0 0.0
    %1383 = vmatpush.msra.mxu0 %v1006
    %1384 = vmatpush.msra.mxu0 %v990
    %1385 = vmatpush.msra.mxu0 %v974
    %1386 = vmatpush.msra.mxu0 %v958
    %1387 = vmatpush.msra.mxu0 %v942
    %1388 = vmatpush.msra.mxu0 %v926
    %1389 = vmatpush.msra.mxu0 %v910
    %1390 = vmatpush.msra.mxu0 %v894
    %1391 = vmatmul.f32.gmra.mxu0 %v1073
    %v1392 = vpop.f32.mrf.mxu0
    %v1393 = vadd.f32 0.0, %v1392
    %1394 = vdwg.mxu0
    %v1396 = vsel %vm139, %v833, 0
    %1398 = vmatpush.msra.mxu0 0.0
    %1399 = vmatpush.msra.mxu0 0.0
    %1400 = vmatpush.msra.mxu0 0.0
    %1401 = vmatpush.msra.mxu0 0.0
    %1402 = vmatpush.msra.mxu0 0.0
    %1403 = vmatpush.msra.mxu0 0.0
    %1404 = vmatpush.msra.mxu0 0.0
    %1405 = vmatpush.msra.mxu0 0.0
    %1406 = vmatpush.msra.mxu0 0.0
    %1407 = vmatpush.msra.mxu0 0.0
    %1408 = vmatpush.msra.mxu0 0.0
    %1409 = vmatpush.msra.mxu0 0.0
    %1410 = vmatpush.msra.mxu0 %v1055
    %1411 = vmatpush.msra.mxu0 %v1039
    %1412 = vmatpush.msra.mxu0 %v1023
    %1413 = vmatpush.msra.mxu0 %v1007
    %1414 = vmatmul.f32.gmra.mxu0 %v1396
    %v1415 = vpop.f32.mrf.mxu0
    %v1416 = vadd.f32 0.0, %v1415
    %1417 = vdwg.mxu0
    %1418 = vmatpush.msra.mxu0 0.0
    %1419 = vmatpush.msra.mxu0 0.0
    %1420 = vmatpush.msra.mxu0 0.0
    %1421 = vmatpush.msra.mxu0 0.0
    %1422 = vmatpush.msra.mxu0 0.0
    %1423 = vmatpush.msra.mxu0 0.0
    %1424 = vmatpush.msra.mxu0 0.0
    %1425 = vmatpush.msra.mxu0 0.0
    %1426 = vmatpush.msra.mxu0 0.0
    %1427 = vmatpush.msra.mxu0 0.0
    %1428 = vmatpush.msra.mxu0 0.0
    %1429 = vmatpush.msra.mxu0 0.0
    %1430 = vmatpush.msra.mxu0 %v1056
    %1431 = vmatpush.msra.mxu0 %v1040
    %1432 = vmatpush.msra.mxu0 %v1024
    %1433 = vmatpush.msra.mxu0 %v1008
    %1434 = vmatmul.f32.gmra.mxu0 %v1396
    %v1435 = vpop.f32.mrf.mxu0
    %v1436 = vadd.f32 0.0, %v1435
    %1437 = vdwg.mxu0
    %1438 = vmatpush.msra.mxu0 0.0
    %1439 = vmatpush.msra.mxu0 0.0
    %1440 = vmatpush.msra.mxu0 0.0
    %1441 = vmatpush.msra.mxu0 0.0
    %1442 = vmatpush.msra.mxu0 0.0
    %1443 = vmatpush.msra.mxu0 0.0
    %1444 = vmatpush.msra.mxu0 0.0
    %1445 = vmatpush.msra.mxu0 0.0
    %1446 = vmatpush.msra.mxu0 0.0
    %1447 = vmatpush.msra.mxu0 0.0
    %1448 = vmatpush.msra.mxu0 0.0
    %1449 = vmatpush.msra.mxu0 0.0
    %1450 = vmatpush.msra.mxu0 %v1057
    %1451 = vmatpush.msra.mxu0 %v1041
    %1452 = vmatpush.msra.mxu0 %v1025
    %1453 = vmatpush.msra.mxu0 %v1009
    %1454 = vmatmul.f32.gmra.mxu0 %v1396
    %v1455 = vpop.f32.mrf.mxu0
    %v1456 = vadd.f32 0.0, %v1455
    %1457 = vdwg.mxu0
    %1458 = vmatpush.msra.mxu0 0.0
    %1459 = vmatpush.msra.mxu0 0.0
    %1460 = vmatpush.msra.mxu0 0.0
    %1461 = vmatpush.msra.mxu0 0.0
    %1462 = vmatpush.msra.mxu0 0.0
    %1463 = vmatpush.msra.mxu0 0.0
    %1464 = vmatpush.msra.mxu0 0.0
    %1465 = vmatpush.msra.mxu0 0.0
    %1466 = vmatpush.msra.mxu0 0.0
    %1467 = vmatpush.msra.mxu0 0.0
    %1468 = vmatpush.msra.mxu0 0.0
    %1469 = vmatpush.msra.mxu0 0.0
    %1470 = vmatpush.msra.mxu0 %v1058
    %1471 = vmatpush.msra.mxu0 %v1042
    %1472 = vmatpush.msra.mxu0 %v1026
    %1473 = vmatpush.msra.mxu0 %v1010
    %1474 = vmatmul.f32.gmra.mxu0 %v1396
    %v1475 = vpop.f32.mrf.mxu0
    %v1476 = vadd.f32 0.0, %v1475
    %1477 = vdwg.mxu0
    %1478 = vmatpush.msra.mxu0 0.0
    %1479 = vmatpush.msra.mxu0 0.0
    %1480 = vmatpush.msra.mxu0 0.0
    %1481 = vmatpush.msra.mxu0 0.0
    %1482 = vmatpush.msra.mxu0 0.0
    %1483 = vmatpush.msra.mxu0 0.0
    %1484 = vmatpush.msra.mxu0 0.0
    %1485 = vmatpush.msra.mxu0 0.0
    %1486 = vmatpush.msra.mxu0 0.0
    %1487 = vmatpush.msra.mxu0 0.0
    %1488 = vmatpush.msra.mxu0 0.0
    %1489 = vmatpush.msra.mxu0 0.0
    %1490 = vmatpush.msra.mxu0 %v1059
    %1491 = vmatpush.msra.mxu0 %v1043
    %1492 = vmatpush.msra.mxu0 %v1027
    %1493 = vmatpush.msra.mxu0 %v1011
    %1494 = vmatmul.f32.gmra.mxu0 %v1396
    %v1495 = vpop.f32.mrf.mxu0
    %v1496 = vadd.f32 0.0, %v1495
    %1497 = vdwg.mxu0
    %1498 = vmatpush.msra.mxu0 0.0
    %1499 = vmatpush.msra.mxu0 0.0
    %1500 = vmatpush.msra.mxu0 0.0
    %1501 = vmatpush.msra.mxu0 0.0
    %1502 = vmatpush.msra.mxu0 0.0
    %1503 = vmatpush.msra.mxu0 0.0
    %1504 = vmatpush.msra.mxu0 0.0
    %1505 = vmatpush.msra.mxu0 0.0
    %1506 = vmatpush.msra.mxu0 0.0
    %1507 = vmatpush.msra.mxu0 0.0
    %1508 = vmatpush.msra.mxu0 0.0
    %1509 = vmatpush.msra.mxu0 0.0
    %1510 = vmatpush.msra.mxu0 %v1060
    %1511 = vmatpush.msra.mxu0 %v1044
    %1512 = vmatpush.msra.mxu0 %v1028
    %1513 = vmatpush.msra.mxu0 %v1012
    %1514 = vmatmul.f32.gmra.mxu0 %v1396
    %v1515 = vpop.f32.mrf.mxu0
    %v1516 = vadd.f32 0.0, %v1515
    %1517 = vdwg.mxu0
    %1518 = vmatpush.msra.mxu0 0.0
    %1519 = vmatpush.msra.mxu0 0.0
    %1520 = vmatpush.msra.mxu0 0.0
    %1521 = vmatpush.msra.mxu0 0.0
    %1522 = vmatpush.msra.mxu0 0.0
    %1523 = vmatpush.msra.mxu0 0.0
    %1524 = vmatpush.msra.mxu0 0.0
    %1525 = vmatpush.msra.mxu0 0.0
    %1526 = vmatpush.msra.mxu0 0.0
    %1527 = vmatpush.msra.mxu0 0.0
    %1528 = vmatpush.msra.mxu0 0.0
    %1529 = vmatpush.msra.mxu0 0.0
    %1530 = vmatpush.msra.mxu0 %v1061
    %1531 = vmatpush.msra.mxu0 %v1045
    %1532 = vmatpush.msra.mxu0 %v1029
    %1533 = vmatpush.msra.mxu0 %v1013
    %1534 = vmatmul.f32.gmra.mxu0 %v1396
    %v1535 = vpop.f32.mrf.mxu0
    %v1536 = vadd.f32 0.0, %v1535
    %1537 = vdwg.mxu0
    %1538 = vmatpush.msra.mxu0 0.0
    %1539 = vmatpush.msra.mxu0 0.0
    %1540 = vmatpush.msra.mxu0 0.0
    %1541 = vmatpush.msra.mxu0 0.0
    %1542 = vmatpush.msra.mxu0 0.0
    %1543 = vmatpush.msra.mxu0 0.0
    %1544 = vmatpush.msra.mxu0 0.0
    %1545 = vmatpush.msra.mxu0 0.0
    %1546 = vmatpush.msra.mxu0 0.0
    %1547 = vmatpush.msra.mxu0 0.0
    %1548 = vmatpush.msra.mxu0 0.0
    %1549 = vmatpush.msra.mxu0 0.0
    %1550 = vmatpush.msra.mxu0 %v1062
    %1551 = vmatpush.msra.mxu0 %v1046
    %1552 = vmatpush.msra.mxu0 %v1030
    %1553 = vmatpush.msra.mxu0 %v1014
    %1554 = vmatmul.f32.gmra.mxu0 %v1396
    %v1555 = vpop.f32.mrf.mxu0
    %v1556 = vadd.f32 0.0, %v1555
    %1557 = vdwg.mxu0
    %1558 = vmatpush.msra.mxu0 0.0
    %1559 = vmatpush.msra.mxu0 0.0
    %1560 = vmatpush.msra.mxu0 0.0
    %1561 = vmatpush.msra.mxu0 0.0
    %1562 = vmatpush.msra.mxu0 0.0
    %1563 = vmatpush.msra.mxu0 0.0
    %1564 = vmatpush.msra.mxu0 0.0
    %1565 = vmatpush.msra.mxu0 0.0
    %1566 = vmatpush.msra.mxu0 0.0
    %1567 = vmatpush.msra.mxu0 0.0
    %1568 = vmatpush.msra.mxu0 0.0
    %1569 = vmatpush.msra.mxu0 0.0
    %1570 = vmatpush.msra.mxu0 %v1063
    %1571 = vmatpush.msra.mxu0 %v1047
    %1572 = vmatpush.msra.mxu0 %v1031
    %1573 = vmatpush.msra.mxu0 %v1015
    %1574 = vmatmul.f32.gmra.mxu0 %v1396
    %v1575 = vpop.f32.mrf.mxu0
    %v1576 = vadd.f32 0.0, %v1575
    %1577 = vdwg.mxu0
    %1578 = vmatpush.msra.mxu0 0.0
    %1579 = vmatpush.msra.mxu0 0.0
    %1580 = vmatpush.msra.mxu0 0.0
    %1581 = vmatpush.msra.mxu0 0.0
    %1582 = vmatpush.msra.mxu0 0.0
    %1583 = vmatpush.msra.mxu0 0.0
    %1584 = vmatpush.msra.mxu0 0.0
    %1585 = vmatpush.msra.mxu0 0.0
    %1586 = vmatpush.msra.mxu0 0.0
    %1587 = vmatpush.msra.mxu0 0.0
    %1588 = vmatpush.msra.mxu0 0.0
    %1589 = vmatpush.msra.mxu0 0.0
    %1590 = vmatpush.msra.mxu0 %v1064
    %1591 = vmatpush.msra.mxu0 %v1048
    %1592 = vmatpush.msra.mxu0 %v1032
    %1593 = vmatpush.msra.mxu0 %v1016
    %1594 = vmatmul.f32.gmra.mxu0 %v1396
    %v1595 = vpop.f32.mrf.mxu0
    %v1596 = vadd.f32 0.0, %v1595
    %1597 = vdwg.mxu0
    %1598 = vmatpush.msra.mxu0 0.0
    %1599 = vmatpush.msra.mxu0 0.0
    %1600 = vmatpush.msra.mxu0 0.0
    %1601 = vmatpush.msra.mxu0 0.0
    %1602 = vmatpush.msra.mxu0 0.0
    %1603 = vmatpush.msra.mxu0 0.0
    %1604 = vmatpush.msra.mxu0 0.0
    %1605 = vmatpush.msra.mxu0 0.0
    %1606 = vmatpush.msra.mxu0 0.0
    %1607 = vmatpush.msra.mxu0 0.0
    %1608 = vmatpush.msra.mxu0 0.0
    %1609 = vmatpush.msra.mxu0 0.0
    %1610 = vmatpush.msra.mxu0 %v1065
    %1611 = vmatpush.msra.mxu0 %v1049
    %1612 = vmatpush.msra.mxu0 %v1033
    %1613 = vmatpush.msra.mxu0 %v1017
    %1614 = vmatmul.f32.gmra.mxu0 %v1396
    %v1615 = vpop.f32.mrf.mxu0
    %v1616 = vadd.f32 0.0, %v1615
    %1617 = vdwg.mxu0
    %1618 = vmatpush.msra.mxu0 0.0
    %1619 = vmatpush.msra.mxu0 0.0
    %1620 = vmatpush.msra.mxu0 0.0
    %1621 = vmatpush.msra.mxu0 0.0
    %1622 = vmatpush.msra.mxu0 0.0
    %1623 = vmatpush.msra.mxu0 0.0
    %1624 = vmatpush.msra.mxu0 0.0
    %1625 = vmatpush.msra.mxu0 0.0
    %1626 = vmatpush.msra.mxu0 0.0
    %1627 = vmatpush.msra.mxu0 0.0
    %1628 = vmatpush.msra.mxu0 0.0
    %1629 = vmatpush.msra.mxu0 0.0
    %1630 = vmatpush.msra.mxu0 %v1066
    %1631 = vmatpush.msra.mxu0 %v1050
    %1632 = vmatpush.msra.mxu0 %v1034
    %1633 = vmatpush.msra.mxu0 %v1018
    %1634 = vmatmul.f32.gmra.mxu0 %v1396
    %v1635 = vpop.f32.mrf.mxu0
    %v1636 = vadd.f32 0.0, %v1635
    %1637 = vdwg.mxu0
    %1638 = vmatpush.msra.mxu0 0.0
    %1639 = vmatpush.msra.mxu0 0.0
    %1640 = vmatpush.msra.mxu0 0.0
    %1641 = vmatpush.msra.mxu0 0.0
    %1642 = vmatpush.msra.mxu0 0.0
    %1643 = vmatpush.msra.mxu0 0.0
    %1644 = vmatpush.msra.mxu0 0.0
    %1645 = vmatpush.msra.mxu0 0.0
    %1646 = vmatpush.msra.mxu0 0.0
    %1647 = vmatpush.msra.mxu0 0.0
    %1648 = vmatpush.msra.mxu0 0.0
    %1649 = vmatpush.msra.mxu0 0.0
    %1650 = vmatpush.msra.mxu0 %v1067
    %1651 = vmatpush.msra.mxu0 %v1051
    %1652 = vmatpush.msra.mxu0 %v1035
    %1653 = vmatpush.msra.mxu0 %v1019
    %1654 = vmatmul.f32.gmra.mxu0 %v1396
    %v1655 = vpop.f32.mrf.mxu0
    %v1656 = vadd.f32 0.0, %v1655
    %1657 = vdwg.mxu0
    %1658 = vmatpush.msra.mxu0 0.0
    %1659 = vmatpush.msra.mxu0 0.0
    %1660 = vmatpush.msra.mxu0 0.0
    %1661 = vmatpush.msra.mxu0 0.0
    %1662 = vmatpush.msra.mxu0 0.0
    %1663 = vmatpush.msra.mxu0 0.0
    %1664 = vmatpush.msra.mxu0 0.0
    %1665 = vmatpush.msra.mxu0 0.0
    %1666 = vmatpush.msra.mxu0 0.0
    %1667 = vmatpush.msra.mxu0 0.0
    %1668 = vmatpush.msra.mxu0 0.0
    %1669 = vmatpush.msra.mxu0 0.0
    %1670 = vmatpush.msra.mxu0 %v1068
    %1671 = vmatpush.msra.mxu0 %v1052
    %1672 = vmatpush.msra.mxu0 %v1036
    %1673 = vmatpush.msra.mxu0 %v1020
    %1674 = vmatmul.f32.gmra.mxu0 %v1396
    %v1675 = vpop.f32.mrf.mxu0
    %v1676 = vadd.f32 0.0, %v1675
    %1677 = vdwg.mxu0
    %1678 = vmatpush.msra.mxu0 0.0
    %1679 = vmatpush.msra.mxu0 0.0
    %1680 = vmatpush.msra.mxu0 0.0
    %1681 = vmatpush.msra.mxu0 0.0
    %1682 = vmatpush.msra.mxu0 0.0
    %1683 = vmatpush.msra.mxu0 0.0
    %1684 = vmatpush.msra.mxu0 0.0
    %1685 = vmatpush.msra.mxu0 0.0
    %1686 = vmatpush.msra.mxu0 0.0
    %1687 = vmatpush.msra.mxu0 0.0
    %1688 = vmatpush.msra.mxu0 0.0
    %1689 = vmatpush.msra.mxu0 0.0
    %1690 = vmatpush.msra.mxu0 %v1069
    %1691 = vmatpush.msra.mxu0 %v1053
    %1692 = vmatpush.msra.mxu0 %v1037
    %1693 = vmatpush.msra.mxu0 %v1021
    %1694 = vmatmul.f32.gmra.mxu0 %v1396
    %v1695 = vpop.f32.mrf.mxu0
    %v1696 = vadd.f32 0.0, %v1695
    %1697 = vdwg.mxu0
    %1698 = vmatpush.msra.mxu0 0.0
    %1699 = vmatpush.msra.mxu0 0.0
    %1700 = vmatpush.msra.mxu0 0.0
    %1701 = vmatpush.msra.mxu0 0.0
    %1702 = vmatpush.msra.mxu0 0.0
    %1703 = vmatpush.msra.mxu0 0.0
    %1704 = vmatpush.msra.mxu0 0.0
    %1705 = vmatpush.msra.mxu0 0.0
    %1706 = vmatpush.msra.mxu0 0.0
    %1707 = vmatpush.msra.mxu0 0.0
    %1708 = vmatpush.msra.mxu0 0.0
    %1709 = vmatpush.msra.mxu0 0.0
    %1710 = vmatpush.msra.mxu0 %v1070
    %1711 = vmatpush.msra.mxu0 %v1054
    %1712 = vmatpush.msra.mxu0 %v1038
    %1713 = vmatpush.msra.mxu0 %v1022
    %1714 = vmatmul.f32.gmra.mxu0 %v1396
    %v1715 = vpop.f32.mrf.mxu0
    %v1716 = vadd.f32 0.0, %v1715
    %1717 = vdwg.mxu0
    %v1718 = vmul.f32 %v1093, %v1416
    %v1719 = vmul.f32 %v1113, %v1436
    %v1720 = vmul.f32 %v1133, %v1456
    %v1721 = vmul.f32 %v1153, %v1476
    %v1722 = vmul.f32 %v1173, %v1496
    %v1723 = vmul.f32 %v1193, %v1516
    %v1724 = vmul.f32 %v1213, %v1536
    %v1725 = vmul.f32 %v1233, %v1556
    %v1726 = vmul.f32 %v1253, %v1576
    %v1727 = vmul.f32 %v1273, %v1596
    %v1728 = vmul.f32 %v1293, %v1616
    %v1729 = vmul.f32 %v1313, %v1636
    %v1730 = vmul.f32 %v1333, %v1656
    %v1731 = vmul.f32 %v1353, %v1676
    %v1732 = vmul.f32 %v1373, %v1696
    %v1733 = vmul.f32 %v1393, %v1716
    %v1734 = vadd.f32 %v1718, 0.0
    %v1735 = vadd.f32 %v1719, 0.0
    %v1736 = vadd.f32 %v1720, 0.0
    %v1737 = vadd.f32 %v1721, 0.0
    %v1738 = vadd.f32 %v1722, 0.0
    %v1739 = vadd.f32 %v1723, 0.0
    %v1740 = vadd.f32 %v1724, 0.0
    %v1741 = vadd.f32 %v1725, 0.0
    %v1742 = vadd.f32 %v1726, 0.0
    %v1743 = vadd.f32 %v1727, 0.0
    %v1744 = vadd.f32 %v1728, 0.0
    %v1745 = vadd.f32 %v1729, 0.0
    %v1746 = vadd.f32 %v1730, 0.0
    %v1747 = vadd.f32 %v1731, 0.0
    %v1748 = vadd.f32 %v1732, 0.0
    %v1749 = vadd.f32 %v1733, 0.0
    %1750 = vrot.lane.b32.xlu0 %v673, 64
    %v1751 = vpop.permute.xlu0 %1750
    %v1752 = vsel %vm1071, %v1751, 0
    %1754 = vmatpush.msra.mxu0 0.0
    %1755 = vmatpush.msra.mxu0 0.0
    %1756 = vmatpush.msra.mxu0 0.0
    %1757 = vmatpush.msra.mxu0 0.0
    %1758 = vmatpush.msra.mxu0 0.0
    %1759 = vmatpush.msra.mxu0 0.0
    %1760 = vmatpush.msra.mxu0 0.0
    %1761 = vmatpush.msra.mxu0 0.0
    %1762 = vmatpush.msra.mxu0 %v991
    %1763 = vmatpush.msra.mxu0 %v975
    %1764 = vmatpush.msra.mxu0 %v959
    %1765 = vmatpush.msra.mxu0 %v943
    %1766 = vmatpush.msra.mxu0 %v927
    %1767 = vmatpush.msra.mxu0 %v911
    %1768 = vmatpush.msra.mxu0 %v895
    %1769 = vmatpush.msra.mxu0 %v879
    %1770 = vmatmul.f32.gmra.mxu0 %v1752
    %v1771 = vpop.f32.mrf.mxu0
    %v1772 = vadd.f32 0.0, %v1771
    %1773 = vdwg.mxu0
    %1774 = vmatpush.msra.mxu0 0.0
    %1775 = vmatpush.msra.mxu0 0.0
    %1776 = vmatpush.msra.mxu0 0.0
    %1777 = vmatpush.msra.mxu0 0.0
    %1778 = vmatpush.msra.mxu0 0.0
    %1779 = vmatpush.msra.mxu0 0.0
    %1780 = vmatpush.msra.mxu0 0.0
    %1781 = vmatpush.msra.mxu0 0.0
    %1782 = vmatpush.msra.mxu0 %v992
    %1783 = vmatpush.msra.mxu0 %v976
    %1784 = vmatpush.msra.mxu0 %v960
    %1785 = vmatpush.msra.mxu0 %v944
    %1786 = vmatpush.msra.mxu0 %v928
    %1787 = vmatpush.msra.mxu0 %v912
    %1788 = vmatpush.msra.mxu0 %v896
    %1789 = vmatpush.msra.mxu0 %v880
    %1790 = vmatmul.f32.gmra.mxu0 %v1752
    %v1791 = vpop.f32.mrf.mxu0
    %v1792 = vadd.f32 0.0, %v1791
    %1793 = vdwg.mxu0
    %1794 = vmatpush.msra.mxu0 0.0
    %1795 = vmatpush.msra.mxu0 0.0
    %1796 = vmatpush.msra.mxu0 0.0
    %1797 = vmatpush.msra.mxu0 0.0
    %1798 = vmatpush.msra.mxu0 0.0
    %1799 = vmatpush.msra.mxu0 0.0
    %1800 = vmatpush.msra.mxu0 0.0
    %1801 = vmatpush.msra.mxu0 0.0
    %1802 = vmatpush.msra.mxu0 %v993
    %1803 = vmatpush.msra.mxu0 %v977
    %1804 = vmatpush.msra.mxu0 %v961
    %1805 = vmatpush.msra.mxu0 %v945
    %1806 = vmatpush.msra.mxu0 %v929
    %1807 = vmatpush.msra.mxu0 %v913
    %1808 = vmatpush.msra.mxu0 %v897
    %1809 = vmatpush.msra.mxu0 %v881
    %1810 = vmatmul.f32.gmra.mxu0 %v1752
    %v1811 = vpop.f32.mrf.mxu0
    %v1812 = vadd.f32 0.0, %v1811
    %1813 = vdwg.mxu0
    %1814 = vmatpush.msra.mxu0 0.0
    %1815 = vmatpush.msra.mxu0 0.0
    %1816 = vmatpush.msra.mxu0 0.0
    %1817 = vmatpush.msra.mxu0 0.0
    %1818 = vmatpush.msra.mxu0 0.0
    %1819 = vmatpush.msra.mxu0 0.0
    %1820 = vmatpush.msra.mxu0 0.0
    %1821 = vmatpush.msra.mxu0 0.0
    %1822 = vmatpush.msra.mxu0 %v994
    %1823 = vmatpush.msra.mxu0 %v978
    %1824 = vmatpush.msra.mxu0 %v962
    %1825 = vmatpush.msra.mxu0 %v946
    %1826 = vmatpush.msra.mxu0 %v930
    %1827 = vmatpush.msra.mxu0 %v914
    %1828 = vmatpush.msra.mxu0 %v898
    %1829 = vmatpush.msra.mxu0 %v882
    %1830 = vmatmul.f32.gmra.mxu0 %v1752
    %v1831 = vpop.f32.mrf.mxu0
    %v1832 = vadd.f32 0.0, %v1831
    %1833 = vdwg.mxu0
    %1834 = vmatpush.msra.mxu0 0.0
    %1835 = vmatpush.msra.mxu0 0.0
    %1836 = vmatpush.msra.mxu0 0.0
    %1837 = vmatpush.msra.mxu0 0.0
    %1838 = vmatpush.msra.mxu0 0.0
    %1839 = vmatpush.msra.mxu0 0.0
    %1840 = vmatpush.msra.mxu0 0.0
    %1841 = vmatpush.msra.mxu0 0.0
    %1842 = vmatpush.msra.mxu0 %v995
    %1843 = vmatpush.msra.mxu0 %v979
    %1844 = vmatpush.msra.mxu0 %v963
    %1845 = vmatpush.msra.mxu0 %v947
    %1846 = vmatpush.msra.mxu0 %v931
    %1847 = vmatpush.msra.mxu0 %v915
    %1848 = vmatpush.msra.mxu0 %v899
    %1849 = vmatpush.msra.mxu0 %v883
    %1850 = vmatmul.f32.gmra.mxu0 %v1752
    %v1851 = vpop.f32.mrf.mxu0
    %v1852 = vadd.f32 0.0, %v1851
    %1853 = vdwg.mxu0
    %1854 = vmatpush.msra.mxu0 0.0
    %1855 = vmatpush.msra.mxu0 0.0
    %1856 = vmatpush.msra.mxu0 0.0
    %1857 = vmatpush.msra.mxu0 0.0
    %1858 = vmatpush.msra.mxu0 0.0
    %1859 = vmatpush.msra.mxu0 0.0
    %1860 = vmatpush.msra.mxu0 0.0
    %1861 = vmatpush.msra.mxu0 0.0
    %1862 = vmatpush.msra.mxu0 %v996
    %1863 = vmatpush.msra.mxu0 %v980
    %1864 = vmatpush.msra.mxu0 %v964
    %1865 = vmatpush.msra.mxu0 %v948
    %1866 = vmatpush.msra.mxu0 %v932
    %1867 = vmatpush.msra.mxu0 %v916
    %1868 = vmatpush.msra.mxu0 %v900
    %1869 = vmatpush.msra.mxu0 %v884
    %1870 = vmatmul.f32.gmra.mxu0 %v1752
    %v1871 = vpop.f32.mrf.mxu0
    %v1872 = vadd.f32 0.0, %v1871
    %1873 = vdwg.mxu0
    %1874 = vmatpush.msra.mxu0 0.0
    %1875 = vmatpush.msra.mxu0 0.0
    %1876 = vmatpush.msra.mxu0 0.0
    %1877 = vmatpush.msra.mxu0 0.0
    %1878 = vmatpush.msra.mxu0 0.0
    %1879 = vmatpush.msra.mxu0 0.0
    %1880 = vmatpush.msra.mxu0 0.0
    %1881 = vmatpush.msra.mxu0 0.0
    %1882 = vmatpush.msra.mxu0 %v997
    %1883 = vmatpush.msra.mxu0 %v981
    %1884 = vmatpush.msra.mxu0 %v965
    %1885 = vmatpush.msra.mxu0 %v949
    %1886 = vmatpush.msra.mxu0 %v933
    %1887 = vmatpush.msra.mxu0 %v917
    %1888 = vmatpush.msra.mxu0 %v901
    %1889 = vmatpush.msra.mxu0 %v885
    %1890 = vmatmul.f32.gmra.mxu0 %v1752
    %v1891 = vpop.f32.mrf.mxu0
    %v1892 = vadd.f32 0.0, %v1891
    %1893 = vdwg.mxu0
    %1894 = vmatpush.msra.mxu0 0.0
    %1895 = vmatpush.msra.mxu0 0.0
    %1896 = vmatpush.msra.mxu0 0.0
    %1897 = vmatpush.msra.mxu0 0.0
    %1898 = vmatpush.msra.mxu0 0.0
    %1899 = vmatpush.msra.mxu0 0.0
    %1900 = vmatpush.msra.mxu0 0.0
    %1901 = vmatpush.msra.mxu0 0.0
    %1902 = vmatpush.msra.mxu0 %v998
    %1903 = vmatpush.msra.mxu0 %v982
    %1904 = vmatpush.msra.mxu0 %v966
    %1905 = vmatpush.msra.mxu0 %v950
    %1906 = vmatpush.msra.mxu0 %v934
    %1907 = vmatpush.msra.mxu0 %v918
    %1908 = vmatpush.msra.mxu0 %v902
    %1909 = vmatpush.msra.mxu0 %v886
    %1910 = vmatmul.f32.gmra.mxu0 %v1752
    %v1911 = vpop.f32.mrf.mxu0
    %v1912 = vadd.f32 0.0, %v1911
    %1913 = vdwg.mxu0
    %1914 = vmatpush.msra.mxu0 0.0
    %1915 = vmatpush.msra.mxu0 0.0
    %1916 = vmatpush.msra.mxu0 0.0
    %1917 = vmatpush.msra.mxu0 0.0
    %1918 = vmatpush.msra.mxu0 0.0
    %1919 = vmatpush.msra.mxu0 0.0
    %1920 = vmatpush.msra.mxu0 0.0
    %1921 = vmatpush.msra.mxu0 0.0
    %1922 = vmatpush.msra.mxu0 %v999
    %1923 = vmatpush.msra.mxu0 %v983
    %1924 = vmatpush.msra.mxu0 %v967
    %1925 = vmatpush.msra.mxu0 %v951
    %1926 = vmatpush.msra.mxu0 %v935
    %1927 = vmatpush.msra.mxu0 %v919
    %1928 = vmatpush.msra.mxu0 %v903
    %1929 = vmatpush.msra.mxu0 %v887
    %1930 = vmatmul.f32.gmra.mxu0 %v1752
    %v1931 = vpop.f32.mrf.mxu0
    %v1932 = vadd.f32 0.0, %v1931
    %1933 = vdwg.mxu0
    %1934 = vmatpush.msra.mxu0 0.0
    %1935 = vmatpush.msra.mxu0 0.0
    %1936 = vmatpush.msra.mxu0 0.0
    %1937 = vmatpush.msra.mxu0 0.0
    %1938 = vmatpush.msra.mxu0 0.0
    %1939 = vmatpush.msra.mxu0 0.0
    %1940 = vmatpush.msra.mxu0 0.0
    %1941 = vmatpush.msra.mxu0 0.0
    %1942 = vmatpush.msra.mxu0 %v1000
    %1943 = vmatpush.msra.mxu0 %v984
    %1944 = vmatpush.msra.mxu0 %v968
    %1945 = vmatpush.msra.mxu0 %v952
    %1946 = vmatpush.msra.mxu0 %v936
    %1947 = vmatpush.msra.mxu0 %v920
    %1948 = vmatpush.msra.mxu0 %v904
    %1949 = vmatpush.msra.mxu0 %v888
    %1950 = vmatmul.f32.gmra.mxu0 %v1752
    %v1951 = vpop.f32.mrf.mxu0
    %v1952 = vadd.f32 0.0, %v1951
    %1953 = vdwg.mxu0
    %1954 = vmatpush.msra.mxu0 0.0
    %1955 = vmatpush.msra.mxu0 0.0
    %1956 = vmatpush.msra.mxu0 0.0
    %1957 = vmatpush.msra.mxu0 0.0
    %1958 = vmatpush.msra.mxu0 0.0
    %1959 = vmatpush.msra.mxu0 0.0
    %1960 = vmatpush.msra.mxu0 0.0
    %1961 = vmatpush.msra.mxu0 0.0
    %1962 = vmatpush.msra.mxu0 %v1001
    %1963 = vmatpush.msra.mxu0 %v985
    %1964 = vmatpush.msra.mxu0 %v969
    %1965 = vmatpush.msra.mxu0 %v953
    %1966 = vmatpush.msra.mxu0 %v937
    %1967 = vmatpush.msra.mxu0 %v921
    %1968 = vmatpush.msra.mxu0 %v905
    %1969 = vmatpush.msra.mxu0 %v889
    %1970 = vmatmul.f32.gmra.mxu0 %v1752
    %v1971 = vpop.f32.mrf.mxu0
    %v1972 = vadd.f32 0.0, %v1971
    %1973 = vdwg.mxu0
    %1974 = vmatpush.msra.mxu0 0.0
    %1975 = vmatpush.msra.mxu0 0.0
    %1976 = vmatpush.msra.mxu0 0.0
    %1977 = vmatpush.msra.mxu0 0.0
    %1978 = vmatpush.msra.mxu0 0.0
    %1979 = vmatpush.msra.mxu0 0.0
    %1980 = vmatpush.msra.mxu0 0.0
    %1981 = vmatpush.msra.mxu0 0.0
    %1982 = vmatpush.msra.mxu0 %v1002
    %1983 = vmatpush.msra.mxu0 %v986
    %1984 = vmatpush.msra.mxu0 %v970
    %1985 = vmatpush.msra.mxu0 %v954
    %1986 = vmatpush.msra.mxu0 %v938
    %1987 = vmatpush.msra.mxu0 %v922
    %1988 = vmatpush.msra.mxu0 %v906
    %1989 = vmatpush.msra.mxu0 %v890
    %1990 = vmatmul.f32.gmra.mxu0 %v1752
    %v1991 = vpop.f32.mrf.mxu0
    %v1992 = vadd.f32 0.0, %v1991
    %1993 = vdwg.mxu0
    %1994 = vmatpush.msra.mxu0 0.0
    %1995 = vmatpush.msra.mxu0 0.0
    %1996 = vmatpush.msra.mxu0 0.0
    %1997 = vmatpush.msra.mxu0 0.0
    %1998 = vmatpush.msra.mxu0 0.0
    %1999 = vmatpush.msra.mxu0 0.0
    %2000 = vmatpush.msra.mxu0 0.0
    %2001 = vmatpush.msra.mxu0 0.0
    %2002 = vmatpush.msra.mxu0 %v1003
    %2003 = vmatpush.msra.mxu0 %v987
    %2004 = vmatpush.msra.mxu0 %v971
    %2005 = vmatpush.msra.mxu0 %v955
    %2006 = vmatpush.msra.mxu0 %v939
    %2007 = vmatpush.msra.mxu0 %v923
    %2008 = vmatpush.msra.mxu0 %v907
    %2009 = vmatpush.msra.mxu0 %v891
    %2010 = vmatmul.f32.gmra.mxu0 %v1752
    %v2011 = vpop.f32.mrf.mxu0
    %v2012 = vadd.f32 0.0, %v2011
    %2013 = vdwg.mxu0
    %2014 = vmatpush.msra.mxu0 0.0
    %2015 = vmatpush.msra.mxu0 0.0
    %2016 = vmatpush.msra.mxu0 0.0
    %2017 = vmatpush.msra.mxu0 0.0
    %2018 = vmatpush.msra.mxu0 0.0
    %2019 = vmatpush.msra.mxu0 0.0
    %2020 = vmatpush.msra.mxu0 0.0
    %2021 = vmatpush.msra.mxu0 0.0
    %2022 = vmatpush.msra.mxu0 %v1004
    %2023 = vmatpush.msra.mxu0 %v988
    %2024 = vmatpush.msra.mxu0 %v972
    %2025 = vmatpush.msra.mxu0 %v956
    %2026 = vmatpush.msra.mxu0 %v940
    %2027 = vmatpush.msra.mxu0 %v924
    %2028 = vmatpush.msra.mxu0 %v908
    %2029 = vmatpush.msra.mxu0 %v892
    %2030 = vmatmul.f32.gmra.mxu0 %v1752
    %v2031 = vpop.f32.mrf.mxu0
    %v2032 = vadd.f32 0.0, %v2031
    %2033 = vdwg.mxu0
    %2034 = vmatpush.msra.mxu0 0.0
    %2035 = vmatpush.msra.mxu0 0.0
    %2036 = vmatpush.msra.mxu0 0.0
    %2037 = vmatpush.msra.mxu0 0.0
    %2038 = vmatpush.msra.mxu0 0.0
    %2039 = vmatpush.msra.mxu0 0.0
    %2040 = vmatpush.msra.mxu0 0.0
    %2041 = vmatpush.msra.mxu0 0.0
    %2042 = vmatpush.msra.mxu0 %v1005
    %2043 = vmatpush.msra.mxu0 %v989
    %2044 = vmatpush.msra.mxu0 %v973
    %2045 = vmatpush.msra.mxu0 %v957
    %2046 = vmatpush.msra.mxu0 %v941
    %2047 = vmatpush.msra.mxu0 %v925
    %2048 = vmatpush.msra.mxu0 %v909
    %2049 = vmatpush.msra.mxu0 %v893
    %2050 = vmatmul.f32.gmra.mxu0 %v1752
    %v2051 = vpop.f32.mrf.mxu0
    %v2052 = vadd.f32 0.0, %v2051
    %2053 = vdwg.mxu0
    %2054 = vmatpush.msra.mxu0 0.0
    %2055 = vmatpush.msra.mxu0 0.0
    %2056 = vmatpush.msra.mxu0 0.0
    %2057 = vmatpush.msra.mxu0 0.0
    %2058 = vmatpush.msra.mxu0 0.0
    %2059 = vmatpush.msra.mxu0 0.0
    %2060 = vmatpush.msra.mxu0 0.0
    %2061 = vmatpush.msra.mxu0 0.0
    %2062 = vmatpush.msra.mxu0 %v1006
    %2063 = vmatpush.msra.mxu0 %v990
    %2064 = vmatpush.msra.mxu0 %v974
    %2065 = vmatpush.msra.mxu0 %v958
    %2066 = vmatpush.msra.mxu0 %v942
    %2067 = vmatpush.msra.mxu0 %v926
    %2068 = vmatpush.msra.mxu0 %v910
    %2069 = vmatpush.msra.mxu0 %v894
    %2070 = vmatmul.f32.gmra.mxu0 %v1752
    %v2071 = vpop.f32.mrf.mxu0
    %v2072 = vadd.f32 0.0, %v2071
    %2073 = vdwg.mxu0
    %2074 = vrot.lane.b32.xlu0 %v833, 96
    %v2075 = vpop.permute.xlu0 %2074
    %v2076 = vsel %vm139, %v2075, 0
    %2078 = vmatpush.msra.mxu0 0.0
    %2079 = vmatpush.msra.mxu0 0.0
    %2080 = vmatpush.msra.mxu0 0.0
    %2081 = vmatpush.msra.mxu0 0.0
    %2082 = vmatpush.msra.mxu0 0.0
    %2083 = vmatpush.msra.mxu0 0.0
    %2084 = vmatpush.msra.mxu0 0.0
    %2085 = vmatpush.msra.mxu0 0.0
    %2086 = vmatpush.msra.mxu0 0.0
    %2087 = vmatpush.msra.mxu0 0.0
    %2088 = vmatpush.msra.mxu0 0.0
    %2089 = vmatpush.msra.mxu0 0.0
    %2090 = vmatpush.msra.mxu0 %v1055
    %2091 = vmatpush.msra.mxu0 %v1039
    %2092 = vmatpush.msra.mxu0 %v1023
    %2093 = vmatpush.msra.mxu0 %v1007
    %2094 = vmatmul.f32.gmra.mxu0 %v2076
    %v2095 = vpop.f32.mrf.mxu0
    %v2096 = vadd.f32 0.0, %v2095
    %2097 = vdwg.mxu0
    %2098 = vmatpush.msra.mxu0 0.0
    %2099 = vmatpush.msra.mxu0 0.0
    %2100 = vmatpush.msra.mxu0 0.0
    %2101 = vmatpush.msra.mxu0 0.0
    %2102 = vmatpush.msra.mxu0 0.0
    %2103 = vmatpush.msra.mxu0 0.0
    %2104 = vmatpush.msra.mxu0 0.0
    %2105 = vmatpush.msra.mxu0 0.0
    %2106 = vmatpush.msra.mxu0 0.0
    %2107 = vmatpush.msra.mxu0 0.0
    %2108 = vmatpush.msra.mxu0 0.0
    %2109 = vmatpush.msra.mxu0 0.0
    %2110 = vmatpush.msra.mxu0 %v1056
    %2111 = vmatpush.msra.mxu0 %v1040
    %2112 = vmatpush.msra.mxu0 %v1024
    %2113 = vmatpush.msra.mxu0 %v1008
    %2114 = vmatmul.f32.gmra.mxu0 %v2076
    %v2115 = vpop.f32.mrf.mxu0
    %v2116 = vadd.f32 0.0, %v2115
    %2117 = vdwg.mxu0
    %2118 = vmatpush.msra.mxu0 0.0
    %2119 = vmatpush.msra.mxu0 0.0
    %2120 = vmatpush.msra.mxu0 0.0
    %2121 = vmatpush.msra.mxu0 0.0
    %2122 = vmatpush.msra.mxu0 0.0
    %2123 = vmatpush.msra.mxu0 0.0
    %2124 = vmatpush.msra.mxu0 0.0
    %2125 = vmatpush.msra.mxu0 0.0
    %2126 = vmatpush.msra.mxu0 0.0
    %2127 = vmatpush.msra.mxu0 0.0
    %2128 = vmatpush.msra.mxu0 0.0
    %2129 = vmatpush.msra.mxu0 0.0
    %2130 = vmatpush.msra.mxu0 %v1057
    %2131 = vmatpush.msra.mxu0 %v1041
    %2132 = vmatpush.msra.mxu0 %v1025
    %2133 = vmatpush.msra.mxu0 %v1009
    %2134 = vmatmul.f32.gmra.mxu0 %v2076
    %v2135 = vpop.f32.mrf.mxu0
    %v2136 = vadd.f32 0.0, %v2135
    %2137 = vdwg.mxu0
    %2138 = vmatpush.msra.mxu0 0.0
    %2139 = vmatpush.msra.mxu0 0.0
    %2140 = vmatpush.msra.mxu0 0.0
    %2141 = vmatpush.msra.mxu0 0.0
    %2142 = vmatpush.msra.mxu0 0.0
    %2143 = vmatpush.msra.mxu0 0.0
    %2144 = vmatpush.msra.mxu0 0.0
    %2145 = vmatpush.msra.mxu0 0.0
    %2146 = vmatpush.msra.mxu0 0.0
    %2147 = vmatpush.msra.mxu0 0.0
    %2148 = vmatpush.msra.mxu0 0.0
    %2149 = vmatpush.msra.mxu0 0.0
    %2150 = vmatpush.msra.mxu0 %v1058
    %2151 = vmatpush.msra.mxu0 %v1042
    %2152 = vmatpush.msra.mxu0 %v1026
    %2153 = vmatpush.msra.mxu0 %v1010
    %2154 = vmatmul.f32.gmra.mxu0 %v2076
    %v2155 = vpop.f32.mrf.mxu0
    %v2156 = vadd.f32 0.0, %v2155
    %2157 = vdwg.mxu0
    %2158 = vmatpush.msra.mxu0 0.0
    %2159 = vmatpush.msra.mxu0 0.0
    %2160 = vmatpush.msra.mxu0 0.0
    %2161 = vmatpush.msra.mxu0 0.0
    %2162 = vmatpush.msra.mxu0 0.0
    %2163 = vmatpush.msra.mxu0 0.0
    %2164 = vmatpush.msra.mxu0 0.0
    %2165 = vmatpush.msra.mxu0 0.0
    %2166 = vmatpush.msra.mxu0 0.0
    %2167 = vmatpush.msra.mxu0 0.0
    %2168 = vmatpush.msra.mxu0 0.0
    %2169 = vmatpush.msra.mxu0 0.0
    %2170 = vmatpush.msra.mxu0 %v1059
    %2171 = vmatpush.msra.mxu0 %v1043
    %2172 = vmatpush.msra.mxu0 %v1027
    %2173 = vmatpush.msra.mxu0 %v1011
    %2174 = vmatmul.f32.gmra.mxu0 %v2076
    %v2175 = vpop.f32.mrf.mxu0
    %v2176 = vadd.f32 0.0, %v2175
    %2177 = vdwg.mxu0
    %2178 = vmatpush.msra.mxu0 0.0
    %2179 = vmatpush.msra.mxu0 0.0
    %2180 = vmatpush.msra.mxu0 0.0
    %2181 = vmatpush.msra.mxu0 0.0
    %2182 = vmatpush.msra.mxu0 0.0
    %2183 = vmatpush.msra.mxu0 0.0
    %2184 = vmatpush.msra.mxu0 0.0
    %2185 = vmatpush.msra.mxu0 0.0
    %2186 = vmatpush.msra.mxu0 0.0
    %2187 = vmatpush.msra.mxu0 0.0
    %2188 = vmatpush.msra.mxu0 0.0
    %2189 = vmatpush.msra.mxu0 0.0
    %2190 = vmatpush.msra.mxu0 %v1060
    %2191 = vmatpush.msra.mxu0 %v1044
    %2192 = vmatpush.msra.mxu0 %v1028
    %2193 = vmatpush.msra.mxu0 %v1012
    %2194 = vmatmul.f32.gmra.mxu0 %v2076
    %v2195 = vpop.f32.mrf.mxu0
    %v2196 = vadd.f32 0.0, %v2195
    %2197 = vdwg.mxu0
    %2198 = vmatpush.msra.mxu0 0.0
    %2199 = vmatpush.msra.mxu0 0.0
    %2200 = vmatpush.msra.mxu0 0.0
    %2201 = vmatpush.msra.mxu0 0.0
    %2202 = vmatpush.msra.mxu0 0.0
    %2203 = vmatpush.msra.mxu0 0.0
    %2204 = vmatpush.msra.mxu0 0.0
    %2205 = vmatpush.msra.mxu0 0.0
    %2206 = vmatpush.msra.mxu0 0.0
    %2207 = vmatpush.msra.mxu0 0.0
    %2208 = vmatpush.msra.mxu0 0.0
    %2209 = vmatpush.msra.mxu0 0.0
    %2210 = vmatpush.msra.mxu0 %v1061
    %2211 = vmatpush.msra.mxu0 %v1045
    %2212 = vmatpush.msra.mxu0 %v1029
    %2213 = vmatpush.msra.mxu0 %v1013
    %2214 = vmatmul.f32.gmra.mxu0 %v2076
    %v2215 = vpop.f32.mrf.mxu0
    %v2216 = vadd.f32 0.0, %v2215
    %2217 = vdwg.mxu0
    %2218 = vmatpush.msra.mxu0 0.0
    %2219 = vmatpush.msra.mxu0 0.0
    %2220 = vmatpush.msra.mxu0 0.0
    %2221 = vmatpush.msra.mxu0 0.0
    %2222 = vmatpush.msra.mxu0 0.0
    %2223 = vmatpush.msra.mxu0 0.0
    %2224 = vmatpush.msra.mxu0 0.0
    %2225 = vmatpush.msra.mxu0 0.0
    %2226 = vmatpush.msra.mxu0 0.0
    %2227 = vmatpush.msra.mxu0 0.0
    %2228 = vmatpush.msra.mxu0 0.0
    %2229 = vmatpush.msra.mxu0 0.0
    %2230 = vmatpush.msra.mxu0 %v1062
    %2231 = vmatpush.msra.mxu0 %v1046
    %2232 = vmatpush.msra.mxu0 %v1030
    %2233 = vmatpush.msra.mxu0 %v1014
    %2234 = vmatmul.f32.gmra.mxu0 %v2076
    %v2235 = vpop.f32.mrf.mxu0
    %v2236 = vadd.f32 0.0, %v2235
    %2237 = vdwg.mxu0
    %2238 = vmatpush.msra.mxu0 0.0
    %2239 = vmatpush.msra.mxu0 0.0
    %2240 = vmatpush.msra.mxu0 0.0
    %2241 = vmatpush.msra.mxu0 0.0
    %2242 = vmatpush.msra.mxu0 0.0
    %2243 = vmatpush.msra.mxu0 0.0
    %2244 = vmatpush.msra.mxu0 0.0
    %2245 = vmatpush.msra.mxu0 0.0
    %2246 = vmatpush.msra.mxu0 0.0
    %2247 = vmatpush.msra.mxu0 0.0
    %2248 = vmatpush.msra.mxu0 0.0
    %2249 = vmatpush.msra.mxu0 0.0
    %2250 = vmatpush.msra.mxu0 %v1063
    %2251 = vmatpush.msra.mxu0 %v1047
    %2252 = vmatpush.msra.mxu0 %v1031
    %2253 = vmatpush.msra.mxu0 %v1015
    %2254 = vmatmul.f32.gmra.mxu0 %v2076
    %v2255 = vpop.f32.mrf.mxu0
    %v2256 = vadd.f32 0.0, %v2255
    %2257 = vdwg.mxu0
    %2258 = vmatpush.msra.mxu0 0.0
    %2259 = vmatpush.msra.mxu0 0.0
    %2260 = vmatpush.msra.mxu0 0.0
    %2261 = vmatpush.msra.mxu0 0.0
    %2262 = vmatpush.msra.mxu0 0.0
    %2263 = vmatpush.msra.mxu0 0.0
    %2264 = vmatpush.msra.mxu0 0.0
    %2265 = vmatpush.msra.mxu0 0.0
    %2266 = vmatpush.msra.mxu0 0.0
    %2267 = vmatpush.msra.mxu0 0.0
    %2268 = vmatpush.msra.mxu0 0.0
    %2269 = vmatpush.msra.mxu0 0.0
    %2270 = vmatpush.msra.mxu0 %v1064
    %2271 = vmatpush.msra.mxu0 %v1048
    %2272 = vmatpush.msra.mxu0 %v1032
    %2273 = vmatpush.msra.mxu0 %v1016
    %2274 = vmatmul.f32.gmra.mxu0 %v2076
    %v2275 = vpop.f32.mrf.mxu0
    %v2276 = vadd.f32 0.0, %v2275
    %2277 = vdwg.mxu0
    %2278 = vmatpush.msra.mxu0 0.0
    %2279 = vmatpush.msra.mxu0 0.0
    %2280 = vmatpush.msra.mxu0 0.0
    %2281 = vmatpush.msra.mxu0 0.0
    %2282 = vmatpush.msra.mxu0 0.0
    %2283 = vmatpush.msra.mxu0 0.0
    %2284 = vmatpush.msra.mxu0 0.0
    %2285 = vmatpush.msra.mxu0 0.0
    %2286 = vmatpush.msra.mxu0 0.0
    %2287 = vmatpush.msra.mxu0 0.0
    %2288 = vmatpush.msra.mxu0 0.0
    %2289 = vmatpush.msra.mxu0 0.0
    %2290 = vmatpush.msra.mxu0 %v1065
    %2291 = vmatpush.msra.mxu0 %v1049
    %2292 = vmatpush.msra.mxu0 %v1033
    %2293 = vmatpush.msra.mxu0 %v1017
    %2294 = vmatmul.f32.gmra.mxu0 %v2076
    %v2295 = vpop.f32.mrf.mxu0
    %v2296 = vadd.f32 0.0, %v2295
    %2297 = vdwg.mxu0
    %2298 = vmatpush.msra.mxu0 0.0
    %2299 = vmatpush.msra.mxu0 0.0
    %2300 = vmatpush.msra.mxu0 0.0
    %2301 = vmatpush.msra.mxu0 0.0
    %2302 = vmatpush.msra.mxu0 0.0
    %2303 = vmatpush.msra.mxu0 0.0
    %2304 = vmatpush.msra.mxu0 0.0
    %2305 = vmatpush.msra.mxu0 0.0
    %2306 = vmatpush.msra.mxu0 0.0
    %2307 = vmatpush.msra.mxu0 0.0
    %2308 = vmatpush.msra.mxu0 0.0
    %2309 = vmatpush.msra.mxu0 0.0
    %2310 = vmatpush.msra.mxu0 %v1066
    %2311 = vmatpush.msra.mxu0 %v1050
    %2312 = vmatpush.msra.mxu0 %v1034
    %2313 = vmatpush.msra.mxu0 %v1018
    %2314 = vmatmul.f32.gmra.mxu0 %v2076
    %v2315 = vpop.f32.mrf.mxu0
    %v2316 = vadd.f32 0.0, %v2315
    %2317 = vdwg.mxu0
    %2318 = vmatpush.msra.mxu0 0.0
    %2319 = vmatpush.msra.mxu0 0.0
    %2320 = vmatpush.msra.mxu0 0.0
    %2321 = vmatpush.msra.mxu0 0.0
    %2322 = vmatpush.msra.mxu0 0.0
    %2323 = vmatpush.msra.mxu0 0.0
    %2324 = vmatpush.msra.mxu0 0.0
    %2325 = vmatpush.msra.mxu0 0.0
    %2326 = vmatpush.msra.mxu0 0.0
    %2327 = vmatpush.msra.mxu0 0.0
    %2328 = vmatpush.msra.mxu0 0.0
    %2329 = vmatpush.msra.mxu0 0.0
    %2330 = vmatpush.msra.mxu0 %v1067
    %2331 = vmatpush.msra.mxu0 %v1051
    %2332 = vmatpush.msra.mxu0 %v1035
    %2333 = vmatpush.msra.mxu0 %v1019
    %2334 = vmatmul.f32.gmra.mxu0 %v2076
    %v2335 = vpop.f32.mrf.mxu0
    %v2336 = vadd.f32 0.0, %v2335
    %2337 = vdwg.mxu0
    %2338 = vmatpush.msra.mxu0 0.0
    %2339 = vmatpush.msra.mxu0 0.0
    %2340 = vmatpush.msra.mxu0 0.0
    %2341 = vmatpush.msra.mxu0 0.0
    %2342 = vmatpush.msra.mxu0 0.0
    %2343 = vmatpush.msra.mxu0 0.0
    %2344 = vmatpush.msra.mxu0 0.0
    %2345 = vmatpush.msra.mxu0 0.0
    %2346 = vmatpush.msra.mxu0 0.0
    %2347 = vmatpush.msra.mxu0 0.0
    %2348 = vmatpush.msra.mxu0 0.0
    %2349 = vmatpush.msra.mxu0 0.0
    %2350 = vmatpush.msra.mxu0 %v1068
    %2351 = vmatpush.msra.mxu0 %v1052
    %2352 = vmatpush.msra.mxu0 %v1036
    %2353 = vmatpush.msra.mxu0 %v1020
    %2354 = vmatmul.f32.gmra.mxu0 %v2076
    %v2355 = vpop.f32.mrf.mxu0
    %v2356 = vadd.f32 0.0, %v2355
    %2357 = vdwg.mxu0
    %2358 = vmatpush.msra.mxu0 0.0
    %2359 = vmatpush.msra.mxu0 0.0
    %2360 = vmatpush.msra.mxu0 0.0
    %2361 = vmatpush.msra.mxu0 0.0
    %2362 = vmatpush.msra.mxu0 0.0
    %2363 = vmatpush.msra.mxu0 0.0
    %2364 = vmatpush.msra.mxu0 0.0
    %2365 = vmatpush.msra.mxu0 0.0
    %2366 = vmatpush.msra.mxu0 0.0
    %2367 = vmatpush.msra.mxu0 0.0
    %2368 = vmatpush.msra.mxu0 0.0
    %2369 = vmatpush.msra.mxu0 0.0
    %2370 = vmatpush.msra.mxu0 %v1069
    %2371 = vmatpush.msra.mxu0 %v1053
    %2372 = vmatpush.msra.mxu0 %v1037
    %2373 = vmatpush.msra.mxu0 %v1021
    %2374 = vmatmul.f32.gmra.mxu0 %v2076
    %v2375 = vpop.f32.mrf.mxu0
    %v2376 = vadd.f32 0.0, %v2375
    %2377 = vdwg.mxu0
    %2378 = vmatpush.msra.mxu0 0.0
    %2379 = vmatpush.msra.mxu0 0.0
    %2380 = vmatpush.msra.mxu0 0.0
    %2381 = vmatpush.msra.mxu0 0.0
    %2382 = vmatpush.msra.mxu0 0.0
    %2383 = vmatpush.msra.mxu0 0.0
    %2384 = vmatpush.msra.mxu0 0.0
    %2385 = vmatpush.msra.mxu0 0.0
    %2386 = vmatpush.msra.mxu0 0.0
    %2387 = vmatpush.msra.mxu0 0.0
    %2388 = vmatpush.msra.mxu0 0.0
    %2389 = vmatpush.msra.mxu0 0.0
    %2390 = vmatpush.msra.mxu0 %v1070
    %2391 = vmatpush.msra.mxu0 %v1054
    %2392 = vmatpush.msra.mxu0 %v1038
    %2393 = vmatpush.msra.mxu0 %v1022
    %2394 = vmatmul.f32.gmra.mxu0 %v2076
    %v2395 = vpop.f32.mrf.mxu0
    %v2396 = vadd.f32 0.0, %v2395
    %2397 = vdwg.mxu0
    %v2398 = vmul.f32 %v1772, %v2096
    %v2399 = vmul.f32 %v1792, %v2116
    %v2400 = vmul.f32 %v1812, %v2136
    %v2401 = vmul.f32 %v1832, %v2156
    %v2402 = vmul.f32 %v1852, %v2176
    %v2403 = vmul.f32 %v1872, %v2196
    %v2404 = vmul.f32 %v1892, %v2216
    %v2405 = vmul.f32 %v1912, %v2236
    %v2406 = vmul.f32 %v1932, %v2256
    %v2407 = vmul.f32 %v1952, %v2276
    %v2408 = vmul.f32 %v1972, %v2296
    %v2409 = vmul.f32 %v1992, %v2316
    %v2410 = vmul.f32 %v2012, %v2336
    %v2411 = vmul.f32 %v2032, %v2356
    %v2412 = vmul.f32 %v2052, %v2376
    %v2413 = vmul.f32 %v2072, %v2396
    %v2414 = vadd.f32 %v1734, %v2398
    %v2415 = vadd.f32 %v1735, %v2399
    %v2416 = vadd.f32 %v1736, %v2400
    %v2417 = vadd.f32 %v1737, %v2401
    %v2418 = vadd.f32 %v1738, %v2402
    %v2419 = vadd.f32 %v1739, %v2403
    %v2420 = vadd.f32 %v1740, %v2404
    %v2421 = vadd.f32 %v1741, %v2405
    %v2422 = vadd.f32 %v1742, %v2406
    %v2423 = vadd.f32 %v1743, %v2407
    %v2424 = vadd.f32 %v1744, %v2408
    %v2425 = vadd.f32 %v1745, %v2409
    %v2426 = vadd.f32 %v1746, %v2410
    %v2427 = vadd.f32 %v1747, %v2411
    %v2428 = vadd.f32 %v1748, %v2412
    %v2429 = vadd.f32 %v1749, %v2413
    %v2431 = vsel %vm1071, %v713, 0
    %2433 = vmatpush.msra.mxu0 0.0
    %2434 = vmatpush.msra.mxu0 0.0
    %2435 = vmatpush.msra.mxu0 0.0
    %2436 = vmatpush.msra.mxu0 0.0
    %2437 = vmatpush.msra.mxu0 0.0
    %2438 = vmatpush.msra.mxu0 0.0
    %2439 = vmatpush.msra.mxu0 0.0
    %2440 = vmatpush.msra.mxu0 0.0
    %2441 = vmatpush.msra.mxu0 %v991
    %2442 = vmatpush.msra.mxu0 %v975
    %2443 = vmatpush.msra.mxu0 %v959
    %2444 = vmatpush.msra.mxu0 %v943
    %2445 = vmatpush.msra.mxu0 %v927
    %2446 = vmatpush.msra.mxu0 %v911
    %2447 = vmatpush.msra.mxu0 %v895
    %2448 = vmatpush.msra.mxu0 %v879
    %2449 = vmatmul.f32.gmra.mxu0 %v2431
    %v2450 = vpop.f32.mrf.mxu0
    %v2451 = vadd.f32 0.0, %v2450
    %2452 = vdwg.mxu0
    %2453 = vmatpush.msra.mxu0 0.0
    %2454 = vmatpush.msra.mxu0 0.0
    %2455 = vmatpush.msra.mxu0 0.0
    %2456 = vmatpush.msra.mxu0 0.0
    %2457 = vmatpush.msra.mxu0 0.0
    %2458 = vmatpush.msra.mxu0 0.0
    %2459 = vmatpush.msra.mxu0 0.0
    %2460 = vmatpush.msra.mxu0 0.0
    %2461 = vmatpush.msra.mxu0 %v992
    %2462 = vmatpush.msra.mxu0 %v976
    %2463 = vmatpush.msra.mxu0 %v960
    %2464 = vmatpush.msra.mxu0 %v944
    %2465 = vmatpush.msra.mxu0 %v928
    %2466 = vmatpush.msra.mxu0 %v912
    %2467 = vmatpush.msra.mxu0 %v896
    %2468 = vmatpush.msra.mxu0 %v880
    %2469 = vmatmul.f32.gmra.mxu0 %v2431
    %v2470 = vpop.f32.mrf.mxu0
    %v2471 = vadd.f32 0.0, %v2470
    %2472 = vdwg.mxu0
    %2473 = vmatpush.msra.mxu0 0.0
    %2474 = vmatpush.msra.mxu0 0.0
    %2475 = vmatpush.msra.mxu0 0.0
    %2476 = vmatpush.msra.mxu0 0.0
    %2477 = vmatpush.msra.mxu0 0.0
    %2478 = vmatpush.msra.mxu0 0.0
    %2479 = vmatpush.msra.mxu0 0.0
    %2480 = vmatpush.msra.mxu0 0.0
    %2481 = vmatpush.msra.mxu0 %v993
    %2482 = vmatpush.msra.mxu0 %v977
    %2483 = vmatpush.msra.mxu0 %v961
    %2484 = vmatpush.msra.mxu0 %v945
    %2485 = vmatpush.msra.mxu0 %v929
    %2486 = vmatpush.msra.mxu0 %v913
    %2487 = vmatpush.msra.mxu0 %v897
    %2488 = vmatpush.msra.mxu0 %v881
    %2489 = vmatmul.f32.gmra.mxu0 %v2431
    %v2490 = vpop.f32.mrf.mxu0
    %v2491 = vadd.f32 0.0, %v2490
    %2492 = vdwg.mxu0
    %2493 = vmatpush.msra.mxu0 0.0
    %2494 = vmatpush.msra.mxu0 0.0
    %2495 = vmatpush.msra.mxu0 0.0
    %2496 = vmatpush.msra.mxu0 0.0
    %2497 = vmatpush.msra.mxu0 0.0
    %2498 = vmatpush.msra.mxu0 0.0
    %2499 = vmatpush.msra.mxu0 0.0
    %2500 = vmatpush.msra.mxu0 0.0
    %2501 = vmatpush.msra.mxu0 %v994
    %2502 = vmatpush.msra.mxu0 %v978
    %2503 = vmatpush.msra.mxu0 %v962
    %2504 = vmatpush.msra.mxu0 %v946
    %2505 = vmatpush.msra.mxu0 %v930
    %2506 = vmatpush.msra.mxu0 %v914
    %2507 = vmatpush.msra.mxu0 %v898
    %2508 = vmatpush.msra.mxu0 %v882
    %2509 = vmatmul.f32.gmra.mxu0 %v2431
    %v2510 = vpop.f32.mrf.mxu0
    %v2511 = vadd.f32 0.0, %v2510
    %2512 = vdwg.mxu0
    %2513 = vmatpush.msra.mxu0 0.0
    %2514 = vmatpush.msra.mxu0 0.0
    %2515 = vmatpush.msra.mxu0 0.0
    %2516 = vmatpush.msra.mxu0 0.0
    %2517 = vmatpush.msra.mxu0 0.0
    %2518 = vmatpush.msra.mxu0 0.0
    %2519 = vmatpush.msra.mxu0 0.0
    %2520 = vmatpush.msra.mxu0 0.0
    %2521 = vmatpush.msra.mxu0 %v995
    %2522 = vmatpush.msra.mxu0 %v979
    %2523 = vmatpush.msra.mxu0 %v963
    %2524 = vmatpush.msra.mxu0 %v947
    %2525 = vmatpush.msra.mxu0 %v931
    %2526 = vmatpush.msra.mxu0 %v915
    %2527 = vmatpush.msra.mxu0 %v899
    %2528 = vmatpush.msra.mxu0 %v883
    %2529 = vmatmul.f32.gmra.mxu0 %v2431
    %v2530 = vpop.f32.mrf.mxu0
    %v2531 = vadd.f32 0.0, %v2530
    %2532 = vdwg.mxu0
    %2533 = vmatpush.msra.mxu0 0.0
    %2534 = vmatpush.msra.mxu0 0.0
    %2535 = vmatpush.msra.mxu0 0.0
    %2536 = vmatpush.msra.mxu0 0.0
    %2537 = vmatpush.msra.mxu0 0.0
    %2538 = vmatpush.msra.mxu0 0.0
    %2539 = vmatpush.msra.mxu0 0.0
    %2540 = vmatpush.msra.mxu0 0.0
    %2541 = vmatpush.msra.mxu0 %v996
    %2542 = vmatpush.msra.mxu0 %v980
    %2543 = vmatpush.msra.mxu0 %v964
    %2544 = vmatpush.msra.mxu0 %v948
    %2545 = vmatpush.msra.mxu0 %v932
    %2546 = vmatpush.msra.mxu0 %v916
    %2547 = vmatpush.msra.mxu0 %v900
    %2548 = vmatpush.msra.mxu0 %v884
    %2549 = vmatmul.f32.gmra.mxu0 %v2431
    %v2550 = vpop.f32.mrf.mxu0
    %v2551 = vadd.f32 0.0, %v2550
    %2552 = vdwg.mxu0
    %2553 = vmatpush.msra.mxu0 0.0
    %2554 = vmatpush.msra.mxu0 0.0
    %2555 = vmatpush.msra.mxu0 0.0
    %2556 = vmatpush.msra.mxu0 0.0
    %2557 = vmatpush.msra.mxu0 0.0
    %2558 = vmatpush.msra.mxu0 0.0
    %2559 = vmatpush.msra.mxu0 0.0
    %2560 = vmatpush.msra.mxu0 0.0
    %2561 = vmatpush.msra.mxu0 %v997
    %2562 = vmatpush.msra.mxu0 %v981
    %2563 = vmatpush.msra.mxu0 %v965
    %2564 = vmatpush.msra.mxu0 %v949
    %2565 = vmatpush.msra.mxu0 %v933
    %2566 = vmatpush.msra.mxu0 %v917
    %2567 = vmatpush.msra.mxu0 %v901
    %2568 = vmatpush.msra.mxu0 %v885
    %2569 = vmatmul.f32.gmra.mxu0 %v2431
    %v2570 = vpop.f32.mrf.mxu0
    %v2571 = vadd.f32 0.0, %v2570
    %2572 = vdwg.mxu0
    %2573 = vmatpush.msra.mxu0 0.0
    %2574 = vmatpush.msra.mxu0 0.0
    %2575 = vmatpush.msra.mxu0 0.0
    %2576 = vmatpush.msra.mxu0 0.0
    %2577 = vmatpush.msra.mxu0 0.0
    %2578 = vmatpush.msra.mxu0 0.0
    %2579 = vmatpush.msra.mxu0 0.0
    %2580 = vmatpush.msra.mxu0 0.0
    %2581 = vmatpush.msra.mxu0 %v998
    %2582 = vmatpush.msra.mxu0 %v982
    %2583 = vmatpush.msra.mxu0 %v966
    %2584 = vmatpush.msra.mxu0 %v950
    %2585 = vmatpush.msra.mxu0 %v934
    %2586 = vmatpush.msra.mxu0 %v918
    %2587 = vmatpush.msra.mxu0 %v902
    %2588 = vmatpush.msra.mxu0 %v886
    %2589 = vmatmul.f32.gmra.mxu0 %v2431
    %v2590 = vpop.f32.mrf.mxu0
    %v2591 = vadd.f32 0.0, %v2590
    %2592 = vdwg.mxu0
    %2593 = vmatpush.msra.mxu0 0.0
    %2594 = vmatpush.msra.mxu0 0.0
    %2595 = vmatpush.msra.mxu0 0.0
    %2596 = vmatpush.msra.mxu0 0.0
    %2597 = vmatpush.msra.mxu0 0.0
    %2598 = vmatpush.msra.mxu0 0.0
    %2599 = vmatpush.msra.mxu0 0.0
    %2600 = vmatpush.msra.mxu0 0.0
    %2601 = vmatpush.msra.mxu0 %v999
    %2602 = vmatpush.msra.mxu0 %v983
    %2603 = vmatpush.msra.mxu0 %v967
    %2604 = vmatpush.msra.mxu0 %v951
    %2605 = vmatpush.msra.mxu0 %v935
    %2606 = vmatpush.msra.mxu0 %v919
    %2607 = vmatpush.msra.mxu0 %v903
    %2608 = vmatpush.msra.mxu0 %v887
    %2609 = vmatmul.f32.gmra.mxu0 %v2431
    %v2610 = vpop.f32.mrf.mxu0
    %v2611 = vadd.f32 0.0, %v2610
    %2612 = vdwg.mxu0
    %2613 = vmatpush.msra.mxu0 0.0
    %2614 = vmatpush.msra.mxu0 0.0
    %2615 = vmatpush.msra.mxu0 0.0
    %2616 = vmatpush.msra.mxu0 0.0
    %2617 = vmatpush.msra.mxu0 0.0
    %2618 = vmatpush.msra.mxu0 0.0
    %2619 = vmatpush.msra.mxu0 0.0
    %2620 = vmatpush.msra.mxu0 0.0
    %2621 = vmatpush.msra.mxu0 %v1000
    %2622 = vmatpush.msra.mxu0 %v984
    %2623 = vmatpush.msra.mxu0 %v968
    %2624 = vmatpush.msra.mxu0 %v952
    %2625 = vmatpush.msra.mxu0 %v936
    %2626 = vmatpush.msra.mxu0 %v920
    %2627 = vmatpush.msra.mxu0 %v904
    %2628 = vmatpush.msra.mxu0 %v888
    %2629 = vmatmul.f32.gmra.mxu0 %v2431
    %v2630 = vpop.f32.mrf.mxu0
    %v2631 = vadd.f32 0.0, %v2630
    %2632 = vdwg.mxu0
    %2633 = vmatpush.msra.mxu0 0.0
    %2634 = vmatpush.msra.mxu0 0.0
    %2635 = vmatpush.msra.mxu0 0.0
    %2636 = vmatpush.msra.mxu0 0.0
    %2637 = vmatpush.msra.mxu0 0.0
    %2638 = vmatpush.msra.mxu0 0.0
    %2639 = vmatpush.msra.mxu0 0.0
    %2640 = vmatpush.msra.mxu0 0.0
    %2641 = vmatpush.msra.mxu0 %v1001
    %2642 = vmatpush.msra.mxu0 %v985
    %2643 = vmatpush.msra.mxu0 %v969
    %2644 = vmatpush.msra.mxu0 %v953
    %2645 = vmatpush.msra.mxu0 %v937
    %2646 = vmatpush.msra.mxu0 %v921
    %2647 = vmatpush.msra.mxu0 %v905
    %2648 = vmatpush.msra.mxu0 %v889
    %2649 = vmatmul.f32.gmra.mxu0 %v2431
    %v2650 = vpop.f32.mrf.mxu0
    %v2651 = vadd.f32 0.0, %v2650
    %2652 = vdwg.mxu0
    %2653 = vmatpush.msra.mxu0 0.0
    %2654 = vmatpush.msra.mxu0 0.0
    %2655 = vmatpush.msra.mxu0 0.0
    %2656 = vmatpush.msra.mxu0 0.0
    %2657 = vmatpush.msra.mxu0 0.0
    %2658 = vmatpush.msra.mxu0 0.0
    %2659 = vmatpush.msra.mxu0 0.0
    %2660 = vmatpush.msra.mxu0 0.0
    %2661 = vmatpush.msra.mxu0 %v1002
    %2662 = vmatpush.msra.mxu0 %v986
    %2663 = vmatpush.msra.mxu0 %v970
    %2664 = vmatpush.msra.mxu0 %v954
    %2665 = vmatpush.msra.mxu0 %v938
    %2666 = vmatpush.msra.mxu0 %v922
    %2667 = vmatpush.msra.mxu0 %v906
    %2668 = vmatpush.msra.mxu0 %v890
    %2669 = vmatmul.f32.gmra.mxu0 %v2431
    %v2670 = vpop.f32.mrf.mxu0
    %v2671 = vadd.f32 0.0, %v2670
    %2672 = vdwg.mxu0
    %2673 = vmatpush.msra.mxu0 0.0
    %2674 = vmatpush.msra.mxu0 0.0
    %2675 = vmatpush.msra.mxu0 0.0
    %2676 = vmatpush.msra.mxu0 0.0
    %2677 = vmatpush.msra.mxu0 0.0
    %2678 = vmatpush.msra.mxu0 0.0
    %2679 = vmatpush.msra.mxu0 0.0
    %2680 = vmatpush.msra.mxu0 0.0
    %2681 = vmatpush.msra.mxu0 %v1003
    %2682 = vmatpush.msra.mxu0 %v987
    %2683 = vmatpush.msra.mxu0 %v971
    %2684 = vmatpush.msra.mxu0 %v955
    %2685 = vmatpush.msra.mxu0 %v939
    %2686 = vmatpush.msra.mxu0 %v923
    %2687 = vmatpush.msra.mxu0 %v907
    %2688 = vmatpush.msra.mxu0 %v891
    %2689 = vmatmul.f32.gmra.mxu0 %v2431
    %v2690 = vpop.f32.mrf.mxu0
    %v2691 = vadd.f32 0.0, %v2690
    %2692 = vdwg.mxu0
    %2693 = vmatpush.msra.mxu0 0.0
    %2694 = vmatpush.msra.mxu0 0.0
    %2695 = vmatpush.msra.mxu0 0.0
    %2696 = vmatpush.msra.mxu0 0.0
    %2697 = vmatpush.msra.mxu0 0.0
    %2698 = vmatpush.msra.mxu0 0.0
    %2699 = vmatpush.msra.mxu0 0.0
    %2700 = vmatpush.msra.mxu0 0.0
    %2701 = vmatpush.msra.mxu0 %v1004
    %2702 = vmatpush.msra.mxu0 %v988
    %2703 = vmatpush.msra.mxu0 %v972
    %2704 = vmatpush.msra.mxu0 %v956
    %2705 = vmatpush.msra.mxu0 %v940
    %2706 = vmatpush.msra.mxu0 %v924
    %2707 = vmatpush.msra.mxu0 %v908
    %2708 = vmatpush.msra.mxu0 %v892
    %2709 = vmatmul.f32.gmra.mxu0 %v2431
    %v2710 = vpop.f32.mrf.mxu0
    %v2711 = vadd.f32 0.0, %v2710
    %2712 = vdwg.mxu0
    %2713 = vmatpush.msra.mxu0 0.0
    %2714 = vmatpush.msra.mxu0 0.0
    %2715 = vmatpush.msra.mxu0 0.0
    %2716 = vmatpush.msra.mxu0 0.0
    %2717 = vmatpush.msra.mxu0 0.0
    %2718 = vmatpush.msra.mxu0 0.0
    %2719 = vmatpush.msra.mxu0 0.0
    %2720 = vmatpush.msra.mxu0 0.0
    %2721 = vmatpush.msra.mxu0 %v1005
    %2722 = vmatpush.msra.mxu0 %v989
    %2723 = vmatpush.msra.mxu0 %v973
    %2724 = vmatpush.msra.mxu0 %v957
    %2725 = vmatpush.msra.mxu0 %v941
    %2726 = vmatpush.msra.mxu0 %v925
    %2727 = vmatpush.msra.mxu0 %v909
    %2728 = vmatpush.msra.mxu0 %v893
    %2729 = vmatmul.f32.gmra.mxu0 %v2431
    %v2730 = vpop.f32.mrf.mxu0
    %v2731 = vadd.f32 0.0, %v2730
    %2732 = vdwg.mxu0
    %2733 = vmatpush.msra.mxu0 0.0
    %2734 = vmatpush.msra.mxu0 0.0
    %2735 = vmatpush.msra.mxu0 0.0
    %2736 = vmatpush.msra.mxu0 0.0
    %2737 = vmatpush.msra.mxu0 0.0
    %2738 = vmatpush.msra.mxu0 0.0
    %2739 = vmatpush.msra.mxu0 0.0
    %2740 = vmatpush.msra.mxu0 0.0
    %2741 = vmatpush.msra.mxu0 %v1006
    %2742 = vmatpush.msra.mxu0 %v990
    %2743 = vmatpush.msra.mxu0 %v974
    %2744 = vmatpush.msra.mxu0 %v958
    %2745 = vmatpush.msra.mxu0 %v942
    %2746 = vmatpush.msra.mxu0 %v926
    %2747 = vmatpush.msra.mxu0 %v910
    %2748 = vmatpush.msra.mxu0 %v894
    %2749 = vmatmul.f32.gmra.mxu0 %v2431
    %v2750 = vpop.f32.mrf.mxu0
    %v2751 = vadd.f32 0.0, %v2750
    %2752 = vdwg.mxu0
    %2753 = vrot.lane.b32.xlu0 %v833, 64
    %v2754 = vpop.permute.xlu0 %2753
    %v2755 = vsel %vm139, %v2754, 0
    %2757 = vmatpush.msra.mxu0 0.0
    %2758 = vmatpush.msra.mxu0 0.0
    %2759 = vmatpush.msra.mxu0 0.0
    %2760 = vmatpush.msra.mxu0 0.0
    %2761 = vmatpush.msra.mxu0 0.0
    %2762 = vmatpush.msra.mxu0 0.0
    %2763 = vmatpush.msra.mxu0 0.0
    %2764 = vmatpush.msra.mxu0 0.0
    %2765 = vmatpush.msra.mxu0 0.0
    %2766 = vmatpush.msra.mxu0 0.0
    %2767 = vmatpush.msra.mxu0 0.0
    %2768 = vmatpush.msra.mxu0 0.0
    %2769 = vmatpush.msra.mxu0 %v1055
    %2770 = vmatpush.msra.mxu0 %v1039
    %2771 = vmatpush.msra.mxu0 %v1023
    %2772 = vmatpush.msra.mxu0 %v1007
    %2773 = vmatmul.f32.gmra.mxu0 %v2755
    %v2774 = vpop.f32.mrf.mxu0
    %v2775 = vadd.f32 0.0, %v2774
    %2776 = vdwg.mxu0
    %2777 = vmatpush.msra.mxu0 0.0
    %2778 = vmatpush.msra.mxu0 0.0
    %2779 = vmatpush.msra.mxu0 0.0
    %2780 = vmatpush.msra.mxu0 0.0
    %2781 = vmatpush.msra.mxu0 0.0
    %2782 = vmatpush.msra.mxu0 0.0
    %2783 = vmatpush.msra.mxu0 0.0
    %2784 = vmatpush.msra.mxu0 0.0
    %2785 = vmatpush.msra.mxu0 0.0
    %2786 = vmatpush.msra.mxu0 0.0
    %2787 = vmatpush.msra.mxu0 0.0
    %2788 = vmatpush.msra.mxu0 0.0
    %2789 = vmatpush.msra.mxu0 %v1056
    %2790 = vmatpush.msra.mxu0 %v1040
    %2791 = vmatpush.msra.mxu0 %v1024
    %2792 = vmatpush.msra.mxu0 %v1008
    %2793 = vmatmul.f32.gmra.mxu0 %v2755
    %v2794 = vpop.f32.mrf.mxu0
    %v2795 = vadd.f32 0.0, %v2794
    %2796 = vdwg.mxu0
    %2797 = vmatpush.msra.mxu0 0.0
    %2798 = vmatpush.msra.mxu0 0.0
    %2799 = vmatpush.msra.mxu0 0.0
    %2800 = vmatpush.msra.mxu0 0.0
    %2801 = vmatpush.msra.mxu0 0.0
    %2802 = vmatpush.msra.mxu0 0.0
    %2803 = vmatpush.msra.mxu0 0.0
    %2804 = vmatpush.msra.mxu0 0.0
    %2805 = vmatpush.msra.mxu0 0.0
    %2806 = vmatpush.msra.mxu0 0.0
    %2807 = vmatpush.msra.mxu0 0.0
    %2808 = vmatpush.msra.mxu0 0.0
    %2809 = vmatpush.msra.mxu0 %v1057
    %2810 = vmatpush.msra.mxu0 %v1041
    %2811 = vmatpush.msra.mxu0 %v1025
    %2812 = vmatpush.msra.mxu0 %v1009
    %2813 = vmatmul.f32.gmra.mxu0 %v2755
    %v2814 = vpop.f32.mrf.mxu0
    %v2815 = vadd.f32 0.0, %v2814
    %2816 = vdwg.mxu0
    %2817 = vmatpush.msra.mxu0 0.0
    %2818 = vmatpush.msra.mxu0 0.0
    %2819 = vmatpush.msra.mxu0 0.0
    %2820 = vmatpush.msra.mxu0 0.0
    %2821 = vmatpush.msra.mxu0 0.0
    %2822 = vmatpush.msra.mxu0 0.0
    %2823 = vmatpush.msra.mxu0 0.0
    %2824 = vmatpush.msra.mxu0 0.0
    %2825 = vmatpush.msra.mxu0 0.0
    %2826 = vmatpush.msra.mxu0 0.0
    %2827 = vmatpush.msra.mxu0 0.0
    %2828 = vmatpush.msra.mxu0 0.0
    %2829 = vmatpush.msra.mxu0 %v1058
    %2830 = vmatpush.msra.mxu0 %v1042
    %2831 = vmatpush.msra.mxu0 %v1026
    %2832 = vmatpush.msra.mxu0 %v1010
    %2833 = vmatmul.f32.gmra.mxu0 %v2755
    %v2834 = vpop.f32.mrf.mxu0
    %v2835 = vadd.f32 0.0, %v2834
    %2836 = vdwg.mxu0
    %2837 = vmatpush.msra.mxu0 0.0
    %2838 = vmatpush.msra.mxu0 0.0
    %2839 = vmatpush.msra.mxu0 0.0
    %2840 = vmatpush.msra.mxu0 0.0
    %2841 = vmatpush.msra.mxu0 0.0
    %2842 = vmatpush.msra.mxu0 0.0
    %2843 = vmatpush.msra.mxu0 0.0
    %2844 = vmatpush.msra.mxu0 0.0
    %2845 = vmatpush.msra.mxu0 0.0
    %2846 = vmatpush.msra.mxu0 0.0
    %2847 = vmatpush.msra.mxu0 0.0
    %2848 = vmatpush.msra.mxu0 0.0
    %2849 = vmatpush.msra.mxu0 %v1059
    %2850 = vmatpush.msra.mxu0 %v1043
    %2851 = vmatpush.msra.mxu0 %v1027
    %2852 = vmatpush.msra.mxu0 %v1011
    %2853 = vmatmul.f32.gmra.mxu0 %v2755
    %v2854 = vpop.f32.mrf.mxu0
    %v2855 = vadd.f32 0.0, %v2854
    %2856 = vdwg.mxu0
    %2857 = vmatpush.msra.mxu0 0.0
    %2858 = vmatpush.msra.mxu0 0.0
    %2859 = vmatpush.msra.mxu0 0.0
    %2860 = vmatpush.msra.mxu0 0.0
    %2861 = vmatpush.msra.mxu0 0.0
    %2862 = vmatpush.msra.mxu0 0.0
    %2863 = vmatpush.msra.mxu0 0.0
    %2864 = vmatpush.msra.mxu0 0.0
    %2865 = vmatpush.msra.mxu0 0.0
    %2866 = vmatpush.msra.mxu0 0.0
    %2867 = vmatpush.msra.mxu0 0.0
    %2868 = vmatpush.msra.mxu0 0.0
    %2869 = vmatpush.msra.mxu0 %v1060
    %2870 = vmatpush.msra.mxu0 %v1044
    %2871 = vmatpush.msra.mxu0 %v1028
    %2872 = vmatpush.msra.mxu0 %v1012
    %2873 = vmatmul.f32.gmra.mxu0 %v2755
    %v2874 = vpop.f32.mrf.mxu0
    %v2875 = vadd.f32 0.0, %v2874
    %2876 = vdwg.mxu0
    %2877 = vmatpush.msra.mxu0 0.0
    %2878 = vmatpush.msra.mxu0 0.0
    %2879 = vmatpush.msra.mxu0 0.0
    %2880 = vmatpush.msra.mxu0 0.0
    %2881 = vmatpush.msra.mxu0 0.0
    %2882 = vmatpush.msra.mxu0 0.0
    %2883 = vmatpush.msra.mxu0 0.0
    %2884 = vmatpush.msra.mxu0 0.0
    %2885 = vmatpush.msra.mxu0 0.0
    %2886 = vmatpush.msra.mxu0 0.0
    %2887 = vmatpush.msra.mxu0 0.0
    %2888 = vmatpush.msra.mxu0 0.0
    %2889 = vmatpush.msra.mxu0 %v1061
    %2890 = vmatpush.msra.mxu0 %v1045
    %2891 = vmatpush.msra.mxu0 %v1029
    %2892 = vmatpush.msra.mxu0 %v1013
    %2893 = vmatmul.f32.gmra.mxu0 %v2755
    %v2894 = vpop.f32.mrf.mxu0
    %v2895 = vadd.f32 0.0, %v2894
    %2896 = vdwg.mxu0
    %2897 = vmatpush.msra.mxu0 0.0
    %2898 = vmatpush.msra.mxu0 0.0
    %2899 = vmatpush.msra.mxu0 0.0
    %2900 = vmatpush.msra.mxu0 0.0
    %2901 = vmatpush.msra.mxu0 0.0
    %2902 = vmatpush.msra.mxu0 0.0
    %2903 = vmatpush.msra.mxu0 0.0
    %2904 = vmatpush.msra.mxu0 0.0
    %2905 = vmatpush.msra.mxu0 0.0
    %2906 = vmatpush.msra.mxu0 0.0
    %2907 = vmatpush.msra.mxu0 0.0
    %2908 = vmatpush.msra.mxu0 0.0
    %2909 = vmatpush.msra.mxu0 %v1062
    %2910 = vmatpush.msra.mxu0 %v1046
    %2911 = vmatpush.msra.mxu0 %v1030
    %2912 = vmatpush.msra.mxu0 %v1014
    %2913 = vmatmul.f32.gmra.mxu0 %v2755
    %v2914 = vpop.f32.mrf.mxu0
    %v2915 = vadd.f32 0.0, %v2914
    %2916 = vdwg.mxu0
    %2917 = vmatpush.msra.mxu0 0.0
    %2918 = vmatpush.msra.mxu0 0.0
    %2919 = vmatpush.msra.mxu0 0.0
    %2920 = vmatpush.msra.mxu0 0.0
    %2921 = vmatpush.msra.mxu0 0.0
    %2922 = vmatpush.msra.mxu0 0.0
    %2923 = vmatpush.msra.mxu0 0.0
    %2924 = vmatpush.msra.mxu0 0.0
    %2925 = vmatpush.msra.mxu0 0.0
    %2926 = vmatpush.msra.mxu0 0.0
    %2927 = vmatpush.msra.mxu0 0.0
    %2928 = vmatpush.msra.mxu0 0.0
    %2929 = vmatpush.msra.mxu0 %v1063
    %2930 = vmatpush.msra.mxu0 %v1047
    %2931 = vmatpush.msra.mxu0 %v1031
    %2932 = vmatpush.msra.mxu0 %v1015
    %2933 = vmatmul.f32.gmra.mxu0 %v2755
    %v2934 = vpop.f32.mrf.mxu0
    %v2935 = vadd.f32 0.0, %v2934
    %2936 = vdwg.mxu0
    %2937 = vmatpush.msra.mxu0 0.0
    %2938 = vmatpush.msra.mxu0 0.0
    %2939 = vmatpush.msra.mxu0 0.0
    %2940 = vmatpush.msra.mxu0 0.0
    %2941 = vmatpush.msra.mxu0 0.0
    %2942 = vmatpush.msra.mxu0 0.0
    %2943 = vmatpush.msra.mxu0 0.0
    %2944 = vmatpush.msra.mxu0 0.0
    %2945 = vmatpush.msra.mxu0 0.0
    %2946 = vmatpush.msra.mxu0 0.0
    %2947 = vmatpush.msra.mxu0 0.0
    %2948 = vmatpush.msra.mxu0 0.0
    %2949 = vmatpush.msra.mxu0 %v1064
    %2950 = vmatpush.msra.mxu0 %v1048
    %2951 = vmatpush.msra.mxu0 %v1032
    %2952 = vmatpush.msra.mxu0 %v1016
    %2953 = vmatmul.f32.gmra.mxu0 %v2755
    %v2954 = vpop.f32.mrf.mxu0
    %v2955 = vadd.f32 0.0, %v2954
    %2956 = vdwg.mxu0
    %2957 = vmatpush.msra.mxu0 0.0
    %2958 = vmatpush.msra.mxu0 0.0
    %2959 = vmatpush.msra.mxu0 0.0
    %2960 = vmatpush.msra.mxu0 0.0
    %2961 = vmatpush.msra.mxu0 0.0
    %2962 = vmatpush.msra.mxu0 0.0
    %2963 = vmatpush.msra.mxu0 0.0
    %2964 = vmatpush.msra.mxu0 0.0
    %2965 = vmatpush.msra.mxu0 0.0
    %2966 = vmatpush.msra.mxu0 0.0
    %2967 = vmatpush.msra.mxu0 0.0
    %2968 = vmatpush.msra.mxu0 0.0
    %2969 = vmatpush.msra.mxu0 %v1065
    %2970 = vmatpush.msra.mxu0 %v1049
    %2971 = vmatpush.msra.mxu0 %v1033
    %2972 = vmatpush.msra.mxu0 %v1017
    %2973 = vmatmul.f32.gmra.mxu0 %v2755
    %v2974 = vpop.f32.mrf.mxu0
    %v2975 = vadd.f32 0.0, %v2974
    %2976 = vdwg.mxu0
    %2977 = vmatpush.msra.mxu0 0.0
    %2978 = vmatpush.msra.mxu0 0.0
    %2979 = vmatpush.msra.mxu0 0.0
    %2980 = vmatpush.msra.mxu0 0.0
    %2981 = vmatpush.msra.mxu0 0.0
    %2982 = vmatpush.msra.mxu0 0.0
    %2983 = vmatpush.msra.mxu0 0.0
    %2984 = vmatpush.msra.mxu0 0.0
    %2985 = vmatpush.msra.mxu0 0.0
    %2986 = vmatpush.msra.mxu0 0.0
    %2987 = vmatpush.msra.mxu0 0.0
    %2988 = vmatpush.msra.mxu0 0.0
    %2989 = vmatpush.msra.mxu0 %v1066
    %2990 = vmatpush.msra.mxu0 %v1050
    %2991 = vmatpush.msra.mxu0 %v1034
    %2992 = vmatpush.msra.mxu0 %v1018
    %2993 = vmatmul.f32.gmra.mxu0 %v2755
    %v2994 = vpop.f32.mrf.mxu0
    %v2995 = vadd.f32 0.0, %v2994
    %2996 = vdwg.mxu0
    %2997 = vmatpush.msra.mxu0 0.0
    %2998 = vmatpush.msra.mxu0 0.0
    %2999 = vmatpush.msra.mxu0 0.0
    %3000 = vmatpush.msra.mxu0 0.0
    %3001 = vmatpush.msra.mxu0 0.0
    %3002 = vmatpush.msra.mxu0 0.0
    %3003 = vmatpush.msra.mxu0 0.0
    %3004 = vmatpush.msra.mxu0 0.0
    %3005 = vmatpush.msra.mxu0 0.0
    %3006 = vmatpush.msra.mxu0 0.0
    %3007 = vmatpush.msra.mxu0 0.0
    %3008 = vmatpush.msra.mxu0 0.0
    %3009 = vmatpush.msra.mxu0 %v1067
    %3010 = vmatpush.msra.mxu0 %v1051
    %3011 = vmatpush.msra.mxu0 %v1035
    %3012 = vmatpush.msra.mxu0 %v1019
    %3013 = vmatmul.f32.gmra.mxu0 %v2755
    %v3014 = vpop.f32.mrf.mxu0
    %v3015 = vadd.f32 0.0, %v3014
    %3016 = vdwg.mxu0
    %3017 = vmatpush.msra.mxu0 0.0
    %3018 = vmatpush.msra.mxu0 0.0
    %3019 = vmatpush.msra.mxu0 0.0
    %3020 = vmatpush.msra.mxu0 0.0
    %3021 = vmatpush.msra.mxu0 0.0
    %3022 = vmatpush.msra.mxu0 0.0
    %3023 = vmatpush.msra.mxu0 0.0
    %3024 = vmatpush.msra.mxu0 0.0
    %3025 = vmatpush.msra.mxu0 0.0
    %3026 = vmatpush.msra.mxu0 0.0
    %3027 = vmatpush.msra.mxu0 0.0
    %3028 = vmatpush.msra.mxu0 0.0
    %3029 = vmatpush.msra.mxu0 %v1068
    %3030 = vmatpush.msra.mxu0 %v1052
    %3031 = vmatpush.msra.mxu0 %v1036
    %3032 = vmatpush.msra.mxu0 %v1020
    %3033 = vmatmul.f32.gmra.mxu0 %v2755
    %v3034 = vpop.f32.mrf.mxu0
    %v3035 = vadd.f32 0.0, %v3034
    %3036 = vdwg.mxu0
    %3037 = vmatpush.msra.mxu0 0.0
    %3038 = vmatpush.msra.mxu0 0.0
    %3039 = vmatpush.msra.mxu0 0.0
    %3040 = vmatpush.msra.mxu0 0.0
    %3041 = vmatpush.msra.mxu0 0.0
    %3042 = vmatpush.msra.mxu0 0.0
    %3043 = vmatpush.msra.mxu0 0.0
    %3044 = vmatpush.msra.mxu0 0.0
    %3045 = vmatpush.msra.mxu0 0.0
    %3046 = vmatpush.msra.mxu0 0.0
    %3047 = vmatpush.msra.mxu0 0.0
    %3048 = vmatpush.msra.mxu0 0.0
    %3049 = vmatpush.msra.mxu0 %v1069
    %3050 = vmatpush.msra.mxu0 %v1053
    %3051 = vmatpush.msra.mxu0 %v1037
    %3052 = vmatpush.msra.mxu0 %v1021
    %3053 = vmatmul.f32.gmra.mxu0 %v2755
    %v3054 = vpop.f32.mrf.mxu0
    %v3055 = vadd.f32 0.0, %v3054
    %3056 = vdwg.mxu0
    %3057 = vmatpush.msra.mxu0 0.0
    %3058 = vmatpush.msra.mxu0 0.0
    %3059 = vmatpush.msra.mxu0 0.0
    %3060 = vmatpush.msra.mxu0 0.0
    %3061 = vmatpush.msra.mxu0 0.0
    %3062 = vmatpush.msra.mxu0 0.0
    %3063 = vmatpush.msra.mxu0 0.0
    %3064 = vmatpush.msra.mxu0 0.0
    %3065 = vmatpush.msra.mxu0 0.0
    %3066 = vmatpush.msra.mxu0 0.0
    %3067 = vmatpush.msra.mxu0 0.0
    %3068 = vmatpush.msra.mxu0 0.0
    %3069 = vmatpush.msra.mxu0 %v1070
    %3070 = vmatpush.msra.mxu0 %v1054
    %3071 = vmatpush.msra.mxu0 %v1038
    %3072 = vmatpush.msra.mxu0 %v1022
    %3073 = vmatmul.f32.gmra.mxu0 %v2755
    %v3074 = vpop.f32.mrf.mxu0
    %v3075 = vadd.f32 0.0, %v3074
    %3076 = vdwg.mxu0
    %v3077 = vmul.f32 %v2451, %v2775
    %v3078 = vmul.f32 %v2471, %v2795
    %v3079 = vmul.f32 %v2491, %v2815
    %v3080 = vmul.f32 %v2511, %v2835
    %v3081 = vmul.f32 %v2531, %v2855
    %v3082 = vmul.f32 %v2551, %v2875
    %v3083 = vmul.f32 %v2571, %v2895
    %v3084 = vmul.f32 %v2591, %v2915
    %v3085 = vmul.f32 %v2611, %v2935
    %v3086 = vmul.f32 %v2631, %v2955
    %v3087 = vmul.f32 %v2651, %v2975
    %v3088 = vmul.f32 %v2671, %v2995
    %v3089 = vmul.f32 %v2691, %v3015
    %v3090 = vmul.f32 %v2711, %v3035
    %v3091 = vmul.f32 %v2731, %v3055
    %v3092 = vmul.f32 %v2751, %v3075
    %v3093 = vadd.f32 %v2414, %v3077
    %v3094 = vadd.f32 %v2415, %v3078
    %v3095 = vadd.f32 %v2416, %v3079
    %v3096 = vadd.f32 %v2417, %v3080
    %v3097 = vadd.f32 %v2418, %v3081
    %v3098 = vadd.f32 %v2419, %v3082
    %v3099 = vadd.f32 %v2420, %v3083
    %v3100 = vadd.f32 %v2421, %v3084
    %v3101 = vadd.f32 %v2422, %v3085
    %v3102 = vadd.f32 %v2423, %v3086
    %v3103 = vadd.f32 %v2424, %v3087
    %v3104 = vadd.f32 %v2425, %v3088
    %v3105 = vadd.f32 %v2426, %v3089
    %v3106 = vadd.f32 %v2427, %v3090
    %v3107 = vadd.f32 %v2428, %v3091
    %v3108 = vadd.f32 %v2429, %v3092
    %3109 = vrot.lane.b32.xlu0 %v713, 64
    %v3110 = vpop.permute.xlu0 %3109
    %v3111 = vsel %vm1071, %v3110, 0
    %3113 = vmatpush.msra.mxu0 0.0
    %3114 = vmatpush.msra.mxu0 0.0
    %3115 = vmatpush.msra.mxu0 0.0
    %3116 = vmatpush.msra.mxu0 0.0
    %3117 = vmatpush.msra.mxu0 0.0
    %3118 = vmatpush.msra.mxu0 0.0
    %3119 = vmatpush.msra.mxu0 0.0
    %3120 = vmatpush.msra.mxu0 0.0
    %3121 = vmatpush.msra.mxu0 %v991
    %3122 = vmatpush.msra.mxu0 %v975
    %3123 = vmatpush.msra.mxu0 %v959
    %3124 = vmatpush.msra.mxu0 %v943
    %3125 = vmatpush.msra.mxu0 %v927
    %3126 = vmatpush.msra.mxu0 %v911
    %3127 = vmatpush.msra.mxu0 %v895
    %3128 = vmatpush.msra.mxu0 %v879
    %3129 = vmatmul.f32.gmra.mxu0 %v3111
    %v3130 = vpop.f32.mrf.mxu0
    %v3131 = vadd.f32 0.0, %v3130
    %3132 = vdwg.mxu0
    %3133 = vmatpush.msra.mxu0 0.0
    %3134 = vmatpush.msra.mxu0 0.0
    %3135 = vmatpush.msra.mxu0 0.0
    %3136 = vmatpush.msra.mxu0 0.0
    %3137 = vmatpush.msra.mxu0 0.0
    %3138 = vmatpush.msra.mxu0 0.0
    %3139 = vmatpush.msra.mxu0 0.0
    %3140 = vmatpush.msra.mxu0 0.0
    %3141 = vmatpush.msra.mxu0 %v992
    %3142 = vmatpush.msra.mxu0 %v976
    %3143 = vmatpush.msra.mxu0 %v960
    %3144 = vmatpush.msra.mxu0 %v944
    %3145 = vmatpush.msra.mxu0 %v928
    %3146 = vmatpush.msra.mxu0 %v912
    %3147 = vmatpush.msra.mxu0 %v896
    %3148 = vmatpush.msra.mxu0 %v880
    %3149 = vmatmul.f32.gmra.mxu0 %v3111
    %v3150 = vpop.f32.mrf.mxu0
    %v3151 = vadd.f32 0.0, %v3150
    %3152 = vdwg.mxu0
    %3153 = vmatpush.msra.mxu0 0.0
    %3154 = vmatpush.msra.mxu0 0.0
    %3155 = vmatpush.msra.mxu0 0.0
    %3156 = vmatpush.msra.mxu0 0.0
    %3157 = vmatpush.msra.mxu0 0.0
    %3158 = vmatpush.msra.mxu0 0.0
    %3159 = vmatpush.msra.mxu0 0.0
    %3160 = vmatpush.msra.mxu0 0.0
    %3161 = vmatpush.msra.mxu0 %v993
    %3162 = vmatpush.msra.mxu0 %v977
    %3163 = vmatpush.msra.mxu0 %v961
    %3164 = vmatpush.msra.mxu0 %v945
    %3165 = vmatpush.msra.mxu0 %v929
    %3166 = vmatpush.msra.mxu0 %v913
    %3167 = vmatpush.msra.mxu0 %v897
    %3168 = vmatpush.msra.mxu0 %v881
    %3169 = vmatmul.f32.gmra.mxu0 %v3111
    %v3170 = vpop.f32.mrf.mxu0
    %v3171 = vadd.f32 0.0, %v3170
    %3172 = vdwg.mxu0
    %3173 = vmatpush.msra.mxu0 0.0
    %3174 = vmatpush.msra.mxu0 0.0
    %3175 = vmatpush.msra.mxu0 0.0
    %3176 = vmatpush.msra.mxu0 0.0
    %3177 = vmatpush.msra.mxu0 0.0
    %3178 = vmatpush.msra.mxu0 0.0
    %3179 = vmatpush.msra.mxu0 0.0
    %3180 = vmatpush.msra.mxu0 0.0
    %3181 = vmatpush.msra.mxu0 %v994
    %3182 = vmatpush.msra.mxu0 %v978
    %3183 = vmatpush.msra.mxu0 %v962
    %3184 = vmatpush.msra.mxu0 %v946
    %3185 = vmatpush.msra.mxu0 %v930
    %3186 = vmatpush.msra.mxu0 %v914
    %3187 = vmatpush.msra.mxu0 %v898
    %3188 = vmatpush.msra.mxu0 %v882
    %3189 = vmatmul.f32.gmra.mxu0 %v3111
    %v3190 = vpop.f32.mrf.mxu0
    %v3191 = vadd.f32 0.0, %v3190
    %3192 = vdwg.mxu0
    %3193 = vmatpush.msra.mxu0 0.0
    %3194 = vmatpush.msra.mxu0 0.0
    %3195 = vmatpush.msra.mxu0 0.0
    %3196 = vmatpush.msra.mxu0 0.0
    %3197 = vmatpush.msra.mxu0 0.0
    %3198 = vmatpush.msra.mxu0 0.0
    %3199 = vmatpush.msra.mxu0 0.0
    %3200 = vmatpush.msra.mxu0 0.0
    %3201 = vmatpush.msra.mxu0 %v995
    %3202 = vmatpush.msra.mxu0 %v979
    %3203 = vmatpush.msra.mxu0 %v963
    %3204 = vmatpush.msra.mxu0 %v947
    %3205 = vmatpush.msra.mxu0 %v931
    %3206 = vmatpush.msra.mxu0 %v915
    %3207 = vmatpush.msra.mxu0 %v899
    %3208 = vmatpush.msra.mxu0 %v883
    %3209 = vmatmul.f32.gmra.mxu0 %v3111
    %v3210 = vpop.f32.mrf.mxu0
    %v3211 = vadd.f32 0.0, %v3210
    %3212 = vdwg.mxu0
    %3213 = vmatpush.msra.mxu0 0.0
    %3214 = vmatpush.msra.mxu0 0.0
    %3215 = vmatpush.msra.mxu0 0.0
    %3216 = vmatpush.msra.mxu0 0.0
    %3217 = vmatpush.msra.mxu0 0.0
    %3218 = vmatpush.msra.mxu0 0.0
    %3219 = vmatpush.msra.mxu0 0.0
    %3220 = vmatpush.msra.mxu0 0.0
    %3221 = vmatpush.msra.mxu0 %v996
    %3222 = vmatpush.msra.mxu0 %v980
    %3223 = vmatpush.msra.mxu0 %v964
    %3224 = vmatpush.msra.mxu0 %v948
    %3225 = vmatpush.msra.mxu0 %v932
    %3226 = vmatpush.msra.mxu0 %v916
    %3227 = vmatpush.msra.mxu0 %v900
    %3228 = vmatpush.msra.mxu0 %v884
    %3229 = vmatmul.f32.gmra.mxu0 %v3111
    %v3230 = vpop.f32.mrf.mxu0
    %v3231 = vadd.f32 0.0, %v3230
    %3232 = vdwg.mxu0
    %3233 = vmatpush.msra.mxu0 0.0
    %3234 = vmatpush.msra.mxu0 0.0
    %3235 = vmatpush.msra.mxu0 0.0
    %3236 = vmatpush.msra.mxu0 0.0
    %3237 = vmatpush.msra.mxu0 0.0
    %3238 = vmatpush.msra.mxu0 0.0
    %3239 = vmatpush.msra.mxu0 0.0
    %3240 = vmatpush.msra.mxu0 0.0
    %3241 = vmatpush.msra.mxu0 %v997
    %3242 = vmatpush.msra.mxu0 %v981
    %3243 = vmatpush.msra.mxu0 %v965
    %3244 = vmatpush.msra.mxu0 %v949
    %3245 = vmatpush.msra.mxu0 %v933
    %3246 = vmatpush.msra.mxu0 %v917
    %3247 = vmatpush.msra.mxu0 %v901
    %3248 = vmatpush.msra.mxu0 %v885
    %3249 = vmatmul.f32.gmra.mxu0 %v3111
    %v3250 = vpop.f32.mrf.mxu0
    %v3251 = vadd.f32 0.0, %v3250
    %3252 = vdwg.mxu0
    %3253 = vmatpush.msra.mxu0 0.0
    %3254 = vmatpush.msra.mxu0 0.0
    %3255 = vmatpush.msra.mxu0 0.0
    %3256 = vmatpush.msra.mxu0 0.0
    %3257 = vmatpush.msra.mxu0 0.0
    %3258 = vmatpush.msra.mxu0 0.0
    %3259 = vmatpush.msra.mxu0 0.0
    %3260 = vmatpush.msra.mxu0 0.0
    %3261 = vmatpush.msra.mxu0 %v998
    %3262 = vmatpush.msra.mxu0 %v982
    %3263 = vmatpush.msra.mxu0 %v966
    %3264 = vmatpush.msra.mxu0 %v950
    %3265 = vmatpush.msra.mxu0 %v934
    %3266 = vmatpush.msra.mxu0 %v918
    %3267 = vmatpush.msra.mxu0 %v902
    %3268 = vmatpush.msra.mxu0 %v886
    %3269 = vmatmul.f32.gmra.mxu0 %v3111
    %v3270 = vpop.f32.mrf.mxu0
    %v3271 = vadd.f32 0.0, %v3270
    %3272 = vdwg.mxu0
    %3273 = vmatpush.msra.mxu0 0.0
    %3274 = vmatpush.msra.mxu0 0.0
    %3275 = vmatpush.msra.mxu0 0.0
    %3276 = vmatpush.msra.mxu0 0.0
    %3277 = vmatpush.msra.mxu0 0.0
    %3278 = vmatpush.msra.mxu0 0.0
    %3279 = vmatpush.msra.mxu0 0.0
    %3280 = vmatpush.msra.mxu0 0.0
    %3281 = vmatpush.msra.mxu0 %v999
    %3282 = vmatpush.msra.mxu0 %v983
    %3283 = vmatpush.msra.mxu0 %v967
    %3284 = vmatpush.msra.mxu0 %v951
    %3285 = vmatpush.msra.mxu0 %v935
    %3286 = vmatpush.msra.mxu0 %v919
    %3287 = vmatpush.msra.mxu0 %v903
    %3288 = vmatpush.msra.mxu0 %v887
    %3289 = vmatmul.f32.gmra.mxu0 %v3111
    %v3290 = vpop.f32.mrf.mxu0
    %v3291 = vadd.f32 0.0, %v3290
    %3292 = vdwg.mxu0
    %3293 = vmatpush.msra.mxu0 0.0
    %3294 = vmatpush.msra.mxu0 0.0
    %3295 = vmatpush.msra.mxu0 0.0
    %3296 = vmatpush.msra.mxu0 0.0
    %3297 = vmatpush.msra.mxu0 0.0
    %3298 = vmatpush.msra.mxu0 0.0
    %3299 = vmatpush.msra.mxu0 0.0
    %3300 = vmatpush.msra.mxu0 0.0
    %3301 = vmatpush.msra.mxu0 %v1000
    %3302 = vmatpush.msra.mxu0 %v984
    %3303 = vmatpush.msra.mxu0 %v968
    %3304 = vmatpush.msra.mxu0 %v952
    %3305 = vmatpush.msra.mxu0 %v936
    %3306 = vmatpush.msra.mxu0 %v920
    %3307 = vmatpush.msra.mxu0 %v904
    %3308 = vmatpush.msra.mxu0 %v888
    %3309 = vmatmul.f32.gmra.mxu0 %v3111
    %v3310 = vpop.f32.mrf.mxu0
    %v3311 = vadd.f32 0.0, %v3310
    %3312 = vdwg.mxu0
    %3313 = vmatpush.msra.mxu0 0.0
    %3314 = vmatpush.msra.mxu0 0.0
    %3315 = vmatpush.msra.mxu0 0.0
    %3316 = vmatpush.msra.mxu0 0.0
    %3317 = vmatpush.msra.mxu0 0.0
    %3318 = vmatpush.msra.mxu0 0.0
    %3319 = vmatpush.msra.mxu0 0.0
    %3320 = vmatpush.msra.mxu0 0.0
    %3321 = vmatpush.msra.mxu0 %v1001
    %3322 = vmatpush.msra.mxu0 %v985
    %3323 = vmatpush.msra.mxu0 %v969
    %3324 = vmatpush.msra.mxu0 %v953
    %3325 = vmatpush.msra.mxu0 %v937
    %3326 = vmatpush.msra.mxu0 %v921
    %3327 = vmatpush.msra.mxu0 %v905
    %3328 = vmatpush.msra.mxu0 %v889
    %3329 = vmatmul.f32.gmra.mxu0 %v3111
    %v3330 = vpop.f32.mrf.mxu0
    %v3331 = vadd.f32 0.0, %v3330
    %3332 = vdwg.mxu0
    %3333 = vmatpush.msra.mxu0 0.0
    %3334 = vmatpush.msra.mxu0 0.0
    %3335 = vmatpush.msra.mxu0 0.0
    %3336 = vmatpush.msra.mxu0 0.0
    %3337 = vmatpush.msra.mxu0 0.0
    %3338 = vmatpush.msra.mxu0 0.0
    %3339 = vmatpush.msra.mxu0 0.0
    %3340 = vmatpush.msra.mxu0 0.0
    %3341 = vmatpush.msra.mxu0 %v1002
    %3342 = vmatpush.msra.mxu0 %v986
    %3343 = vmatpush.msra.mxu0 %v970
    %3344 = vmatpush.msra.mxu0 %v954
    %3345 = vmatpush.msra.mxu0 %v938
    %3346 = vmatpush.msra.mxu0 %v922
    %3347 = vmatpush.msra.mxu0 %v906
    %3348 = vmatpush.msra.mxu0 %v890
    %3349 = vmatmul.f32.gmra.mxu0 %v3111
    %v3350 = vpop.f32.mrf.mxu0
    %v3351 = vadd.f32 0.0, %v3350
    %3352 = vdwg.mxu0
    %3353 = vmatpush.msra.mxu0 0.0
    %3354 = vmatpush.msra.mxu0 0.0
    %3355 = vmatpush.msra.mxu0 0.0
    %3356 = vmatpush.msra.mxu0 0.0
    %3357 = vmatpush.msra.mxu0 0.0
    %3358 = vmatpush.msra.mxu0 0.0
    %3359 = vmatpush.msra.mxu0 0.0
    %3360 = vmatpush.msra.mxu0 0.0
    %3361 = vmatpush.msra.mxu0 %v1003
    %3362 = vmatpush.msra.mxu0 %v987
    %3363 = vmatpush.msra.mxu0 %v971
    %3364 = vmatpush.msra.mxu0 %v955
    %3365 = vmatpush.msra.mxu0 %v939
    %3366 = vmatpush.msra.mxu0 %v923
    %3367 = vmatpush.msra.mxu0 %v907
    %3368 = vmatpush.msra.mxu0 %v891
    %3369 = vmatmul.f32.gmra.mxu0 %v3111
    %v3370 = vpop.f32.mrf.mxu0
    %v3371 = vadd.f32 0.0, %v3370
    %3372 = vdwg.mxu0
    %3373 = vmatpush.msra.mxu0 0.0
    %3374 = vmatpush.msra.mxu0 0.0
    %3375 = vmatpush.msra.mxu0 0.0
    %3376 = vmatpush.msra.mxu0 0.0
    %3377 = vmatpush.msra.mxu0 0.0
    %3378 = vmatpush.msra.mxu0 0.0
    %3379 = vmatpush.msra.mxu0 0.0
    %3380 = vmatpush.msra.mxu0 0.0
    %3381 = vmatpush.msra.mxu0 %v1004
    %3382 = vmatpush.msra.mxu0 %v988
    %3383 = vmatpush.msra.mxu0 %v972
    %3384 = vmatpush.msra.mxu0 %v956
    %3385 = vmatpush.msra.mxu0 %v940
    %3386 = vmatpush.msra.mxu0 %v924
    %3387 = vmatpush.msra.mxu0 %v908
    %3388 = vmatpush.msra.mxu0 %v892
    %3389 = vmatmul.f32.gmra.mxu0 %v3111
    %v3390 = vpop.f32.mrf.mxu0
    %v3391 = vadd.f32 0.0, %v3390
    %3392 = vdwg.mxu0
    %3393 = vmatpush.msra.mxu0 0.0
    %3394 = vmatpush.msra.mxu0 0.0
    %3395 = vmatpush.msra.mxu0 0.0
    %3396 = vmatpush.msra.mxu0 0.0
    %3397 = vmatpush.msra.mxu0 0.0
    %3398 = vmatpush.msra.mxu0 0.0
    %3399 = vmatpush.msra.mxu0 0.0
    %3400 = vmatpush.msra.mxu0 0.0
    %3401 = vmatpush.msra.mxu0 %v1005
    %3402 = vmatpush.msra.mxu0 %v989
    %3403 = vmatpush.msra.mxu0 %v973
    %3404 = vmatpush.msra.mxu0 %v957
    %3405 = vmatpush.msra.mxu0 %v941
    %3406 = vmatpush.msra.mxu0 %v925
    %3407 = vmatpush.msra.mxu0 %v909
    %3408 = vmatpush.msra.mxu0 %v893
    %3409 = vmatmul.f32.gmra.mxu0 %v3111
    %v3410 = vpop.f32.mrf.mxu0
    %v3411 = vadd.f32 0.0, %v3410
    %3412 = vdwg.mxu0
    %3413 = vmatpush.msra.mxu0 0.0
    %3414 = vmatpush.msra.mxu0 0.0
    %3415 = vmatpush.msra.mxu0 0.0
    %3416 = vmatpush.msra.mxu0 0.0
    %3417 = vmatpush.msra.mxu0 0.0
    %3418 = vmatpush.msra.mxu0 0.0
    %3419 = vmatpush.msra.mxu0 0.0
    %3420 = vmatpush.msra.mxu0 0.0
    %3421 = vmatpush.msra.mxu0 %v1006
    %3422 = vmatpush.msra.mxu0 %v990
    %3423 = vmatpush.msra.mxu0 %v974
    %3424 = vmatpush.msra.mxu0 %v958
    %3425 = vmatpush.msra.mxu0 %v942
    %3426 = vmatpush.msra.mxu0 %v926
    %3427 = vmatpush.msra.mxu0 %v910
    %3428 = vmatpush.msra.mxu0 %v894
    %3429 = vmatmul.f32.gmra.mxu0 %v3111
    %v3430 = vpop.f32.mrf.mxu0
    %v3431 = vadd.f32 0.0, %v3430
    %3432 = vdwg.mxu0
    %3433 = vrot.lane.b32.xlu0 %v833, 32
    %v3434 = vpop.permute.xlu0 %3433
    %v3435 = vsel %vm139, %v3434, 0
    %3437 = vmatpush.msra.mxu0 0.0
    %3438 = vmatpush.msra.mxu0 0.0
    %3439 = vmatpush.msra.mxu0 0.0
    %3440 = vmatpush.msra.mxu0 0.0
    %3441 = vmatpush.msra.mxu0 0.0
    %3442 = vmatpush.msra.mxu0 0.0
    %3443 = vmatpush.msra.mxu0 0.0
    %3444 = vmatpush.msra.mxu0 0.0
    %3445 = vmatpush.msra.mxu0 0.0
    %3446 = vmatpush.msra.mxu0 0.0
    %3447 = vmatpush.msra.mxu0 0.0
    %3448 = vmatpush.msra.mxu0 0.0
    %3449 = vmatpush.msra.mxu0 %v1055
    %3450 = vmatpush.msra.mxu0 %v1039
    %3451 = vmatpush.msra.mxu0 %v1023
    %3452 = vmatpush.msra.mxu0 %v1007
    %3453 = vmatmul.f32.gmra.mxu0 %v3435
    %v3454 = vpop.f32.mrf.mxu0
    %v3455 = vadd.f32 0.0, %v3454
    %3456 = vdwg.mxu0
    %3457 = vmatpush.msra.mxu0 0.0
    %3458 = vmatpush.msra.mxu0 0.0
    %3459 = vmatpush.msra.mxu0 0.0
    %3460 = vmatpush.msra.mxu0 0.0
    %3461 = vmatpush.msra.mxu0 0.0
    %3462 = vmatpush.msra.mxu0 0.0
    %3463 = vmatpush.msra.mxu0 0.0
    %3464 = vmatpush.msra.mxu0 0.0
    %3465 = vmatpush.msra.mxu0 0.0
    %3466 = vmatpush.msra.mxu0 0.0
    %3467 = vmatpush.msra.mxu0 0.0
    %3468 = vmatpush.msra.mxu0 0.0
    %3469 = vmatpush.msra.mxu0 %v1056
    %3470 = vmatpush.msra.mxu0 %v1040
    %3471 = vmatpush.msra.mxu0 %v1024
    %3472 = vmatpush.msra.mxu0 %v1008
    %3473 = vmatmul.f32.gmra.mxu0 %v3435
    %v3474 = vpop.f32.mrf.mxu0
    %v3475 = vadd.f32 0.0, %v3474
    %3476 = vdwg.mxu0
    %3477 = vmatpush.msra.mxu0 0.0
    %3478 = vmatpush.msra.mxu0 0.0
    %3479 = vmatpush.msra.mxu0 0.0
    %3480 = vmatpush.msra.mxu0 0.0
    %3481 = vmatpush.msra.mxu0 0.0
    %3482 = vmatpush.msra.mxu0 0.0
    %3483 = vmatpush.msra.mxu0 0.0
    %3484 = vmatpush.msra.mxu0 0.0
    %3485 = vmatpush.msra.mxu0 0.0
    %3486 = vmatpush.msra.mxu0 0.0
    %3487 = vmatpush.msra.mxu0 0.0
    %3488 = vmatpush.msra.mxu0 0.0
    %3489 = vmatpush.msra.mxu0 %v1057
    %3490 = vmatpush.msra.mxu0 %v1041
    %3491 = vmatpush.msra.mxu0 %v1025
    %3492 = vmatpush.msra.mxu0 %v1009
    %3493 = vmatmul.f32.gmra.mxu0 %v3435
    %v3494 = vpop.f32.mrf.mxu0
    %v3495 = vadd.f32 0.0, %v3494
    %3496 = vdwg.mxu0
    %3497 = vmatpush.msra.mxu0 0.0
    %3498 = vmatpush.msra.mxu0 0.0
    %3499 = vmatpush.msra.mxu0 0.0
    %3500 = vmatpush.msra.mxu0 0.0
    %3501 = vmatpush.msra.mxu0 0.0
    %3502 = vmatpush.msra.mxu0 0.0
    %3503 = vmatpush.msra.mxu0 0.0
    %3504 = vmatpush.msra.mxu0 0.0
    %3505 = vmatpush.msra.mxu0 0.0
    %3506 = vmatpush.msra.mxu0 0.0
    %3507 = vmatpush.msra.mxu0 0.0
    %3508 = vmatpush.msra.mxu0 0.0
    %3509 = vmatpush.msra.mxu0 %v1058
    %3510 = vmatpush.msra.mxu0 %v1042
    %3511 = vmatpush.msra.mxu0 %v1026
    %3512 = vmatpush.msra.mxu0 %v1010
    %3513 = vmatmul.f32.gmra.mxu0 %v3435
    %v3514 = vpop.f32.mrf.mxu0
    %v3515 = vadd.f32 0.0, %v3514
    %3516 = vdwg.mxu0
    %3517 = vmatpush.msra.mxu0 0.0
    %3518 = vmatpush.msra.mxu0 0.0
    %3519 = vmatpush.msra.mxu0 0.0
    %3520 = vmatpush.msra.mxu0 0.0
    %3521 = vmatpush.msra.mxu0 0.0
    %3522 = vmatpush.msra.mxu0 0.0
    %3523 = vmatpush.msra.mxu0 0.0
    %3524 = vmatpush.msra.mxu0 0.0
    %3525 = vmatpush.msra.mxu0 0.0
    %3526 = vmatpush.msra.mxu0 0.0
    %3527 = vmatpush.msra.mxu0 0.0
    %3528 = vmatpush.msra.mxu0 0.0
    %3529 = vmatpush.msra.mxu0 %v1059
    %3530 = vmatpush.msra.mxu0 %v1043
    %3531 = vmatpush.msra.mxu0 %v1027
    %3532 = vmatpush.msra.mxu0 %v1011
    %3533 = vmatmul.f32.gmra.mxu0 %v3435
    %v3534 = vpop.f32.mrf.mxu0
    %v3535 = vadd.f32 0.0, %v3534
    %3536 = vdwg.mxu0
    %3537 = vmatpush.msra.mxu0 0.0
    %3538 = vmatpush.msra.mxu0 0.0
    %3539 = vmatpush.msra.mxu0 0.0
    %3540 = vmatpush.msra.mxu0 0.0
    %3541 = vmatpush.msra.mxu0 0.0
    %3542 = vmatpush.msra.mxu0 0.0
    %3543 = vmatpush.msra.mxu0 0.0
    %3544 = vmatpush.msra.mxu0 0.0
    %3545 = vmatpush.msra.mxu0 0.0
    %3546 = vmatpush.msra.mxu0 0.0
    %3547 = vmatpush.msra.mxu0 0.0
    %3548 = vmatpush.msra.mxu0 0.0
    %3549 = vmatpush.msra.mxu0 %v1060
    %3550 = vmatpush.msra.mxu0 %v1044
    %3551 = vmatpush.msra.mxu0 %v1028
    %3552 = vmatpush.msra.mxu0 %v1012
    %3553 = vmatmul.f32.gmra.mxu0 %v3435
    %v3554 = vpop.f32.mrf.mxu0
    %v3555 = vadd.f32 0.0, %v3554
    %3556 = vdwg.mxu0
    %3557 = vmatpush.msra.mxu0 0.0
    %3558 = vmatpush.msra.mxu0 0.0
    %3559 = vmatpush.msra.mxu0 0.0
    %3560 = vmatpush.msra.mxu0 0.0
    %3561 = vmatpush.msra.mxu0 0.0
    %3562 = vmatpush.msra.mxu0 0.0
    %3563 = vmatpush.msra.mxu0 0.0
    %3564 = vmatpush.msra.mxu0 0.0
    %3565 = vmatpush.msra.mxu0 0.0
    %3566 = vmatpush.msra.mxu0 0.0
    %3567 = vmatpush.msra.mxu0 0.0
    %3568 = vmatpush.msra.mxu0 0.0
    %3569 = vmatpush.msra.mxu0 %v1061
    %3570 = vmatpush.msra.mxu0 %v1045
    %3571 = vmatpush.msra.mxu0 %v1029
    %3572 = vmatpush.msra.mxu0 %v1013
    %3573 = vmatmul.f32.gmra.mxu0 %v3435
    %v3574 = vpop.f32.mrf.mxu0
    %v3575 = vadd.f32 0.0, %v3574
    %3576 = vdwg.mxu0
    %3577 = vmatpush.msra.mxu0 0.0
    %3578 = vmatpush.msra.mxu0 0.0
    %3579 = vmatpush.msra.mxu0 0.0
    %3580 = vmatpush.msra.mxu0 0.0
    %3581 = vmatpush.msra.mxu0 0.0
    %3582 = vmatpush.msra.mxu0 0.0
    %3583 = vmatpush.msra.mxu0 0.0
    %3584 = vmatpush.msra.mxu0 0.0
    %3585 = vmatpush.msra.mxu0 0.0
    %3586 = vmatpush.msra.mxu0 0.0
    %3587 = vmatpush.msra.mxu0 0.0
    %3588 = vmatpush.msra.mxu0 0.0
    %3589 = vmatpush.msra.mxu0 %v1062
    %3590 = vmatpush.msra.mxu0 %v1046
    %3591 = vmatpush.msra.mxu0 %v1030
    %3592 = vmatpush.msra.mxu0 %v1014
    %3593 = vmatmul.f32.gmra.mxu0 %v3435
    %v3594 = vpop.f32.mrf.mxu0
    %v3595 = vadd.f32 0.0, %v3594
    %3596 = vdwg.mxu0
    %3597 = vmatpush.msra.mxu0 0.0
    %3598 = vmatpush.msra.mxu0 0.0
    %3599 = vmatpush.msra.mxu0 0.0
    %3600 = vmatpush.msra.mxu0 0.0
    %3601 = vmatpush.msra.mxu0 0.0
    %3602 = vmatpush.msra.mxu0 0.0
    %3603 = vmatpush.msra.mxu0 0.0
    %3604 = vmatpush.msra.mxu0 0.0
    %3605 = vmatpush.msra.mxu0 0.0
    %3606 = vmatpush.msra.mxu0 0.0
    %3607 = vmatpush.msra.mxu0 0.0
    %3608 = vmatpush.msra.mxu0 0.0
    %3609 = vmatpush.msra.mxu0 %v1063
    %3610 = vmatpush.msra.mxu0 %v1047
    %3611 = vmatpush.msra.mxu0 %v1031
    %3612 = vmatpush.msra.mxu0 %v1015
    %3613 = vmatmul.f32.gmra.mxu0 %v3435
    %v3614 = vpop.f32.mrf.mxu0
    %v3615 = vadd.f32 0.0, %v3614
    %3616 = vdwg.mxu0
    %3617 = vmatpush.msra.mxu0 0.0
    %3618 = vmatpush.msra.mxu0 0.0
    %3619 = vmatpush.msra.mxu0 0.0
    %3620 = vmatpush.msra.mxu0 0.0
    %3621 = vmatpush.msra.mxu0 0.0
    %3622 = vmatpush.msra.mxu0 0.0
    %3623 = vmatpush.msra.mxu0 0.0
    %3624 = vmatpush.msra.mxu0 0.0
    %3625 = vmatpush.msra.mxu0 0.0
    %3626 = vmatpush.msra.mxu0 0.0
    %3627 = vmatpush.msra.mxu0 0.0
    %3628 = vmatpush.msra.mxu0 0.0
    %3629 = vmatpush.msra.mxu0 %v1064
    %3630 = vmatpush.msra.mxu0 %v1048
    %3631 = vmatpush.msra.mxu0 %v1032
    %3632 = vmatpush.msra.mxu0 %v1016
    %3633 = vmatmul.f32.gmra.mxu0 %v3435
    %v3634 = vpop.f32.mrf.mxu0
    %v3635 = vadd.f32 0.0, %v3634
    %3636 = vdwg.mxu0
    %3637 = vmatpush.msra.mxu0 0.0
    %3638 = vmatpush.msra.mxu0 0.0
    %3639 = vmatpush.msra.mxu0 0.0
    %3640 = vmatpush.msra.mxu0 0.0
    %3641 = vmatpush.msra.mxu0 0.0
    %3642 = vmatpush.msra.mxu0 0.0
    %3643 = vmatpush.msra.mxu0 0.0
    %3644 = vmatpush.msra.mxu0 0.0
    %3645 = vmatpush.msra.mxu0 0.0
    %3646 = vmatpush.msra.mxu0 0.0
    %3647 = vmatpush.msra.mxu0 0.0
    %3648 = vmatpush.msra.mxu0 0.0
    %3649 = vmatpush.msra.mxu0 %v1065
    %3650 = vmatpush.msra.mxu0 %v1049
    %3651 = vmatpush.msra.mxu0 %v1033
    %3652 = vmatpush.msra.mxu0 %v1017
    %3653 = vmatmul.f32.gmra.mxu0 %v3435
    %v3654 = vpop.f32.mrf.mxu0
    %v3655 = vadd.f32 0.0, %v3654
    %3656 = vdwg.mxu0
    %3657 = vmatpush.msra.mxu0 0.0
    %3658 = vmatpush.msra.mxu0 0.0
    %3659 = vmatpush.msra.mxu0 0.0
    %3660 = vmatpush.msra.mxu0 0.0
    %3661 = vmatpush.msra.mxu0 0.0
    %3662 = vmatpush.msra.mxu0 0.0
    %3663 = vmatpush.msra.mxu0 0.0
    %3664 = vmatpush.msra.mxu0 0.0
    %3665 = vmatpush.msra.mxu0 0.0
    %3666 = vmatpush.msra.mxu0 0.0
    %3667 = vmatpush.msra.mxu0 0.0
    %3668 = vmatpush.msra.mxu0 0.0
    %3669 = vmatpush.msra.mxu0 %v1066
    %3670 = vmatpush.msra.mxu0 %v1050
    %3671 = vmatpush.msra.mxu0 %v1034
    %3672 = vmatpush.msra.mxu0 %v1018
    %3673 = vmatmul.f32.gmra.mxu0 %v3435
    %v3674 = vpop.f32.mrf.mxu0
    %v3675 = vadd.f32 0.0, %v3674
    %3676 = vdwg.mxu0
    %3677 = vmatpush.msra.mxu0 0.0
    %3678 = vmatpush.msra.mxu0 0.0
    %3679 = vmatpush.msra.mxu0 0.0
    %3680 = vmatpush.msra.mxu0 0.0
    %3681 = vmatpush.msra.mxu0 0.0
    %3682 = vmatpush.msra.mxu0 0.0
    %3683 = vmatpush.msra.mxu0 0.0
    %3684 = vmatpush.msra.mxu0 0.0
    %3685 = vmatpush.msra.mxu0 0.0
    %3686 = vmatpush.msra.mxu0 0.0
    %3687 = vmatpush.msra.mxu0 0.0
    %3688 = vmatpush.msra.mxu0 0.0
    %3689 = vmatpush.msra.mxu0 %v1067
    %3690 = vmatpush.msra.mxu0 %v1051
    %3691 = vmatpush.msra.mxu0 %v1035
    %3692 = vmatpush.msra.mxu0 %v1019
    %3693 = vmatmul.f32.gmra.mxu0 %v3435
    %v3694 = vpop.f32.mrf.mxu0
    %v3695 = vadd.f32 0.0, %v3694
    %3696 = vdwg.mxu0
    %3697 = vmatpush.msra.mxu0 0.0
    %3698 = vmatpush.msra.mxu0 0.0
    %3699 = vmatpush.msra.mxu0 0.0
    %3700 = vmatpush.msra.mxu0 0.0
    %3701 = vmatpush.msra.mxu0 0.0
    %3702 = vmatpush.msra.mxu0 0.0
    %3703 = vmatpush.msra.mxu0 0.0
    %3704 = vmatpush.msra.mxu0 0.0
    %3705 = vmatpush.msra.mxu0 0.0
    %3706 = vmatpush.msra.mxu0 0.0
    %3707 = vmatpush.msra.mxu0 0.0
    %3708 = vmatpush.msra.mxu0 0.0
    %3709 = vmatpush.msra.mxu0 %v1068
    %3710 = vmatpush.msra.mxu0 %v1052
    %3711 = vmatpush.msra.mxu0 %v1036
    %3712 = vmatpush.msra.mxu0 %v1020
    %3713 = vmatmul.f32.gmra.mxu0 %v3435
    %v3714 = vpop.f32.mrf.mxu0
    %v3715 = vadd.f32 0.0, %v3714
    %3716 = vdwg.mxu0
    %3717 = vmatpush.msra.mxu0 0.0
    %3718 = vmatpush.msra.mxu0 0.0
    %3719 = vmatpush.msra.mxu0 0.0
    %3720 = vmatpush.msra.mxu0 0.0
    %3721 = vmatpush.msra.mxu0 0.0
    %3722 = vmatpush.msra.mxu0 0.0
    %3723 = vmatpush.msra.mxu0 0.0
    %3724 = vmatpush.msra.mxu0 0.0
    %3725 = vmatpush.msra.mxu0 0.0
    %3726 = vmatpush.msra.mxu0 0.0
    %3727 = vmatpush.msra.mxu0 0.0
    %3728 = vmatpush.msra.mxu0 0.0
    %3729 = vmatpush.msra.mxu0 %v1069
    %3730 = vmatpush.msra.mxu0 %v1053
    %3731 = vmatpush.msra.mxu0 %v1037
    %3732 = vmatpush.msra.mxu0 %v1021
    %3733 = vmatmul.f32.gmra.mxu0 %v3435
    %v3734 = vpop.f32.mrf.mxu0
    %v3735 = vadd.f32 0.0, %v3734
    %3736 = vdwg.mxu0
    %3737 = vmatpush.msra.mxu0 0.0
    %3738 = vmatpush.msra.mxu0 0.0
    %3739 = vmatpush.msra.mxu0 0.0
    %3740 = vmatpush.msra.mxu0 0.0
    %3741 = vmatpush.msra.mxu0 0.0
    %3742 = vmatpush.msra.mxu0 0.0
    %3743 = vmatpush.msra.mxu0 0.0
    %3744 = vmatpush.msra.mxu0 0.0
    %3745 = vmatpush.msra.mxu0 0.0
    %3746 = vmatpush.msra.mxu0 0.0
    %3747 = vmatpush.msra.mxu0 0.0
    %3748 = vmatpush.msra.mxu0 0.0
    %3749 = vmatpush.msra.mxu0 %v1070
    %3750 = vmatpush.msra.mxu0 %v1054
    %3751 = vmatpush.msra.mxu0 %v1038
    %3752 = vmatpush.msra.mxu0 %v1022
    %3753 = vmatmul.f32.gmra.mxu0 %v3435
    %v3754 = vpop.f32.mrf.mxu0
    %v3755 = vadd.f32 0.0, %v3754
    %3756 = vdwg.mxu0
    %v3757 = vmul.f32 %v3131, %v3455
    %v3758 = vmul.f32 %v3151, %v3475
    %v3759 = vmul.f32 %v3171, %v3495
    %v3760 = vmul.f32 %v3191, %v3515
    %v3761 = vmul.f32 %v3211, %v3535
    %v3762 = vmul.f32 %v3231, %v3555
    %v3763 = vmul.f32 %v3251, %v3575
    %v3764 = vmul.f32 %v3271, %v3595
    %v3765 = vmul.f32 %v3291, %v3615
    %v3766 = vmul.f32 %v3311, %v3635
    %v3767 = vmul.f32 %v3331, %v3655
    %v3768 = vmul.f32 %v3351, %v3675
    %v3769 = vmul.f32 %v3371, %v3695
    %v3770 = vmul.f32 %v3391, %v3715
    %v3771 = vmul.f32 %v3411, %v3735
    %v3772 = vmul.f32 %v3431, %v3755
    %v3773 = vadd.f32 %v3093, %v3757
    %v3774 = vadd.f32 %v3094, %v3758
    %v3775 = vadd.f32 %v3095, %v3759
    %v3776 = vadd.f32 %v3096, %v3760
    %v3777 = vadd.f32 %v3097, %v3761
    %v3778 = vadd.f32 %v3098, %v3762
    %v3779 = vadd.f32 %v3099, %v3763
    %v3780 = vadd.f32 %v3100, %v3764
    %v3781 = vadd.f32 %v3101, %v3765
    %v3782 = vadd.f32 %v3102, %v3766
    %v3783 = vadd.f32 %v3103, %v3767
    %v3784 = vadd.f32 %v3104, %v3768
    %v3785 = vadd.f32 %v3105, %v3769
    %v3786 = vadd.f32 %v3106, %v3770
    %v3787 = vadd.f32 %v3107, %v3771
    %v3788 = vadd.f32 %v3108, %v3772
    %v3790 = vsel %vm1071, %v753, 0
    %3792 = vmatpush.msra.mxu0 0.0
    %3793 = vmatpush.msra.mxu0 0.0
    %3794 = vmatpush.msra.mxu0 0.0
    %3795 = vmatpush.msra.mxu0 0.0
    %3796 = vmatpush.msra.mxu0 0.0
    %3797 = vmatpush.msra.mxu0 0.0
    %3798 = vmatpush.msra.mxu0 0.0
    %3799 = vmatpush.msra.mxu0 0.0
    %3800 = vmatpush.msra.mxu0 %v991
    %3801 = vmatpush.msra.mxu0 %v975
    %3802 = vmatpush.msra.mxu0 %v959
    %3803 = vmatpush.msra.mxu0 %v943
    %3804 = vmatpush.msra.mxu0 %v927
    %3805 = vmatpush.msra.mxu0 %v911
    %3806 = vmatpush.msra.mxu0 %v895
    %3807 = vmatpush.msra.mxu0 %v879
    %3808 = vmatmul.f32.gmra.mxu0 %v3790
    %v3809 = vpop.f32.mrf.mxu0
    %v3810 = vadd.f32 0.0, %v3809
    %3811 = vdwg.mxu0
    %3812 = vmatpush.msra.mxu0 0.0
    %3813 = vmatpush.msra.mxu0 0.0
    %3814 = vmatpush.msra.mxu0 0.0
    %3815 = vmatpush.msra.mxu0 0.0
    %3816 = vmatpush.msra.mxu0 0.0
    %3817 = vmatpush.msra.mxu0 0.0
    %3818 = vmatpush.msra.mxu0 0.0
    %3819 = vmatpush.msra.mxu0 0.0
    %3820 = vmatpush.msra.mxu0 %v992
    %3821 = vmatpush.msra.mxu0 %v976
    %3822 = vmatpush.msra.mxu0 %v960
    %3823 = vmatpush.msra.mxu0 %v944
    %3824 = vmatpush.msra.mxu0 %v928
    %3825 = vmatpush.msra.mxu0 %v912
    %3826 = vmatpush.msra.mxu0 %v896
    %3827 = vmatpush.msra.mxu0 %v880
    %3828 = vmatmul.f32.gmra.mxu0 %v3790
    %v3829 = vpop.f32.mrf.mxu0
    %v3830 = vadd.f32 0.0, %v3829
    %3831 = vdwg.mxu0
    %3832 = vmatpush.msra.mxu0 0.0
    %3833 = vmatpush.msra.mxu0 0.0
    %3834 = vmatpush.msra.mxu0 0.0
    %3835 = vmatpush.msra.mxu0 0.0
    %3836 = vmatpush.msra.mxu0 0.0
    %3837 = vmatpush.msra.mxu0 0.0
    %3838 = vmatpush.msra.mxu0 0.0
    %3839 = vmatpush.msra.mxu0 0.0
    %3840 = vmatpush.msra.mxu0 %v993
    %3841 = vmatpush.msra.mxu0 %v977
    %3842 = vmatpush.msra.mxu0 %v961
    %3843 = vmatpush.msra.mxu0 %v945
    %3844 = vmatpush.msra.mxu0 %v929
    %3845 = vmatpush.msra.mxu0 %v913
    %3846 = vmatpush.msra.mxu0 %v897
    %3847 = vmatpush.msra.mxu0 %v881
    %3848 = vmatmul.f32.gmra.mxu0 %v3790
    %v3849 = vpop.f32.mrf.mxu0
    %v3850 = vadd.f32 0.0, %v3849
    %3851 = vdwg.mxu0
    %3852 = vmatpush.msra.mxu0 0.0
    %3853 = vmatpush.msra.mxu0 0.0
    %3854 = vmatpush.msra.mxu0 0.0
    %3855 = vmatpush.msra.mxu0 0.0
    %3856 = vmatpush.msra.mxu0 0.0
    %3857 = vmatpush.msra.mxu0 0.0
    %3858 = vmatpush.msra.mxu0 0.0
    %3859 = vmatpush.msra.mxu0 0.0
    %3860 = vmatpush.msra.mxu0 %v994
    %3861 = vmatpush.msra.mxu0 %v978
    %3862 = vmatpush.msra.mxu0 %v962
    %3863 = vmatpush.msra.mxu0 %v946
    %3864 = vmatpush.msra.mxu0 %v930
    %3865 = vmatpush.msra.mxu0 %v914
    %3866 = vmatpush.msra.mxu0 %v898
    %3867 = vmatpush.msra.mxu0 %v882
    %3868 = vmatmul.f32.gmra.mxu0 %v3790
    %v3869 = vpop.f32.mrf.mxu0
    %v3870 = vadd.f32 0.0, %v3869
    %3871 = vdwg.mxu0
    %3872 = vmatpush.msra.mxu0 0.0
    %3873 = vmatpush.msra.mxu0 0.0
    %3874 = vmatpush.msra.mxu0 0.0
    %3875 = vmatpush.msra.mxu0 0.0
    %3876 = vmatpush.msra.mxu0 0.0
    %3877 = vmatpush.msra.mxu0 0.0
    %3878 = vmatpush.msra.mxu0 0.0
    %3879 = vmatpush.msra.mxu0 0.0
    %3880 = vmatpush.msra.mxu0 %v995
    %3881 = vmatpush.msra.mxu0 %v979
    %3882 = vmatpush.msra.mxu0 %v963
    %3883 = vmatpush.msra.mxu0 %v947
    %3884 = vmatpush.msra.mxu0 %v931
    %3885 = vmatpush.msra.mxu0 %v915
    %3886 = vmatpush.msra.mxu0 %v899
    %3887 = vmatpush.msra.mxu0 %v883
    %3888 = vmatmul.f32.gmra.mxu0 %v3790
    %v3889 = vpop.f32.mrf.mxu0
    %v3890 = vadd.f32 0.0, %v3889
    %3891 = vdwg.mxu0
    %3892 = vmatpush.msra.mxu0 0.0
    %3893 = vmatpush.msra.mxu0 0.0
    %3894 = vmatpush.msra.mxu0 0.0
    %3895 = vmatpush.msra.mxu0 0.0
    %3896 = vmatpush.msra.mxu0 0.0
    %3897 = vmatpush.msra.mxu0 0.0
    %3898 = vmatpush.msra.mxu0 0.0
    %3899 = vmatpush.msra.mxu0 0.0
    %3900 = vmatpush.msra.mxu0 %v996
    %3901 = vmatpush.msra.mxu0 %v980
    %3902 = vmatpush.msra.mxu0 %v964
    %3903 = vmatpush.msra.mxu0 %v948
    %3904 = vmatpush.msra.mxu0 %v932
    %3905 = vmatpush.msra.mxu0 %v916
    %3906 = vmatpush.msra.mxu0 %v900
    %3907 = vmatpush.msra.mxu0 %v884
    %3908 = vmatmul.f32.gmra.mxu0 %v3790
    %v3909 = vpop.f32.mrf.mxu0
    %v3910 = vadd.f32 0.0, %v3909
    %3911 = vdwg.mxu0
    %3912 = vmatpush.msra.mxu0 0.0
    %3913 = vmatpush.msra.mxu0 0.0
    %3914 = vmatpush.msra.mxu0 0.0
    %3915 = vmatpush.msra.mxu0 0.0
    %3916 = vmatpush.msra.mxu0 0.0
    %3917 = vmatpush.msra.mxu0 0.0
    %3918 = vmatpush.msra.mxu0 0.0
    %3919 = vmatpush.msra.mxu0 0.0
    %3920 = vmatpush.msra.mxu0 %v997
    %3921 = vmatpush.msra.mxu0 %v981
    %3922 = vmatpush.msra.mxu0 %v965
    %3923 = vmatpush.msra.mxu0 %v949
    %3924 = vmatpush.msra.mxu0 %v933
    %3925 = vmatpush.msra.mxu0 %v917
    %3926 = vmatpush.msra.mxu0 %v901
    %3927 = vmatpush.msra.mxu0 %v885
    %3928 = vmatmul.f32.gmra.mxu0 %v3790
    %v3929 = vpop.f32.mrf.mxu0
    %v3930 = vadd.f32 0.0, %v3929
    %3931 = vdwg.mxu0
    %3932 = vmatpush.msra.mxu0 0.0
    %3933 = vmatpush.msra.mxu0 0.0
    %3934 = vmatpush.msra.mxu0 0.0
    %3935 = vmatpush.msra.mxu0 0.0
    %3936 = vmatpush.msra.mxu0 0.0
    %3937 = vmatpush.msra.mxu0 0.0
    %3938 = vmatpush.msra.mxu0 0.0
    %3939 = vmatpush.msra.mxu0 0.0
    %3940 = vmatpush.msra.mxu0 %v998
    %3941 = vmatpush.msra.mxu0 %v982
    %3942 = vmatpush.msra.mxu0 %v966
    %3943 = vmatpush.msra.mxu0 %v950
    %3944 = vmatpush.msra.mxu0 %v934
    %3945 = vmatpush.msra.mxu0 %v918
    %3946 = vmatpush.msra.mxu0 %v902
    %3947 = vmatpush.msra.mxu0 %v886
    %3948 = vmatmul.f32.gmra.mxu0 %v3790
    %v3949 = vpop.f32.mrf.mxu0
    %v3950 = vadd.f32 0.0, %v3949
    %3951 = vdwg.mxu0
    %3952 = vmatpush.msra.mxu0 0.0
    %3953 = vmatpush.msra.mxu0 0.0
    %3954 = vmatpush.msra.mxu0 0.0
    %3955 = vmatpush.msra.mxu0 0.0
    %3956 = vmatpush.msra.mxu0 0.0
    %3957 = vmatpush.msra.mxu0 0.0
    %3958 = vmatpush.msra.mxu0 0.0
    %3959 = vmatpush.msra.mxu0 0.0
    %3960 = vmatpush.msra.mxu0 %v999
    %3961 = vmatpush.msra.mxu0 %v983
    %3962 = vmatpush.msra.mxu0 %v967
    %3963 = vmatpush.msra.mxu0 %v951
    %3964 = vmatpush.msra.mxu0 %v935
    %3965 = vmatpush.msra.mxu0 %v919
    %3966 = vmatpush.msra.mxu0 %v903
    %3967 = vmatpush.msra.mxu0 %v887
    %3968 = vmatmul.f32.gmra.mxu0 %v3790
    %v3969 = vpop.f32.mrf.mxu0
    %v3970 = vadd.f32 0.0, %v3969
    %3971 = vdwg.mxu0
    %3972 = vmatpush.msra.mxu0 0.0
    %3973 = vmatpush.msra.mxu0 0.0
    %3974 = vmatpush.msra.mxu0 0.0
    %3975 = vmatpush.msra.mxu0 0.0
    %3976 = vmatpush.msra.mxu0 0.0
    %3977 = vmatpush.msra.mxu0 0.0
    %3978 = vmatpush.msra.mxu0 0.0
    %3979 = vmatpush.msra.mxu0 0.0
    %3980 = vmatpush.msra.mxu0 %v1000
    %3981 = vmatpush.msra.mxu0 %v984
    %3982 = vmatpush.msra.mxu0 %v968
    %3983 = vmatpush.msra.mxu0 %v952
    %3984 = vmatpush.msra.mxu0 %v936
    %3985 = vmatpush.msra.mxu0 %v920
    %3986 = vmatpush.msra.mxu0 %v904
    %3987 = vmatpush.msra.mxu0 %v888
    %3988 = vmatmul.f32.gmra.mxu0 %v3790
    %v3989 = vpop.f32.mrf.mxu0
    %v3990 = vadd.f32 0.0, %v3989
    %3991 = vdwg.mxu0
    %3992 = vmatpush.msra.mxu0 0.0
    %3993 = vmatpush.msra.mxu0 0.0
    %3994 = vmatpush.msra.mxu0 0.0
    %3995 = vmatpush.msra.mxu0 0.0
    %3996 = vmatpush.msra.mxu0 0.0
    %3997 = vmatpush.msra.mxu0 0.0
    %3998 = vmatpush.msra.mxu0 0.0
    %3999 = vmatpush.msra.mxu0 0.0
    %4000 = vmatpush.msra.mxu0 %v1001
    %4001 = vmatpush.msra.mxu0 %v985
    %4002 = vmatpush.msra.mxu0 %v969
    %4003 = vmatpush.msra.mxu0 %v953
    %4004 = vmatpush.msra.mxu0 %v937
    %4005 = vmatpush.msra.mxu0 %v921
    %4006 = vmatpush.msra.mxu0 %v905
    %4007 = vmatpush.msra.mxu0 %v889
    %4008 = vmatmul.f32.gmra.mxu0 %v3790
    %v4009 = vpop.f32.mrf.mxu0
    %v4010 = vadd.f32 0.0, %v4009
    %4011 = vdwg.mxu0
    %4012 = vmatpush.msra.mxu0 0.0
    %4013 = vmatpush.msra.mxu0 0.0
    %4014 = vmatpush.msra.mxu0 0.0
    %4015 = vmatpush.msra.mxu0 0.0
    %4016 = vmatpush.msra.mxu0 0.0
    %4017 = vmatpush.msra.mxu0 0.0
    %4018 = vmatpush.msra.mxu0 0.0
    %4019 = vmatpush.msra.mxu0 0.0
    %4020 = vmatpush.msra.mxu0 %v1002
    %4021 = vmatpush.msra.mxu0 %v986
    %4022 = vmatpush.msra.mxu0 %v970
    %4023 = vmatpush.msra.mxu0 %v954
    %4024 = vmatpush.msra.mxu0 %v938
    %4025 = vmatpush.msra.mxu0 %v922
    %4026 = vmatpush.msra.mxu0 %v906
    %4027 = vmatpush.msra.mxu0 %v890
    %4028 = vmatmul.f32.gmra.mxu0 %v3790
    %v4029 = vpop.f32.mrf.mxu0
    %v4030 = vadd.f32 0.0, %v4029
    %4031 = vdwg.mxu0
    %4032 = vmatpush.msra.mxu0 0.0
    %4033 = vmatpush.msra.mxu0 0.0
    %4034 = vmatpush.msra.mxu0 0.0
    %4035 = vmatpush.msra.mxu0 0.0
    %4036 = vmatpush.msra.mxu0 0.0
    %4037 = vmatpush.msra.mxu0 0.0
    %4038 = vmatpush.msra.mxu0 0.0
    %4039 = vmatpush.msra.mxu0 0.0
    %4040 = vmatpush.msra.mxu0 %v1003
    %4041 = vmatpush.msra.mxu0 %v987
    %4042 = vmatpush.msra.mxu0 %v971
    %4043 = vmatpush.msra.mxu0 %v955
    %4044 = vmatpush.msra.mxu0 %v939
    %4045 = vmatpush.msra.mxu0 %v923
    %4046 = vmatpush.msra.mxu0 %v907
    %4047 = vmatpush.msra.mxu0 %v891
    %4048 = vmatmul.f32.gmra.mxu0 %v3790
    %v4049 = vpop.f32.mrf.mxu0
    %v4050 = vadd.f32 0.0, %v4049
    %4051 = vdwg.mxu0
    %4052 = vmatpush.msra.mxu0 0.0
    %4053 = vmatpush.msra.mxu0 0.0
    %4054 = vmatpush.msra.mxu0 0.0
    %4055 = vmatpush.msra.mxu0 0.0
    %4056 = vmatpush.msra.mxu0 0.0
    %4057 = vmatpush.msra.mxu0 0.0
    %4058 = vmatpush.msra.mxu0 0.0
    %4059 = vmatpush.msra.mxu0 0.0
    %4060 = vmatpush.msra.mxu0 %v1004
    %4061 = vmatpush.msra.mxu0 %v988
    %4062 = vmatpush.msra.mxu0 %v972
    %4063 = vmatpush.msra.mxu0 %v956
    %4064 = vmatpush.msra.mxu0 %v940
    %4065 = vmatpush.msra.mxu0 %v924
    %4066 = vmatpush.msra.mxu0 %v908
    %4067 = vmatpush.msra.mxu0 %v892
    %4068 = vmatmul.f32.gmra.mxu0 %v3790
    %v4069 = vpop.f32.mrf.mxu0
    %v4070 = vadd.f32 0.0, %v4069
    %4071 = vdwg.mxu0
    %4072 = vmatpush.msra.mxu0 0.0
    %4073 = vmatpush.msra.mxu0 0.0
    %4074 = vmatpush.msra.mxu0 0.0
    %4075 = vmatpush.msra.mxu0 0.0
    %4076 = vmatpush.msra.mxu0 0.0
    %4077 = vmatpush.msra.mxu0 0.0
    %4078 = vmatpush.msra.mxu0 0.0
    %4079 = vmatpush.msra.mxu0 0.0
    %4080 = vmatpush.msra.mxu0 %v1005
    %4081 = vmatpush.msra.mxu0 %v989
    %4082 = vmatpush.msra.mxu0 %v973
    %4083 = vmatpush.msra.mxu0 %v957
    %4084 = vmatpush.msra.mxu0 %v941
    %4085 = vmatpush.msra.mxu0 %v925
    %4086 = vmatpush.msra.mxu0 %v909
    %4087 = vmatpush.msra.mxu0 %v893
    %4088 = vmatmul.f32.gmra.mxu0 %v3790
    %v4089 = vpop.f32.mrf.mxu0
    %v4090 = vadd.f32 0.0, %v4089
    %4091 = vdwg.mxu0
    %4092 = vmatpush.msra.mxu0 0.0
    %4093 = vmatpush.msra.mxu0 0.0
    %4094 = vmatpush.msra.mxu0 0.0
    %4095 = vmatpush.msra.mxu0 0.0
    %4096 = vmatpush.msra.mxu0 0.0
    %4097 = vmatpush.msra.mxu0 0.0
    %4098 = vmatpush.msra.mxu0 0.0
    %4099 = vmatpush.msra.mxu0 0.0
    %4100 = vmatpush.msra.mxu0 %v1006
    %4101 = vmatpush.msra.mxu0 %v990
    %4102 = vmatpush.msra.mxu0 %v974
    %4103 = vmatpush.msra.mxu0 %v958
    %4104 = vmatpush.msra.mxu0 %v942
    %4105 = vmatpush.msra.mxu0 %v926
    %4106 = vmatpush.msra.mxu0 %v910
    %4107 = vmatpush.msra.mxu0 %v894
    %4108 = vmatmul.f32.gmra.mxu0 %v3790
    %v4109 = vpop.f32.mrf.mxu0
    %v4110 = vadd.f32 0.0, %v4109
    %4111 = vdwg.mxu0
    %v4113 = vsel %vm139, %v873, 0
    %4115 = vmatpush.msra.mxu0 0.0
    %4116 = vmatpush.msra.mxu0 0.0
    %4117 = vmatpush.msra.mxu0 0.0
    %4118 = vmatpush.msra.mxu0 0.0
    %4119 = vmatpush.msra.mxu0 0.0
    %4120 = vmatpush.msra.mxu0 0.0
    %4121 = vmatpush.msra.mxu0 0.0
    %4122 = vmatpush.msra.mxu0 0.0
    %4123 = vmatpush.msra.mxu0 0.0
    %4124 = vmatpush.msra.mxu0 0.0
    %4125 = vmatpush.msra.mxu0 0.0
    %4126 = vmatpush.msra.mxu0 0.0
    %4127 = vmatpush.msra.mxu0 %v1055
    %4128 = vmatpush.msra.mxu0 %v1039
    %4129 = vmatpush.msra.mxu0 %v1023
    %4130 = vmatpush.msra.mxu0 %v1007
    %4131 = vmatmul.f32.gmra.mxu0 %v4113
    %v4132 = vpop.f32.mrf.mxu0
    %v4133 = vadd.f32 0.0, %v4132
    %4134 = vdwg.mxu0
    %4135 = vmatpush.msra.mxu0 0.0
    %4136 = vmatpush.msra.mxu0 0.0
    %4137 = vmatpush.msra.mxu0 0.0
    %4138 = vmatpush.msra.mxu0 0.0
    %4139 = vmatpush.msra.mxu0 0.0
    %4140 = vmatpush.msra.mxu0 0.0
    %4141 = vmatpush.msra.mxu0 0.0
    %4142 = vmatpush.msra.mxu0 0.0
    %4143 = vmatpush.msra.mxu0 0.0
    %4144 = vmatpush.msra.mxu0 0.0
    %4145 = vmatpush.msra.mxu0 0.0
    %4146 = vmatpush.msra.mxu0 0.0
    %4147 = vmatpush.msra.mxu0 %v1056
    %4148 = vmatpush.msra.mxu0 %v1040
    %4149 = vmatpush.msra.mxu0 %v1024
    %4150 = vmatpush.msra.mxu0 %v1008
    %4151 = vmatmul.f32.gmra.mxu0 %v4113
    %v4152 = vpop.f32.mrf.mxu0
    %v4153 = vadd.f32 0.0, %v4152
    %4154 = vdwg.mxu0
    %4155 = vmatpush.msra.mxu0 0.0
    %4156 = vmatpush.msra.mxu0 0.0
    %4157 = vmatpush.msra.mxu0 0.0
    %4158 = vmatpush.msra.mxu0 0.0
    %4159 = vmatpush.msra.mxu0 0.0
    %4160 = vmatpush.msra.mxu0 0.0
    %4161 = vmatpush.msra.mxu0 0.0
    %4162 = vmatpush.msra.mxu0 0.0
    %4163 = vmatpush.msra.mxu0 0.0
    %4164 = vmatpush.msra.mxu0 0.0
    %4165 = vmatpush.msra.mxu0 0.0
    %4166 = vmatpush.msra.mxu0 0.0
    %4167 = vmatpush.msra.mxu0 %v1057
    %4168 = vmatpush.msra.mxu0 %v1041
    %4169 = vmatpush.msra.mxu0 %v1025
    %4170 = vmatpush.msra.mxu0 %v1009
    %4171 = vmatmul.f32.gmra.mxu0 %v4113
    %v4172 = vpop.f32.mrf.mxu0
    %v4173 = vadd.f32 0.0, %v4172
    %4174 = vdwg.mxu0
    %4175 = vmatpush.msra.mxu0 0.0
    %4176 = vmatpush.msra.mxu0 0.0
    %4177 = vmatpush.msra.mxu0 0.0
    %4178 = vmatpush.msra.mxu0 0.0
    %4179 = vmatpush.msra.mxu0 0.0
    %4180 = vmatpush.msra.mxu0 0.0
    %4181 = vmatpush.msra.mxu0 0.0
    %4182 = vmatpush.msra.mxu0 0.0
    %4183 = vmatpush.msra.mxu0 0.0
    %4184 = vmatpush.msra.mxu0 0.0
    %4185 = vmatpush.msra.mxu0 0.0
    %4186 = vmatpush.msra.mxu0 0.0
    %4187 = vmatpush.msra.mxu0 %v1058
    %4188 = vmatpush.msra.mxu0 %v1042
    %4189 = vmatpush.msra.mxu0 %v1026
    %4190 = vmatpush.msra.mxu0 %v1010
    %4191 = vmatmul.f32.gmra.mxu0 %v4113
    %v4192 = vpop.f32.mrf.mxu0
    %v4193 = vadd.f32 0.0, %v4192
    %4194 = vdwg.mxu0
    %4195 = vmatpush.msra.mxu0 0.0
    %4196 = vmatpush.msra.mxu0 0.0
    %4197 = vmatpush.msra.mxu0 0.0
    %4198 = vmatpush.msra.mxu0 0.0
    %4199 = vmatpush.msra.mxu0 0.0
    %4200 = vmatpush.msra.mxu0 0.0
    %4201 = vmatpush.msra.mxu0 0.0
    %4202 = vmatpush.msra.mxu0 0.0
    %4203 = vmatpush.msra.mxu0 0.0
    %4204 = vmatpush.msra.mxu0 0.0
    %4205 = vmatpush.msra.mxu0 0.0
    %4206 = vmatpush.msra.mxu0 0.0
    %4207 = vmatpush.msra.mxu0 %v1059
    %4208 = vmatpush.msra.mxu0 %v1043
    %4209 = vmatpush.msra.mxu0 %v1027
    %4210 = vmatpush.msra.mxu0 %v1011
    %4211 = vmatmul.f32.gmra.mxu0 %v4113
    %v4212 = vpop.f32.mrf.mxu0
    %v4213 = vadd.f32 0.0, %v4212
    %4214 = vdwg.mxu0
    %4215 = vmatpush.msra.mxu0 0.0
    %4216 = vmatpush.msra.mxu0 0.0
    %4217 = vmatpush.msra.mxu0 0.0
    %4218 = vmatpush.msra.mxu0 0.0
    %4219 = vmatpush.msra.mxu0 0.0
    %4220 = vmatpush.msra.mxu0 0.0
    %4221 = vmatpush.msra.mxu0 0.0
    %4222 = vmatpush.msra.mxu0 0.0
    %4223 = vmatpush.msra.mxu0 0.0
    %4224 = vmatpush.msra.mxu0 0.0
    %4225 = vmatpush.msra.mxu0 0.0
    %4226 = vmatpush.msra.mxu0 0.0
    %4227 = vmatpush.msra.mxu0 %v1060
    %4228 = vmatpush.msra.mxu0 %v1044
    %4229 = vmatpush.msra.mxu0 %v1028
    %4230 = vmatpush.msra.mxu0 %v1012
    %4231 = vmatmul.f32.gmra.mxu0 %v4113
    %v4232 = vpop.f32.mrf.mxu0
    %v4233 = vadd.f32 0.0, %v4232
    %4234 = vdwg.mxu0
    %4235 = vmatpush.msra.mxu0 0.0
    %4236 = vmatpush.msra.mxu0 0.0
    %4237 = vmatpush.msra.mxu0 0.0
    %4238 = vmatpush.msra.mxu0 0.0
    %4239 = vmatpush.msra.mxu0 0.0
    %4240 = vmatpush.msra.mxu0 0.0
    %4241 = vmatpush.msra.mxu0 0.0
    %4242 = vmatpush.msra.mxu0 0.0
    %4243 = vmatpush.msra.mxu0 0.0
    %4244 = vmatpush.msra.mxu0 0.0
    %4245 = vmatpush.msra.mxu0 0.0
    %4246 = vmatpush.msra.mxu0 0.0
    %4247 = vmatpush.msra.mxu0 %v1061
    %4248 = vmatpush.msra.mxu0 %v1045
    %4249 = vmatpush.msra.mxu0 %v1029
    %4250 = vmatpush.msra.mxu0 %v1013
    %4251 = vmatmul.f32.gmra.mxu0 %v4113
    %v4252 = vpop.f32.mrf.mxu0
    %v4253 = vadd.f32 0.0, %v4252
    %4254 = vdwg.mxu0
    %4255 = vmatpush.msra.mxu0 0.0
    %4256 = vmatpush.msra.mxu0 0.0
    %4257 = vmatpush.msra.mxu0 0.0
    %4258 = vmatpush.msra.mxu0 0.0
    %4259 = vmatpush.msra.mxu0 0.0
    %4260 = vmatpush.msra.mxu0 0.0
    %4261 = vmatpush.msra.mxu0 0.0
    %4262 = vmatpush.msra.mxu0 0.0
    %4263 = vmatpush.msra.mxu0 0.0
    %4264 = vmatpush.msra.mxu0 0.0
    %4265 = vmatpush.msra.mxu0 0.0
    %4266 = vmatpush.msra.mxu0 0.0
    %4267 = vmatpush.msra.mxu0 %v1062
    %4268 = vmatpush.msra.mxu0 %v1046
    %4269 = vmatpush.msra.mxu0 %v1030
    %4270 = vmatpush.msra.mxu0 %v1014
    %4271 = vmatmul.f32.gmra.mxu0 %v4113
    %v4272 = vpop.f32.mrf.mxu0
    %v4273 = vadd.f32 0.0, %v4272
    %4274 = vdwg.mxu0
    %4275 = vmatpush.msra.mxu0 0.0
    %4276 = vmatpush.msra.mxu0 0.0
    %4277 = vmatpush.msra.mxu0 0.0
    %4278 = vmatpush.msra.mxu0 0.0
    %4279 = vmatpush.msra.mxu0 0.0
    %4280 = vmatpush.msra.mxu0 0.0
    %4281 = vmatpush.msra.mxu0 0.0
    %4282 = vmatpush.msra.mxu0 0.0
    %4283 = vmatpush.msra.mxu0 0.0
    %4284 = vmatpush.msra.mxu0 0.0
    %4285 = vmatpush.msra.mxu0 0.0
    %4286 = vmatpush.msra.mxu0 0.0
    %4287 = vmatpush.msra.mxu0 %v1063
    %4288 = vmatpush.msra.mxu0 %v1047
    %4289 = vmatpush.msra.mxu0 %v1031
    %4290 = vmatpush.msra.mxu0 %v1015
    %4291 = vmatmul.f32.gmra.mxu0 %v4113
    %v4292 = vpop.f32.mrf.mxu0
    %v4293 = vadd.f32 0.0, %v4292
    %4294 = vdwg.mxu0
    %4295 = vmatpush.msra.mxu0 0.0
    %4296 = vmatpush.msra.mxu0 0.0
    %4297 = vmatpush.msra.mxu0 0.0
    %4298 = vmatpush.msra.mxu0 0.0
    %4299 = vmatpush.msra.mxu0 0.0
    %4300 = vmatpush.msra.mxu0 0.0
    %4301 = vmatpush.msra.mxu0 0.0
    %4302 = vmatpush.msra.mxu0 0.0
    %4303 = vmatpush.msra.mxu0 0.0
    %4304 = vmatpush.msra.mxu0 0.0
    %4305 = vmatpush.msra.mxu0 0.0
    %4306 = vmatpush.msra.mxu0 0.0
    %4307 = vmatpush.msra.mxu0 %v1064
    %4308 = vmatpush.msra.mxu0 %v1048
    %4309 = vmatpush.msra.mxu0 %v1032
    %4310 = vmatpush.msra.mxu0 %v1016
    %4311 = vmatmul.f32.gmra.mxu0 %v4113
    %v4312 = vpop.f32.mrf.mxu0
    %v4313 = vadd.f32 0.0, %v4312
    %4314 = vdwg.mxu0
    %4315 = vmatpush.msra.mxu0 0.0
    %4316 = vmatpush.msra.mxu0 0.0
    %4317 = vmatpush.msra.mxu0 0.0
    %4318 = vmatpush.msra.mxu0 0.0
    %4319 = vmatpush.msra.mxu0 0.0
    %4320 = vmatpush.msra.mxu0 0.0
    %4321 = vmatpush.msra.mxu0 0.0
    %4322 = vmatpush.msra.mxu0 0.0
    %4323 = vmatpush.msra.mxu0 0.0
    %4324 = vmatpush.msra.mxu0 0.0
    %4325 = vmatpush.msra.mxu0 0.0
    %4326 = vmatpush.msra.mxu0 0.0
    %4327 = vmatpush.msra.mxu0 %v1065
    %4328 = vmatpush.msra.mxu0 %v1049
    %4329 = vmatpush.msra.mxu0 %v1033
    %4330 = vmatpush.msra.mxu0 %v1017
    %4331 = vmatmul.f32.gmra.mxu0 %v4113
    %v4332 = vpop.f32.mrf.mxu0
    %v4333 = vadd.f32 0.0, %v4332
    %4334 = vdwg.mxu0
    %4335 = vmatpush.msra.mxu0 0.0
    %4336 = vmatpush.msra.mxu0 0.0
    %4337 = vmatpush.msra.mxu0 0.0
    %4338 = vmatpush.msra.mxu0 0.0
    %4339 = vmatpush.msra.mxu0 0.0
    %4340 = vmatpush.msra.mxu0 0.0
    %4341 = vmatpush.msra.mxu0 0.0
    %4342 = vmatpush.msra.mxu0 0.0
    %4343 = vmatpush.msra.mxu0 0.0
    %4344 = vmatpush.msra.mxu0 0.0
    %4345 = vmatpush.msra.mxu0 0.0
    %4346 = vmatpush.msra.mxu0 0.0
    %4347 = vmatpush.msra.mxu0 %v1066
    %4348 = vmatpush.msra.mxu0 %v1050
    %4349 = vmatpush.msra.mxu0 %v1034
    %4350 = vmatpush.msra.mxu0 %v1018
    %4351 = vmatmul.f32.gmra.mxu0 %v4113
    %v4352 = vpop.f32.mrf.mxu0
    %v4353 = vadd.f32 0.0, %v4352
    %4354 = vdwg.mxu0
    %4355 = vmatpush.msra.mxu0 0.0
    %4356 = vmatpush.msra.mxu0 0.0
    %4357 = vmatpush.msra.mxu0 0.0
    %4358 = vmatpush.msra.mxu0 0.0
    %4359 = vmatpush.msra.mxu0 0.0
    %4360 = vmatpush.msra.mxu0 0.0
    %4361 = vmatpush.msra.mxu0 0.0
    %4362 = vmatpush.msra.mxu0 0.0
    %4363 = vmatpush.msra.mxu0 0.0
    %4364 = vmatpush.msra.mxu0 0.0
    %4365 = vmatpush.msra.mxu0 0.0
    %4366 = vmatpush.msra.mxu0 0.0
    %4367 = vmatpush.msra.mxu0 %v1067
    %4368 = vmatpush.msra.mxu0 %v1051
    %4369 = vmatpush.msra.mxu0 %v1035
    %4370 = vmatpush.msra.mxu0 %v1019
    %4371 = vmatmul.f32.gmra.mxu0 %v4113
    %v4372 = vpop.f32.mrf.mxu0
    %v4373 = vadd.f32 0.0, %v4372
    %4374 = vdwg.mxu0
    %4375 = vmatpush.msra.mxu0 0.0
    %4376 = vmatpush.msra.mxu0 0.0
    %4377 = vmatpush.msra.mxu0 0.0
    %4378 = vmatpush.msra.mxu0 0.0
    %4379 = vmatpush.msra.mxu0 0.0
    %4380 = vmatpush.msra.mxu0 0.0
    %4381 = vmatpush.msra.mxu0 0.0
    %4382 = vmatpush.msra.mxu0 0.0
    %4383 = vmatpush.msra.mxu0 0.0
    %4384 = vmatpush.msra.mxu0 0.0
    %4385 = vmatpush.msra.mxu0 0.0
    %4386 = vmatpush.msra.mxu0 0.0
    %4387 = vmatpush.msra.mxu0 %v1068
    %4388 = vmatpush.msra.mxu0 %v1052
    %4389 = vmatpush.msra.mxu0 %v1036
    %4390 = vmatpush.msra.mxu0 %v1020
    %4391 = vmatmul.f32.gmra.mxu0 %v4113
    %v4392 = vpop.f32.mrf.mxu0
    %v4393 = vadd.f32 0.0, %v4392
    %4394 = vdwg.mxu0
    %4395 = vmatpush.msra.mxu0 0.0
    %4396 = vmatpush.msra.mxu0 0.0
    %4397 = vmatpush.msra.mxu0 0.0
    %4398 = vmatpush.msra.mxu0 0.0
    %4399 = vmatpush.msra.mxu0 0.0
    %4400 = vmatpush.msra.mxu0 0.0
    %4401 = vmatpush.msra.mxu0 0.0
    %4402 = vmatpush.msra.mxu0 0.0
    %4403 = vmatpush.msra.mxu0 0.0
    %4404 = vmatpush.msra.mxu0 0.0
    %4405 = vmatpush.msra.mxu0 0.0
    %4406 = vmatpush.msra.mxu0 0.0
    %4407 = vmatpush.msra.mxu0 %v1069
    %4408 = vmatpush.msra.mxu0 %v1053
    %4409 = vmatpush.msra.mxu0 %v1037
    %4410 = vmatpush.msra.mxu0 %v1021
    %4411 = vmatmul.f32.gmra.mxu0 %v4113
    %v4412 = vpop.f32.mrf.mxu0
    %v4413 = vadd.f32 0.0, %v4412
    %4414 = vdwg.mxu0
    %4415 = vmatpush.msra.mxu0 0.0
    %4416 = vmatpush.msra.mxu0 0.0
    %4417 = vmatpush.msra.mxu0 0.0
    %4418 = vmatpush.msra.mxu0 0.0
    %4419 = vmatpush.msra.mxu0 0.0
    %4420 = vmatpush.msra.mxu0 0.0
    %4421 = vmatpush.msra.mxu0 0.0
    %4422 = vmatpush.msra.mxu0 0.0
    %4423 = vmatpush.msra.mxu0 0.0
    %4424 = vmatpush.msra.mxu0 0.0
    %4425 = vmatpush.msra.mxu0 0.0
    %4426 = vmatpush.msra.mxu0 0.0
    %4427 = vmatpush.msra.mxu0 %v1070
    %4428 = vmatpush.msra.mxu0 %v1054
    %4429 = vmatpush.msra.mxu0 %v1038
    %4430 = vmatpush.msra.mxu0 %v1022
    %4431 = vmatmul.f32.gmra.mxu0 %v4113
    %v4432 = vpop.f32.mrf.mxu0
    %v4433 = vadd.f32 0.0, %v4432
    %4434 = vdwg.mxu0
    %v4435 = vmul.f32 %v3810, %v4133
    %v4436 = vmul.f32 %v3830, %v4153
    %v4437 = vmul.f32 %v3850, %v4173
    %v4438 = vmul.f32 %v3870, %v4193
    %v4439 = vmul.f32 %v3890, %v4213
    %v4440 = vmul.f32 %v3910, %v4233
    %v4441 = vmul.f32 %v3930, %v4253
    %v4442 = vmul.f32 %v3950, %v4273
    %v4443 = vmul.f32 %v3970, %v4293
    %v4444 = vmul.f32 %v3990, %v4313
    %v4445 = vmul.f32 %v4010, %v4333
    %v4446 = vmul.f32 %v4030, %v4353
    %v4447 = vmul.f32 %v4050, %v4373
    %v4448 = vmul.f32 %v4070, %v4393
    %v4449 = vmul.f32 %v4090, %v4413
    %v4450 = vmul.f32 %v4110, %v4433
    %v4451 = vadd.f32 %v3773, %v4435
    %v4452 = vadd.f32 %v3774, %v4436
    %v4453 = vadd.f32 %v3775, %v4437
    %v4454 = vadd.f32 %v3776, %v4438
    %v4455 = vadd.f32 %v3777, %v4439
    %v4456 = vadd.f32 %v3778, %v4440
    %v4457 = vadd.f32 %v3779, %v4441
    %v4458 = vadd.f32 %v3780, %v4442
    %v4459 = vadd.f32 %v3781, %v4443
    %v4460 = vadd.f32 %v3782, %v4444
    %v4461 = vadd.f32 %v3783, %v4445
    %v4462 = vadd.f32 %v3784, %v4446
    %v4463 = vadd.f32 %v3785, %v4447
    %v4464 = vadd.f32 %v3786, %v4448
    %v4465 = vadd.f32 %v3787, %v4449
    %v4466 = vadd.f32 %v3788, %v4450
    %4467 = vrot.lane.b32.xlu0 %v753, 64
    %v4468 = vpop.permute.xlu0 %4467
    %v4469 = vsel %vm1071, %v4468, 0
    %4471 = vmatpush.msra.mxu0 0.0
    %4472 = vmatpush.msra.mxu0 0.0
    %4473 = vmatpush.msra.mxu0 0.0
    %4474 = vmatpush.msra.mxu0 0.0
    %4475 = vmatpush.msra.mxu0 0.0
    %4476 = vmatpush.msra.mxu0 0.0
    %4477 = vmatpush.msra.mxu0 0.0
    %4478 = vmatpush.msra.mxu0 0.0
    %4479 = vmatpush.msra.mxu0 %v991
    %4480 = vmatpush.msra.mxu0 %v975
    %4481 = vmatpush.msra.mxu0 %v959
    %4482 = vmatpush.msra.mxu0 %v943
    %4483 = vmatpush.msra.mxu0 %v927
    %4484 = vmatpush.msra.mxu0 %v911
    %4485 = vmatpush.msra.mxu0 %v895
    %4486 = vmatpush.msra.mxu0 %v879
    %4487 = vmatmul.f32.gmra.mxu0 %v4469
    %v4488 = vpop.f32.mrf.mxu0
    %v4489 = vadd.f32 0.0, %v4488
    %4490 = vdwg.mxu0
    %4491 = vmatpush.msra.mxu0 0.0
    %4492 = vmatpush.msra.mxu0 0.0
    %4493 = vmatpush.msra.mxu0 0.0
    %4494 = vmatpush.msra.mxu0 0.0
    %4495 = vmatpush.msra.mxu0 0.0
    %4496 = vmatpush.msra.mxu0 0.0
    %4497 = vmatpush.msra.mxu0 0.0
    %4498 = vmatpush.msra.mxu0 0.0
    %4499 = vmatpush.msra.mxu0 %v992
    %4500 = vmatpush.msra.mxu0 %v976
    %4501 = vmatpush.msra.mxu0 %v960
    %4502 = vmatpush.msra.mxu0 %v944
    %4503 = vmatpush.msra.mxu0 %v928
    %4504 = vmatpush.msra.mxu0 %v912
    %4505 = vmatpush.msra.mxu0 %v896
    %4506 = vmatpush.msra.mxu0 %v880
    %4507 = vmatmul.f32.gmra.mxu0 %v4469
    %v4508 = vpop.f32.mrf.mxu0
    %v4509 = vadd.f32 0.0, %v4508
    %4510 = vdwg.mxu0
    %4511 = vmatpush.msra.mxu0 0.0
    %4512 = vmatpush.msra.mxu0 0.0
    %4513 = vmatpush.msra.mxu0 0.0
    %4514 = vmatpush.msra.mxu0 0.0
    %4515 = vmatpush.msra.mxu0 0.0
    %4516 = vmatpush.msra.mxu0 0.0
    %4517 = vmatpush.msra.mxu0 0.0
    %4518 = vmatpush.msra.mxu0 0.0
    %4519 = vmatpush.msra.mxu0 %v993
    %4520 = vmatpush.msra.mxu0 %v977
    %4521 = vmatpush.msra.mxu0 %v961
    %4522 = vmatpush.msra.mxu0 %v945
    %4523 = vmatpush.msra.mxu0 %v929
    %4524 = vmatpush.msra.mxu0 %v913
    %4525 = vmatpush.msra.mxu0 %v897
    %4526 = vmatpush.msra.mxu0 %v881
    %4527 = vmatmul.f32.gmra.mxu0 %v4469
    %v4528 = vpop.f32.mrf.mxu0
    %v4529 = vadd.f32 0.0, %v4528
    %4530 = vdwg.mxu0
    %4531 = vmatpush.msra.mxu0 0.0
    %4532 = vmatpush.msra.mxu0 0.0
    %4533 = vmatpush.msra.mxu0 0.0
    %4534 = vmatpush.msra.mxu0 0.0
    %4535 = vmatpush.msra.mxu0 0.0
    %4536 = vmatpush.msra.mxu0 0.0
    %4537 = vmatpush.msra.mxu0 0.0
    %4538 = vmatpush.msra.mxu0 0.0
    %4539 = vmatpush.msra.mxu0 %v994
    %4540 = vmatpush.msra.mxu0 %v978
    %4541 = vmatpush.msra.mxu0 %v962
    %4542 = vmatpush.msra.mxu0 %v946
    %4543 = vmatpush.msra.mxu0 %v930
    %4544 = vmatpush.msra.mxu0 %v914
    %4545 = vmatpush.msra.mxu0 %v898
    %4546 = vmatpush.msra.mxu0 %v882
    %4547 = vmatmul.f32.gmra.mxu0 %v4469
    %v4548 = vpop.f32.mrf.mxu0
    %v4549 = vadd.f32 0.0, %v4548
    %4550 = vdwg.mxu0
    %4551 = vmatpush.msra.mxu0 0.0
    %4552 = vmatpush.msra.mxu0 0.0
    %4553 = vmatpush.msra.mxu0 0.0
    %4554 = vmatpush.msra.mxu0 0.0
    %4555 = vmatpush.msra.mxu0 0.0
    %4556 = vmatpush.msra.mxu0 0.0
    %4557 = vmatpush.msra.mxu0 0.0
    %4558 = vmatpush.msra.mxu0 0.0
    %4559 = vmatpush.msra.mxu0 %v995
    %4560 = vmatpush.msra.mxu0 %v979
    %4561 = vmatpush.msra.mxu0 %v963
    %4562 = vmatpush.msra.mxu0 %v947
    %4563 = vmatpush.msra.mxu0 %v931
    %4564 = vmatpush.msra.mxu0 %v915
    %4565 = vmatpush.msra.mxu0 %v899
    %4566 = vmatpush.msra.mxu0 %v883
    %4567 = vmatmul.f32.gmra.mxu0 %v4469
    %v4568 = vpop.f32.mrf.mxu0
    %v4569 = vadd.f32 0.0, %v4568
    %4570 = vdwg.mxu0
    %4571 = vmatpush.msra.mxu0 0.0
    %4572 = vmatpush.msra.mxu0 0.0
    %4573 = vmatpush.msra.mxu0 0.0
    %4574 = vmatpush.msra.mxu0 0.0
    %4575 = vmatpush.msra.mxu0 0.0
    %4576 = vmatpush.msra.mxu0 0.0
    %4577 = vmatpush.msra.mxu0 0.0
    %4578 = vmatpush.msra.mxu0 0.0
    %4579 = vmatpush.msra.mxu0 %v996
    %4580 = vmatpush.msra.mxu0 %v980
    %4581 = vmatpush.msra.mxu0 %v964
    %4582 = vmatpush.msra.mxu0 %v948
    %4583 = vmatpush.msra.mxu0 %v932
    %4584 = vmatpush.msra.mxu0 %v916
    %4585 = vmatpush.msra.mxu0 %v900
    %4586 = vmatpush.msra.mxu0 %v884
    %4587 = vmatmul.f32.gmra.mxu0 %v4469
    %v4588 = vpop.f32.mrf.mxu0
    %v4589 = vadd.f32 0.0, %v4588
    %4590 = vdwg.mxu0
    %4591 = vmatpush.msra.mxu0 0.0
    %4592 = vmatpush.msra.mxu0 0.0
    %4593 = vmatpush.msra.mxu0 0.0
    %4594 = vmatpush.msra.mxu0 0.0
    %4595 = vmatpush.msra.mxu0 0.0
    %4596 = vmatpush.msra.mxu0 0.0
    %4597 = vmatpush.msra.mxu0 0.0
    %4598 = vmatpush.msra.mxu0 0.0
    %4599 = vmatpush.msra.mxu0 %v997
    %4600 = vmatpush.msra.mxu0 %v981
    %4601 = vmatpush.msra.mxu0 %v965
    %4602 = vmatpush.msra.mxu0 %v949
    %4603 = vmatpush.msra.mxu0 %v933
    %4604 = vmatpush.msra.mxu0 %v917
    %4605 = vmatpush.msra.mxu0 %v901
    %4606 = vmatpush.msra.mxu0 %v885
    %4607 = vmatmul.f32.gmra.mxu0 %v4469
    %v4608 = vpop.f32.mrf.mxu0
    %v4609 = vadd.f32 0.0, %v4608
    %4610 = vdwg.mxu0
    %4611 = vmatpush.msra.mxu0 0.0
    %4612 = vmatpush.msra.mxu0 0.0
    %4613 = vmatpush.msra.mxu0 0.0
    %4614 = vmatpush.msra.mxu0 0.0
    %4615 = vmatpush.msra.mxu0 0.0
    %4616 = vmatpush.msra.mxu0 0.0
    %4617 = vmatpush.msra.mxu0 0.0
    %4618 = vmatpush.msra.mxu0 0.0
    %4619 = vmatpush.msra.mxu0 %v998
    %4620 = vmatpush.msra.mxu0 %v982
    %4621 = vmatpush.msra.mxu0 %v966
    %4622 = vmatpush.msra.mxu0 %v950
    %4623 = vmatpush.msra.mxu0 %v934
    %4624 = vmatpush.msra.mxu0 %v918
    %4625 = vmatpush.msra.mxu0 %v902
    %4626 = vmatpush.msra.mxu0 %v886
    %4627 = vmatmul.f32.gmra.mxu0 %v4469
    %v4628 = vpop.f32.mrf.mxu0
    %v4629 = vadd.f32 0.0, %v4628
    %4630 = vdwg.mxu0
    %4631 = vmatpush.msra.mxu0 0.0
    %4632 = vmatpush.msra.mxu0 0.0
    %4633 = vmatpush.msra.mxu0 0.0
    %4634 = vmatpush.msra.mxu0 0.0
    %4635 = vmatpush.msra.mxu0 0.0
    %4636 = vmatpush.msra.mxu0 0.0
    %4637 = vmatpush.msra.mxu0 0.0
    %4638 = vmatpush.msra.mxu0 0.0
    %4639 = vmatpush.msra.mxu0 %v999
    %4640 = vmatpush.msra.mxu0 %v983
    %4641 = vmatpush.msra.mxu0 %v967
    %4642 = vmatpush.msra.mxu0 %v951
    %4643 = vmatpush.msra.mxu0 %v935
    %4644 = vmatpush.msra.mxu0 %v919
    %4645 = vmatpush.msra.mxu0 %v903
    %4646 = vmatpush.msra.mxu0 %v887
    %4647 = vmatmul.f32.gmra.mxu0 %v4469
    %v4648 = vpop.f32.mrf.mxu0
    %v4649 = vadd.f32 0.0, %v4648
    %4650 = vdwg.mxu0
    %4651 = vmatpush.msra.mxu0 0.0
    %4652 = vmatpush.msra.mxu0 0.0
    %4653 = vmatpush.msra.mxu0 0.0
    %4654 = vmatpush.msra.mxu0 0.0
    %4655 = vmatpush.msra.mxu0 0.0
    %4656 = vmatpush.msra.mxu0 0.0
    %4657 = vmatpush.msra.mxu0 0.0
    %4658 = vmatpush.msra.mxu0 0.0
    %4659 = vmatpush.msra.mxu0 %v1000
    %4660 = vmatpush.msra.mxu0 %v984
    %4661 = vmatpush.msra.mxu0 %v968
    %4662 = vmatpush.msra.mxu0 %v952
    %4663 = vmatpush.msra.mxu0 %v936
    %4664 = vmatpush.msra.mxu0 %v920
    %4665 = vmatpush.msra.mxu0 %v904
    %4666 = vmatpush.msra.mxu0 %v888
    %4667 = vmatmul.f32.gmra.mxu0 %v4469
    %v4668 = vpop.f32.mrf.mxu0
    %v4669 = vadd.f32 0.0, %v4668
    %4670 = vdwg.mxu0
    %4671 = vmatpush.msra.mxu0 0.0
    %4672 = vmatpush.msra.mxu0 0.0
    %4673 = vmatpush.msra.mxu0 0.0
    %4674 = vmatpush.msra.mxu0 0.0
    %4675 = vmatpush.msra.mxu0 0.0
    %4676 = vmatpush.msra.mxu0 0.0
    %4677 = vmatpush.msra.mxu0 0.0
    %4678 = vmatpush.msra.mxu0 0.0
    %4679 = vmatpush.msra.mxu0 %v1001
    %4680 = vmatpush.msra.mxu0 %v985
    %4681 = vmatpush.msra.mxu0 %v969
    %4682 = vmatpush.msra.mxu0 %v953
    %4683 = vmatpush.msra.mxu0 %v937
    %4684 = vmatpush.msra.mxu0 %v921
    %4685 = vmatpush.msra.mxu0 %v905
    %4686 = vmatpush.msra.mxu0 %v889
    %4687 = vmatmul.f32.gmra.mxu0 %v4469
    %v4688 = vpop.f32.mrf.mxu0
    %v4689 = vadd.f32 0.0, %v4688
    %4690 = vdwg.mxu0
    %4691 = vmatpush.msra.mxu0 0.0
    %4692 = vmatpush.msra.mxu0 0.0
    %4693 = vmatpush.msra.mxu0 0.0
    %4694 = vmatpush.msra.mxu0 0.0
    %4695 = vmatpush.msra.mxu0 0.0
    %4696 = vmatpush.msra.mxu0 0.0
    %4697 = vmatpush.msra.mxu0 0.0
    %4698 = vmatpush.msra.mxu0 0.0
    %4699 = vmatpush.msra.mxu0 %v1002
    %4700 = vmatpush.msra.mxu0 %v986
    %4701 = vmatpush.msra.mxu0 %v970
    %4702 = vmatpush.msra.mxu0 %v954
    %4703 = vmatpush.msra.mxu0 %v938
    %4704 = vmatpush.msra.mxu0 %v922
    %4705 = vmatpush.msra.mxu0 %v906
    %4706 = vmatpush.msra.mxu0 %v890
    %4707 = vmatmul.f32.gmra.mxu0 %v4469
    %v4708 = vpop.f32.mrf.mxu0
    %v4709 = vadd.f32 0.0, %v4708
    %4710 = vdwg.mxu0
    %4711 = vmatpush.msra.mxu0 0.0
    %4712 = vmatpush.msra.mxu0 0.0
    %4713 = vmatpush.msra.mxu0 0.0
    %4714 = vmatpush.msra.mxu0 0.0
    %4715 = vmatpush.msra.mxu0 0.0
    %4716 = vmatpush.msra.mxu0 0.0
    %4717 = vmatpush.msra.mxu0 0.0
    %4718 = vmatpush.msra.mxu0 0.0
    %4719 = vmatpush.msra.mxu0 %v1003
    %4720 = vmatpush.msra.mxu0 %v987
    %4721 = vmatpush.msra.mxu0 %v971
    %4722 = vmatpush.msra.mxu0 %v955
    %4723 = vmatpush.msra.mxu0 %v939
    %4724 = vmatpush.msra.mxu0 %v923
    %4725 = vmatpush.msra.mxu0 %v907
    %4726 = vmatpush.msra.mxu0 %v891
    %4727 = vmatmul.f32.gmra.mxu0 %v4469
    %v4728 = vpop.f32.mrf.mxu0
    %v4729 = vadd.f32 0.0, %v4728
    %4730 = vdwg.mxu0
    %4731 = vmatpush.msra.mxu0 0.0
    %4732 = vmatpush.msra.mxu0 0.0
    %4733 = vmatpush.msra.mxu0 0.0
    %4734 = vmatpush.msra.mxu0 0.0
    %4735 = vmatpush.msra.mxu0 0.0
    %4736 = vmatpush.msra.mxu0 0.0
    %4737 = vmatpush.msra.mxu0 0.0
    %4738 = vmatpush.msra.mxu0 0.0
    %4739 = vmatpush.msra.mxu0 %v1004
    %4740 = vmatpush.msra.mxu0 %v988
    %4741 = vmatpush.msra.mxu0 %v972
    %4742 = vmatpush.msra.mxu0 %v956
    %4743 = vmatpush.msra.mxu0 %v940
    %4744 = vmatpush.msra.mxu0 %v924
    %4745 = vmatpush.msra.mxu0 %v908
    %4746 = vmatpush.msra.mxu0 %v892
    %4747 = vmatmul.f32.gmra.mxu0 %v4469
    %v4748 = vpop.f32.mrf.mxu0
    %v4749 = vadd.f32 0.0, %v4748
    %4750 = vdwg.mxu0
    %4751 = vmatpush.msra.mxu0 0.0
    %4752 = vmatpush.msra.mxu0 0.0
    %4753 = vmatpush.msra.mxu0 0.0
    %4754 = vmatpush.msra.mxu0 0.0
    %4755 = vmatpush.msra.mxu0 0.0
    %4756 = vmatpush.msra.mxu0 0.0
    %4757 = vmatpush.msra.mxu0 0.0
    %4758 = vmatpush.msra.mxu0 0.0
    %4759 = vmatpush.msra.mxu0 %v1005
    %4760 = vmatpush.msra.mxu0 %v989
    %4761 = vmatpush.msra.mxu0 %v973
    %4762 = vmatpush.msra.mxu0 %v957
    %4763 = vmatpush.msra.mxu0 %v941
    %4764 = vmatpush.msra.mxu0 %v925
    %4765 = vmatpush.msra.mxu0 %v909
    %4766 = vmatpush.msra.mxu0 %v893
    %4767 = vmatmul.f32.gmra.mxu0 %v4469
    %v4768 = vpop.f32.mrf.mxu0
    %v4769 = vadd.f32 0.0, %v4768
    %4770 = vdwg.mxu0
    %4771 = vmatpush.msra.mxu0 0.0
    %4772 = vmatpush.msra.mxu0 0.0
    %4773 = vmatpush.msra.mxu0 0.0
    %4774 = vmatpush.msra.mxu0 0.0
    %4775 = vmatpush.msra.mxu0 0.0
    %4776 = vmatpush.msra.mxu0 0.0
    %4777 = vmatpush.msra.mxu0 0.0
    %4778 = vmatpush.msra.mxu0 0.0
    %4779 = vmatpush.msra.mxu0 %v1006
    %4780 = vmatpush.msra.mxu0 %v990
    %4781 = vmatpush.msra.mxu0 %v974
    %4782 = vmatpush.msra.mxu0 %v958
    %4783 = vmatpush.msra.mxu0 %v942
    %4784 = vmatpush.msra.mxu0 %v926
    %4785 = vmatpush.msra.mxu0 %v910
    %4786 = vmatpush.msra.mxu0 %v894
    %4787 = vmatmul.f32.gmra.mxu0 %v4469
    %v4788 = vpop.f32.mrf.mxu0
    %v4789 = vadd.f32 0.0, %v4788
    %4790 = vdwg.mxu0
    %4791 = vrot.lane.b32.xlu0 %v873, 96
    %v4792 = vpop.permute.xlu0 %4791
    %v4793 = vsel %vm139, %v4792, 0
    %4795 = vmatpush.msra.mxu0 0.0
    %4796 = vmatpush.msra.mxu0 0.0
    %4797 = vmatpush.msra.mxu0 0.0
    %4798 = vmatpush.msra.mxu0 0.0
    %4799 = vmatpush.msra.mxu0 0.0
    %4800 = vmatpush.msra.mxu0 0.0
    %4801 = vmatpush.msra.mxu0 0.0
    %4802 = vmatpush.msra.mxu0 0.0
    %4803 = vmatpush.msra.mxu0 0.0
    %4804 = vmatpush.msra.mxu0 0.0
    %4805 = vmatpush.msra.mxu0 0.0
    %4806 = vmatpush.msra.mxu0 0.0
    %4807 = vmatpush.msra.mxu0 %v1055
    %4808 = vmatpush.msra.mxu0 %v1039
    %4809 = vmatpush.msra.mxu0 %v1023
    %4810 = vmatpush.msra.mxu0 %v1007
    %4811 = vmatmul.f32.gmra.mxu0 %v4793
    %v4812 = vpop.f32.mrf.mxu0
    %v4813 = vadd.f32 0.0, %v4812
    %4814 = vdwg.mxu0
    %4815 = vmatpush.msra.mxu0 0.0
    %4816 = vmatpush.msra.mxu0 0.0
    %4817 = vmatpush.msra.mxu0 0.0
    %4818 = vmatpush.msra.mxu0 0.0
    %4819 = vmatpush.msra.mxu0 0.0
    %4820 = vmatpush.msra.mxu0 0.0
    %4821 = vmatpush.msra.mxu0 0.0
    %4822 = vmatpush.msra.mxu0 0.0
    %4823 = vmatpush.msra.mxu0 0.0
    %4824 = vmatpush.msra.mxu0 0.0
    %4825 = vmatpush.msra.mxu0 0.0
    %4826 = vmatpush.msra.mxu0 0.0
    %4827 = vmatpush.msra.mxu0 %v1056
    %4828 = vmatpush.msra.mxu0 %v1040
    %4829 = vmatpush.msra.mxu0 %v1024
    %4830 = vmatpush.msra.mxu0 %v1008
    %4831 = vmatmul.f32.gmra.mxu0 %v4793
    %v4832 = vpop.f32.mrf.mxu0
    %v4833 = vadd.f32 0.0, %v4832
    %4834 = vdwg.mxu0
    %4835 = vmatpush.msra.mxu0 0.0
    %4836 = vmatpush.msra.mxu0 0.0
    %4837 = vmatpush.msra.mxu0 0.0
    %4838 = vmatpush.msra.mxu0 0.0
    %4839 = vmatpush.msra.mxu0 0.0
    %4840 = vmatpush.msra.mxu0 0.0
    %4841 = vmatpush.msra.mxu0 0.0
    %4842 = vmatpush.msra.mxu0 0.0
    %4843 = vmatpush.msra.mxu0 0.0
    %4844 = vmatpush.msra.mxu0 0.0
    %4845 = vmatpush.msra.mxu0 0.0
    %4846 = vmatpush.msra.mxu0 0.0
    %4847 = vmatpush.msra.mxu0 %v1057
    %4848 = vmatpush.msra.mxu0 %v1041
    %4849 = vmatpush.msra.mxu0 %v1025
    %4850 = vmatpush.msra.mxu0 %v1009
    %4851 = vmatmul.f32.gmra.mxu0 %v4793
    %v4852 = vpop.f32.mrf.mxu0
    %v4853 = vadd.f32 0.0, %v4852
    %4854 = vdwg.mxu0
    %4855 = vmatpush.msra.mxu0 0.0
    %4856 = vmatpush.msra.mxu0 0.0
    %4857 = vmatpush.msra.mxu0 0.0
    %4858 = vmatpush.msra.mxu0 0.0
    %4859 = vmatpush.msra.mxu0 0.0
    %4860 = vmatpush.msra.mxu0 0.0
    %4861 = vmatpush.msra.mxu0 0.0
    %4862 = vmatpush.msra.mxu0 0.0
    %4863 = vmatpush.msra.mxu0 0.0
    %4864 = vmatpush.msra.mxu0 0.0
    %4865 = vmatpush.msra.mxu0 0.0
    %4866 = vmatpush.msra.mxu0 0.0
    %4867 = vmatpush.msra.mxu0 %v1058
    %4868 = vmatpush.msra.mxu0 %v1042
    %4869 = vmatpush.msra.mxu0 %v1026
    %4870 = vmatpush.msra.mxu0 %v1010
    %4871 = vmatmul.f32.gmra.mxu0 %v4793
    %v4872 = vpop.f32.mrf.mxu0
    %v4873 = vadd.f32 0.0, %v4872
    %4874 = vdwg.mxu0
    %4875 = vmatpush.msra.mxu0 0.0
    %4876 = vmatpush.msra.mxu0 0.0
    %4877 = vmatpush.msra.mxu0 0.0
    %4878 = vmatpush.msra.mxu0 0.0
    %4879 = vmatpush.msra.mxu0 0.0
    %4880 = vmatpush.msra.mxu0 0.0
    %4881 = vmatpush.msra.mxu0 0.0
    %4882 = vmatpush.msra.mxu0 0.0
    %4883 = vmatpush.msra.mxu0 0.0
    %4884 = vmatpush.msra.mxu0 0.0
    %4885 = vmatpush.msra.mxu0 0.0
    %4886 = vmatpush.msra.mxu0 0.0
    %4887 = vmatpush.msra.mxu0 %v1059
    %4888 = vmatpush.msra.mxu0 %v1043
    %4889 = vmatpush.msra.mxu0 %v1027
    %4890 = vmatpush.msra.mxu0 %v1011
    %4891 = vmatmul.f32.gmra.mxu0 %v4793
    %v4892 = vpop.f32.mrf.mxu0
    %v4893 = vadd.f32 0.0, %v4892
    %4894 = vdwg.mxu0
    %4895 = vmatpush.msra.mxu0 0.0
    %4896 = vmatpush.msra.mxu0 0.0
    %4897 = vmatpush.msra.mxu0 0.0
    %4898 = vmatpush.msra.mxu0 0.0
    %4899 = vmatpush.msra.mxu0 0.0
    %4900 = vmatpush.msra.mxu0 0.0
    %4901 = vmatpush.msra.mxu0 0.0
    %4902 = vmatpush.msra.mxu0 0.0
    %4903 = vmatpush.msra.mxu0 0.0
    %4904 = vmatpush.msra.mxu0 0.0
    %4905 = vmatpush.msra.mxu0 0.0
    %4906 = vmatpush.msra.mxu0 0.0
    %4907 = vmatpush.msra.mxu0 %v1060
    %4908 = vmatpush.msra.mxu0 %v1044
    %4909 = vmatpush.msra.mxu0 %v1028
    %4910 = vmatpush.msra.mxu0 %v1012
    %4911 = vmatmul.f32.gmra.mxu0 %v4793
    %v4912 = vpop.f32.mrf.mxu0
    %v4913 = vadd.f32 0.0, %v4912
    %4914 = vdwg.mxu0
    %4915 = vmatpush.msra.mxu0 0.0
    %4916 = vmatpush.msra.mxu0 0.0
    %4917 = vmatpush.msra.mxu0 0.0
    %4918 = vmatpush.msra.mxu0 0.0
    %4919 = vmatpush.msra.mxu0 0.0
    %4920 = vmatpush.msra.mxu0 0.0
    %4921 = vmatpush.msra.mxu0 0.0
    %4922 = vmatpush.msra.mxu0 0.0
    %4923 = vmatpush.msra.mxu0 0.0
    %4924 = vmatpush.msra.mxu0 0.0
    %4925 = vmatpush.msra.mxu0 0.0
    %4926 = vmatpush.msra.mxu0 0.0
    %4927 = vmatpush.msra.mxu0 %v1061
    %4928 = vmatpush.msra.mxu0 %v1045
    %4929 = vmatpush.msra.mxu0 %v1029
    %4930 = vmatpush.msra.mxu0 %v1013
    %4931 = vmatmul.f32.gmra.mxu0 %v4793
    %v4932 = vpop.f32.mrf.mxu0
    %v4933 = vadd.f32 0.0, %v4932
    %4934 = vdwg.mxu0
    %4935 = vmatpush.msra.mxu0 0.0
    %4936 = vmatpush.msra.mxu0 0.0
    %4937 = vmatpush.msra.mxu0 0.0
    %4938 = vmatpush.msra.mxu0 0.0
    %4939 = vmatpush.msra.mxu0 0.0
    %4940 = vmatpush.msra.mxu0 0.0
    %4941 = vmatpush.msra.mxu0 0.0
    %4942 = vmatpush.msra.mxu0 0.0
    %4943 = vmatpush.msra.mxu0 0.0
    %4944 = vmatpush.msra.mxu0 0.0
    %4945 = vmatpush.msra.mxu0 0.0
    %4946 = vmatpush.msra.mxu0 0.0
    %4947 = vmatpush.msra.mxu0 %v1062
    %4948 = vmatpush.msra.mxu0 %v1046
    %4949 = vmatpush.msra.mxu0 %v1030
    %4950 = vmatpush.msra.mxu0 %v1014
    %4951 = vmatmul.f32.gmra.mxu0 %v4793
    %v4952 = vpop.f32.mrf.mxu0
    %v4953 = vadd.f32 0.0, %v4952
    %4954 = vdwg.mxu0
    %4955 = vmatpush.msra.mxu0 0.0
    %4956 = vmatpush.msra.mxu0 0.0
    %4957 = vmatpush.msra.mxu0 0.0
    %4958 = vmatpush.msra.mxu0 0.0
    %4959 = vmatpush.msra.mxu0 0.0
    %4960 = vmatpush.msra.mxu0 0.0
    %4961 = vmatpush.msra.mxu0 0.0
    %4962 = vmatpush.msra.mxu0 0.0
    %4963 = vmatpush.msra.mxu0 0.0
    %4964 = vmatpush.msra.mxu0 0.0
    %4965 = vmatpush.msra.mxu0 0.0
    %4966 = vmatpush.msra.mxu0 0.0
    %4967 = vmatpush.msra.mxu0 %v1063
    %4968 = vmatpush.msra.mxu0 %v1047
    %4969 = vmatpush.msra.mxu0 %v1031
    %4970 = vmatpush.msra.mxu0 %v1015
    %4971 = vmatmul.f32.gmra.mxu0 %v4793
    %v4972 = vpop.f32.mrf.mxu0
    %v4973 = vadd.f32 0.0, %v4972
    %4974 = vdwg.mxu0
    %4975 = vmatpush.msra.mxu0 0.0
    %4976 = vmatpush.msra.mxu0 0.0
    %4977 = vmatpush.msra.mxu0 0.0
    %4978 = vmatpush.msra.mxu0 0.0
    %4979 = vmatpush.msra.mxu0 0.0
    %4980 = vmatpush.msra.mxu0 0.0
    %4981 = vmatpush.msra.mxu0 0.0
    %4982 = vmatpush.msra.mxu0 0.0
    %4983 = vmatpush.msra.mxu0 0.0
    %4984 = vmatpush.msra.mxu0 0.0
    %4985 = vmatpush.msra.mxu0 0.0
    %4986 = vmatpush.msra.mxu0 0.0
    %4987 = vmatpush.msra.mxu0 %v1064
    %4988 = vmatpush.msra.mxu0 %v1048
    %4989 = vmatpush.msra.mxu0 %v1032
    %4990 = vmatpush.msra.mxu0 %v1016
    %4991 = vmatmul.f32.gmra.mxu0 %v4793
    %v4992 = vpop.f32.mrf.mxu0
    %v4993 = vadd.f32 0.0, %v4992
    %4994 = vdwg.mxu0
    %4995 = vmatpush.msra.mxu0 0.0
    %4996 = vmatpush.msra.mxu0 0.0
    %4997 = vmatpush.msra.mxu0 0.0
    %4998 = vmatpush.msra.mxu0 0.0
    %4999 = vmatpush.msra.mxu0 0.0
    %5000 = vmatpush.msra.mxu0 0.0
    %5001 = vmatpush.msra.mxu0 0.0
    %5002 = vmatpush.msra.mxu0 0.0
    %5003 = vmatpush.msra.mxu0 0.0
    %5004 = vmatpush.msra.mxu0 0.0
    %5005 = vmatpush.msra.mxu0 0.0
    %5006 = vmatpush.msra.mxu0 0.0
    %5007 = vmatpush.msra.mxu0 %v1065
    %5008 = vmatpush.msra.mxu0 %v1049
    %5009 = vmatpush.msra.mxu0 %v1033
    %5010 = vmatpush.msra.mxu0 %v1017
    %5011 = vmatmul.f32.gmra.mxu0 %v4793
    %v5012 = vpop.f32.mrf.mxu0
    %v5013 = vadd.f32 0.0, %v5012
    %5014 = vdwg.mxu0
    %5015 = vmatpush.msra.mxu0 0.0
    %5016 = vmatpush.msra.mxu0 0.0
    %5017 = vmatpush.msra.mxu0 0.0
    %5018 = vmatpush.msra.mxu0 0.0
    %5019 = vmatpush.msra.mxu0 0.0
    %5020 = vmatpush.msra.mxu0 0.0
    %5021 = vmatpush.msra.mxu0 0.0
    %5022 = vmatpush.msra.mxu0 0.0
    %5023 = vmatpush.msra.mxu0 0.0
    %5024 = vmatpush.msra.mxu0 0.0
    %5025 = vmatpush.msra.mxu0 0.0
    %5026 = vmatpush.msra.mxu0 0.0
    %5027 = vmatpush.msra.mxu0 %v1066
    %5028 = vmatpush.msra.mxu0 %v1050
    %5029 = vmatpush.msra.mxu0 %v1034
    %5030 = vmatpush.msra.mxu0 %v1018
    %5031 = vmatmul.f32.gmra.mxu0 %v4793
    %v5032 = vpop.f32.mrf.mxu0
    %v5033 = vadd.f32 0.0, %v5032
    %5034 = vdwg.mxu0
    %5035 = vmatpush.msra.mxu0 0.0
    %5036 = vmatpush.msra.mxu0 0.0
    %5037 = vmatpush.msra.mxu0 0.0
    %5038 = vmatpush.msra.mxu0 0.0
    %5039 = vmatpush.msra.mxu0 0.0
    %5040 = vmatpush.msra.mxu0 0.0
    %5041 = vmatpush.msra.mxu0 0.0
    %5042 = vmatpush.msra.mxu0 0.0
    %5043 = vmatpush.msra.mxu0 0.0
    %5044 = vmatpush.msra.mxu0 0.0
    %5045 = vmatpush.msra.mxu0 0.0
    %5046 = vmatpush.msra.mxu0 0.0
    %5047 = vmatpush.msra.mxu0 %v1067
    %5048 = vmatpush.msra.mxu0 %v1051
    %5049 = vmatpush.msra.mxu0 %v1035
    %5050 = vmatpush.msra.mxu0 %v1019
    %5051 = vmatmul.f32.gmra.mxu0 %v4793
    %v5052 = vpop.f32.mrf.mxu0
    %v5053 = vadd.f32 0.0, %v5052
    %5054 = vdwg.mxu0
    %5055 = vmatpush.msra.mxu0 0.0
    %5056 = vmatpush.msra.mxu0 0.0
    %5057 = vmatpush.msra.mxu0 0.0
    %5058 = vmatpush.msra.mxu0 0.0
    %5059 = vmatpush.msra.mxu0 0.0
    %5060 = vmatpush.msra.mxu0 0.0
    %5061 = vmatpush.msra.mxu0 0.0
    %5062 = vmatpush.msra.mxu0 0.0
    %5063 = vmatpush.msra.mxu0 0.0
    %5064 = vmatpush.msra.mxu0 0.0
    %5065 = vmatpush.msra.mxu0 0.0
    %5066 = vmatpush.msra.mxu0 0.0
    %5067 = vmatpush.msra.mxu0 %v1068
    %5068 = vmatpush.msra.mxu0 %v1052
    %5069 = vmatpush.msra.mxu0 %v1036
    %5070 = vmatpush.msra.mxu0 %v1020
    %5071 = vmatmul.f32.gmra.mxu0 %v4793
    %v5072 = vpop.f32.mrf.mxu0
    %v5073 = vadd.f32 0.0, %v5072
    %5074 = vdwg.mxu0
    %5075 = vmatpush.msra.mxu0 0.0
    %5076 = vmatpush.msra.mxu0 0.0
    %5077 = vmatpush.msra.mxu0 0.0
    %5078 = vmatpush.msra.mxu0 0.0
    %5079 = vmatpush.msra.mxu0 0.0
    %5080 = vmatpush.msra.mxu0 0.0
    %5081 = vmatpush.msra.mxu0 0.0
    %5082 = vmatpush.msra.mxu0 0.0
    %5083 = vmatpush.msra.mxu0 0.0
    %5084 = vmatpush.msra.mxu0 0.0
    %5085 = vmatpush.msra.mxu0 0.0
    %5086 = vmatpush.msra.mxu0 0.0
    %5087 = vmatpush.msra.mxu0 %v1069
    %5088 = vmatpush.msra.mxu0 %v1053
    %5089 = vmatpush.msra.mxu0 %v1037
    %5090 = vmatpush.msra.mxu0 %v1021
    %5091 = vmatmul.f32.gmra.mxu0 %v4793
    %v5092 = vpop.f32.mrf.mxu0
    %v5093 = vadd.f32 0.0, %v5092
    %5094 = vdwg.mxu0
    %5095 = vmatpush.msra.mxu0 0.0
    %5096 = vmatpush.msra.mxu0 0.0
    %5097 = vmatpush.msra.mxu0 0.0
    %5098 = vmatpush.msra.mxu0 0.0
    %5099 = vmatpush.msra.mxu0 0.0
    %5100 = vmatpush.msra.mxu0 0.0
    %5101 = vmatpush.msra.mxu0 0.0
    %5102 = vmatpush.msra.mxu0 0.0
    %5103 = vmatpush.msra.mxu0 0.0
    %5104 = vmatpush.msra.mxu0 0.0
    %5105 = vmatpush.msra.mxu0 0.0
    %5106 = vmatpush.msra.mxu0 0.0
    %5107 = vmatpush.msra.mxu0 %v1070
    %5108 = vmatpush.msra.mxu0 %v1054
    %5109 = vmatpush.msra.mxu0 %v1038
    %5110 = vmatpush.msra.mxu0 %v1022
    %5111 = vmatmul.f32.gmra.mxu0 %v4793
    %v5112 = vpop.f32.mrf.mxu0
    %v5113 = vadd.f32 0.0, %v5112
    %5114 = vdwg.mxu0
    %v5115 = vmul.f32 %v4489, %v4813
    %v5116 = vmul.f32 %v4509, %v4833
    %v5117 = vmul.f32 %v4529, %v4853
    %v5118 = vmul.f32 %v4549, %v4873
    %v5119 = vmul.f32 %v4569, %v4893
    %v5120 = vmul.f32 %v4589, %v4913
    %v5121 = vmul.f32 %v4609, %v4933
    %v5122 = vmul.f32 %v4629, %v4953
    %v5123 = vmul.f32 %v4649, %v4973
    %v5124 = vmul.f32 %v4669, %v4993
    %v5125 = vmul.f32 %v4689, %v5013
    %v5126 = vmul.f32 %v4709, %v5033
    %v5127 = vmul.f32 %v4729, %v5053
    %v5128 = vmul.f32 %v4749, %v5073
    %v5129 = vmul.f32 %v4769, %v5093
    %v5130 = vmul.f32 %v4789, %v5113
    %v5131 = vadd.f32 %v4451, %v5115
    %v5132 = vadd.f32 %v4452, %v5116
    %v5133 = vadd.f32 %v4453, %v5117
    %v5134 = vadd.f32 %v4454, %v5118
    %v5135 = vadd.f32 %v4455, %v5119
    %v5136 = vadd.f32 %v4456, %v5120
    %v5137 = vadd.f32 %v4457, %v5121
    %v5138 = vadd.f32 %v4458, %v5122
    %v5139 = vadd.f32 %v4459, %v5123
    %v5140 = vadd.f32 %v4460, %v5124
    %v5141 = vadd.f32 %v4461, %v5125
    %v5142 = vadd.f32 %v4462, %v5126
    %v5143 = vadd.f32 %v4463, %v5127
    %v5144 = vadd.f32 %v4464, %v5128
    %v5145 = vadd.f32 %v4465, %v5129
    %v5146 = vadd.f32 %v4466, %v5130
    %v5148 = vsel %vm1071, %v793, 0
    %5150 = vmatpush.msra.mxu0 0.0
    %5151 = vmatpush.msra.mxu0 0.0
    %5152 = vmatpush.msra.mxu0 0.0
    %5153 = vmatpush.msra.mxu0 0.0
    %5154 = vmatpush.msra.mxu0 0.0
    %5155 = vmatpush.msra.mxu0 0.0
    %5156 = vmatpush.msra.mxu0 0.0
    %5157 = vmatpush.msra.mxu0 0.0
    %5158 = vmatpush.msra.mxu0 %v991
    %5159 = vmatpush.msra.mxu0 %v975
    %5160 = vmatpush.msra.mxu0 %v959
    %5161 = vmatpush.msra.mxu0 %v943
    %5162 = vmatpush.msra.mxu0 %v927
    %5163 = vmatpush.msra.mxu0 %v911
    %5164 = vmatpush.msra.mxu0 %v895
    %5165 = vmatpush.msra.mxu0 %v879
    %5166 = vmatmul.f32.gmra.mxu0 %v5148
    %v5167 = vpop.f32.mrf.mxu0
    %v5168 = vadd.f32 0.0, %v5167
    %5169 = vdwg.mxu0
    %5170 = vmatpush.msra.mxu0 0.0
    %5171 = vmatpush.msra.mxu0 0.0
    %5172 = vmatpush.msra.mxu0 0.0
    %5173 = vmatpush.msra.mxu0 0.0
    %5174 = vmatpush.msra.mxu0 0.0
    %5175 = vmatpush.msra.mxu0 0.0
    %5176 = vmatpush.msra.mxu0 0.0
    %5177 = vmatpush.msra.mxu0 0.0
    %5178 = vmatpush.msra.mxu0 %v992
    %5179 = vmatpush.msra.mxu0 %v976
    %5180 = vmatpush.msra.mxu0 %v960
    %5181 = vmatpush.msra.mxu0 %v944
    %5182 = vmatpush.msra.mxu0 %v928
    %5183 = vmatpush.msra.mxu0 %v912
    %5184 = vmatpush.msra.mxu0 %v896
    %5185 = vmatpush.msra.mxu0 %v880
    %5186 = vmatmul.f32.gmra.mxu0 %v5148
    %v5187 = vpop.f32.mrf.mxu0
    %v5188 = vadd.f32 0.0, %v5187
    %5189 = vdwg.mxu0
    %5190 = vmatpush.msra.mxu0 0.0
    %5191 = vmatpush.msra.mxu0 0.0
    %5192 = vmatpush.msra.mxu0 0.0
    %5193 = vmatpush.msra.mxu0 0.0
    %5194 = vmatpush.msra.mxu0 0.0
    %5195 = vmatpush.msra.mxu0 0.0
    %5196 = vmatpush.msra.mxu0 0.0
    %5197 = vmatpush.msra.mxu0 0.0
    %5198 = vmatpush.msra.mxu0 %v993
    %5199 = vmatpush.msra.mxu0 %v977
    %5200 = vmatpush.msra.mxu0 %v961
    %5201 = vmatpush.msra.mxu0 %v945
    %5202 = vmatpush.msra.mxu0 %v929
    %5203 = vmatpush.msra.mxu0 %v913
    %5204 = vmatpush.msra.mxu0 %v897
    %5205 = vmatpush.msra.mxu0 %v881
    %5206 = vmatmul.f32.gmra.mxu0 %v5148
    %v5207 = vpop.f32.mrf.mxu0
    %v5208 = vadd.f32 0.0, %v5207
    %5209 = vdwg.mxu0
    %5210 = vmatpush.msra.mxu0 0.0
    %5211 = vmatpush.msra.mxu0 0.0
    %5212 = vmatpush.msra.mxu0 0.0
    %5213 = vmatpush.msra.mxu0 0.0
    %5214 = vmatpush.msra.mxu0 0.0
    %5215 = vmatpush.msra.mxu0 0.0
    %5216 = vmatpush.msra.mxu0 0.0
    %5217 = vmatpush.msra.mxu0 0.0
    %5218 = vmatpush.msra.mxu0 %v994
    %5219 = vmatpush.msra.mxu0 %v978
    %5220 = vmatpush.msra.mxu0 %v962
    %5221 = vmatpush.msra.mxu0 %v946
    %5222 = vmatpush.msra.mxu0 %v930
    %5223 = vmatpush.msra.mxu0 %v914
    %5224 = vmatpush.msra.mxu0 %v898
    %5225 = vmatpush.msra.mxu0 %v882
    %5226 = vmatmul.f32.gmra.mxu0 %v5148
    %v5227 = vpop.f32.mrf.mxu0
    %v5228 = vadd.f32 0.0, %v5227
    %5229 = vdwg.mxu0
    %5230 = vmatpush.msra.mxu0 0.0
    %5231 = vmatpush.msra.mxu0 0.0
    %5232 = vmatpush.msra.mxu0 0.0
    %5233 = vmatpush.msra.mxu0 0.0
    %5234 = vmatpush.msra.mxu0 0.0
    %5235 = vmatpush.msra.mxu0 0.0
    %5236 = vmatpush.msra.mxu0 0.0
    %5237 = vmatpush.msra.mxu0 0.0
    %5238 = vmatpush.msra.mxu0 %v995
    %5239 = vmatpush.msra.mxu0 %v979
    %5240 = vmatpush.msra.mxu0 %v963
    %5241 = vmatpush.msra.mxu0 %v947
    %5242 = vmatpush.msra.mxu0 %v931
    %5243 = vmatpush.msra.mxu0 %v915
    %5244 = vmatpush.msra.mxu0 %v899
    %5245 = vmatpush.msra.mxu0 %v883
    %5246 = vmatmul.f32.gmra.mxu0 %v5148
    %v5247 = vpop.f32.mrf.mxu0
    %v5248 = vadd.f32 0.0, %v5247
    %5249 = vdwg.mxu0
    %5250 = vmatpush.msra.mxu0 0.0
    %5251 = vmatpush.msra.mxu0 0.0
    %5252 = vmatpush.msra.mxu0 0.0
    %5253 = vmatpush.msra.mxu0 0.0
    %5254 = vmatpush.msra.mxu0 0.0
    %5255 = vmatpush.msra.mxu0 0.0
    %5256 = vmatpush.msra.mxu0 0.0
    %5257 = vmatpush.msra.mxu0 0.0
    %5258 = vmatpush.msra.mxu0 %v996
    %5259 = vmatpush.msra.mxu0 %v980
    %5260 = vmatpush.msra.mxu0 %v964
    %5261 = vmatpush.msra.mxu0 %v948
    %5262 = vmatpush.msra.mxu0 %v932
    %5263 = vmatpush.msra.mxu0 %v916
    %5264 = vmatpush.msra.mxu0 %v900
    %5265 = vmatpush.msra.mxu0 %v884
    %5266 = vmatmul.f32.gmra.mxu0 %v5148
    %v5267 = vpop.f32.mrf.mxu0
    %v5268 = vadd.f32 0.0, %v5267
    %5269 = vdwg.mxu0
    %5270 = vmatpush.msra.mxu0 0.0
    %5271 = vmatpush.msra.mxu0 0.0
    %5272 = vmatpush.msra.mxu0 0.0
    %5273 = vmatpush.msra.mxu0 0.0
    %5274 = vmatpush.msra.mxu0 0.0
    %5275 = vmatpush.msra.mxu0 0.0
    %5276 = vmatpush.msra.mxu0 0.0
    %5277 = vmatpush.msra.mxu0 0.0
    %5278 = vmatpush.msra.mxu0 %v997
    %5279 = vmatpush.msra.mxu0 %v981
    %5280 = vmatpush.msra.mxu0 %v965
    %5281 = vmatpush.msra.mxu0 %v949
    %5282 = vmatpush.msra.mxu0 %v933
    %5283 = vmatpush.msra.mxu0 %v917
    %5284 = vmatpush.msra.mxu0 %v901
    %5285 = vmatpush.msra.mxu0 %v885
    %5286 = vmatmul.f32.gmra.mxu0 %v5148
    %v5287 = vpop.f32.mrf.mxu0
    %v5288 = vadd.f32 0.0, %v5287
    %5289 = vdwg.mxu0
    %5290 = vmatpush.msra.mxu0 0.0
    %5291 = vmatpush.msra.mxu0 0.0
    %5292 = vmatpush.msra.mxu0 0.0
    %5293 = vmatpush.msra.mxu0 0.0
    %5294 = vmatpush.msra.mxu0 0.0
    %5295 = vmatpush.msra.mxu0 0.0
    %5296 = vmatpush.msra.mxu0 0.0
    %5297 = vmatpush.msra.mxu0 0.0
    %5298 = vmatpush.msra.mxu0 %v998
    %5299 = vmatpush.msra.mxu0 %v982
    %5300 = vmatpush.msra.mxu0 %v966
    %5301 = vmatpush.msra.mxu0 %v950
    %5302 = vmatpush.msra.mxu0 %v934
    %5303 = vmatpush.msra.mxu0 %v918
    %5304 = vmatpush.msra.mxu0 %v902
    %5305 = vmatpush.msra.mxu0 %v886
    %5306 = vmatmul.f32.gmra.mxu0 %v5148
    %v5307 = vpop.f32.mrf.mxu0
    %v5308 = vadd.f32 0.0, %v5307
    %5309 = vdwg.mxu0
    %5310 = vmatpush.msra.mxu0 0.0
    %5311 = vmatpush.msra.mxu0 0.0
    %5312 = vmatpush.msra.mxu0 0.0
    %5313 = vmatpush.msra.mxu0 0.0
    %5314 = vmatpush.msra.mxu0 0.0
    %5315 = vmatpush.msra.mxu0 0.0
    %5316 = vmatpush.msra.mxu0 0.0
    %5317 = vmatpush.msra.mxu0 0.0
    %5318 = vmatpush.msra.mxu0 %v999
    %5319 = vmatpush.msra.mxu0 %v983
    %5320 = vmatpush.msra.mxu0 %v967
    %5321 = vmatpush.msra.mxu0 %v951
    %5322 = vmatpush.msra.mxu0 %v935
    %5323 = vmatpush.msra.mxu0 %v919
    %5324 = vmatpush.msra.mxu0 %v903
    %5325 = vmatpush.msra.mxu0 %v887
    %5326 = vmatmul.f32.gmra.mxu0 %v5148
    %v5327 = vpop.f32.mrf.mxu0
    %v5328 = vadd.f32 0.0, %v5327
    %5329 = vdwg.mxu0
    %5330 = vmatpush.msra.mxu0 0.0
    %5331 = vmatpush.msra.mxu0 0.0
    %5332 = vmatpush.msra.mxu0 0.0
    %5333 = vmatpush.msra.mxu0 0.0
    %5334 = vmatpush.msra.mxu0 0.0
    %5335 = vmatpush.msra.mxu0 0.0
    %5336 = vmatpush.msra.mxu0 0.0
    %5337 = vmatpush.msra.mxu0 0.0
    %5338 = vmatpush.msra.mxu0 %v1000
    %5339 = vmatpush.msra.mxu0 %v984
    %5340 = vmatpush.msra.mxu0 %v968
    %5341 = vmatpush.msra.mxu0 %v952
    %5342 = vmatpush.msra.mxu0 %v936
    %5343 = vmatpush.msra.mxu0 %v920
    %5344 = vmatpush.msra.mxu0 %v904
    %5345 = vmatpush.msra.mxu0 %v888
    %5346 = vmatmul.f32.gmra.mxu0 %v5148
    %v5347 = vpop.f32.mrf.mxu0
    %v5348 = vadd.f32 0.0, %v5347
    %5349 = vdwg.mxu0
    %5350 = vmatpush.msra.mxu0 0.0
    %5351 = vmatpush.msra.mxu0 0.0
    %5352 = vmatpush.msra.mxu0 0.0
    %5353 = vmatpush.msra.mxu0 0.0
    %5354 = vmatpush.msra.mxu0 0.0
    %5355 = vmatpush.msra.mxu0 0.0
    %5356 = vmatpush.msra.mxu0 0.0
    %5357 = vmatpush.msra.mxu0 0.0
    %5358 = vmatpush.msra.mxu0 %v1001
    %5359 = vmatpush.msra.mxu0 %v985
    %5360 = vmatpush.msra.mxu0 %v969
    %5361 = vmatpush.msra.mxu0 %v953
    %5362 = vmatpush.msra.mxu0 %v937
    %5363 = vmatpush.msra.mxu0 %v921
    %5364 = vmatpush.msra.mxu0 %v905
    %5365 = vmatpush.msra.mxu0 %v889
    %5366 = vmatmul.f32.gmra.mxu0 %v5148
    %v5367 = vpop.f32.mrf.mxu0
    %v5368 = vadd.f32 0.0, %v5367
    %5369 = vdwg.mxu0
    %5370 = vmatpush.msra.mxu0 0.0
    %5371 = vmatpush.msra.mxu0 0.0
    %5372 = vmatpush.msra.mxu0 0.0
    %5373 = vmatpush.msra.mxu0 0.0
    %5374 = vmatpush.msra.mxu0 0.0
    %5375 = vmatpush.msra.mxu0 0.0
    %5376 = vmatpush.msra.mxu0 0.0
    %5377 = vmatpush.msra.mxu0 0.0
    %5378 = vmatpush.msra.mxu0 %v1002
    %5379 = vmatpush.msra.mxu0 %v986
    %5380 = vmatpush.msra.mxu0 %v970
    %5381 = vmatpush.msra.mxu0 %v954
    %5382 = vmatpush.msra.mxu0 %v938
    %5383 = vmatpush.msra.mxu0 %v922
    %5384 = vmatpush.msra.mxu0 %v906
    %5385 = vmatpush.msra.mxu0 %v890
    %5386 = vmatmul.f32.gmra.mxu0 %v5148
    %v5387 = vpop.f32.mrf.mxu0
    %v5388 = vadd.f32 0.0, %v5387
    %5389 = vdwg.mxu0
    %5390 = vmatpush.msra.mxu0 0.0
    %5391 = vmatpush.msra.mxu0 0.0
    %5392 = vmatpush.msra.mxu0 0.0
    %5393 = vmatpush.msra.mxu0 0.0
    %5394 = vmatpush.msra.mxu0 0.0
    %5395 = vmatpush.msra.mxu0 0.0
    %5396 = vmatpush.msra.mxu0 0.0
    %5397 = vmatpush.msra.mxu0 0.0
    %5398 = vmatpush.msra.mxu0 %v1003
    %5399 = vmatpush.msra.mxu0 %v987
    %5400 = vmatpush.msra.mxu0 %v971
    %5401 = vmatpush.msra.mxu0 %v955
    %5402 = vmatpush.msra.mxu0 %v939
    %5403 = vmatpush.msra.mxu0 %v923
    %5404 = vmatpush.msra.mxu0 %v907
    %5405 = vmatpush.msra.mxu0 %v891
    %5406 = vmatmul.f32.gmra.mxu0 %v5148
    %v5407 = vpop.f32.mrf.mxu0
    %v5408 = vadd.f32 0.0, %v5407
    %5409 = vdwg.mxu0
    %5410 = vmatpush.msra.mxu0 0.0
    %5411 = vmatpush.msra.mxu0 0.0
    %5412 = vmatpush.msra.mxu0 0.0
    %5413 = vmatpush.msra.mxu0 0.0
    %5414 = vmatpush.msra.mxu0 0.0
    %5415 = vmatpush.msra.mxu0 0.0
    %5416 = vmatpush.msra.mxu0 0.0
    %5417 = vmatpush.msra.mxu0 0.0
    %5418 = vmatpush.msra.mxu0 %v1004
    %5419 = vmatpush.msra.mxu0 %v988
    %5420 = vmatpush.msra.mxu0 %v972
    %5421 = vmatpush.msra.mxu0 %v956
    %5422 = vmatpush.msra.mxu0 %v940
    %5423 = vmatpush.msra.mxu0 %v924
    %5424 = vmatpush.msra.mxu0 %v908
    %5425 = vmatpush.msra.mxu0 %v892
    %5426 = vmatmul.f32.gmra.mxu0 %v5148
    %v5427 = vpop.f32.mrf.mxu0
    %v5428 = vadd.f32 0.0, %v5427
    %5429 = vdwg.mxu0
    %5430 = vmatpush.msra.mxu0 0.0
    %5431 = vmatpush.msra.mxu0 0.0
    %5432 = vmatpush.msra.mxu0 0.0
    %5433 = vmatpush.msra.mxu0 0.0
    %5434 = vmatpush.msra.mxu0 0.0
    %5435 = vmatpush.msra.mxu0 0.0
    %5436 = vmatpush.msra.mxu0 0.0
    %5437 = vmatpush.msra.mxu0 0.0
    %5438 = vmatpush.msra.mxu0 %v1005
    %5439 = vmatpush.msra.mxu0 %v989
    %5440 = vmatpush.msra.mxu0 %v973
    %5441 = vmatpush.msra.mxu0 %v957
    %5442 = vmatpush.msra.mxu0 %v941
    %5443 = vmatpush.msra.mxu0 %v925
    %5444 = vmatpush.msra.mxu0 %v909
    %5445 = vmatpush.msra.mxu0 %v893
    %5446 = vmatmul.f32.gmra.mxu0 %v5148
    %v5447 = vpop.f32.mrf.mxu0
    %v5448 = vadd.f32 0.0, %v5447
    %5449 = vdwg.mxu0
    %5450 = vmatpush.msra.mxu0 0.0
    %5451 = vmatpush.msra.mxu0 0.0
    %5452 = vmatpush.msra.mxu0 0.0
    %5453 = vmatpush.msra.mxu0 0.0
    %5454 = vmatpush.msra.mxu0 0.0
    %5455 = vmatpush.msra.mxu0 0.0
    %5456 = vmatpush.msra.mxu0 0.0
    %5457 = vmatpush.msra.mxu0 0.0
    %5458 = vmatpush.msra.mxu0 %v1006
    %5459 = vmatpush.msra.mxu0 %v990
    %5460 = vmatpush.msra.mxu0 %v974
    %5461 = vmatpush.msra.mxu0 %v958
    %5462 = vmatpush.msra.mxu0 %v942
    %5463 = vmatpush.msra.mxu0 %v926
    %5464 = vmatpush.msra.mxu0 %v910
    %5465 = vmatpush.msra.mxu0 %v894
    %5466 = vmatmul.f32.gmra.mxu0 %v5148
    %v5467 = vpop.f32.mrf.mxu0
    %v5468 = vadd.f32 0.0, %v5467
    %5469 = vdwg.mxu0
    %5470 = vrot.lane.b32.xlu0 %v873, 64
    %v5471 = vpop.permute.xlu0 %5470
    %v5472 = vsel %vm139, %v5471, 0
    %5474 = vmatpush.msra.mxu0 0.0
    %5475 = vmatpush.msra.mxu0 0.0
    %5476 = vmatpush.msra.mxu0 0.0
    %5477 = vmatpush.msra.mxu0 0.0
    %5478 = vmatpush.msra.mxu0 0.0
    %5479 = vmatpush.msra.mxu0 0.0
    %5480 = vmatpush.msra.mxu0 0.0
    %5481 = vmatpush.msra.mxu0 0.0
    %5482 = vmatpush.msra.mxu0 0.0
    %5483 = vmatpush.msra.mxu0 0.0
    %5484 = vmatpush.msra.mxu0 0.0
    %5485 = vmatpush.msra.mxu0 0.0
    %5486 = vmatpush.msra.mxu0 %v1055
    %5487 = vmatpush.msra.mxu0 %v1039
    %5488 = vmatpush.msra.mxu0 %v1023
    %5489 = vmatpush.msra.mxu0 %v1007
    %5490 = vmatmul.f32.gmra.mxu0 %v5472
    %v5491 = vpop.f32.mrf.mxu0
    %v5492 = vadd.f32 0.0, %v5491
    %5493 = vdwg.mxu0
    %5494 = vmatpush.msra.mxu0 0.0
    %5495 = vmatpush.msra.mxu0 0.0
    %5496 = vmatpush.msra.mxu0 0.0
    %5497 = vmatpush.msra.mxu0 0.0
    %5498 = vmatpush.msra.mxu0 0.0
    %5499 = vmatpush.msra.mxu0 0.0
    %5500 = vmatpush.msra.mxu0 0.0
    %5501 = vmatpush.msra.mxu0 0.0
    %5502 = vmatpush.msra.mxu0 0.0
    %5503 = vmatpush.msra.mxu0 0.0
    %5504 = vmatpush.msra.mxu0 0.0
    %5505 = vmatpush.msra.mxu0 0.0
    %5506 = vmatpush.msra.mxu0 %v1056
    %5507 = vmatpush.msra.mxu0 %v1040
    %5508 = vmatpush.msra.mxu0 %v1024
    %5509 = vmatpush.msra.mxu0 %v1008
    %5510 = vmatmul.f32.gmra.mxu0 %v5472
    %v5511 = vpop.f32.mrf.mxu0
    %v5512 = vadd.f32 0.0, %v5511
    %5513 = vdwg.mxu0
    %5514 = vmatpush.msra.mxu0 0.0
    %5515 = vmatpush.msra.mxu0 0.0
    %5516 = vmatpush.msra.mxu0 0.0
    %5517 = vmatpush.msra.mxu0 0.0
    %5518 = vmatpush.msra.mxu0 0.0
    %5519 = vmatpush.msra.mxu0 0.0
    %5520 = vmatpush.msra.mxu0 0.0
    %5521 = vmatpush.msra.mxu0 0.0
    %5522 = vmatpush.msra.mxu0 0.0
    %5523 = vmatpush.msra.mxu0 0.0
    %5524 = vmatpush.msra.mxu0 0.0
    %5525 = vmatpush.msra.mxu0 0.0
    %5526 = vmatpush.msra.mxu0 %v1057
    %5527 = vmatpush.msra.mxu0 %v1041
    %5528 = vmatpush.msra.mxu0 %v1025
    %5529 = vmatpush.msra.mxu0 %v1009
    %5530 = vmatmul.f32.gmra.mxu0 %v5472
    %v5531 = vpop.f32.mrf.mxu0
    %v5532 = vadd.f32 0.0, %v5531
    %5533 = vdwg.mxu0
    %5534 = vmatpush.msra.mxu0 0.0
    %5535 = vmatpush.msra.mxu0 0.0
    %5536 = vmatpush.msra.mxu0 0.0
    %5537 = vmatpush.msra.mxu0 0.0
    %5538 = vmatpush.msra.mxu0 0.0
    %5539 = vmatpush.msra.mxu0 0.0
    %5540 = vmatpush.msra.mxu0 0.0
    %5541 = vmatpush.msra.mxu0 0.0
    %5542 = vmatpush.msra.mxu0 0.0
    %5543 = vmatpush.msra.mxu0 0.0
    %5544 = vmatpush.msra.mxu0 0.0
    %5545 = vmatpush.msra.mxu0 0.0
    %5546 = vmatpush.msra.mxu0 %v1058
    %5547 = vmatpush.msra.mxu0 %v1042
    %5548 = vmatpush.msra.mxu0 %v1026
    %5549 = vmatpush.msra.mxu0 %v1010
    %5550 = vmatmul.f32.gmra.mxu0 %v5472
    %v5551 = vpop.f32.mrf.mxu0
    %v5552 = vadd.f32 0.0, %v5551
    %5553 = vdwg.mxu0
    %5554 = vmatpush.msra.mxu0 0.0
    %5555 = vmatpush.msra.mxu0 0.0
    %5556 = vmatpush.msra.mxu0 0.0
    %5557 = vmatpush.msra.mxu0 0.0
    %5558 = vmatpush.msra.mxu0 0.0
    %5559 = vmatpush.msra.mxu0 0.0
    %5560 = vmatpush.msra.mxu0 0.0
    %5561 = vmatpush.msra.mxu0 0.0
    %5562 = vmatpush.msra.mxu0 0.0
    %5563 = vmatpush.msra.mxu0 0.0
    %5564 = vmatpush.msra.mxu0 0.0
    %5565 = vmatpush.msra.mxu0 0.0
    %5566 = vmatpush.msra.mxu0 %v1059
    %5567 = vmatpush.msra.mxu0 %v1043
    %5568 = vmatpush.msra.mxu0 %v1027
    %5569 = vmatpush.msra.mxu0 %v1011
    %5570 = vmatmul.f32.gmra.mxu0 %v5472
    %v5571 = vpop.f32.mrf.mxu0
    %v5572 = vadd.f32 0.0, %v5571
    %5573 = vdwg.mxu0
    %5574 = vmatpush.msra.mxu0 0.0
    %5575 = vmatpush.msra.mxu0 0.0
    %5576 = vmatpush.msra.mxu0 0.0
    %5577 = vmatpush.msra.mxu0 0.0
    %5578 = vmatpush.msra.mxu0 0.0
    %5579 = vmatpush.msra.mxu0 0.0
    %5580 = vmatpush.msra.mxu0 0.0
    %5581 = vmatpush.msra.mxu0 0.0
    %5582 = vmatpush.msra.mxu0 0.0
    %5583 = vmatpush.msra.mxu0 0.0
    %5584 = vmatpush.msra.mxu0 0.0
    %5585 = vmatpush.msra.mxu0 0.0
    %5586 = vmatpush.msra.mxu0 %v1060
    %5587 = vmatpush.msra.mxu0 %v1044
    %5588 = vmatpush.msra.mxu0 %v1028
    %5589 = vmatpush.msra.mxu0 %v1012
    %5590 = vmatmul.f32.gmra.mxu0 %v5472
    %v5591 = vpop.f32.mrf.mxu0
    %v5592 = vadd.f32 0.0, %v5591
    %5593 = vdwg.mxu0
    %5594 = vmatpush.msra.mxu0 0.0
    %5595 = vmatpush.msra.mxu0 0.0
    %5596 = vmatpush.msra.mxu0 0.0
    %5597 = vmatpush.msra.mxu0 0.0
    %5598 = vmatpush.msra.mxu0 0.0
    %5599 = vmatpush.msra.mxu0 0.0
    %5600 = vmatpush.msra.mxu0 0.0
    %5601 = vmatpush.msra.mxu0 0.0
    %5602 = vmatpush.msra.mxu0 0.0
    %5603 = vmatpush.msra.mxu0 0.0
    %5604 = vmatpush.msra.mxu0 0.0
    %5605 = vmatpush.msra.mxu0 0.0
    %5606 = vmatpush.msra.mxu0 %v1061
    %5607 = vmatpush.msra.mxu0 %v1045
    %5608 = vmatpush.msra.mxu0 %v1029
    %5609 = vmatpush.msra.mxu0 %v1013
    %5610 = vmatmul.f32.gmra.mxu0 %v5472
    %v5611 = vpop.f32.mrf.mxu0
    %v5612 = vadd.f32 0.0, %v5611
    %5613 = vdwg.mxu0
    %5614 = vmatpush.msra.mxu0 0.0
    %5615 = vmatpush.msra.mxu0 0.0
    %5616 = vmatpush.msra.mxu0 0.0
    %5617 = vmatpush.msra.mxu0 0.0
    %5618 = vmatpush.msra.mxu0 0.0
    %5619 = vmatpush.msra.mxu0 0.0
    %5620 = vmatpush.msra.mxu0 0.0
    %5621 = vmatpush.msra.mxu0 0.0
    %5622 = vmatpush.msra.mxu0 0.0
    %5623 = vmatpush.msra.mxu0 0.0
    %5624 = vmatpush.msra.mxu0 0.0
    %5625 = vmatpush.msra.mxu0 0.0
    %5626 = vmatpush.msra.mxu0 %v1062
    %5627 = vmatpush.msra.mxu0 %v1046
    %5628 = vmatpush.msra.mxu0 %v1030
    %5629 = vmatpush.msra.mxu0 %v1014
    %5630 = vmatmul.f32.gmra.mxu0 %v5472
    %v5631 = vpop.f32.mrf.mxu0
    %v5632 = vadd.f32 0.0, %v5631
    %5633 = vdwg.mxu0
    %5634 = vmatpush.msra.mxu0 0.0
    %5635 = vmatpush.msra.mxu0 0.0
    %5636 = vmatpush.msra.mxu0 0.0
    %5637 = vmatpush.msra.mxu0 0.0
    %5638 = vmatpush.msra.mxu0 0.0
    %5639 = vmatpush.msra.mxu0 0.0
    %5640 = vmatpush.msra.mxu0 0.0
    %5641 = vmatpush.msra.mxu0 0.0
    %5642 = vmatpush.msra.mxu0 0.0
    %5643 = vmatpush.msra.mxu0 0.0
    %5644 = vmatpush.msra.mxu0 0.0
    %5645 = vmatpush.msra.mxu0 0.0
    %5646 = vmatpush.msra.mxu0 %v1063
    %5647 = vmatpush.msra.mxu0 %v1047
    %5648 = vmatpush.msra.mxu0 %v1031
    %5649 = vmatpush.msra.mxu0 %v1015
    %5650 = vmatmul.f32.gmra.mxu0 %v5472
    %v5651 = vpop.f32.mrf.mxu0
    %v5652 = vadd.f32 0.0, %v5651
    %5653 = vdwg.mxu0
    %5654 = vmatpush.msra.mxu0 0.0
    %5655 = vmatpush.msra.mxu0 0.0
    %5656 = vmatpush.msra.mxu0 0.0
    %5657 = vmatpush.msra.mxu0 0.0
    %5658 = vmatpush.msra.mxu0 0.0
    %5659 = vmatpush.msra.mxu0 0.0
    %5660 = vmatpush.msra.mxu0 0.0
    %5661 = vmatpush.msra.mxu0 0.0
    %5662 = vmatpush.msra.mxu0 0.0
    %5663 = vmatpush.msra.mxu0 0.0
    %5664 = vmatpush.msra.mxu0 0.0
    %5665 = vmatpush.msra.mxu0 0.0
    %5666 = vmatpush.msra.mxu0 %v1064
    %5667 = vmatpush.msra.mxu0 %v1048
    %5668 = vmatpush.msra.mxu0 %v1032
    %5669 = vmatpush.msra.mxu0 %v1016
    %5670 = vmatmul.f32.gmra.mxu0 %v5472
    %v5671 = vpop.f32.mrf.mxu0
    %v5672 = vadd.f32 0.0, %v5671
    %5673 = vdwg.mxu0
    %5674 = vmatpush.msra.mxu0 0.0
    %5675 = vmatpush.msra.mxu0 0.0
    %5676 = vmatpush.msra.mxu0 0.0
    %5677 = vmatpush.msra.mxu0 0.0
    %5678 = vmatpush.msra.mxu0 0.0
    %5679 = vmatpush.msra.mxu0 0.0
    %5680 = vmatpush.msra.mxu0 0.0
    %5681 = vmatpush.msra.mxu0 0.0
    %5682 = vmatpush.msra.mxu0 0.0
    %5683 = vmatpush.msra.mxu0 0.0
    %5684 = vmatpush.msra.mxu0 0.0
    %5685 = vmatpush.msra.mxu0 0.0
    %5686 = vmatpush.msra.mxu0 %v1065
    %5687 = vmatpush.msra.mxu0 %v1049
    %5688 = vmatpush.msra.mxu0 %v1033
    %5689 = vmatpush.msra.mxu0 %v1017
    %5690 = vmatmul.f32.gmra.mxu0 %v5472
    %v5691 = vpop.f32.mrf.mxu0
    %v5692 = vadd.f32 0.0, %v5691
    %5693 = vdwg.mxu0
    %5694 = vmatpush.msra.mxu0 0.0
    %5695 = vmatpush.msra.mxu0 0.0
    %5696 = vmatpush.msra.mxu0 0.0
    %5697 = vmatpush.msra.mxu0 0.0
    %5698 = vmatpush.msra.mxu0 0.0
    %5699 = vmatpush.msra.mxu0 0.0
    %5700 = vmatpush.msra.mxu0 0.0
    %5701 = vmatpush.msra.mxu0 0.0
    %5702 = vmatpush.msra.mxu0 0.0
    %5703 = vmatpush.msra.mxu0 0.0
    %5704 = vmatpush.msra.mxu0 0.0
    %5705 = vmatpush.msra.mxu0 0.0
    %5706 = vmatpush.msra.mxu0 %v1066
    %5707 = vmatpush.msra.mxu0 %v1050
    %5708 = vmatpush.msra.mxu0 %v1034
    %5709 = vmatpush.msra.mxu0 %v1018
    %5710 = vmatmul.f32.gmra.mxu0 %v5472
    %v5711 = vpop.f32.mrf.mxu0
    %v5712 = vadd.f32 0.0, %v5711
    %5713 = vdwg.mxu0
    %5714 = vmatpush.msra.mxu0 0.0
    %5715 = vmatpush.msra.mxu0 0.0
    %5716 = vmatpush.msra.mxu0 0.0
    %5717 = vmatpush.msra.mxu0 0.0
    %5718 = vmatpush.msra.mxu0 0.0
    %5719 = vmatpush.msra.mxu0 0.0
    %5720 = vmatpush.msra.mxu0 0.0
    %5721 = vmatpush.msra.mxu0 0.0
    %5722 = vmatpush.msra.mxu0 0.0
    %5723 = vmatpush.msra.mxu0 0.0
    %5724 = vmatpush.msra.mxu0 0.0
    %5725 = vmatpush.msra.mxu0 0.0
    %5726 = vmatpush.msra.mxu0 %v1067
    %5727 = vmatpush.msra.mxu0 %v1051
    %5728 = vmatpush.msra.mxu0 %v1035
    %5729 = vmatpush.msra.mxu0 %v1019
    %5730 = vmatmul.f32.gmra.mxu0 %v5472
    %v5731 = vpop.f32.mrf.mxu0
    %v5732 = vadd.f32 0.0, %v5731
    %5733 = vdwg.mxu0
    %5734 = vmatpush.msra.mxu0 0.0
    %5735 = vmatpush.msra.mxu0 0.0
    %5736 = vmatpush.msra.mxu0 0.0
    %5737 = vmatpush.msra.mxu0 0.0
    %5738 = vmatpush.msra.mxu0 0.0
    %5739 = vmatpush.msra.mxu0 0.0
    %5740 = vmatpush.msra.mxu0 0.0
    %5741 = vmatpush.msra.mxu0 0.0
    %5742 = vmatpush.msra.mxu0 0.0
    %5743 = vmatpush.msra.mxu0 0.0
    %5744 = vmatpush.msra.mxu0 0.0
    %5745 = vmatpush.msra.mxu0 0.0
    %5746 = vmatpush.msra.mxu0 %v1068
    %5747 = vmatpush.msra.mxu0 %v1052
    %5748 = vmatpush.msra.mxu0 %v1036
    %5749 = vmatpush.msra.mxu0 %v1020
    %5750 = vmatmul.f32.gmra.mxu0 %v5472
    %v5751 = vpop.f32.mrf.mxu0
    %v5752 = vadd.f32 0.0, %v5751
    %5753 = vdwg.mxu0
    %5754 = vmatpush.msra.mxu0 0.0
    %5755 = vmatpush.msra.mxu0 0.0
    %5756 = vmatpush.msra.mxu0 0.0
    %5757 = vmatpush.msra.mxu0 0.0
    %5758 = vmatpush.msra.mxu0 0.0
    %5759 = vmatpush.msra.mxu0 0.0
    %5760 = vmatpush.msra.mxu0 0.0
    %5761 = vmatpush.msra.mxu0 0.0
    %5762 = vmatpush.msra.mxu0 0.0
    %5763 = vmatpush.msra.mxu0 0.0
    %5764 = vmatpush.msra.mxu0 0.0
    %5765 = vmatpush.msra.mxu0 0.0
    %5766 = vmatpush.msra.mxu0 %v1069
    %5767 = vmatpush.msra.mxu0 %v1053
    %5768 = vmatpush.msra.mxu0 %v1037
    %5769 = vmatpush.msra.mxu0 %v1021
    %5770 = vmatmul.f32.gmra.mxu0 %v5472
    %v5771 = vpop.f32.mrf.mxu0
    %v5772 = vadd.f32 0.0, %v5771
    %5773 = vdwg.mxu0
    %5774 = vmatpush.msra.mxu0 0.0
    %5775 = vmatpush.msra.mxu0 0.0
    %5776 = vmatpush.msra.mxu0 0.0
    %5777 = vmatpush.msra.mxu0 0.0
    %5778 = vmatpush.msra.mxu0 0.0
    %5779 = vmatpush.msra.mxu0 0.0
    %5780 = vmatpush.msra.mxu0 0.0
    %5781 = vmatpush.msra.mxu0 0.0
    %5782 = vmatpush.msra.mxu0 0.0
    %5783 = vmatpush.msra.mxu0 0.0
    %5784 = vmatpush.msra.mxu0 0.0
    %5785 = vmatpush.msra.mxu0 0.0
    %5786 = vmatpush.msra.mxu0 %v1070
    %5787 = vmatpush.msra.mxu0 %v1054
    %5788 = vmatpush.msra.mxu0 %v1038
    %5789 = vmatpush.msra.mxu0 %v1022
    %5790 = vmatmul.f32.gmra.mxu0 %v5472
    %v5791 = vpop.f32.mrf.mxu0
    %v5792 = vadd.f32 0.0, %v5791
    %5793 = vdwg.mxu0
    %v5794 = vmul.f32 %v5168, %v5492
    %v5795 = vmul.f32 %v5188, %v5512
    %v5796 = vmul.f32 %v5208, %v5532
    %v5797 = vmul.f32 %v5228, %v5552
    %v5798 = vmul.f32 %v5248, %v5572
    %v5799 = vmul.f32 %v5268, %v5592
    %v5800 = vmul.f32 %v5288, %v5612
    %v5801 = vmul.f32 %v5308, %v5632
    %v5802 = vmul.f32 %v5328, %v5652
    %v5803 = vmul.f32 %v5348, %v5672
    %v5804 = vmul.f32 %v5368, %v5692
    %v5805 = vmul.f32 %v5388, %v5712
    %v5806 = vmul.f32 %v5408, %v5732
    %v5807 = vmul.f32 %v5428, %v5752
    %v5808 = vmul.f32 %v5448, %v5772
    %v5809 = vmul.f32 %v5468, %v5792
    %v5810 = vadd.f32 %v5131, %v5794
    %v5811 = vadd.f32 %v5132, %v5795
    %v5812 = vadd.f32 %v5133, %v5796
    %v5813 = vadd.f32 %v5134, %v5797
    %v5814 = vadd.f32 %v5135, %v5798
    %v5815 = vadd.f32 %v5136, %v5799
    %v5816 = vadd.f32 %v5137, %v5800
    %v5817 = vadd.f32 %v5138, %v5801
    %v5818 = vadd.f32 %v5139, %v5802
    %v5819 = vadd.f32 %v5140, %v5803
    %v5820 = vadd.f32 %v5141, %v5804
    %v5821 = vadd.f32 %v5142, %v5805
    %v5822 = vadd.f32 %v5143, %v5806
    %v5823 = vadd.f32 %v5144, %v5807
    %v5824 = vadd.f32 %v5145, %v5808
    %v5825 = vadd.f32 %v5146, %v5809
    %5826 = vrot.lane.b32.xlu0 %v793, 64
    %v5827 = vpop.permute.xlu0 %5826
    %v5828 = vsel %vm1071, %v5827, 0
    %5830 = vmatpush.msra.mxu0 0.0
    %5831 = vmatpush.msra.mxu0 0.0
    %5832 = vmatpush.msra.mxu0 0.0
    %5833 = vmatpush.msra.mxu0 0.0
    %5834 = vmatpush.msra.mxu0 0.0
    %5835 = vmatpush.msra.mxu0 0.0
    %5836 = vmatpush.msra.mxu0 0.0
    %5837 = vmatpush.msra.mxu0 0.0
    %5838 = vmatpush.msra.mxu0 %v991
    %5839 = vmatpush.msra.mxu0 %v975
    %5840 = vmatpush.msra.mxu0 %v959
    %5841 = vmatpush.msra.mxu0 %v943
    %5842 = vmatpush.msra.mxu0 %v927
    %5843 = vmatpush.msra.mxu0 %v911
    %5844 = vmatpush.msra.mxu0 %v895
    %5845 = vmatpush.msra.mxu0 %v879
    %5846 = vmatmul.f32.gmra.mxu0 %v5828
    %v5847 = vpop.f32.mrf.mxu0
    %v5848 = vadd.f32 0.0, %v5847
    %5849 = vdwg.mxu0
    %5850 = vmatpush.msra.mxu0 0.0
    %5851 = vmatpush.msra.mxu0 0.0
    %5852 = vmatpush.msra.mxu0 0.0
    %5853 = vmatpush.msra.mxu0 0.0
    %5854 = vmatpush.msra.mxu0 0.0
    %5855 = vmatpush.msra.mxu0 0.0
    %5856 = vmatpush.msra.mxu0 0.0
    %5857 = vmatpush.msra.mxu0 0.0
    %5858 = vmatpush.msra.mxu0 %v992
    %5859 = vmatpush.msra.mxu0 %v976
    %5860 = vmatpush.msra.mxu0 %v960
    %5861 = vmatpush.msra.mxu0 %v944
    %5862 = vmatpush.msra.mxu0 %v928
    %5863 = vmatpush.msra.mxu0 %v912
    %5864 = vmatpush.msra.mxu0 %v896
    %5865 = vmatpush.msra.mxu0 %v880
    %5866 = vmatmul.f32.gmra.mxu0 %v5828
    %v5867 = vpop.f32.mrf.mxu0
    %v5868 = vadd.f32 0.0, %v5867
    %5869 = vdwg.mxu0
    %5870 = vmatpush.msra.mxu0 0.0
    %5871 = vmatpush.msra.mxu0 0.0
    %5872 = vmatpush.msra.mxu0 0.0
    %5873 = vmatpush.msra.mxu0 0.0
    %5874 = vmatpush.msra.mxu0 0.0
    %5875 = vmatpush.msra.mxu0 0.0
    %5876 = vmatpush.msra.mxu0 0.0
    %5877 = vmatpush.msra.mxu0 0.0
    %5878 = vmatpush.msra.mxu0 %v993
    %5879 = vmatpush.msra.mxu0 %v977
    %5880 = vmatpush.msra.mxu0 %v961
    %5881 = vmatpush.msra.mxu0 %v945
    %5882 = vmatpush.msra.mxu0 %v929
    %5883 = vmatpush.msra.mxu0 %v913
    %5884 = vmatpush.msra.mxu0 %v897
    %5885 = vmatpush.msra.mxu0 %v881
    %5886 = vmatmul.f32.gmra.mxu0 %v5828
    %v5887 = vpop.f32.mrf.mxu0
    %v5888 = vadd.f32 0.0, %v5887
    %5889 = vdwg.mxu0
    %5890 = vmatpush.msra.mxu0 0.0
    %5891 = vmatpush.msra.mxu0 0.0
    %5892 = vmatpush.msra.mxu0 0.0
    %5893 = vmatpush.msra.mxu0 0.0
    %5894 = vmatpush.msra.mxu0 0.0
    %5895 = vmatpush.msra.mxu0 0.0
    %5896 = vmatpush.msra.mxu0 0.0
    %5897 = vmatpush.msra.mxu0 0.0
    %5898 = vmatpush.msra.mxu0 %v994
    %5899 = vmatpush.msra.mxu0 %v978
    %5900 = vmatpush.msra.mxu0 %v962
    %5901 = vmatpush.msra.mxu0 %v946
    %5902 = vmatpush.msra.mxu0 %v930
    %5903 = vmatpush.msra.mxu0 %v914
    %5904 = vmatpush.msra.mxu0 %v898
    %5905 = vmatpush.msra.mxu0 %v882
    %5906 = vmatmul.f32.gmra.mxu0 %v5828
    %v5907 = vpop.f32.mrf.mxu0
    %v5908 = vadd.f32 0.0, %v5907
    %5909 = vdwg.mxu0
    %5910 = vmatpush.msra.mxu0 0.0
    %5911 = vmatpush.msra.mxu0 0.0
    %5912 = vmatpush.msra.mxu0 0.0
    %5913 = vmatpush.msra.mxu0 0.0
    %5914 = vmatpush.msra.mxu0 0.0
    %5915 = vmatpush.msra.mxu0 0.0
    %5916 = vmatpush.msra.mxu0 0.0
    %5917 = vmatpush.msra.mxu0 0.0
    %5918 = vmatpush.msra.mxu0 %v995
    %5919 = vmatpush.msra.mxu0 %v979
    %5920 = vmatpush.msra.mxu0 %v963
    %5921 = vmatpush.msra.mxu0 %v947
    %5922 = vmatpush.msra.mxu0 %v931
    %5923 = vmatpush.msra.mxu0 %v915
    %5924 = vmatpush.msra.mxu0 %v899
    %5925 = vmatpush.msra.mxu0 %v883
    %5926 = vmatmul.f32.gmra.mxu0 %v5828
    %v5927 = vpop.f32.mrf.mxu0
    %v5928 = vadd.f32 0.0, %v5927
    %5929 = vdwg.mxu0
    %5930 = vmatpush.msra.mxu0 0.0
    %5931 = vmatpush.msra.mxu0 0.0
    %5932 = vmatpush.msra.mxu0 0.0
    %5933 = vmatpush.msra.mxu0 0.0
    %5934 = vmatpush.msra.mxu0 0.0
    %5935 = vmatpush.msra.mxu0 0.0
    %5936 = vmatpush.msra.mxu0 0.0
    %5937 = vmatpush.msra.mxu0 0.0
    %5938 = vmatpush.msra.mxu0 %v996
    %5939 = vmatpush.msra.mxu0 %v980
    %5940 = vmatpush.msra.mxu0 %v964
    %5941 = vmatpush.msra.mxu0 %v948
    %5942 = vmatpush.msra.mxu0 %v932
    %5943 = vmatpush.msra.mxu0 %v916
    %5944 = vmatpush.msra.mxu0 %v900
    %5945 = vmatpush.msra.mxu0 %v884
    %5946 = vmatmul.f32.gmra.mxu0 %v5828
    %v5947 = vpop.f32.mrf.mxu0
    %v5948 = vadd.f32 0.0, %v5947
    %5949 = vdwg.mxu0
    %5950 = vmatpush.msra.mxu0 0.0
    %5951 = vmatpush.msra.mxu0 0.0
    %5952 = vmatpush.msra.mxu0 0.0
    %5953 = vmatpush.msra.mxu0 0.0
    %5954 = vmatpush.msra.mxu0 0.0
    %5955 = vmatpush.msra.mxu0 0.0
    %5956 = vmatpush.msra.mxu0 0.0
    %5957 = vmatpush.msra.mxu0 0.0
    %5958 = vmatpush.msra.mxu0 %v997
    %5959 = vmatpush.msra.mxu0 %v981
    %5960 = vmatpush.msra.mxu0 %v965
    %5961 = vmatpush.msra.mxu0 %v949
    %5962 = vmatpush.msra.mxu0 %v933
    %5963 = vmatpush.msra.mxu0 %v917
    %5964 = vmatpush.msra.mxu0 %v901
    %5965 = vmatpush.msra.mxu0 %v885
    %5966 = vmatmul.f32.gmra.mxu0 %v5828
    %v5967 = vpop.f32.mrf.mxu0
    %v5968 = vadd.f32 0.0, %v5967
    %5969 = vdwg.mxu0
    %5970 = vmatpush.msra.mxu0 0.0
    %5971 = vmatpush.msra.mxu0 0.0
    %5972 = vmatpush.msra.mxu0 0.0
    %5973 = vmatpush.msra.mxu0 0.0
    %5974 = vmatpush.msra.mxu0 0.0
    %5975 = vmatpush.msra.mxu0 0.0
    %5976 = vmatpush.msra.mxu0 0.0
    %5977 = vmatpush.msra.mxu0 0.0
    %5978 = vmatpush.msra.mxu0 %v998
    %5979 = vmatpush.msra.mxu0 %v982
    %5980 = vmatpush.msra.mxu0 %v966
    %5981 = vmatpush.msra.mxu0 %v950
    %5982 = vmatpush.msra.mxu0 %v934
    %5983 = vmatpush.msra.mxu0 %v918
    %5984 = vmatpush.msra.mxu0 %v902
    %5985 = vmatpush.msra.mxu0 %v886
    %5986 = vmatmul.f32.gmra.mxu0 %v5828
    %v5987 = vpop.f32.mrf.mxu0
    %v5988 = vadd.f32 0.0, %v5987
    %5989 = vdwg.mxu0
    %5990 = vmatpush.msra.mxu0 0.0
    %5991 = vmatpush.msra.mxu0 0.0
    %5992 = vmatpush.msra.mxu0 0.0
    %5993 = vmatpush.msra.mxu0 0.0
    %5994 = vmatpush.msra.mxu0 0.0
    %5995 = vmatpush.msra.mxu0 0.0
    %5996 = vmatpush.msra.mxu0 0.0
    %5997 = vmatpush.msra.mxu0 0.0
    %5998 = vmatpush.msra.mxu0 %v999
    %5999 = vmatpush.msra.mxu0 %v983
    %6000 = vmatpush.msra.mxu0 %v967
    %6001 = vmatpush.msra.mxu0 %v951
    %6002 = vmatpush.msra.mxu0 %v935
    %6003 = vmatpush.msra.mxu0 %v919
    %6004 = vmatpush.msra.mxu0 %v903
    %6005 = vmatpush.msra.mxu0 %v887
    %6006 = vmatmul.f32.gmra.mxu0 %v5828
    %v6007 = vpop.f32.mrf.mxu0
    %v6008 = vadd.f32 0.0, %v6007
    %6009 = vdwg.mxu0
    %6010 = vmatpush.msra.mxu0 0.0
    %6011 = vmatpush.msra.mxu0 0.0
    %6012 = vmatpush.msra.mxu0 0.0
    %6013 = vmatpush.msra.mxu0 0.0
    %6014 = vmatpush.msra.mxu0 0.0
    %6015 = vmatpush.msra.mxu0 0.0
    %6016 = vmatpush.msra.mxu0 0.0
    %6017 = vmatpush.msra.mxu0 0.0
    %6018 = vmatpush.msra.mxu0 %v1000
    %6019 = vmatpush.msra.mxu0 %v984
    %6020 = vmatpush.msra.mxu0 %v968
    %6021 = vmatpush.msra.mxu0 %v952
    %6022 = vmatpush.msra.mxu0 %v936
    %6023 = vmatpush.msra.mxu0 %v920
    %6024 = vmatpush.msra.mxu0 %v904
    %6025 = vmatpush.msra.mxu0 %v888
    %6026 = vmatmul.f32.gmra.mxu0 %v5828
    %v6027 = vpop.f32.mrf.mxu0
    %v6028 = vadd.f32 0.0, %v6027
    %6029 = vdwg.mxu0
    %6030 = vmatpush.msra.mxu0 0.0
    %6031 = vmatpush.msra.mxu0 0.0
    %6032 = vmatpush.msra.mxu0 0.0
    %6033 = vmatpush.msra.mxu0 0.0
    %6034 = vmatpush.msra.mxu0 0.0
    %6035 = vmatpush.msra.mxu0 0.0
    %6036 = vmatpush.msra.mxu0 0.0
    %6037 = vmatpush.msra.mxu0 0.0
    %6038 = vmatpush.msra.mxu0 %v1001
    %6039 = vmatpush.msra.mxu0 %v985
    %6040 = vmatpush.msra.mxu0 %v969
    %6041 = vmatpush.msra.mxu0 %v953
    %6042 = vmatpush.msra.mxu0 %v937
    %6043 = vmatpush.msra.mxu0 %v921
    %6044 = vmatpush.msra.mxu0 %v905
    %6045 = vmatpush.msra.mxu0 %v889
    %6046 = vmatmul.f32.gmra.mxu0 %v5828
    %v6047 = vpop.f32.mrf.mxu0
    %v6048 = vadd.f32 0.0, %v6047
    %6049 = vdwg.mxu0
    %6050 = vmatpush.msra.mxu0 0.0
    %6051 = vmatpush.msra.mxu0 0.0
    %6052 = vmatpush.msra.mxu0 0.0
    %6053 = vmatpush.msra.mxu0 0.0
    %6054 = vmatpush.msra.mxu0 0.0
    %6055 = vmatpush.msra.mxu0 0.0
    %6056 = vmatpush.msra.mxu0 0.0
    %6057 = vmatpush.msra.mxu0 0.0
    %6058 = vmatpush.msra.mxu0 %v1002
    %6059 = vmatpush.msra.mxu0 %v986
    %6060 = vmatpush.msra.mxu0 %v970
    %6061 = vmatpush.msra.mxu0 %v954
    %6062 = vmatpush.msra.mxu0 %v938
    %6063 = vmatpush.msra.mxu0 %v922
    %6064 = vmatpush.msra.mxu0 %v906
    %6065 = vmatpush.msra.mxu0 %v890
    %6066 = vmatmul.f32.gmra.mxu0 %v5828
    %v6067 = vpop.f32.mrf.mxu0
    %v6068 = vadd.f32 0.0, %v6067
    %6069 = vdwg.mxu0
    %6070 = vmatpush.msra.mxu0 0.0
    %6071 = vmatpush.msra.mxu0 0.0
    %6072 = vmatpush.msra.mxu0 0.0
    %6073 = vmatpush.msra.mxu0 0.0
    %6074 = vmatpush.msra.mxu0 0.0
    %6075 = vmatpush.msra.mxu0 0.0
    %6076 = vmatpush.msra.mxu0 0.0
    %6077 = vmatpush.msra.mxu0 0.0
    %6078 = vmatpush.msra.mxu0 %v1003
    %6079 = vmatpush.msra.mxu0 %v987
    %6080 = vmatpush.msra.mxu0 %v971
    %6081 = vmatpush.msra.mxu0 %v955
    %6082 = vmatpush.msra.mxu0 %v939
    %6083 = vmatpush.msra.mxu0 %v923
    %6084 = vmatpush.msra.mxu0 %v907
    %6085 = vmatpush.msra.mxu0 %v891
    %6086 = vmatmul.f32.gmra.mxu0 %v5828
    %v6087 = vpop.f32.mrf.mxu0
    %v6088 = vadd.f32 0.0, %v6087
    %6089 = vdwg.mxu0
    %6090 = vmatpush.msra.mxu0 0.0
    %6091 = vmatpush.msra.mxu0 0.0
    %6092 = vmatpush.msra.mxu0 0.0
    %6093 = vmatpush.msra.mxu0 0.0
    %6094 = vmatpush.msra.mxu0 0.0
    %6095 = vmatpush.msra.mxu0 0.0
    %6096 = vmatpush.msra.mxu0 0.0
    %6097 = vmatpush.msra.mxu0 0.0
    %6098 = vmatpush.msra.mxu0 %v1004
    %6099 = vmatpush.msra.mxu0 %v988
    %6100 = vmatpush.msra.mxu0 %v972
    %6101 = vmatpush.msra.mxu0 %v956
    %6102 = vmatpush.msra.mxu0 %v940
    %6103 = vmatpush.msra.mxu0 %v924
    %6104 = vmatpush.msra.mxu0 %v908
    %6105 = vmatpush.msra.mxu0 %v892
    %6106 = vmatmul.f32.gmra.mxu0 %v5828
    %v6107 = vpop.f32.mrf.mxu0
    %v6108 = vadd.f32 0.0, %v6107
    %6109 = vdwg.mxu0
    %6110 = vmatpush.msra.mxu0 0.0
    %6111 = vmatpush.msra.mxu0 0.0
    %6112 = vmatpush.msra.mxu0 0.0
    %6113 = vmatpush.msra.mxu0 0.0
    %6114 = vmatpush.msra.mxu0 0.0
    %6115 = vmatpush.msra.mxu0 0.0
    %6116 = vmatpush.msra.mxu0 0.0
    %6117 = vmatpush.msra.mxu0 0.0
    %6118 = vmatpush.msra.mxu0 %v1005
    %6119 = vmatpush.msra.mxu0 %v989
    %6120 = vmatpush.msra.mxu0 %v973
    %6121 = vmatpush.msra.mxu0 %v957
    %6122 = vmatpush.msra.mxu0 %v941
    %6123 = vmatpush.msra.mxu0 %v925
    %6124 = vmatpush.msra.mxu0 %v909
    %6125 = vmatpush.msra.mxu0 %v893
    %6126 = vmatmul.f32.gmra.mxu0 %v5828
    %v6127 = vpop.f32.mrf.mxu0
    %v6128 = vadd.f32 0.0, %v6127
    %6129 = vdwg.mxu0
    %6130 = vmatpush.msra.mxu0 0.0
    %6131 = vmatpush.msra.mxu0 0.0
    %6132 = vmatpush.msra.mxu0 0.0
    %6133 = vmatpush.msra.mxu0 0.0
    %6134 = vmatpush.msra.mxu0 0.0
    %6135 = vmatpush.msra.mxu0 0.0
    %6136 = vmatpush.msra.mxu0 0.0
    %6137 = vmatpush.msra.mxu0 0.0
    %6138 = vmatpush.msra.mxu0 %v1006
    %6139 = vmatpush.msra.mxu0 %v990
    %6140 = vmatpush.msra.mxu0 %v974
    %6141 = vmatpush.msra.mxu0 %v958
    %6142 = vmatpush.msra.mxu0 %v942
    %6143 = vmatpush.msra.mxu0 %v926
    %6144 = vmatpush.msra.mxu0 %v910
    %6145 = vmatpush.msra.mxu0 %v894
    %6146 = vmatmul.f32.gmra.mxu0 %v5828
    %v6147 = vpop.f32.mrf.mxu0
    %v6148 = vadd.f32 0.0, %v6147
    %6149 = vdwg.mxu0
    %6150 = vrot.lane.b32.xlu0 %v873, 32
    %v6151 = vpop.permute.xlu0 %6150
    %v6152 = vsel %vm139, %v6151, 0
    %6154 = vmatpush.msra.mxu0 0.0
    %6155 = vmatpush.msra.mxu0 0.0
    %6156 = vmatpush.msra.mxu0 0.0
    %6157 = vmatpush.msra.mxu0 0.0
    %6158 = vmatpush.msra.mxu0 0.0
    %6159 = vmatpush.msra.mxu0 0.0
    %6160 = vmatpush.msra.mxu0 0.0
    %6161 = vmatpush.msra.mxu0 0.0
    %6162 = vmatpush.msra.mxu0 0.0
    %6163 = vmatpush.msra.mxu0 0.0
    %6164 = vmatpush.msra.mxu0 0.0
    %6165 = vmatpush.msra.mxu0 0.0
    %6166 = vmatpush.msra.mxu0 %v1055
    %6167 = vmatpush.msra.mxu0 %v1039
    %6168 = vmatpush.msra.mxu0 %v1023
    %6169 = vmatpush.msra.mxu0 %v1007
    %6170 = vmatmul.f32.gmra.mxu0 %v6152
    %v6171 = vpop.f32.mrf.mxu0
    %v6172 = vadd.f32 0.0, %v6171
    %6173 = vdwg.mxu0
    %6174 = vmatpush.msra.mxu0 0.0
    %6175 = vmatpush.msra.mxu0 0.0
    %6176 = vmatpush.msra.mxu0 0.0
    %6177 = vmatpush.msra.mxu0 0.0
    %6178 = vmatpush.msra.mxu0 0.0
    %6179 = vmatpush.msra.mxu0 0.0
    %6180 = vmatpush.msra.mxu0 0.0
    %6181 = vmatpush.msra.mxu0 0.0
    %6182 = vmatpush.msra.mxu0 0.0
    %6183 = vmatpush.msra.mxu0 0.0
    %6184 = vmatpush.msra.mxu0 0.0
    %6185 = vmatpush.msra.mxu0 0.0
    %6186 = vmatpush.msra.mxu0 %v1056
    %6187 = vmatpush.msra.mxu0 %v1040
    %6188 = vmatpush.msra.mxu0 %v1024
    %6189 = vmatpush.msra.mxu0 %v1008
    %6190 = vmatmul.f32.gmra.mxu0 %v6152
    %v6191 = vpop.f32.mrf.mxu0
    %v6192 = vadd.f32 0.0, %v6191
    %6193 = vdwg.mxu0
    %6194 = vmatpush.msra.mxu0 0.0
    %6195 = vmatpush.msra.mxu0 0.0
    %6196 = vmatpush.msra.mxu0 0.0
    %6197 = vmatpush.msra.mxu0 0.0
    %6198 = vmatpush.msra.mxu0 0.0
    %6199 = vmatpush.msra.mxu0 0.0
    %6200 = vmatpush.msra.mxu0 0.0
    %6201 = vmatpush.msra.mxu0 0.0
    %6202 = vmatpush.msra.mxu0 0.0
    %6203 = vmatpush.msra.mxu0 0.0
    %6204 = vmatpush.msra.mxu0 0.0
    %6205 = vmatpush.msra.mxu0 0.0
    %6206 = vmatpush.msra.mxu0 %v1057
    %6207 = vmatpush.msra.mxu0 %v1041
    %6208 = vmatpush.msra.mxu0 %v1025
    %6209 = vmatpush.msra.mxu0 %v1009
    %6210 = vmatmul.f32.gmra.mxu0 %v6152
    %v6211 = vpop.f32.mrf.mxu0
    %v6212 = vadd.f32 0.0, %v6211
    %6213 = vdwg.mxu0
    %6214 = vmatpush.msra.mxu0 0.0
    %6215 = vmatpush.msra.mxu0 0.0
    %6216 = vmatpush.msra.mxu0 0.0
    %6217 = vmatpush.msra.mxu0 0.0
    %6218 = vmatpush.msra.mxu0 0.0
    %6219 = vmatpush.msra.mxu0 0.0
    %6220 = vmatpush.msra.mxu0 0.0
    %6221 = vmatpush.msra.mxu0 0.0
    %6222 = vmatpush.msra.mxu0 0.0
    %6223 = vmatpush.msra.mxu0 0.0
    %6224 = vmatpush.msra.mxu0 0.0
    %6225 = vmatpush.msra.mxu0 0.0
    %6226 = vmatpush.msra.mxu0 %v1058
    %6227 = vmatpush.msra.mxu0 %v1042
    %6228 = vmatpush.msra.mxu0 %v1026
    %6229 = vmatpush.msra.mxu0 %v1010
    %6230 = vmatmul.f32.gmra.mxu0 %v6152
    %v6231 = vpop.f32.mrf.mxu0
    %v6232 = vadd.f32 0.0, %v6231
    %6233 = vdwg.mxu0
    %6234 = vmatpush.msra.mxu0 0.0
    %6235 = vmatpush.msra.mxu0 0.0
    %6236 = vmatpush.msra.mxu0 0.0
    %6237 = vmatpush.msra.mxu0 0.0
    %6238 = vmatpush.msra.mxu0 0.0
    %6239 = vmatpush.msra.mxu0 0.0
    %6240 = vmatpush.msra.mxu0 0.0
    %6241 = vmatpush.msra.mxu0 0.0
    %6242 = vmatpush.msra.mxu0 0.0
    %6243 = vmatpush.msra.mxu0 0.0
    %6244 = vmatpush.msra.mxu0 0.0
    %6245 = vmatpush.msra.mxu0 0.0
    %6246 = vmatpush.msra.mxu0 %v1059
    %6247 = vmatpush.msra.mxu0 %v1043
    %6248 = vmatpush.msra.mxu0 %v1027
    %6249 = vmatpush.msra.mxu0 %v1011
    %6250 = vmatmul.f32.gmra.mxu0 %v6152
    %v6251 = vpop.f32.mrf.mxu0
    %v6252 = vadd.f32 0.0, %v6251
    %6253 = vdwg.mxu0
    %6254 = vmatpush.msra.mxu0 0.0
    %6255 = vmatpush.msra.mxu0 0.0
    %6256 = vmatpush.msra.mxu0 0.0
    %6257 = vmatpush.msra.mxu0 0.0
    %6258 = vmatpush.msra.mxu0 0.0
    %6259 = vmatpush.msra.mxu0 0.0
    %6260 = vmatpush.msra.mxu0 0.0
    %6261 = vmatpush.msra.mxu0 0.0
    %6262 = vmatpush.msra.mxu0 0.0
    %6263 = vmatpush.msra.mxu0 0.0
    %6264 = vmatpush.msra.mxu0 0.0
    %6265 = vmatpush.msra.mxu0 0.0
    %6266 = vmatpush.msra.mxu0 %v1060
    %6267 = vmatpush.msra.mxu0 %v1044
    %6268 = vmatpush.msra.mxu0 %v1028
    %6269 = vmatpush.msra.mxu0 %v1012
    %6270 = vmatmul.f32.gmra.mxu0 %v6152
    %v6271 = vpop.f32.mrf.mxu0
    %v6272 = vadd.f32 0.0, %v6271
    %6273 = vdwg.mxu0
    %6274 = vmatpush.msra.mxu0 0.0
    %6275 = vmatpush.msra.mxu0 0.0
    %6276 = vmatpush.msra.mxu0 0.0
    %6277 = vmatpush.msra.mxu0 0.0
    %6278 = vmatpush.msra.mxu0 0.0
    %6279 = vmatpush.msra.mxu0 0.0
    %6280 = vmatpush.msra.mxu0 0.0
    %6281 = vmatpush.msra.mxu0 0.0
    %6282 = vmatpush.msra.mxu0 0.0
    %6283 = vmatpush.msra.mxu0 0.0
    %6284 = vmatpush.msra.mxu0 0.0
    %6285 = vmatpush.msra.mxu0 0.0
    %6286 = vmatpush.msra.mxu0 %v1061
    %6287 = vmatpush.msra.mxu0 %v1045
    %6288 = vmatpush.msra.mxu0 %v1029
    %6289 = vmatpush.msra.mxu0 %v1013
    %6290 = vmatmul.f32.gmra.mxu0 %v6152
    %v6291 = vpop.f32.mrf.mxu0
    %v6292 = vadd.f32 0.0, %v6291
    %6293 = vdwg.mxu0
    %6294 = vmatpush.msra.mxu0 0.0
    %6295 = vmatpush.msra.mxu0 0.0
    %6296 = vmatpush.msra.mxu0 0.0
    %6297 = vmatpush.msra.mxu0 0.0
    %6298 = vmatpush.msra.mxu0 0.0
    %6299 = vmatpush.msra.mxu0 0.0
    %6300 = vmatpush.msra.mxu0 0.0
    %6301 = vmatpush.msra.mxu0 0.0
    %6302 = vmatpush.msra.mxu0 0.0
    %6303 = vmatpush.msra.mxu0 0.0
    %6304 = vmatpush.msra.mxu0 0.0
    %6305 = vmatpush.msra.mxu0 0.0
    %6306 = vmatpush.msra.mxu0 %v1062
    %6307 = vmatpush.msra.mxu0 %v1046
    %6308 = vmatpush.msra.mxu0 %v1030
    %6309 = vmatpush.msra.mxu0 %v1014
    %6310 = vmatmul.f32.gmra.mxu0 %v6152
    %v6311 = vpop.f32.mrf.mxu0
    %v6312 = vadd.f32 0.0, %v6311
    %6313 = vdwg.mxu0
    %6314 = vmatpush.msra.mxu0 0.0
    %6315 = vmatpush.msra.mxu0 0.0
    %6316 = vmatpush.msra.mxu0 0.0
    %6317 = vmatpush.msra.mxu0 0.0
    %6318 = vmatpush.msra.mxu0 0.0
    %6319 = vmatpush.msra.mxu0 0.0
    %6320 = vmatpush.msra.mxu0 0.0
    %6321 = vmatpush.msra.mxu0 0.0
    %6322 = vmatpush.msra.mxu0 0.0
    %6323 = vmatpush.msra.mxu0 0.0
    %6324 = vmatpush.msra.mxu0 0.0
    %6325 = vmatpush.msra.mxu0 0.0
    %6326 = vmatpush.msra.mxu0 %v1063
    %6327 = vmatpush.msra.mxu0 %v1047
    %6328 = vmatpush.msra.mxu0 %v1031
    %6329 = vmatpush.msra.mxu0 %v1015
    %6330 = vmatmul.f32.gmra.mxu0 %v6152
    %v6331 = vpop.f32.mrf.mxu0
    %v6332 = vadd.f32 0.0, %v6331
    %6333 = vdwg.mxu0
    %6334 = vmatpush.msra.mxu0 0.0
    %6335 = vmatpush.msra.mxu0 0.0
    %6336 = vmatpush.msra.mxu0 0.0
    %6337 = vmatpush.msra.mxu0 0.0
    %6338 = vmatpush.msra.mxu0 0.0
    %6339 = vmatpush.msra.mxu0 0.0
    %6340 = vmatpush.msra.mxu0 0.0
    %6341 = vmatpush.msra.mxu0 0.0
    %6342 = vmatpush.msra.mxu0 0.0
    %6343 = vmatpush.msra.mxu0 0.0
    %6344 = vmatpush.msra.mxu0 0.0
    %6345 = vmatpush.msra.mxu0 0.0
    %6346 = vmatpush.msra.mxu0 %v1064
    %6347 = vmatpush.msra.mxu0 %v1048
    %6348 = vmatpush.msra.mxu0 %v1032
    %6349 = vmatpush.msra.mxu0 %v1016
    %6350 = vmatmul.f32.gmra.mxu0 %v6152
    %v6351 = vpop.f32.mrf.mxu0
    %v6352 = vadd.f32 0.0, %v6351
    %6353 = vdwg.mxu0
    %6354 = vmatpush.msra.mxu0 0.0
    %6355 = vmatpush.msra.mxu0 0.0
    %6356 = vmatpush.msra.mxu0 0.0
    %6357 = vmatpush.msra.mxu0 0.0
    %6358 = vmatpush.msra.mxu0 0.0
    %6359 = vmatpush.msra.mxu0 0.0
    %6360 = vmatpush.msra.mxu0 0.0
    %6361 = vmatpush.msra.mxu0 0.0
    %6362 = vmatpush.msra.mxu0 0.0
    %6363 = vmatpush.msra.mxu0 0.0
    %6364 = vmatpush.msra.mxu0 0.0
    %6365 = vmatpush.msra.mxu0 0.0
    %6366 = vmatpush.msra.mxu0 %v1065
    %6367 = vmatpush.msra.mxu0 %v1049
    %6368 = vmatpush.msra.mxu0 %v1033
    %6369 = vmatpush.msra.mxu0 %v1017
    %6370 = vmatmul.f32.gmra.mxu0 %v6152
    %v6371 = vpop.f32.mrf.mxu0
    %v6372 = vadd.f32 0.0, %v6371
    %6373 = vdwg.mxu0
    %6374 = vmatpush.msra.mxu0 0.0
    %6375 = vmatpush.msra.mxu0 0.0
    %6376 = vmatpush.msra.mxu0 0.0
    %6377 = vmatpush.msra.mxu0 0.0
    %6378 = vmatpush.msra.mxu0 0.0
    %6379 = vmatpush.msra.mxu0 0.0
    %6380 = vmatpush.msra.mxu0 0.0
    %6381 = vmatpush.msra.mxu0 0.0
    %6382 = vmatpush.msra.mxu0 0.0
    %6383 = vmatpush.msra.mxu0 0.0
    %6384 = vmatpush.msra.mxu0 0.0
    %6385 = vmatpush.msra.mxu0 0.0
    %6386 = vmatpush.msra.mxu0 %v1066
    %6387 = vmatpush.msra.mxu0 %v1050
    %6388 = vmatpush.msra.mxu0 %v1034
    %6389 = vmatpush.msra.mxu0 %v1018
    %6390 = vmatmul.f32.gmra.mxu0 %v6152
    %v6391 = vpop.f32.mrf.mxu0
    %v6392 = vadd.f32 0.0, %v6391
    %6393 = vdwg.mxu0
    %6394 = vmatpush.msra.mxu0 0.0
    %6395 = vmatpush.msra.mxu0 0.0
    %6396 = vmatpush.msra.mxu0 0.0
    %6397 = vmatpush.msra.mxu0 0.0
    %6398 = vmatpush.msra.mxu0 0.0
    %6399 = vmatpush.msra.mxu0 0.0
    %6400 = vmatpush.msra.mxu0 0.0
    %6401 = vmatpush.msra.mxu0 0.0
    %6402 = vmatpush.msra.mxu0 0.0
    %6403 = vmatpush.msra.mxu0 0.0
    %6404 = vmatpush.msra.mxu0 0.0
    %6405 = vmatpush.msra.mxu0 0.0
    %6406 = vmatpush.msra.mxu0 %v1067
    %6407 = vmatpush.msra.mxu0 %v1051
    %6408 = vmatpush.msra.mxu0 %v1035
    %6409 = vmatpush.msra.mxu0 %v1019
    %6410 = vmatmul.f32.gmra.mxu0 %v6152
    %v6411 = vpop.f32.mrf.mxu0
    %v6412 = vadd.f32 0.0, %v6411
    %6413 = vdwg.mxu0
    %6414 = vmatpush.msra.mxu0 0.0
    %6415 = vmatpush.msra.mxu0 0.0
    %6416 = vmatpush.msra.mxu0 0.0
    %6417 = vmatpush.msra.mxu0 0.0
    %6418 = vmatpush.msra.mxu0 0.0
    %6419 = vmatpush.msra.mxu0 0.0
    %6420 = vmatpush.msra.mxu0 0.0
    %6421 = vmatpush.msra.mxu0 0.0
    %6422 = vmatpush.msra.mxu0 0.0
    %6423 = vmatpush.msra.mxu0 0.0
    %6424 = vmatpush.msra.mxu0 0.0
    %6425 = vmatpush.msra.mxu0 0.0
    %6426 = vmatpush.msra.mxu0 %v1068
    %6427 = vmatpush.msra.mxu0 %v1052
    %6428 = vmatpush.msra.mxu0 %v1036
    %6429 = vmatpush.msra.mxu0 %v1020
    %6430 = vmatmul.f32.gmra.mxu0 %v6152
    %v6431 = vpop.f32.mrf.mxu0
    %v6432 = vadd.f32 0.0, %v6431
    %6433 = vdwg.mxu0
    %6434 = vmatpush.msra.mxu0 0.0
    %6435 = vmatpush.msra.mxu0 0.0
    %6436 = vmatpush.msra.mxu0 0.0
    %6437 = vmatpush.msra.mxu0 0.0
    %6438 = vmatpush.msra.mxu0 0.0
    %6439 = vmatpush.msra.mxu0 0.0
    %6440 = vmatpush.msra.mxu0 0.0
    %6441 = vmatpush.msra.mxu0 0.0
    %6442 = vmatpush.msra.mxu0 0.0
    %6443 = vmatpush.msra.mxu0 0.0
    %6444 = vmatpush.msra.mxu0 0.0
    %6445 = vmatpush.msra.mxu0 0.0
    %6446 = vmatpush.msra.mxu0 %v1069
    %6447 = vmatpush.msra.mxu0 %v1053
    %6448 = vmatpush.msra.mxu0 %v1037
    %6449 = vmatpush.msra.mxu0 %v1021
    %6450 = vmatmul.f32.gmra.mxu0 %v6152
    %v6451 = vpop.f32.mrf.mxu0
    %v6452 = vadd.f32 0.0, %v6451
    %6453 = vdwg.mxu0
    %6454 = vmatpush.msra.mxu0 0.0
    %6455 = vmatpush.msra.mxu0 0.0
    %6456 = vmatpush.msra.mxu0 0.0
    %6457 = vmatpush.msra.mxu0 0.0
    %6458 = vmatpush.msra.mxu0 0.0
    %6459 = vmatpush.msra.mxu0 0.0
    %6460 = vmatpush.msra.mxu0 0.0
    %6461 = vmatpush.msra.mxu0 0.0
    %6462 = vmatpush.msra.mxu0 0.0
    %6463 = vmatpush.msra.mxu0 0.0
    %6464 = vmatpush.msra.mxu0 0.0
    %6465 = vmatpush.msra.mxu0 0.0
    %6466 = vmatpush.msra.mxu0 %v1070
    %6467 = vmatpush.msra.mxu0 %v1054
    %6468 = vmatpush.msra.mxu0 %v1038
    %6469 = vmatpush.msra.mxu0 %v1022
    %6470 = vmatmul.f32.gmra.mxu0 %v6152
    %v6471 = vpop.f32.mrf.mxu0
    %v6472 = vadd.f32 0.0, %v6471
    %6473 = vdwg.mxu0
    %v6474 = vmul.f32 %v5848, %v6172
    %v6475 = vmul.f32 %v5868, %v6192
    %v6476 = vmul.f32 %v5888, %v6212
    %v6477 = vmul.f32 %v5908, %v6232
    %v6478 = vmul.f32 %v5928, %v6252
    %v6479 = vmul.f32 %v5948, %v6272
    %v6480 = vmul.f32 %v5968, %v6292
    %v6481 = vmul.f32 %v5988, %v6312
    %v6482 = vmul.f32 %v6008, %v6332
    %v6483 = vmul.f32 %v6028, %v6352
    %v6484 = vmul.f32 %v6048, %v6372
    %v6485 = vmul.f32 %v6068, %v6392
    %v6486 = vmul.f32 %v6088, %v6412
    %v6487 = vmul.f32 %v6108, %v6432
    %v6488 = vmul.f32 %v6128, %v6452
    %v6489 = vmul.f32 %v6148, %v6472
    %v6490 = vadd.f32 %v5810, %v6474
    %v6491 = vadd.f32 %v5811, %v6475
    %v6492 = vadd.f32 %v5812, %v6476
    %v6493 = vadd.f32 %v5813, %v6477
    %v6494 = vadd.f32 %v5814, %v6478
    %v6495 = vadd.f32 %v5815, %v6479
    %v6496 = vadd.f32 %v5816, %v6480
    %v6497 = vadd.f32 %v5817, %v6481
    %v6498 = vadd.f32 %v5818, %v6482
    %v6499 = vadd.f32 %v5819, %v6483
    %v6500 = vadd.f32 %v5820, %v6484
    %v6501 = vadd.f32 %v5821, %v6485
    %v6502 = vadd.f32 %v5822, %v6486
    %v6503 = vadd.f32 %v5823, %v6487
    %v6504 = vadd.f32 %v5824, %v6488
    %v6505 = vadd.f32 %v5825, %v6489
    %6506 = vst [vmem:[%s8] sm:$0xff] %v6490
    %6507 = vst [vmem:[%s8 + $0x8] sm:$0xff] %v6491
    %6508 = vst [vmem:[%s8 + $0x10] sm:$0xff] %v6492
    %6509 = vst [vmem:[%s8 + $0x18] sm:$0xff] %v6493
    %6510 = vst [vmem:[%s8 + $0x20] sm:$0xff] %v6494
    %6511 = vst [vmem:[%s8 + $0x28] sm:$0xff] %v6495
    %6512 = vst [vmem:[%s8 + $0x30] sm:$0xff] %v6496
    %6513 = vst [vmem:[%s8 + $0x38] sm:$0xff] %v6497
    %6514 = vst [vmem:[%s8 + $0x40] sm:$0xff] %v6498
    %6515 = vst [vmem:[%s8 + $0x48] sm:$0xff] %v6499
    %6516 = vst [vmem:[%s8 + $0x50] sm:$0xff] %v6500
    %6517 = vst [vmem:[%s8 + $0x58] sm:$0xff] %v6501
    %6518 = vst [vmem:[%s8 + $0x60] sm:$0xff] %v6502
    %6519 = vst [vmem:[%s8 + $0x68] sm:$0xff] %v6503
    %6520 = vst [vmem:[%s8 + $0x70] sm:$0xff] %v6504
    %6521 = vst [vmem:[%s8 + $0x78] sm:$0xff] %v6505
    // Predicated region
    $region54: #{meta_recommender_forward.1} parent=1 // pred_check
      _
    $region55: #{meta_recommender_forward.1} parent=1 // pred_check_branch
      %6523 = sbr.rel (0) target = $region57
    $region56: #{meta_recommender_forward.1} parent=1 // pred_region
      _
    $region57: #{meta_recommender_forward.1} parent=1 // pred_fallthru
      _
    // Predicated region
    $region58: #{meta_recommender_forward.1} parent=1 // pred_check
      _
    $region59: #{meta_recommender_forward.1} parent=1 // pred_check_branch
      %6525 = sbr.rel (0) target = $region61
    $region60: #{meta_recommender_forward.1} parent=1 // pred_region
      _
    $region61: #{meta_recommender_forward.1} parent=1 // pred_fallthru
      _
    // Predicated region
    $region62: #{meta_recommender_forward.1} parent=1 // pred_check
      _
    $region63: #{meta_recommender_forward.1} parent=1 // pred_check_branch
      %6527 = sbr.rel (0) target = $region65
    $region64: #{meta_recommender_forward.1} parent=1 // pred_region
      _
    $region65: #{meta_recommender_forward.1} parent=1 // pred_fallthru
      _
    // Predicated region
    $region66: #{meta_recommender_forward.1} parent=1 // pred_check
      _
    $region67: #{meta_recommender_forward.1} parent=1 // pred_check_branch
      %6529 = sbr.rel (0) target = $region69
    $region68: #{meta_recommender_forward.1} parent=1 // pred_region
      _
    $region69: #{meta_recommender_forward.1} parent=1 // pred_fallthru
      _
    %6530 = vsyncpa [#allocation3], 1
    %6531 = vsyncpa [#allocation5], 1
    %6532 = vsyncpa [#allocation8], 1
    %6533 = vsyncpa [#allocation11], 1

</llo_original>
